<compile_context>
chip_gen: v6e
topology: v6e:2x2x1
jax: 0.10.0
libtpu: 0.0.40
codegen_flags: <defaults>
</compile_context>

<pallas_src>
import functools

import jax
import jax.numpy as jnp
import numpy as np
from jax.experimental import pallas as pl
from jax.experimental.pallas import tpu as pltpu

BN_EPS = 1e-5
K = 7      # conv kernel size
PAD = 3    # conv spatial padding


def gam_attention_kernel(x_ref, w1_ref, b1_ref, w2_ref, b2_ref,
                         wc1_ref, bc1_ref, wc2_ref, bc2_ref,
                         out_ref, pad1_ref, pad2_ref, *, H, W):
    """Whole GAM_Attention forward for one batch element.

    x_ref   : (1, H*W, C)          input activations (VMEM), spatially pre-flattened
    w1/b1   : (C, Cr) / (1, Cr)    channel-attention Linear 1
    w2/b2   : (Cr, C) / (1, C)     channel-attention Linear 2
    wc1/bc1 : (7, 7*C, Cr)/(1,Cr)  conv1 7x7 weights (per vertical tap), BN1 folded in
    wc2/bc2 : (7, 7*Cr, C)/(1,C)   conv2 7x7 weights (per vertical tap), BN2 folded in
    out_ref : (1, H*W, C)
    pad1/pad2: VMEM halo scratch (H+6, W+6, C) / (H+6, W+6, Cr)
    """
    _, HW, C = x_ref.shape
    Cr = w1_ref.shape[1]

    x = x_ref[0].astype(jnp.float32)                          # (HW, C) — no reshape needed

    # ---- channel attention: per-pixel 2-layer MLP over channels (no sigmoid, per spec) ----
    h = jnp.dot(x, w1_ref[...], preferred_element_type=jnp.float32) + b1_ref[...]
    h = jnp.maximum(h, 0.0)
    att = jnp.dot(h, w2_ref[...], preferred_element_type=jnp.float32) + b2_ref[...]
    x1 = x * att                                              # x = x * x_channel_att

    # ---- 7x7 conv (+ folded BN): unfold horizontal taps once, accumulate vertical taps ----
    def conv7x7(act, cin, pad_ref, w_ref_, b_ref_):
        # act: (HW, cin) f32 -> (HW, cout) f32 = BN(conv7x7(act, padding=3))
        Wp = W + 2 * PAD
        zrow = jnp.zeros((PAD, Wp, cin), jnp.float32)
        zcol = jnp.zeros((H, PAD, cin), jnp.float32)
        # Zero-padded halo lives in a persistent VMEM scratch.  All stores are full-width
        # along the tiled (sublane/lane) dims; only the untiled leading axis is offset,
        # so no masked partial stores.
        pad_ref[0:PAD, :, :] = zrow
        pad_ref[PAD + H:, :, :] = zrow
        pad_ref[PAD:PAD + H, :, :] = jnp.concatenate(
            [zcol, act.reshape(H, W, cin), zcol], axis=1)
        yp = pad_ref[...]                                     # (H+6, W+6, cin)

        # Horizontal unfold (done ONCE): 7 sublane-window slices -> lane axis packs (dw, ci).
        yp_w = jnp.concatenate([yp[:, dw:dw + W, :] for dw in range(K)], axis=-1)
        # Vertical accumulation: 7 GEMMs, K = 7*cin each (same MXU tile count as one
        # K = 49*cin GEMM, without materializing the 49*cin-wide im2col matrix).
        acc = jnp.dot(yp_w[0:H].reshape(HW, K * cin), w_ref_[0],
                      preferred_element_type=jnp.float32) + b_ref_[...]
        for dh in range(1, K):
            acc = acc + jnp.dot(yp_w[dh:dh + H].reshape(HW, K * cin), w_ref_[dh],
                                preferred_element_type=jnp.float32)
        return acc

    s1 = jnp.maximum(conv7x7(x1, C, pad1_ref, wc1_ref, bc1_ref), 0.0)   # conv1+BN1+ReLU
    gate = jax.nn.sigmoid(conv7x7(s1, Cr, pad2_ref, wc2_ref, bc2_ref))  # conv2+BN2+sigmoid

    # TODO(synk): operands kept in f32 (not bf16) so the 1e-4-class check against the f32
    # reference holds; cast the unfolded slabs/weights to bf16 for peak MXU rate on v6e/v7x.
    # TODO(synk): a lane-dense (H, W*C) output slab would give unmasked vst / denser DMA,
    # but needs a minor-dim-changing relayout from the (HW, C) compute layout in-kernel.
    out_ref[0] = (x1 * gate).astype(out_ref.dtype)


def gam_attention(x, params):
    """x: (N, H, W, C) NHWC.  Returns (N, H, W, C)."""
    N, H, W, C = x.shape
    w1, b1, w2, b2 = params["w1"], params["b1"], params["w2"], params["b2"]
    wc1, bc1 = params["wc1"], params["bc1"]
    g1, be1, m1, v1 = params["g1"], params["be1"], params["m1"], params["v1"]
    wc2, bc2 = params["wc2"], params["bc2"]
    g2, be2, m2, v2 = params["g2"], params["be2"], params["m2"], params["v2"]

    Cr = w1.shape[1]
    Cout = wc2.shape[-1]
    HW = H * W
    assert Cout == C, "final elementwise gate requires out_channels == in_channels"

    # Fold eval-mode BatchNorm into the conv weights/biases (host side, free):
    #   BN(conv(x) + b) = conv(x) * s + ((b - mean) * s + beta),  s = gamma * rsqrt(var + eps)
    s1 = g1 * jax.lax.rsqrt(v1 + BN_EPS)
    wc1_eff = (wc1 * s1).reshape(K, K * C, Cr)                # per-vertical-tap layout
    bc1_eff = ((bc1 - m1) * s1 + be1).reshape(1, Cr)
    s2 = g2 * jax.lax.rsqrt(v2 + BN_EPS)
    wc2_eff = (wc2 * s2).reshape(K, K * Cr, Cout)
    bc2_eff = ((bc2 - m2) * s2 + be2).reshape(1, Cout)

    kernel = functools.partial(gam_attention_kernel, H=H, W=W)

    out_flat = pl.pallas_call(
        kernel,
        out_shape=jax.ShapeDtypeStruct((N, HW, Cout), x.dtype),
        grid=(N,),
        in_specs=[
            pl.BlockSpec((1, HW, C), lambda n: (n, 0, 0)),
            pl.BlockSpec((C, Cr), lambda n: (0, 0)),
            pl.BlockSpec((1, Cr), lambda n: (0, 0)),
            pl.BlockSpec((Cr, C), lambda n: (0, 0)),
            pl.BlockSpec((1, C), lambda n: (0, 0)),
            pl.BlockSpec((K, K * C, Cr), lambda n: (0, 0, 0)),
            pl.BlockSpec((1, Cr), lambda n: (0, 0)),
            pl.BlockSpec((K, K * Cr, Cout), lambda n: (0, 0, 0)),
            pl.BlockSpec((1, Cout), lambda n: (0, 0)),
        ],
        out_specs=pl.BlockSpec((1, HW, Cout), lambda n: (n, 0, 0)),
        scratch_shapes=[
            pltpu.VMEM((H + 2 * PAD, W + 2 * PAD, C), jnp.float32),
            pltpu.VMEM((H + 2 * PAD, W + 2 * PAD, Cr), jnp.float32),
        ],
        compiler_params=pltpu.CompilerParams(
            # batch axis is 'parallel' so v7x's two TensorCores split it (no-op on v5e/v6e)
            dimension_semantics=("parallel",),
            vmem_limit_bytes=64 * 1024 * 1024,
        ),
    )(x.reshape(N, HW, C), w1, b1.reshape(1, Cr), w2, b2.reshape(1, C),
      wc1_eff, bc1_eff, wc2_eff, bc2_eff)

    return out_flat.reshape(N, H, W, Cout)


def gam_attention_ref(x, params):
    """Pure-JAX reference (same semantics) for correctness checking."""
    N, H, W, C = x.shape
    h = jnp.maximum(x.reshape(N, H * W, C) @ params["w1"] + params["b1"], 0.0)
    att = (h @ params["w2"] + params["b2"]).reshape(N, H, W, C)
    x1 = x * att

    def conv_bn(y, w, b, g, beta, mean, var):
        z = jax.lax.conv_general_dilated(
            y, w, window_strides=(1, 1), padding=((PAD, PAD), (PAD, PAD)),
            dimension_numbers=("NHWC", "HWIO", "NHWC")) + b
        return (z - mean) * (g * jax.lax.rsqrt(var + BN_EPS)) + beta

    y = jnp.maximum(conv_bn(x1, params["wc1"], params["bc1"], params["g1"],
                            params["be1"], params["m1"], params["v1"]), 0.0)
    z = conv_bn(y, params["wc2"], params["bc2"], params["g2"],
                params["be2"], params["m2"], params["v2"])
    return x1 * jax.nn.sigmoid(z)


if __name__ == "__main__":
    # GAM_Attention(in_channels=16, out_channels=16, rate=4); batch=2, spatial 16x16.
    N, H, W, C = 2, 16, 16, 16          # NHWC (== torch NCHW [2,16,16,16] transposed)
    rate = 4
    Cr = C // rate
    Cout = C

    key = jax.random.PRNGKey(0)
    ks = jax.random.split(key, 17)
    x = jax.random.normal(ks[0], (N, H, W, C), jnp.float32)

    params = dict(
        # channel attention: Linear(C->Cr), ReLU, Linear(Cr->C)
        w1=0.3 * jax.random.normal(ks[1], (C, Cr), jnp.float32),
        b1=0.1 * jax.random.normal(ks[2], (Cr,), jnp.float32),
        w2=0.3 * jax.random.normal(ks[3], (Cr, C), jnp.float32),
        b2=0.1 * jax.random.normal(ks[4], (C,), jnp.float32),
        # spatial attention: Conv7x7(C->Cr)+BN+ReLU, Conv7x7(Cr->Cout)+BN, then sigmoid
        wc1=0.1 * jax.random.normal(ks[5], (K, K, C, Cr), jnp.float32),
        bc1=0.1 * jax.random.normal(ks[6], (Cr,), jnp.float32),
        g1=1.0 + 0.1 * jax.random.normal(ks[7], (Cr,), jnp.float32),
        be1=0.1 * jax.random.normal(ks[8], (Cr,), jnp.float32),
        m1=0.1 * jax.random.normal(ks[9], (Cr,), jnp.float32),
        v1=0.5 + jnp.abs(jax.random.normal(ks[10], (Cr,), jnp.float32)),
        wc2=0.1 * jax.random.normal(ks[11], (K, K, Cr, Cout), jnp.float32),
        bc2=0.1 * jax.random.normal(ks[12], (Cout,), jnp.float32),
        g2=1.0 + 0.1 * jax.random.normal(ks[13], (Cout,), jnp.float32),
        be2=0.1 * jax.random.normal(ks[14], (Cout,), jnp.float32),
        m2=0.1 * jax.random.normal(ks[15], (Cout,), jnp.float32),
        v2=0.5 + jnp.abs(jax.random.normal(ks[16], (Cout,), jnp.float32)),
    )

    out = gam_attention(x, params)
    out = jax.block_until_ready(out)

    ref = gam_attention_ref(x, params)
    np.testing.assert_allclose(np.asarray(out), np.asarray(ref), rtol=2e-4, atol=2e-4)
    assert out.shape == (N, H, W, Cout)

    print("KERNEL_OK")
</pallas_src>

<mosaic_0001>
module attributes {stable_mosaic.version = 11 : i64} {
  func.func @gam_attention_kernel(%arg0: i32, %arg1: memref<1x256x16xf32, #tpu.memory_space<vmem>>, %arg2: memref<16x4xf32, #tpu.memory_space<vmem>>, %arg3: memref<1x4xf32, #tpu.memory_space<vmem>>, %arg4: memref<4x16xf32, #tpu.memory_space<vmem>>, %arg5: memref<1x16xf32, #tpu.memory_space<vmem>>, %arg6: memref<7x112x4xf32, #tpu.memory_space<vmem>>, %arg7: memref<1x4xf32, #tpu.memory_space<vmem>>, %arg8: memref<7x28x16xf32, #tpu.memory_space<vmem>>, %arg9: memref<1x16xf32, #tpu.memory_space<vmem>>, %arg10: memref<1x256x16xf32, #tpu.memory_space<vmem>>, %arg11: memref<22x22x16xf32, #tpu.memory_space<vmem>>, %arg12: memref<22x22x4xf32, #tpu.memory_space<vmem>>) attributes {dimension_semantics = [#tpu.dimension_semantics<parallel>], iteration_bounds = array<i64: 2>, scalar_prefetch = 0 : i64, scratch_operands = 2 : i64, tpu.core_type = #tpu.core_type<tc>, window_params = [{transform_indices = @transform_0, window_bounds = array<i64: 1, 256, 16>}, {pipeline_mode = #tpu.pipeline_mode<synchronous>, transform_indices = @transform_1, window_bounds = array<i64: 16, 4>}, {pipeline_mode = #tpu.pipeline_mode<synchronous>, transform_indices = @transform_2, window_bounds = array<i64: 1, 4>}, {pipeline_mode = #tpu.pipeline_mode<synchronous>, transform_indices = @transform_3, window_bounds = array<i64: 4, 16>}, {pipeline_mode = #tpu.pipeline_mode<synchronous>, transform_indices = @transform_4, window_bounds = array<i64: 1, 16>}, {pipeline_mode = #tpu.pipeline_mode<synchronous>, transform_indices = @transform_5, window_bounds = array<i64: 7, 112, 4>}, {pipeline_mode = #tpu.pipeline_mode<synchronous>, transform_indices = @transform_6, window_bounds = array<i64: 1, 4>}, {pipeline_mode = #tpu.pipeline_mode<synchronous>, transform_indices = @transform_7, window_bounds = array<i64: 7, 28, 16>}, {pipeline_mode = #tpu.pipeline_mode<synchronous>, transform_indices = @transform_8, window_bounds = array<i64: 1, 16>}, {transform_indices = @transform_9, window_bounds = array<i64: 1, 256, 16>}]} {
    %c0 = arith.constant 0 : index
    %c0_0 = arith.constant 0 : index
    %c0_1 = arith.constant 0 : index
    %0 = vector.load %arg1[%c0, %c0_0, %c0_1] : memref<1x256x16xf32, #tpu.memory_space<vmem>>, vector<1x256x16xf32>
    %1 = vector.shape_cast %0 : vector<1x256x16xf32> to vector<256x16xf32>
    %c0_2 = arith.constant 0 : index
    %c0_3 = arith.constant 0 : index
    %2 = vector.load %arg2[%c0_2, %c0_3] : memref<16x4xf32, #tpu.memory_space<vmem>>, vector<16x4xf32>
    %cst = arith.constant dense<0.000000e+00> : vector<256x4xf32>
    %3 = tpu.matmul %1, %2, %cst {dimension_numbers = #tpu.dot_dimension_numbers<[1], [0], [0], [1], [0, 0, 1, 1], [], []>} : vector<256x16xf32>, vector<16x4xf32>, vector<256x4xf32> -> vector<256x4xf32>
    %c0_4 = arith.constant 0 : index
    %c0_5 = arith.constant 0 : index
    %4 = vector.load %arg3[%c0_4, %c0_5] : memref<1x4xf32, #tpu.memory_space<vmem>>, vector<1x4xf32>
    %5 = vector.broadcast %4 : vector<1x4xf32> to vector<256x4xf32>
    %6 = arith.addf %3, %5 : vector<256x4xf32>
    %cst_6 = arith.constant 0.000000e+00 : f32
    %7 = vector.broadcast %cst_6 : f32 to vector<256x4xf32>
    %8 = arith.maximumf %6, %7 : vector<256x4xf32>
    %c0_7 = arith.constant 0 : index
    %c0_8 = arith.constant 0 : index
    %9 = vector.load %arg4[%c0_7, %c0_8] : memref<4x16xf32, #tpu.memory_space<vmem>>, vector<4x16xf32>
    %cst_9 = arith.constant dense<0.000000e+00> : vector<256x16xf32>
    %10 = tpu.matmul %8, %9, %cst_9 {dimension_numbers = #tpu.dot_dimension_numbers<[1], [0], [0], [1], [0, 0, 1, 1], [], []>} : vector<256x4xf32>, vector<4x16xf32>, vector<256x16xf32> -> vector<256x16xf32>
    %c0_10 = arith.constant 0 : index
    %c0_11 = arith.constant 0 : index
    %11 = vector.load %arg5[%c0_10, %c0_11] : memref<1x16xf32, #tpu.memory_space<vmem>>, vector<1x16xf32>
    %12 = vector.broadcast %11 : vector<1x16xf32> to vector<256x16xf32>
    %13 = arith.addf %10, %12 : vector<256x16xf32>
    %14 = arith.mulf %1, %13 : vector<256x16xf32>
    %cst_12 = arith.constant 0.000000e+00 : f32
    %15 = vector.broadcast %cst_12 : f32 to vector<3x22x16xf32>
    %cst_13 = arith.constant 0.000000e+00 : f32
    %16 = vector.broadcast %cst_13 : f32 to vector<16x3x16xf32>
    %c0_14 = arith.constant 0 : index
    %c0_15 = arith.constant 0 : index
    %c0_16 = arith.constant 0 : index
    %17 = vector.load %arg11[%c0_14, %c0_15, %c0_16] : memref<22x22x16xf32, #tpu.memory_space<vmem>>, vector<3x22x16xf32>
    tpu.vector_store %arg11[%c0_14, %c0_15, %c0_16], %15 {strides = array<i32>} : memref<22x22x16xf32, #tpu.memory_space<vmem>>, vector<3x22x16xf32>,
    %c19 = arith.constant 19 : index
    %c0_17 = arith.constant 0 : index
    %c0_18 = arith.constant 0 : index
    %18 = vector.load %arg11[%c19, %c0_17, %c0_18] : memref<22x22x16xf32, #tpu.memory_space<vmem>>, vector<3x22x16xf32>
    tpu.vector_store %arg11[%c19, %c0_17, %c0_18], %15 {strides = array<i32>} : memref<22x22x16xf32, #tpu.memory_space<vmem>>, vector<3x22x16xf32>,
    %19 = vector.shape_cast %14 : vector<256x16xf32> to vector<16x16x16xf32>
    %20 = tpu.concatenate %16, %19, %16 in 1 : vector<16x3x16xf32>, vector<16x16x16xf32>, vector<16x3x16xf32> -> vector<16x22x16xf32>
    %c3 = arith.constant 3 : index
    %c0_19 = arith.constant 0 : index
    %c0_20 = arith.constant 0 : index
    %21 = vector.load %arg11[%c3, %c0_19, %c0_20] : memref<22x22x16xf32, #tpu.memory_space<vmem>>, vector<16x22x16xf32>
    tpu.vector_store %arg11[%c3, %c0_19, %c0_20], %20 {strides = array<i32>} : memref<22x22x16xf32, #tpu.memory_space<vmem>>, vector<16x22x16xf32>,
    %c0_21 = arith.constant 0 : index
    %c0_22 = arith.constant 0 : index
    %c0_23 = arith.constant 0 : index
    %22 = vector.load %arg11[%c0_21, %c0_22, %c0_23] : memref<22x22x16xf32, #tpu.memory_space<vmem>>, vector<22x22x16xf32>
    %23 = vector.extract_strided_slice %22 {offsets = [0, 0, 0], sizes = [22, 16, 16], strides = [1, 1, 1]} : vector<22x22x16xf32> to vector<22x16x16xf32>
    %24 = vector.extract_strided_slice %22 {offsets = [0, 1, 0], sizes = [22, 16, 16], strides = [1, 1, 1]} : vector<22x22x16xf32> to vector<22x16x16xf32>
    %25 = vector.extract_strided_slice %22 {offsets = [0, 2, 0], sizes = [22, 16, 16], strides = [1, 1, 1]} : vector<22x22x16xf32> to vector<22x16x16xf32>
    %26 = vector.extract_strided_slice %22 {offsets = [0, 3, 0], sizes = [22, 16, 16], strides = [1, 1, 1]} : vector<22x22x16xf32> to vector<22x16x16xf32>
    %27 = vector.extract_strided_slice %22 {offsets = [0, 4, 0], sizes = [22, 16, 16], strides = [1, 1, 1]} : vector<22x22x16xf32> to vector<22x16x16xf32>
    %28 = vector.extract_strided_slice %22 {offsets = [0, 5, 0], sizes = [22, 16, 16], strides = [1, 1, 1]} : vector<22x22x16xf32> to vector<22x16x16xf32>
    %29 = vector.extract_strided_slice %22 {offsets = [0, 6, 0], sizes = [22, 16, 16], strides = [1, 1, 1]} : vector<22x22x16xf32> to vector<22x16x16xf32>
    %30 = tpu.concatenate %23, %24, %25, %26, %27, %28, %29 in 2 : vector<22x16x16xf32>, vector<22x16x16xf32>, vector<22x16x16xf32>, vector<22x16x16xf32>, vector<22x16x16xf32>, vector<22x16x16xf32>, vector<22x16x16xf32> -> vector<22x16x112xf32>
    %31 = vector.extract_strided_slice %30 {offsets = [0, 0, 0], sizes = [16, 16, 112], strides = [1, 1, 1]} : vector<22x16x112xf32> to vector<16x16x112xf32>
    %32 = vector.shape_cast %31 : vector<16x16x112xf32> to vector<256x112xf32>
    %c0_24 = arith.constant 0 : index
    %c0_25 = arith.constant 0 : index
    %c0_26 = arith.constant 0 : index
    %33 = vector.load %arg6[%c0_24, %c0_25, %c0_26] : memref<7x112x4xf32, #tpu.memory_space<vmem>>, vector<1x112x4xf32>
    %34 = vector.shape_cast %33 : vector<1x112x4xf32> to vector<112x4xf32>
    %cst_27 = arith.constant dense<0.000000e+00> : vector<256x4xf32>
    %35 = tpu.matmul %32, %34, %cst_27 {dimension_numbers = #tpu.dot_dimension_numbers<[1], [0], [0], [1], [0, 0, 1, 1], [], []>} : vector<256x112xf32>, vector<112x4xf32>, vector<256x4xf32> -> vector<256x4xf32>
    %c0_28 = arith.constant 0 : index
    %c0_29 = arith.constant 0 : index
    %36 = vector.load %arg7[%c0_28, %c0_29] : memref<1x4xf32, #tpu.memory_space<vmem>>, vector<1x4xf32>
    %37 = vector.broadcast %36 : vector<1x4xf32> to vector<256x4xf32>
    %38 = arith.addf %35, %37 : vector<256x4xf32>
    %39 = vector.extract_strided_slice %30 {offsets = [1, 0, 0], sizes = [16, 16, 112], strides = [1, 1, 1]} : vector<22x16x112xf32> to vector<16x16x112xf32>
    %40 = vector.shape_cast %39 : vector<16x16x112xf32> to vector<256x112xf32>
    %c1 = arith.constant 1 : index
    %c0_30 = arith.constant 0 : index
    %c0_31 = arith.constant 0 : index
    %41 = vector.load %arg6[%c1, %c0_30, %c0_31] : memref<7x112x4xf32, #tpu.memory_space<vmem>>, vector<1x112x4xf32>
    %42 = vector.shape_cast %41 : vector<1x112x4xf32> to vector<112x4xf32>
    %cst_32 = arith.constant dense<0.000000e+00> : vector<256x4xf32>
    %43 = tpu.matmul %40, %42, %cst_32 {dimension_numbers = #tpu.dot_dimension_numbers<[1], [0], [0], [1], [0, 0, 1, 1], [], []>} : vector<256x112xf32>, vector<112x4xf32>, vector<256x4xf32> -> vector<256x4xf32>
    %44 = arith.addf %38, %43 : vector<256x4xf32>
    %45 = vector.extract_strided_slice %30 {offsets = [2, 0, 0], sizes = [16, 16, 112], strides = [1, 1, 1]} : vector<22x16x112xf32> to vector<16x16x112xf32>
    %46 = vector.shape_cast %45 : vector<16x16x112xf32> to vector<256x112xf32>
    %c2 = arith.constant 2 : index
    %c0_33 = arith.constant 0 : index
    %c0_34 = arith.constant 0 : index
    %47 = vector.load %arg6[%c2, %c0_33, %c0_34] : memref<7x112x4xf32, #tpu.memory_space<vmem>>, vector<1x112x4xf32>
    %48 = vector.shape_cast %47 : vector<1x112x4xf32> to vector<112x4xf32>
    %cst_35 = arith.constant dense<0.000000e+00> : vector<256x4xf32>
    %49 = tpu.matmul %46, %48, %cst_35 {dimension_numbers = #tpu.dot_dimension_numbers<[1], [0], [0], [1], [0, 0, 1, 1], [], []>} : vector<256x112xf32>, vector<112x4xf32>, vector<256x4xf32> -> vector<256x4xf32>
    %50 = arith.addf %44, %49 : vector<256x4xf32>
    %51 = vector.extract_strided_slice %30 {offsets = [3, 0, 0], sizes = [16, 16, 112], strides = [1, 1, 1]} : vector<22x16x112xf32> to vector<16x16x112xf32>
    %52 = vector.shape_cast %51 : vector<16x16x112xf32> to vector<256x112xf32>
    %c3_36 = arith.constant 3 : index
    %c0_37 = arith.constant 0 : index
    %c0_38 = arith.constant 0 : index
    %53 = vector.load %arg6[%c3_36, %c0_37, %c0_38] : memref<7x112x4xf32, #tpu.memory_space<vmem>>, vector<1x112x4xf32>
    %54 = vector.shape_cast %53 : vector<1x112x4xf32> to vector<112x4xf32>
    %cst_39 = arith.constant dense<0.000000e+00> : vector<256x4xf32>
    %55 = tpu.matmul %52, %54, %cst_39 {dimension_numbers = #tpu.dot_dimension_numbers<[1], [0], [0], [1], [0, 0, 1, 1], [], []>} : vector<256x112xf32>, vector<112x4xf32>, vector<256x4xf32> -> vector<256x4xf32>
    %56 = arith.addf %50, %55 : vector<256x4xf32>
    %57 = vector.extract_strided_slice %30 {offsets = [4, 0, 0], sizes = [16, 16, 112], strides = [1, 1, 1]} : vector<22x16x112xf32> to vector<16x16x112xf32>
    %58 = vector.shape_cast %57 : vector<16x16x112xf32> to vector<256x112xf32>
    %c4 = arith.constant 4 : index
    %c0_40 = arith.constant 0 : index
    %c0_41 = arith.constant 0 : index
    %59 = vector.load %arg6[%c4, %c0_40, %c0_41] : memref<7x112x4xf32, #tpu.memory_space<vmem>>, vector<1x112x4xf32>
    %60 = vector.shape_cast %59 : vector<1x112x4xf32> to vector<112x4xf32>
    %cst_42 = arith.constant dense<0.000000e+00> : vector<256x4xf32>
    %61 = tpu.matmul %58, %60, %cst_42 {dimension_numbers = #tpu.dot_dimension_numbers<[1], [0], [0], [1], [0, 0, 1, 1], [], []>} : vector<256x112xf32>, vector<112x4xf32>, vector<256x4xf32> -> vector<256x4xf32>
    %62 = arith.addf %56, %61 : vector<256x4xf32>
    %63 = vector.extract_strided_slice %30 {offsets = [5, 0, 0], sizes = [16, 16, 112], strides = [1, 1, 1]} : vector<22x16x112xf32> to vector<16x16x112xf32>
    %64 = vector.shape_cast %63 : vector<16x16x112xf32> to vector<256x112xf32>
    %c5 = arith.constant 5 : index
    %c0_43 = arith.constant 0 : index
    %c0_44 = arith.constant 0 : index
    %65 = vector.load %arg6[%c5, %c0_43, %c0_44] : memref<7x112x4xf32, #tpu.memory_space<vmem>>, vector<1x112x4xf32>
    %66 = vector.shape_cast %65 : vector<1x112x4xf32> to vector<112x4xf32>
    %cst_45 = arith.constant dense<0.000000e+00> : vector<256x4xf32>
    %67 = tpu.matmul %64, %66, %cst_45 {dimension_numbers = #tpu.dot_dimension_numbers<[1], [0], [0], [1], [0, 0, 1, 1], [], []>} : vector<256x112xf32>, vector<112x4xf32>, vector<256x4xf32> -> vector<256x4xf32>
    %68 = arith.addf %62, %67 : vector<256x4xf32>
    %69 = vector.extract_strided_slice %30 {offsets = [6, 0, 0], sizes = [16, 16, 112], strides = [1, 1, 1]} : vector<22x16x112xf32> to vector<16x16x112xf32>
    %70 = vector.shape_cast %69 : vector<16x16x112xf32> to vector<256x112xf32>
    %c6 = arith.constant 6 : index
    %c0_46 = arith.constant 0 : index
    %c0_47 = arith.constant 0 : index
    %71 = vector.load %arg6[%c6, %c0_46, %c0_47] : memref<7x112x4xf32, #tpu.memory_space<vmem>>, vector<1x112x4xf32>
    %72 = vector.shape_cast %71 : vector<1x112x4xf32> to vector<112x4xf32>
    %cst_48 = arith.constant dense<0.000000e+00> : vector<256x4xf32>
    %73 = tpu.matmul %70, %72, %cst_48 {dimension_numbers = #tpu.dot_dimension_numbers<[1], [0], [0], [1], [0, 0, 1, 1], [], []>} : vector<256x112xf32>, vector<112x4xf32>, vector<256x4xf32> -> vector<256x4xf32>
    %74 = arith.addf %68, %73 : vector<256x4xf32>
    %cst_49 = arith.constant 0.000000e+00 : f32
    %75 = vector.broadcast %cst_49 : f32 to vector<256x4xf32>
    %76 = arith.maximumf %74, %75 : vector<256x4xf32>
    %cst_50 = arith.constant 0.000000e+00 : f32
    %77 = vector.broadcast %cst_50 : f32 to vector<3x22x4xf32>
    %cst_51 = arith.constant 0.000000e+00 : f32
    %78 = vector.broadcast %cst_51 : f32 to vector<16x3x4xf32>
    %c0_52 = arith.constant 0 : index
    %c0_53 = arith.constant 0 : index
    %c0_54 = arith.constant 0 : index
    %79 = vector.load %arg12[%c0_52, %c0_53, %c0_54] : memref<22x22x4xf32, #tpu.memory_space<vmem>>, vector<3x22x4xf32>
    tpu.vector_store %arg12[%c0_52, %c0_53, %c0_54], %77 {strides = array<i32>} : memref<22x22x4xf32, #tpu.memory_space<vmem>>, vector<3x22x4xf32>,
    %c19_55 = arith.constant 19 : index
    %c0_56 = arith.constant 0 : index
    %c0_57 = arith.constant 0 : index
    %80 = vector.load %arg12[%c19_55, %c0_56, %c0_57] : memref<22x22x4xf32, #tpu.memory_space<vmem>>, vector<3x22x4xf32>
    tpu.vector_store %arg12[%c19_55, %c0_56, %c0_57], %77 {strides = array<i32>} : memref<22x22x4xf32, #tpu.memory_space<vmem>>, vector<3x22x4xf32>,
    %81 = vector.shape_cast %76 : vector<256x4xf32> to vector<16x16x4xf32>
    %82 = tpu.concatenate %78, %81, %78 in 1 : vector<16x3x4xf32>, vector<16x16x4xf32>, vector<16x3x4xf32> -> vector<16x22x4xf32>
    %c3_58 = arith.constant 3 : index
    %c0_59 = arith.constant 0 : index
    %c0_60 = arith.constant 0 : index
    %83 = vector.load %arg12[%c3_58, %c0_59, %c0_60] : memref<22x22x4xf32, #tpu.memory_space<vmem>>, vector<16x22x4xf32>
    tpu.vector_store %arg12[%c3_58, %c0_59, %c0_60], %82 {strides = array<i32>} : memref<22x22x4xf32, #tpu.memory_space<vmem>>, vector<16x22x4xf32>,
    %c0_61 = arith.constant 0 : index
    %c0_62 = arith.constant 0 : index
    %c0_63 = arith.constant 0 : index
    %84 = vector.load %arg12[%c0_61, %c0_62, %c0_63] : memref<22x22x4xf32, #tpu.memory_space<vmem>>, vector<22x22x4xf32>
    %85 = vector.extract_strided_slice %84 {offsets = [0, 0, 0], sizes = [22, 16, 4], strides = [1, 1, 1]} : vector<22x22x4xf32> to vector<22x16x4xf32>
    %86 = vector.extract_strided_slice %84 {offsets = [0, 1, 0], sizes = [22, 16, 4], strides = [1, 1, 1]} : vector<22x22x4xf32> to vector<22x16x4xf32>
    %87 = vector.extract_strided_slice %84 {offsets = [0, 2, 0], sizes = [22, 16, 4], strides = [1, 1, 1]} : vector<22x22x4xf32> to vector<22x16x4xf32>
    %88 = vector.extract_strided_slice %84 {offsets = [0, 3, 0], sizes = [22, 16, 4], strides = [1, 1, 1]} : vector<22x22x4xf32> to vector<22x16x4xf32>
    %89 = vector.extract_strided_slice %84 {offsets = [0, 4, 0], sizes = [22, 16, 4], strides = [1, 1, 1]} : vector<22x22x4xf32> to vector<22x16x4xf32>
    %90 = vector.extract_strided_slice %84 {offsets = [0, 5, 0], sizes = [22, 16, 4], strides = [1, 1, 1]} : vector<22x22x4xf32> to vector<22x16x4xf32>
    %91 = vector.extract_strided_slice %84 {offsets = [0, 6, 0], sizes = [22, 16, 4], strides = [1, 1, 1]} : vector<22x22x4xf32> to vector<22x16x4xf32>
    %92 = tpu.concatenate %85, %86, %87, %88, %89, %90, %91 in 2 : vector<22x16x4xf32>, vector<22x16x4xf32>, vector<22x16x4xf32>, vector<22x16x4xf32>, vector<22x16x4xf32>, vector<22x16x4xf32>, vector<22x16x4xf32> -> vector<22x16x28xf32>
    %93 = vector.extract_strided_slice %92 {offsets = [0, 0, 0], sizes = [16, 16, 28], strides = [1, 1, 1]} : vector<22x16x28xf32> to vector<16x16x28xf32>
    %94 = vector.shape_cast %93 : vector<16x16x28xf32> to vector<256x28xf32>
    %c0_64 = arith.constant 0 : index
    %c0_65 = arith.constant 0 : index
    %c0_66 = arith.constant 0 : index
    %95 = vector.load %arg8[%c0_64, %c0_65, %c0_66] : memref<7x28x16xf32, #tpu.memory_space<vmem>>, vector<1x28x16xf32>
    %96 = vector.shape_cast %95 : vector<1x28x16xf32> to vector<28x16xf32>
    %cst_67 = arith.constant dense<0.000000e+00> : vector<256x16xf32>
    %97 = tpu.matmul %94, %96, %cst_67 {dimension_numbers = #tpu.dot_dimension_numbers<[1], [0], [0], [1], [0, 0, 1, 1], [], []>} : vector<256x28xf32>, vector<28x16xf32>, vector<256x16xf32> -> vector<256x16xf32>
    %c0_68 = arith.constant 0 : index
    %c0_69 = arith.constant 0 : index
    %98 = vector.load %arg9[%c0_68, %c0_69] : memref<1x16xf32, #tpu.memory_space<vmem>>, vector<1x16xf32>
    %99 = vector.broadcast %98 : vector<1x16xf32> to vector<256x16xf32>
    %100 = arith.addf %97, %99 : vector<256x16xf32>
    %101 = vector.extract_strided_slice %92 {offsets = [1, 0, 0], sizes = [16, 16, 28], strides = [1, 1, 1]} : vector<22x16x28xf32> to vector<16x16x28xf32>
    %102 = vector.shape_cast %101 : vector<16x16x28xf32> to vector<256x28xf32>
    %c1_70 = arith.constant 1 : index
    %c0_71 = arith.constant 0 : index
    %c0_72 = arith.constant 0 : index
    %103 = vector.load %arg8[%c1_70, %c0_71, %c0_72] : memref<7x28x16xf32, #tpu.memory_space<vmem>>, vector<1x28x16xf32>
    %104 = vector.shape_cast %103 : vector<1x28x16xf32> to vector<28x16xf32>
    %cst_73 = arith.constant dense<0.000000e+00> : vector<256x16xf32>
    %105 = tpu.matmul %102, %104, %cst_73 {dimension_numbers = #tpu.dot_dimension_numbers<[1], [0], [0], [1], [0, 0, 1, 1], [], []>} : vector<256x28xf32>, vector<28x16xf32>, vector<256x16xf32> -> vector<256x16xf32>
    %106 = arith.addf %100, %105 : vector<256x16xf32>
    %107 = vector.extract_strided_slice %92 {offsets = [2, 0, 0], sizes = [16, 16, 28], strides = [1, 1, 1]} : vector<22x16x28xf32> to vector<16x16x28xf32>
    %108 = vector.shape_cast %107 : vector<16x16x28xf32> to vector<256x28xf32>
    %c2_74 = arith.constant 2 : index
    %c0_75 = arith.constant 0 : index
    %c0_76 = arith.constant 0 : index
    %109 = vector.load %arg8[%c2_74, %c0_75, %c0_76] : memref<7x28x16xf32, #tpu.memory_space<vmem>>, vector<1x28x16xf32>
    %110 = vector.shape_cast %109 : vector<1x28x16xf32> to vector<28x16xf32>
    %cst_77 = arith.constant dense<0.000000e+00> : vector<256x16xf32>
    %111 = tpu.matmul %108, %110, %cst_77 {dimension_numbers = #tpu.dot_dimension_numbers<[1], [0], [0], [1], [0, 0, 1, 1], [], []>} : vector<256x28xf32>, vector<28x16xf32>, vector<256x16xf32> -> vector<256x16xf32>
    %112 = arith.addf %106, %111 : vector<256x16xf32>
    %113 = vector.extract_strided_slice %92 {offsets = [3, 0, 0], sizes = [16, 16, 28], strides = [1, 1, 1]} : vector<22x16x28xf32> to vector<16x16x28xf32>
    %114 = vector.shape_cast %113 : vector<16x16x28xf32> to vector<256x28xf32>
    %c3_78 = arith.constant 3 : index
    %c0_79 = arith.constant 0 : index
    %c0_80 = arith.constant 0 : index
    %115 = vector.load %arg8[%c3_78, %c0_79, %c0_80] : memref<7x28x16xf32, #tpu.memory_space<vmem>>, vector<1x28x16xf32>
    %116 = vector.shape_cast %115 : vector<1x28x16xf32> to vector<28x16xf32>
    %cst_81 = arith.constant dense<0.000000e+00> : vector<256x16xf32>
    %117 = tpu.matmul %114, %116, %cst_81 {dimension_numbers = #tpu.dot_dimension_numbers<[1], [0], [0], [1], [0, 0, 1, 1], [], []>} : vector<256x28xf32>, vector<28x16xf32>, vector<256x16xf32> -> vector<256x16xf32>
    %118 = arith.addf %112, %117 : vector<256x16xf32>
    %119 = vector.extract_strided_slice %92 {offsets = [4, 0, 0], sizes = [16, 16, 28], strides = [1, 1, 1]} : vector<22x16x28xf32> to vector<16x16x28xf32>
    %120 = vector.shape_cast %119 : vector<16x16x28xf32> to vector<256x28xf32>
    %c4_82 = arith.constant 4 : index
    %c0_83 = arith.constant 0 : index
    %c0_84 = arith.constant 0 : index
    %121 = vector.load %arg8[%c4_82, %c0_83, %c0_84] : memref<7x28x16xf32, #tpu.memory_space<vmem>>, vector<1x28x16xf32>
    %122 = vector.shape_cast %121 : vector<1x28x16xf32> to vector<28x16xf32>
    %cst_85 = arith.constant dense<0.000000e+00> : vector<256x16xf32>
    %123 = tpu.matmul %120, %122, %cst_85 {dimension_numbers = #tpu.dot_dimension_numbers<[1], [0], [0], [1], [0, 0, 1, 1], [], []>} : vector<256x28xf32>, vector<28x16xf32>, vector<256x16xf32> -> vector<256x16xf32>
    %124 = arith.addf %118, %123 : vector<256x16xf32>
    %125 = vector.extract_strided_slice %92 {offsets = [5, 0, 0], sizes = [16, 16, 28], strides = [1, 1, 1]} : vector<22x16x28xf32> to vector<16x16x28xf32>
    %126 = vector.shape_cast %125 : vector<16x16x28xf32> to vector<256x28xf32>
    %c5_86 = arith.constant 5 : index
    %c0_87 = arith.constant 0 : index
    %c0_88 = arith.constant 0 : index
    %127 = vector.load %arg8[%c5_86, %c0_87, %c0_88] : memref<7x28x16xf32, #tpu.memory_space<vmem>>, vector<1x28x16xf32>
    %128 = vector.shape_cast %127 : vector<1x28x16xf32> to vector<28x16xf32>
    %cst_89 = arith.constant dense<0.000000e+00> : vector<256x16xf32>
    %129 = tpu.matmul %126, %128, %cst_89 {dimension_numbers = #tpu.dot_dimension_numbers<[1], [0], [0], [1], [0, 0, 1, 1], [], []>} : vector<256x28xf32>, vector<28x16xf32>, vector<256x16xf32> -> vector<256x16xf32>
    %130 = arith.addf %124, %129 : vector<256x16xf32>
    %131 = vector.extract_strided_slice %92 {offsets = [6, 0, 0], sizes = [16, 16, 28], strides = [1, 1, 1]} : vector<22x16x28xf32> to vector<16x16x28xf32>
    %132 = vector.shape_cast %131 : vector<16x16x28xf32> to vector<256x28xf32>
    %c6_90 = arith.constant 6 : index
    %c0_91 = arith.constant 0 : index
    %c0_92 = arith.constant 0 : index
    %133 = vector.load %arg8[%c6_90, %c0_91, %c0_92] : memref<7x28x16xf32, #tpu.memory_space<vmem>>, vector<1x28x16xf32>
    %134 = vector.shape_cast %133 : vector<1x28x16xf32> to vector<28x16xf32>
    %cst_93 = arith.constant dense<0.000000e+00> : vector<256x16xf32>
    %135 = tpu.matmul %132, %134, %cst_93 {dimension_numbers = #tpu.dot_dimension_numbers<[1], [0], [0], [1], [0, 0, 1, 1], [], []>} : vector<256x28xf32>, vector<28x16xf32>, vector<256x16xf32> -> vector<256x16xf32>
    %136 = arith.addf %130, %135 : vector<256x16xf32>
    %137 = arith.negf %136 : vector<256x16xf32>
    %138 = math.exp %137 : vector<256x16xf32>
    %cst_94 = arith.constant 1.000000e+00 : f32
    %139 = vector.broadcast %cst_94 : f32 to vector<256x16xf32>
    %140 = arith.addf %139, %138 : vector<256x16xf32>
    %141 = arith.divf %139, %140 : vector<256x16xf32>
    %142 = arith.mulf %14, %141 : vector<256x16xf32>
    %c0_95 = arith.constant 0 : index
    %c0_96 = arith.constant 0 : index
    %c0_97 = arith.constant 0 : index
    %143 = vector.load %arg10[%c0_95, %c0_96, %c0_97] : memref<1x256x16xf32, #tpu.memory_space<vmem>>, vector<1x256x16xf32>
    %144 = vector.shape_cast %143 : vector<1x256x16xf32> to vector<256x16xf32>
    %145 = vector.shape_cast %142 : vector<256x16xf32> to vector<1x256x16xf32>
    tpu.vector_store %arg10[%c0_95, %c0_96, %c0_97], %145 {strides = array<i32>} : memref<1x256x16xf32, #tpu.memory_space<vmem>>, vector<1x256x16xf32>,
    return
  }
  func.func @transform_0(%arg0: i32) -> (i32, i32, i32) {
    %c0_i32 = arith.constant 0 : i32
    %c0_i32_0 = arith.constant 0 : i32
    %c0_i32_1 = arith.constant 0 : i32
    return %arg0, %c0_i32, %c0_i32_0 : i32, i32, i32
  }
  func.func @transform_1(%arg0: i32) -> (i32, i32) {
    %c0_i32 = arith.constant 0 : i32
    %c0_i32_0 = arith.constant 0 : i32
    %c0_i32_1 = arith.constant 0 : i32
    return %c0_i32, %c0_i32_0 : i32, i32
  }
  func.func @transform_2(%arg0: i32) -> (i32, i32) {
    %c0_i32 = arith.constant 0 : i32
    %c0_i32_0 = arith.constant 0 : i32
    %c0_i32_1 = arith.constant 0 : i32
    return %c0_i32, %c0_i32_0 : i32, i32
  }
  func.func @transform_3(%arg0: i32) -> (i32, i32) {
    %c0_i32 = arith.constant 0 : i32
    %c0_i32_0 = arith.constant 0 : i32
    %c0_i32_1 = arith.constant 0 : i32
    return %c0_i32, %c0_i32_0 : i32, i32
  }
  func.func @transform_4(%arg0: i32) -> (i32, i32) {
    %c0_i32 = arith.constant 0 : i32
    %c0_i32_0 = arith.constant 0 : i32
    %c0_i32_1 = arith.constant 0 : i32
    return %c0_i32, %c0_i32_0 : i32, i32
  }
  func.func @transform_5(%arg0: i32) -> (i32, i32, i32) {
    %c0_i32 = arith.constant 0 : i32
    %c0_i32_0 = arith.constant 0 : i32
    %c0_i32_1 = arith.constant 0 : i32
    %c0_i32_2 = arith.constant 0 : i32
    return %c0_i32, %c0_i32_0, %c0_i32_1 : i32, i32, i32
  }
  func.func @transform_6(%arg0: i32) -> (i32, i32) {
    %c0_i32 = arith.constant 0 : i32
    %c0_i32_0 = arith.constant 0 : i32
    %c0_i32_1 = arith.constant 0 : i32
    return %c0_i32, %c0_i32_0 : i32, i32
  }
  func.func @transform_7(%arg0: i32) -> (i32, i32, i32) {
    %c0_i32 = arith.constant 0 : i32
    %c0_i32_0 = arith.constant 0 : i32
    %c0_i32_1 = arith.constant 0 : i32
    %c0_i32_2 = arith.constant 0 : i32
    return %c0_i32, %c0_i32_0, %c0_i32_1 : i32, i32, i32
  }
  func.func @transform_8(%arg0: i32) -> (i32, i32) {
    %c0_i32 = arith.constant 0 : i32
    %c0_i32_0 = arith.constant 0 : i32
    %c0_i32_1 = arith.constant 0 : i32
    return %c0_i32, %c0_i32_0 : i32, i32
  }
  func.func @transform_9(%arg0: i32) -> (i32, i32, i32) {
    %c0_i32 = arith.constant 0 : i32
    %c0_i32_0 = arith.constant 0 : i32
    %c0_i32_1 = arith.constant 0 : i32
    return %arg0, %c0_i32, %c0_i32_0 : i32, i32, i32
  }
}

</mosaic_0001>

<llo_original>
// kernel: tpu_custom_call.1
$region0: #{tpu_custom_call.1}
  #allocation0 [shape = 'u32[]', space=smem, size = 0x4, offset = 0x4, fixed_abs, tag = 'smem constant byte address 0x4 - core index']
  #allocation1 [shape = 'u32[144,128]{1,0:T(1,128)}', space=vmem, size = 0x12000, scoped, tag = 'internal scratch']
  #allocation2 [shape = 'f32[22,22,16]{2,1,0:T(8,128)}', space=vmem, size = 0x42000, scoped, tag = 'scratch operand']
  #allocation3 [shape = 'f32[22,22,4]{2,1,0:T(8,128)}', space=vmem, size = 0x42000, scoped, tag = 'scratch operand']
  %s0 = inlined_call_operand.vmem [shape: f32[2,256,16], index: 0, kind: input, shape index: {}]
  %s1 = inlined_call_operand.vmem [shape: f32[16,4], index: 1, kind: input, shape index: {}]
  %s2 = inlined_call_operand.vmem [shape: f32[1,4], index: 2, kind: input, shape index: {}]
  %s3 = inlined_call_operand.vmem [shape: f32[4,16], index: 3, kind: input, shape index: {}]
  %s4 = inlined_call_operand.vmem [shape: f32[1,16], index: 4, kind: input, shape index: {}]
  %s5 = inlined_call_operand.vmem [shape: f32[7,112,4], index: 5, kind: input, shape index: {}]
  %s6 = inlined_call_operand.vmem [shape: f32[1,4], index: 6, kind: input, shape index: {}]
  %s7 = inlined_call_operand.vmem [shape: f32[7,28,16], index: 7, kind: input, shape index: {}]
  %s8 = inlined_call_operand.vmem [shape: f32[1,16], index: 8, kind: input, shape index: {}]
  %s9 = inlined_call_operand.vmem [shape: f32[2,256,16], index: 9, kind: output, shape index: {}]
  %s10 = sld [smem:[#allocation0]]
  $region69: #{tpu_custom_call.1} parent=0
    _
  %s12 = ssub.s32 1, %s10
  %s13 = scalar_select 0, %s12, %s10
  loop: start=0, step=1, limit=4
  $region2: #{tpu_custom_call.1} parent=0 // loop_pre_header
    _
  $region3: #{tpu_custom_call.1} parent=0 // loop_header
    %s15 = sphi 0, %s19
    %p16 = scmp.ge.s32.totalorder %s15, 4
    %s25 = sphi 0, %s27
    %s28 = sphi 0, %s25
    %s29 = sphi 0, %s28
    %s45 = sphi 0, %s29
    %s49 = sphi 0, %s49
    %s51 = sphi 0, %s49
    %s52 = sphi 0, %s51
    %s66 = sphi 0, %s52
    %s70 = sphi 0, %s70
    %s72 = sphi 0, %s70
    %s73 = sphi 0, %s72
    %s87 = sphi 0, %s73
    %s91 = sphi 0, %s91
    %s93 = sphi 0, %s91
    %s94 = sphi 0, %s93
    %s108 = sphi 0, %s94
    %s112 = sphi 0, %s112
    %s114 = sphi 0, %s112
    %s115 = sphi 0, %s114
    %s129 = sphi 0, %s115
    %s133 = sphi 0, %s133
    %s135 = sphi 0, %s133
    %s136 = sphi 0, %s135
    %s150 = sphi 0, %s136
    %s154 = sphi 0, %s154
    %s156 = sphi 0, %s154
    %s157 = sphi 0, %s156
    %s171 = sphi 0, %s157
    %s175 = sphi 0, %s175
    %s177 = sphi 0, %s175
    %s178 = sphi 0, %s177
    %s192 = sphi 0, %s178
    %s196 = sphi 0, %s196
    %s198 = sphi 0, %s196
    %s199 = sphi 0, %s198
    %s213 = sphi 0, %s199
    %s219 = sphi 0, %s221
    %s222 = sphi 0, %s219
    %s223 = sphi 0, %s222
    %s239 = sphi 0, %s223
  $region4: #{tpu_custom_call.1} parent=0 // loop_header_branch
    %18 = sbr.rel (%p16) target = $region8
  $region5: #{tpu_custom_call.1} parent=0 // loop_body
    %s20 = ssub.s32 %s15, 1
    %s21 = ssub.s32 %s15, 2
    %s22 = sadd.s32 %s15, 1
    %s23 = ssub.s32 %s15, %s22
    %p24 = scmp.eq.s32.totalorder %s23, 0
    %s26 = sadd.s32 %s25, 1
    %s27 = scalar_select %p24, %s25, %s26
    %p30 = pneg %p24
    %p31 = scmp.eq.s32.totalorder %s15, 1
    %p32 = por %p30, %p31
    %p33 = scmp.ne.s32.totalorder %s25, %s28
    %p34 = scmp.eq.s32.totalorder %s15, 0
    %p35 = por %p33, %p34
    %p36 = scmp.ne.s32.totalorder %s25, %s28
    %p37 = scmp.eq.s32.totalorder %s20, 1
    %p38 = por %p36, %p37
    %p39 = scmp.ne.s32.totalorder %s28, %s29
    %p40 = scmp.eq.s32.totalorder %s20, 0
    %p41 = por %p39, %p40
    %p42 = scmp.ne.s32.totalorder %s28, %s29
    %p43 = scmp.eq.s32.totalorder %s21, 1
    %p44 = por %p42, %p43
    %p46 = scmp.ne.s32.totalorder %s29, %s45
    %p47 = scmp.eq.s32.totalorder %s21, 0
    %p48 = por %p46, %p47
    %s50 = sadd.s32 %s49, 1
    %p53 = scmp.eq.s32.totalorder %s15, 1
    %p54 = scmp.ne.s32.totalorder %s49, %s51
    %p55 = scmp.eq.s32.totalorder %s15, 0
    %p56 = por %p54, %p55
    %p57 = scmp.ne.s32.totalorder %s49, %s51
    %p58 = scmp.eq.s32.totalorder %s20, 1
    %p59 = por %p57, %p58
    %p60 = scmp.ne.s32.totalorder %s51, %s52
    %p61 = scmp.eq.s32.totalorder %s20, 0
    %p62 = por %p60, %p61
    %p63 = scmp.ne.s32.totalorder %s51, %s52
    %p64 = scmp.eq.s32.totalorder %s21, 1
    %p65 = por %p63, %p64
    %p67 = scmp.ne.s32.totalorder %s52, %s66
    %p68 = scmp.eq.s32.totalorder %s21, 0
    %p69 = por %p67, %p68
    %s71 = sadd.s32 %s70, 1
    %p74 = scmp.eq.s32.totalorder %s15, 1
    %p75 = scmp.ne.s32.totalorder %s70, %s72
    %p76 = scmp.eq.s32.totalorder %s15, 0
    %p77 = por %p75, %p76
    %p78 = scmp.ne.s32.totalorder %s70, %s72
    %p79 = scmp.eq.s32.totalorder %s20, 1
    %p80 = por %p78, %p79
    %p81 = scmp.ne.s32.totalorder %s72, %s73
    %p82 = scmp.eq.s32.totalorder %s20, 0
    %p83 = por %p81, %p82
    %p84 = scmp.ne.s32.totalorder %s72, %s73
    %p85 = scmp.eq.s32.totalorder %s21, 1
    %p86 = por %p84, %p85
    %p88 = scmp.ne.s32.totalorder %s73, %s87
    %p89 = scmp.eq.s32.totalorder %s21, 0
    %p90 = por %p88, %p89
    %s92 = sadd.s32 %s91, 1
    %p95 = scmp.eq.s32.totalorder %s15, 1
    %p96 = scmp.ne.s32.totalorder %s91, %s93
    %p97 = scmp.eq.s32.totalorder %s15, 0
    %p98 = por %p96, %p97
    %p99 = scmp.ne.s32.totalorder %s91, %s93
    %p100 = scmp.eq.s32.totalorder %s20, 1
    %p101 = por %p99, %p100
    %p102 = scmp.ne.s32.totalorder %s93, %s94
    %p103 = scmp.eq.s32.totalorder %s20, 0
    %p104 = por %p102, %p103
    %p105 = scmp.ne.s32.totalorder %s93, %s94
    %p106 = scmp.eq.s32.totalorder %s21, 1
    %p107 = por %p105, %p106
    %p109 = scmp.ne.s32.totalorder %s94, %s108
    %p110 = scmp.eq.s32.totalorder %s21, 0
    %p111 = por %p109, %p110
    %s113 = sadd.s32 %s112, 1
    %p116 = scmp.eq.s32.totalorder %s15, 1
    %p117 = scmp.ne.s32.totalorder %s112, %s114
    %p118 = scmp.eq.s32.totalorder %s15, 0
    %p119 = por %p117, %p118
    %p120 = scmp.ne.s32.totalorder %s112, %s114
    %p121 = scmp.eq.s32.totalorder %s20, 1
    %p122 = por %p120, %p121
    %p123 = scmp.ne.s32.totalorder %s114, %s115
    %p124 = scmp.eq.s32.totalorder %s20, 0
    %p125 = por %p123, %p124
    %p126 = scmp.ne.s32.totalorder %s114, %s115
    %p127 = scmp.eq.s32.totalorder %s21, 1
    %p128 = por %p126, %p127
    %p130 = scmp.ne.s32.totalorder %s115, %s129
    %p131 = scmp.eq.s32.totalorder %s21, 0
    %p132 = por %p130, %p131
    %s134 = sadd.s32 %s133, 1
    %p137 = scmp.eq.s32.totalorder %s15, 1
    %p138 = scmp.ne.s32.totalorder %s133, %s135
    %p139 = scmp.eq.s32.totalorder %s15, 0
    %p140 = por %p138, %p139
    %p141 = scmp.ne.s32.totalorder %s133, %s135
    %p142 = scmp.eq.s32.totalorder %s20, 1
    %p143 = por %p141, %p142
    %p144 = scmp.ne.s32.totalorder %s135, %s136
    %p145 = scmp.eq.s32.totalorder %s20, 0
    %p146 = por %p144, %p145
    %p147 = scmp.ne.s32.totalorder %s135, %s136
    %p148 = scmp.eq.s32.totalorder %s21, 1
    %p149 = por %p147, %p148
    %p151 = scmp.ne.s32.totalorder %s136, %s150
    %p152 = scmp.eq.s32.totalorder %s21, 0
    %p153 = por %p151, %p152
    %s155 = sadd.s32 %s154, 1
    %p158 = scmp.eq.s32.totalorder %s15, 1
    %p159 = scmp.ne.s32.totalorder %s154, %s156
    %p160 = scmp.eq.s32.totalorder %s15, 0
    %p161 = por %p159, %p160
    %p162 = scmp.ne.s32.totalorder %s154, %s156
    %p163 = scmp.eq.s32.totalorder %s20, 1
    %p164 = por %p162, %p163
    %p165 = scmp.ne.s32.totalorder %s156, %s157
    %p166 = scmp.eq.s32.totalorder %s20, 0
    %p167 = por %p165, %p166
    %p168 = scmp.ne.s32.totalorder %s156, %s157
    %p169 = scmp.eq.s32.totalorder %s21, 1
    %p170 = por %p168, %p169
    %p172 = scmp.ne.s32.totalorder %s157, %s171
    %p173 = scmp.eq.s32.totalorder %s21, 0
    %p174 = por %p172, %p173
    %s176 = sadd.s32 %s175, 1
    %p179 = scmp.eq.s32.totalorder %s15, 1
    %p180 = scmp.ne.s32.totalorder %s175, %s177
    %p181 = scmp.eq.s32.totalorder %s15, 0
    %p182 = por %p180, %p181
    %p183 = scmp.ne.s32.totalorder %s175, %s177
    %p184 = scmp.eq.s32.totalorder %s20, 1
    %p185 = por %p183, %p184
    %p186 = scmp.ne.s32.totalorder %s177, %s178
    %p187 = scmp.eq.s32.totalorder %s20, 0
    %p188 = por %p186, %p187
    %p189 = scmp.ne.s32.totalorder %s177, %s178
    %p190 = scmp.eq.s32.totalorder %s21, 1
    %p191 = por %p189, %p190
    %p193 = scmp.ne.s32.totalorder %s178, %s192
    %p194 = scmp.eq.s32.totalorder %s21, 0
    %p195 = por %p193, %p194
    %s197 = sadd.s32 %s196, 1
    %p200 = scmp.eq.s32.totalorder %s15, 1
    %p201 = scmp.ne.s32.totalorder %s196, %s198
    %p202 = scmp.eq.s32.totalorder %s15, 0
    %p203 = por %p201, %p202
    %p204 = scmp.ne.s32.totalorder %s196, %s198
    %p205 = scmp.eq.s32.totalorder %s20, 1
    %p206 = por %p204, %p205
    %p207 = scmp.ne.s32.totalorder %s198, %s199
    %p208 = scmp.eq.s32.totalorder %s20, 0
    %p209 = por %p207, %p208
    %p210 = scmp.ne.s32.totalorder %s198, %s199
    %p211 = scmp.eq.s32.totalorder %s21, 1
    %p212 = por %p210, %p211
    %p214 = scmp.ne.s32.totalorder %s199, %s213
    %p215 = scmp.eq.s32.totalorder %s21, 0
    %p216 = por %p214, %p215
    %s217 = ssub.s32 %s15, %s22
    %p218 = scmp.eq.s32.totalorder %s217, 0
    %s220 = sadd.s32 %s219, 1
    %s221 = scalar_select %p218, %s219, %s220
    %p224 = pneg %p218
    %p225 = scmp.eq.s32.totalorder %s15, 1
    %p226 = por %p224, %p225
    %p227 = scmp.ne.s32.totalorder %s219, %s222
    %p228 = scmp.eq.s32.totalorder %s15, 0
    %p229 = por %p227, %p228
    %p230 = scmp.ne.s32.totalorder %s219, %s222
    %p231 = scmp.eq.s32.totalorder %s20, 1
    %p232 = por %p230, %p231
    %p233 = scmp.ne.s32.totalorder %s222, %s223
    %p234 = scmp.eq.s32.totalorder %s20, 0
    %p235 = por %p233, %p234
    %p236 = scmp.ne.s32.totalorder %s222, %s223
    %p237 = scmp.eq.s32.totalorder %s21, 1
    %p238 = por %p236, %p237
    %p240 = scmp.ne.s32.totalorder %s223, %s239
    %p241 = scmp.eq.s32.totalorder %s21, 0
    %p242 = por %p240, %p241
    %p243 = scmp.le.s32.totalorder 1, %s15
    %p244 = scmp.lt.s32.totalorder %s15, 3
    %p245 = pnand %p243, %p244
    %p246 = pneg %p245
    // Predicated region
    $region9: #{tpu_custom_call.1} parent=5 // pred_check
      _
    $region10: #{tpu_custom_call.1} parent=5 // pred_check_branch
      %248 = sbr.rel (%p245) target = $region12
    $region11: #{tpu_custom_call.1} parent=5 // pred_region
      %s249 = ssub.s32 %s15, 1
      // Predicated region
      $region13: #{tpu_custom_call.1} parent=11 // pred_check
        %p250 = pneg %p62
      $region14: #{tpu_custom_call.1} parent=11 // pred_check_branch
        %252 = sbr.rel (%p250) target = $region16
      $region15: #{tpu_custom_call.1} parent=11 // pred_region
        _
      $region16: #{tpu_custom_call.1} parent=11 // pred_fallthru
        _
      // Predicated region
      $region17: #{tpu_custom_call.1} parent=11 // pred_check
        %p253 = pneg %p83
      $region18: #{tpu_custom_call.1} parent=11 // pred_check_branch
        %255 = sbr.rel (%p253) target = $region20
      $region19: #{tpu_custom_call.1} parent=11 // pred_region
        _
      $region20: #{tpu_custom_call.1} parent=11 // pred_fallthru
        _
      // Predicated region
      $region21: #{tpu_custom_call.1} parent=11 // pred_check
        %p256 = pneg %p104
      $region22: #{tpu_custom_call.1} parent=11 // pred_check_branch
        %258 = sbr.rel (%p256) target = $region24
      $region23: #{tpu_custom_call.1} parent=11 // pred_region
        _
      $region24: #{tpu_custom_call.1} parent=11 // pred_fallthru
        _
      // Predicated region
      $region25: #{tpu_custom_call.1} parent=11 // pred_check
        %p259 = pneg %p125
      $region26: #{tpu_custom_call.1} parent=11 // pred_check_branch
        %261 = sbr.rel (%p259) target = $region28
      $region27: #{tpu_custom_call.1} parent=11 // pred_region
        _
      $region28: #{tpu_custom_call.1} parent=11 // pred_fallthru
        _
      // Predicated region
      $region29: #{tpu_custom_call.1} parent=11 // pred_check
        %p262 = pneg %p146
      $region30: #{tpu_custom_call.1} parent=11 // pred_check_branch
        %264 = sbr.rel (%p262) target = $region32
      $region31: #{tpu_custom_call.1} parent=11 // pred_region
        _
      $region32: #{tpu_custom_call.1} parent=11 // pred_fallthru
        _
      // Predicated region
      $region33: #{tpu_custom_call.1} parent=11 // pred_check
        %p265 = pneg %p167
      $region34: #{tpu_custom_call.1} parent=11 // pred_check_branch
        %267 = sbr.rel (%p265) target = $region36
      $region35: #{tpu_custom_call.1} parent=11 // pred_region
        _
      $region36: #{tpu_custom_call.1} parent=11 // pred_fallthru
        _
      // Predicated region
      $region37: #{tpu_custom_call.1} parent=11 // pred_check
        %p268 = pneg %p188
      $region38: #{tpu_custom_call.1} parent=11 // pred_check_branch
        %270 = sbr.rel (%p268) target = $region40
      $region39: #{tpu_custom_call.1} parent=11 // pred_region
        _
      $region40: #{tpu_custom_call.1} parent=11 // pred_fallthru
        _
      // Predicated region
      $region41: #{tpu_custom_call.1} parent=11 // pred_check
        %p271 = pneg %p209
      $region42: #{tpu_custom_call.1} parent=11 // pred_check_branch
        %273 = sbr.rel (%p271) target = $region44
      $region43: #{tpu_custom_call.1} parent=11 // pred_region
        _
      $region44: #{tpu_custom_call.1} parent=11 // pred_fallthru
        _
    $region12: #{tpu_custom_call.1} parent=5 // pred_fallthru
      _
    %p274 = scmp.lt.s32.totalorder %s15, 2
    // Predicated region
    $region45: #{tpu_custom_call.1} parent=5 // pred_check
      %p275 = pneg %p274
    $region46: #{tpu_custom_call.1} parent=5 // pred_check_branch
      %277 = sbr.rel (%p275) target = $region48
    $region47: #{tpu_custom_call.1} parent=5 // pred_region
      // Predicated region
      $region49: #{tpu_custom_call.1} parent=47 // pred_check
        %p278 = pneg %p35
      $region50: #{tpu_custom_call.1} parent=47 // pred_check_branch
        %280 = sbr.rel (%p278) target = $region52
      $region51: #{tpu_custom_call.1} parent=47 // pred_region
        %p281 = scmp.lt.s32.totalorder %s15, 1
        %s282 = scalar_select %p281, %s15, 1
        %s283 = smul.addr %s282, 32
        %s284 = smul.addr %s283, 8
        %s285 = scalar_lea.vmem %s0, %s284
      $region52: #{tpu_custom_call.1} parent=47 // pred_fallthru
        _
    $region48: #{tpu_custom_call.1} parent=5 // pred_fallthru
      _
    %p286 = scmp.le.s32.totalorder 1, %s15
    %p287 = scmp.lt.s32.totalorder %s15, 3
    %p288 = pnand %p286, %p287
    %p289 = pneg %p288
    // Predicated region
    $region53: #{tpu_custom_call.1} parent=5 // pred_check
      _
    $region54: #{tpu_custom_call.1} parent=5 // pred_check_branch
      %291 = sbr.rel (%p288) target = $region56
    $region55: #{tpu_custom_call.1} parent=5 // pred_region
      %s292 = ssub.s32 %s15, 1
      %p293 = scmp.lt.s32.totalorder %s20, 1
      %s294 = scalar_select %p293, %s20, 1
      %s295 = smul.addr %s294, 32
      %s296 = smul.addr %s295, 8
      %s297 = scalar_lea.vmem %s0, %s296
      %p298 = pneg %p41
      %p299 = pneg %p38
      %p300 = pneg %p62
      %p301 = pneg %p59
      %p302 = pneg %p83
      %p303 = pneg %p80
      %p304 = pneg %p104
      %p305 = pneg %p101
      %p306 = pneg %p125
      %p307 = pneg %p122
      %p308 = pneg %p146
      %p309 = pneg %p143
      %p310 = pneg %p167
      %p311 = pneg %p164
      %p312 = pneg %p188
      %p313 = pneg %p185
      %p314 = pneg %p209
      %p315 = pneg %p206
      %p316 = pneg %p235
      %p317 = pneg %p232
      %p318 = scmp.lt.s32.totalorder %s20, 1
      %s319 = scalar_select %p318, %s20, 1
      %s320 = smul.addr %s319, 32
      %s321 = smul.addr %s320, 8
      %s322 = scalar_lea.vmem %s9, %s321
      %p323 = scmp.lt.s32.totalorder %s20, 1
      %s324 = scalar_select %p323, %s20, 1
      %s325 = smul.addr %s324, 32
      %s326 = smul.addr %s325, 8
      %s327 = scalar_lea.vmem %s0, %s326
      %p328 = scmp.lt.s32.totalorder %s20, 1
      %s329 = scalar_select %p328, %s20, 1
      %s330 = smul.addr %s329, 32
      %s331 = smul.addr %s330, 8
      %s332 = scalar_lea.vmem %s9, %s331
      %v333 = vld [vmem:[%s327] sm:$0xff]
      %v334 = vld [vmem:[%s327 + $0x8] sm:$0xff]
      %v335 = vld [vmem:[%s327 + $0x10] sm:$0xff]
      %v336 = vld [vmem:[%s327 + $0x18] sm:$0xff]
      %v337 = vld [vmem:[%s327 + $0x20] sm:$0xff]
      %v338 = vld [vmem:[%s327 + $0x28] sm:$0xff]
      %v339 = vld [vmem:[%s327 + $0x30] sm:$0xff]
      %v340 = vld [vmem:[%s327 + $0x38] sm:$0xff]
      %v341 = vld [vmem:[%s327 + $0x40] sm:$0xff]
      %v342 = vld [vmem:[%s327 + $0x48] sm:$0xff]
      %v343 = vld [vmem:[%s327 + $0x50] sm:$0xff]
      %v344 = vld [vmem:[%s327 + $0x58] sm:$0xff]
      %v345 = vld [vmem:[%s327 + $0x60] sm:$0xff]
      %v346 = vld [vmem:[%s327 + $0x68] sm:$0xff]
      %v347 = vld [vmem:[%s327 + $0x70] sm:$0xff]
      %v348 = vld [vmem:[%s327 + $0x78] sm:$0xff]
      %v349 = vld [vmem:[%s327 + $0x80] sm:$0xff]
      %v350 = vld [vmem:[%s327 + $0x88] sm:$0xff]
      %v351 = vld [vmem:[%s327 + $0x90] sm:$0xff]
      %v352 = vld [vmem:[%s327 + $0x98] sm:$0xff]
      %v353 = vld [vmem:[%s327 + $0xa0] sm:$0xff]
      %v354 = vld [vmem:[%s327 + $0xa8] sm:$0xff]
      %v355 = vld [vmem:[%s327 + $0xb0] sm:$0xff]
      %v356 = vld [vmem:[%s327 + $0xb8] sm:$0xff]
      %v357 = vld [vmem:[%s327 + $0xc0] sm:$0xff]
      %v358 = vld [vmem:[%s327 + $0xc8] sm:$0xff]
      %v359 = vld [vmem:[%s327 + $0xd0] sm:$0xff]
      %v360 = vld [vmem:[%s327 + $0xd8] sm:$0xff]
      %v361 = vld [vmem:[%s327 + $0xe0] sm:$0xff]
      %v362 = vld [vmem:[%s327 + $0xe8] sm:$0xff]
      %v363 = vld [vmem:[%s327 + $0xf0] sm:$0xff]
      %v364 = vld [vmem:[%s327 + $0xf8] sm:$0xff]
      %v365 = vld [vmem:[%s1] sm:$0xff]
      %v366 = vld [vmem:[%s1 + $0x8] sm:$0xff]
      %v367 = vld [vmem:[%s2] sm:$0x1]
      %v369 = vlaneseq
      %v370 = vshrl.u32 %v369, 7
      %v371 = vsub.s32 0, %v370
      %v372 = vrot.slane %v367, %v371
      %vm374 = vcmask 130048
      %v376 = vsel %vm374, %v333, 0
      %v379 = vsel %vm374, %v334, 0
      %v382 = vsel %vm374, %v335, 0
      %v385 = vsel %vm374, %v336, 0
      %v388 = vsel %vm374, %v337, 0
      %v391 = vsel %vm374, %v338, 0
      %v394 = vsel %vm374, %v339, 0
      %v397 = vsel %vm374, %v340, 0
      %v400 = vsel %vm374, %v341, 0
      %v403 = vsel %vm374, %v342, 0
      %v406 = vsel %vm374, %v343, 0
      %v409 = vsel %vm374, %v344, 0
      %v412 = vsel %vm374, %v345, 0
      %v415 = vsel %vm374, %v346, 0
      %v418 = vsel %vm374, %v347, 0
      %v421 = vsel %vm374, %v348, 0
      %v424 = vsel %vm374, %v349, 0
      %v427 = vsel %vm374, %v350, 0
      %v430 = vsel %vm374, %v351, 0
      %v433 = vsel %vm374, %v352, 0
      %v436 = vsel %vm374, %v353, 0
      %v439 = vsel %vm374, %v354, 0
      %v442 = vsel %vm374, %v355, 0
      %v445 = vsel %vm374, %v356, 0
      %v448 = vsel %vm374, %v357, 0
      %v451 = vsel %vm374, %v358, 0
      %v454 = vsel %vm374, %v359, 0
      %v457 = vsel %vm374, %v360, 0
      %v460 = vsel %vm374, %v361, 0
      %v463 = vsel %vm374, %v362, 0
      %v466 = vsel %vm374, %v363, 0
      %v469 = vsel %vm374, %v364, 0
      %471 = vmatprep.subr.mxu0 0.0
      %472 = vmatpush1.msra.mxu0 0.0
      %473 = vmatprep.subr.mxu0 0.0
      %474 = vmatpush1.msra.mxu0 0.0
      %475 = vmatprep.subr.mxu0 0.0
      %476 = vmatpush1.msra.mxu0 0.0
      %477 = vmatprep.subr.mxu0 0.0
      %478 = vmatpush1.msra.mxu0 0.0
      %479 = vmatprep.subr.mxu0 0.0
      %480 = vmatpush1.msra.mxu0 0.0
      %481 = vmatprep.subr.mxu0 0.0
      %482 = vmatpush1.msra.mxu0 0.0
      %483 = vmatprep.subr.mxu0 0.0
      %484 = vmatpush1.msra.mxu0 0.0
      %485 = vmatprep.subr.mxu0 0.0
      %486 = vmatpush1.msra.mxu0 0.0
      %487 = vmatprep.subr.mxu0 0.0
      %488 = vmatpush1.msra.mxu0 0.0
      %489 = vmatprep.subr.mxu0 0.0
      %490 = vmatpush1.msra.mxu0 0.0
      %491 = vmatprep.subr.mxu0 0.0
      %492 = vmatpush1.msra.mxu0 0.0
      %493 = vmatprep.subr.mxu0 0.0
      %494 = vmatpush1.msra.mxu0 0.0
      %495 = vmatprep.subr.mxu0 0.0
      %496 = vmatpush1.msra.mxu0 0.0
      %497 = vmatprep.subr.mxu0 0.0
      %498 = vmatpush1.msra.mxu0 0.0
      %499 = vmatprep.subr.mxu0 0.0
      %500 = vmatpush1.msra.mxu0 %v366
      %501 = vmatprep.subr.mxu0 0.0
      %502 = vmatpush1.msra.mxu0 %v365
      %503 = vmatprep.subr.mxu0 0.0
      %504 = vmatpush2.msra.mxu0 0.0
      %505 = vmatprep.subr.mxu0 0.0
      %506 = vmatpush2.msra.mxu0 0.0
      %507 = vmatprep.subr.mxu0 0.0
      %508 = vmatpush2.msra.mxu0 0.0
      %509 = vmatprep.subr.mxu0 0.0
      %510 = vmatpush2.msra.mxu0 0.0
      %511 = vmatprep.subr.mxu0 0.0
      %512 = vmatpush2.msra.mxu0 0.0
      %513 = vmatprep.subr.mxu0 0.0
      %514 = vmatpush2.msra.mxu0 0.0
      %515 = vmatprep.subr.mxu0 0.0
      %516 = vmatpush2.msra.mxu0 0.0
      %517 = vmatprep.subr.mxu0 0.0
      %518 = vmatpush2.msra.mxu0 0.0
      %519 = vmatprep.subr.mxu0 0.0
      %520 = vmatpush2.msra.mxu0 0.0
      %521 = vmatprep.subr.mxu0 0.0
      %522 = vmatpush2.msra.mxu0 0.0
      %523 = vmatprep.subr.mxu0 0.0
      %524 = vmatpush2.msra.mxu0 0.0
      %525 = vmatprep.subr.mxu0 0.0
      %526 = vmatpush2.msra.mxu0 0.0
      %527 = vmatprep.subr.mxu0 0.0
      %528 = vmatpush2.msra.mxu0 0.0
      %529 = vmatprep.subr.mxu0 0.0
      %530 = vmatpush2.msra.mxu0 0.0
      %531 = vmatprep.subr.mxu0 0.0
      %532 = vmatpush2.msra.mxu0 0.0
      %533 = vmatprep.subr.mxu0 0.0
      %534 = vmatpush2.msra.mxu0 0.0
      %535 = vmatprep.mubr.f32.mxu0 0.0
      %536 = vmatmul.mubr.f32.gmra.mxu0 %v376
      %v537 = vpop.f32.mrf.mxu0
      %v538 = vadd.f32 %v372, %v537
      %v539 = vpop.f32.mrf.mxu0
      %540 = vmatprep.mubr.f32.mxu0 0.0
      %541 = vmatmul.mubr.f32.gmra.mxu0 %v379
      %v542 = vpop.f32.mrf.mxu0
      %v543 = vadd.f32 %v372, %v542
      %v544 = vpop.f32.mrf.mxu0
      %545 = vmatprep.mubr.f32.mxu0 0.0
      %546 = vmatmul.mubr.f32.gmra.mxu0 %v382
      %v547 = vpop.f32.mrf.mxu0
      %v548 = vadd.f32 %v372, %v547
      %v549 = vpop.f32.mrf.mxu0
      %550 = vmatprep.mubr.f32.mxu0 0.0
      %551 = vmatmul.mubr.f32.gmra.mxu0 %v385
      %v552 = vpop.f32.mrf.mxu0
      %v553 = vadd.f32 %v372, %v552
      %v554 = vpop.f32.mrf.mxu0
      %555 = vmatprep.mubr.f32.mxu0 0.0
      %556 = vmatmul.mubr.f32.gmra.mxu0 %v388
      %v557 = vpop.f32.mrf.mxu0
      %v558 = vadd.f32 %v372, %v557
      %v559 = vpop.f32.mrf.mxu0
      %560 = vmatprep.mubr.f32.mxu0 0.0
      %561 = vmatmul.mubr.f32.gmra.mxu0 %v391
      %v562 = vpop.f32.mrf.mxu0
      %v563 = vadd.f32 %v372, %v562
      %v564 = vpop.f32.mrf.mxu0
      %565 = vmatprep.mubr.f32.mxu0 0.0
      %566 = vmatmul.mubr.f32.gmra.mxu0 %v394
      %v567 = vpop.f32.mrf.mxu0
      %v568 = vadd.f32 %v372, %v567
      %v569 = vpop.f32.mrf.mxu0
      %570 = vmatprep.mubr.f32.mxu0 0.0
      %571 = vmatmul.mubr.f32.gmra.mxu0 %v397
      %v572 = vpop.f32.mrf.mxu0
      %v573 = vadd.f32 %v372, %v572
      %v574 = vpop.f32.mrf.mxu0
      %575 = vmatprep.mubr.f32.mxu0 0.0
      %576 = vmatmul.mubr.f32.gmra.mxu0 %v400
      %v577 = vpop.f32.mrf.mxu0
      %v578 = vadd.f32 %v372, %v577
      %v579 = vpop.f32.mrf.mxu0
      %580 = vmatprep.mubr.f32.mxu0 0.0
      %581 = vmatmul.mubr.f32.gmra.mxu0 %v403
      %v582 = vpop.f32.mrf.mxu0
      %v583 = vadd.f32 %v372, %v582
      %v584 = vpop.f32.mrf.mxu0
      %585 = vmatprep.mubr.f32.mxu0 0.0
      %586 = vmatmul.mubr.f32.gmra.mxu0 %v406
      %v587 = vpop.f32.mrf.mxu0
      %v588 = vadd.f32 %v372, %v587
      %v589 = vpop.f32.mrf.mxu0
      %590 = vmatprep.mubr.f32.mxu0 0.0
      %591 = vmatmul.mubr.f32.gmra.mxu0 %v409
      %v592 = vpop.f32.mrf.mxu0
      %v593 = vadd.f32 %v372, %v592
      %v594 = vpop.f32.mrf.mxu0
      %595 = vmatprep.mubr.f32.mxu0 0.0
      %596 = vmatmul.mubr.f32.gmra.mxu0 %v412
      %v597 = vpop.f32.mrf.mxu0
      %v598 = vadd.f32 %v372, %v597
      %v599 = vpop.f32.mrf.mxu0
      %600 = vmatprep.mubr.f32.mxu0 0.0
      %601 = vmatmul.mubr.f32.gmra.mxu0 %v415
      %v602 = vpop.f32.mrf.mxu0
      %v603 = vadd.f32 %v372, %v602
      %v604 = vpop.f32.mrf.mxu0
      %605 = vmatprep.mubr.f32.mxu0 0.0
      %606 = vmatmul.mubr.f32.gmra.mxu0 %v418
      %v607 = vpop.f32.mrf.mxu0
      %v608 = vadd.f32 %v372, %v607
      %v609 = vpop.f32.mrf.mxu0
      %610 = vmatprep.mubr.f32.mxu0 0.0
      %611 = vmatmul.mubr.f32.gmra.mxu0 %v421
      %v612 = vpop.f32.mrf.mxu0
      %v613 = vadd.f32 %v372, %v612
      %v614 = vpop.f32.mrf.mxu0
      %615 = vmatprep.mubr.f32.mxu0 0.0
      %616 = vmatmul.mubr.f32.gmra.mxu0 %v424
      %v617 = vpop.f32.mrf.mxu0
      %v618 = vadd.f32 %v372, %v617
      %v619 = vpop.f32.mrf.mxu0
      %620 = vmatprep.mubr.f32.mxu0 0.0
      %621 = vmatmul.mubr.f32.gmra.mxu0 %v427
      %v622 = vpop.f32.mrf.mxu0
      %v623 = vadd.f32 %v372, %v622
      %v624 = vpop.f32.mrf.mxu0
      %625 = vmatprep.mubr.f32.mxu0 0.0
      %626 = vmatmul.mubr.f32.gmra.mxu0 %v430
      %v627 = vpop.f32.mrf.mxu0
      %v628 = vadd.f32 %v372, %v627
      %v629 = vpop.f32.mrf.mxu0
      %630 = vmatprep.mubr.f32.mxu0 0.0
      %631 = vmatmul.mubr.f32.gmra.mxu0 %v433
      %v632 = vpop.f32.mrf.mxu0
      %v633 = vadd.f32 %v372, %v632
      %v634 = vpop.f32.mrf.mxu0
      %635 = vmatprep.mubr.f32.mxu0 0.0
      %636 = vmatmul.mubr.f32.gmra.mxu0 %v436
      %v637 = vpop.f32.mrf.mxu0
      %v638 = vadd.f32 %v372, %v637
      %v639 = vpop.f32.mrf.mxu0
      %640 = vmatprep.mubr.f32.mxu0 0.0
      %641 = vmatmul.mubr.f32.gmra.mxu0 %v439
      %v642 = vpop.f32.mrf.mxu0
      %v643 = vadd.f32 %v372, %v642
      %v644 = vpop.f32.mrf.mxu0
      %645 = vmatprep.mubr.f32.mxu0 0.0
      %646 = vmatmul.mubr.f32.gmra.mxu0 %v442
      %v647 = vpop.f32.mrf.mxu0
      %v648 = vadd.f32 %v372, %v647
      %v649 = vpop.f32.mrf.mxu0
      %650 = vmatprep.mubr.f32.mxu0 0.0
      %651 = vmatmul.mubr.f32.gmra.mxu0 %v445
      %v652 = vpop.f32.mrf.mxu0
      %v653 = vadd.f32 %v372, %v652
      %v654 = vpop.f32.mrf.mxu0
      %655 = vmatprep.mubr.f32.mxu0 0.0
      %656 = vmatmul.mubr.f32.gmra.mxu0 %v448
      %v657 = vpop.f32.mrf.mxu0
      %v658 = vadd.f32 %v372, %v657
      %v659 = vpop.f32.mrf.mxu0
      %660 = vmatprep.mubr.f32.mxu0 0.0
      %661 = vmatmul.mubr.f32.gmra.mxu0 %v451
      %v662 = vpop.f32.mrf.mxu0
      %v663 = vadd.f32 %v372, %v662
      %v664 = vpop.f32.mrf.mxu0
      %665 = vmatprep.mubr.f32.mxu0 0.0
      %666 = vmatmul.mubr.f32.gmra.mxu0 %v454
      %v667 = vpop.f32.mrf.mxu0
      %v668 = vadd.f32 %v372, %v667
      %v669 = vpop.f32.mrf.mxu0
      %670 = vmatprep.mubr.f32.mxu0 0.0
      %671 = vmatmul.mubr.f32.gmra.mxu0 %v457
      %v672 = vpop.f32.mrf.mxu0
      %v673 = vadd.f32 %v372, %v672
      %v674 = vpop.f32.mrf.mxu0
      %675 = vmatprep.mubr.f32.mxu0 0.0
      %676 = vmatmul.mubr.f32.gmra.mxu0 %v460
      %v677 = vpop.f32.mrf.mxu0
      %v678 = vadd.f32 %v372, %v677
      %v679 = vpop.f32.mrf.mxu0
      %680 = vmatprep.mubr.f32.mxu0 0.0
      %681 = vmatmul.mubr.f32.gmra.mxu0 %v463
      %v682 = vpop.f32.mrf.mxu0
      %v683 = vadd.f32 %v372, %v682
      %v684 = vpop.f32.mrf.mxu0
      %685 = vmatprep.mubr.f32.mxu0 0.0
      %686 = vmatmul.mubr.f32.gmra.mxu0 %v466
      %v687 = vpop.f32.mrf.mxu0
      %v688 = vadd.f32 %v372, %v687
      %v689 = vpop.f32.mrf.mxu0
      %690 = vmatprep.mubr.f32.mxu0 0.0
      %691 = vmatmul.mubr.f32.gmra.mxu0 %v469
      %v692 = vpop.f32.mrf.mxu0
      %v693 = vadd.f32 %v372, %v692
      %v694 = vpop.f32.mrf.mxu0
      %695 = vdwg.mxu0
      %v696 = vmax.f32 %v538, 0.0
      %v697 = vmax.f32 %v543, 0.0
      %v698 = vmax.f32 %v548, 0.0
      %v699 = vmax.f32 %v553, 0.0
      %v700 = vmax.f32 %v558, 0.0
      %v701 = vmax.f32 %v563, 0.0
      %v702 = vmax.f32 %v568, 0.0
      %v703 = vmax.f32 %v573, 0.0
      %v704 = vmax.f32 %v578, 0.0
      %v705 = vmax.f32 %v583, 0.0
      %v706 = vmax.f32 %v588, 0.0
      %v707 = vmax.f32 %v593, 0.0
      %v708 = vmax.f32 %v598, 0.0
      %v709 = vmax.f32 %v603, 0.0
      %v710 = vmax.f32 %v608, 0.0
      %v711 = vmax.f32 %v613, 0.0
      %v712 = vmax.f32 %v618, 0.0
      %v713 = vmax.f32 %v623, 0.0
      %v714 = vmax.f32 %v628, 0.0
      %v715 = vmax.f32 %v633, 0.0
      %v716 = vmax.f32 %v638, 0.0
      %v717 = vmax.f32 %v643, 0.0
      %v718 = vmax.f32 %v648, 0.0
      %v719 = vmax.f32 %v653, 0.0
      %v720 = vmax.f32 %v658, 0.0
      %v721 = vmax.f32 %v663, 0.0
      %v722 = vmax.f32 %v668, 0.0
      %v723 = vmax.f32 %v673, 0.0
      %v724 = vmax.f32 %v678, 0.0
      %v725 = vmax.f32 %v683, 0.0
      %v726 = vmax.f32 %v688, 0.0
      %v727 = vmax.f32 %v693, 0.0
      %v728 = vld [vmem:[%s3] sm:$0xf]
      %v729 = vld [vmem:[%s4] sm:$0x1]
      %v731 = vlaneseq
      %v732 = vshrl.u32 %v731, 7
      %v733 = vsub.s32 0, %v732
      %v734 = vrot.slane %v729, %v733
      %vm736 = vcmask 31744
      %v738 = vsel %vm736, %v696, 0
      %v741 = vsel %vm736, %v697, 0
      %v744 = vsel %vm736, %v698, 0
      %v747 = vsel %vm736, %v699, 0
      %v750 = vsel %vm736, %v700, 0
      %v753 = vsel %vm736, %v701, 0
      %v756 = vsel %vm736, %v702, 0
      %v759 = vsel %vm736, %v703, 0
      %v762 = vsel %vm736, %v704, 0
      %v765 = vsel %vm736, %v705, 0
      %v768 = vsel %vm736, %v706, 0
      %v771 = vsel %vm736, %v707, 0
      %v774 = vsel %vm736, %v708, 0
      %v777 = vsel %vm736, %v709, 0
      %v780 = vsel %vm736, %v710, 0
      %v783 = vsel %vm736, %v711, 0
      %v786 = vsel %vm736, %v712, 0
      %v789 = vsel %vm736, %v713, 0
      %v792 = vsel %vm736, %v714, 0
      %v795 = vsel %vm736, %v715, 0
      %v798 = vsel %vm736, %v716, 0
      %v801 = vsel %vm736, %v717, 0
      %v804 = vsel %vm736, %v718, 0
      %v807 = vsel %vm736, %v719, 0
      %v810 = vsel %vm736, %v720, 0
      %v813 = vsel %vm736, %v721, 0
      %v816 = vsel %vm736, %v722, 0
      %v819 = vsel %vm736, %v723, 0
      %v822 = vsel %vm736, %v724, 0
      %v825 = vsel %vm736, %v725, 0
      %v828 = vsel %vm736, %v726, 0
      %v831 = vsel %vm736, %v727, 0
      %vm833 = vcmask 1043456
      %v835 = vsel %vm833, %v728, 0
      %837 = vmatprep.subr.mxu0 0.0
      %838 = vmatpush1.msra.mxu0 0.0
      %839 = vmatprep.subr.mxu0 0.0
      %840 = vmatpush1.msra.mxu0 0.0
      %841 = vmatprep.subr.mxu0 0.0
      %842 = vmatpush1.msra.mxu0 0.0
      %843 = vmatprep.subr.mxu0 0.0
      %844 = vmatpush1.msra.mxu0 0.0
      %845 = vmatprep.subr.mxu0 0.0
      %846 = vmatpush1.msra.mxu0 0.0
      %847 = vmatprep.subr.mxu0 0.0
      %848 = vmatpush1.msra.mxu0 0.0
      %849 = vmatprep.subr.mxu0 0.0
      %850 = vmatpush1.msra.mxu0 0.0
      %851 = vmatprep.subr.mxu0 0.0
      %852 = vmatpush1.msra.mxu0 0.0
      %853 = vmatprep.subr.mxu0 0.0
      %854 = vmatpush1.msra.mxu0 0.0
      %855 = vmatprep.subr.mxu0 0.0
      %856 = vmatpush1.msra.mxu0 0.0
      %857 = vmatprep.subr.mxu0 0.0
      %858 = vmatpush1.msra.mxu0 0.0
      %859 = vmatprep.subr.mxu0 0.0
      %860 = vmatpush1.msra.mxu0 0.0
      %861 = vmatprep.subr.mxu0 0.0
      %862 = vmatpush1.msra.mxu0 0.0
      %863 = vmatprep.subr.mxu0 0.0
      %864 = vmatpush1.msra.mxu0 0.0
      %865 = vmatprep.subr.mxu0 0.0
      %866 = vmatpush1.msra.mxu0 0.0
      %867 = vmatprep.subr.mxu0 0.0
      %868 = vmatpush1.msra.mxu0 %v835
      %869 = vmatprep.subr.mxu0 0.0
      %870 = vmatpush2.msra.mxu0 0.0
      %871 = vmatprep.subr.mxu0 0.0
      %872 = vmatpush2.msra.mxu0 0.0
      %873 = vmatprep.subr.mxu0 0.0
      %874 = vmatpush2.msra.mxu0 0.0
      %875 = vmatprep.subr.mxu0 0.0
      %876 = vmatpush2.msra.mxu0 0.0
      %877 = vmatprep.subr.mxu0 0.0
      %878 = vmatpush2.msra.mxu0 0.0
      %879 = vmatprep.subr.mxu0 0.0
      %880 = vmatpush2.msra.mxu0 0.0
      %881 = vmatprep.subr.mxu0 0.0
      %882 = vmatpush2.msra.mxu0 0.0
      %883 = vmatprep.subr.mxu0 0.0
      %884 = vmatpush2.msra.mxu0 0.0
      %885 = vmatprep.subr.mxu0 0.0
      %886 = vmatpush2.msra.mxu0 0.0
      %887 = vmatprep.subr.mxu0 0.0
      %888 = vmatpush2.msra.mxu0 0.0
      %889 = vmatprep.subr.mxu0 0.0
      %890 = vmatpush2.msra.mxu0 0.0
      %891 = vmatprep.subr.mxu0 0.0
      %892 = vmatpush2.msra.mxu0 0.0
      %893 = vmatprep.subr.mxu0 0.0
      %894 = vmatpush2.msra.mxu0 0.0
      %895 = vmatprep.subr.mxu0 0.0
      %896 = vmatpush2.msra.mxu0 0.0
      %897 = vmatprep.subr.mxu0 0.0
      %898 = vmatpush2.msra.mxu0 0.0
      %899 = vmatprep.subr.mxu0 0.0
      %900 = vmatpush2.msra.mxu0 0.0
      %901 = vmatprep.mubr.f32.mxu0 0.0
      %902 = vmatmul.mubr.f32.gmra.mxu0 %v738
      %v903 = vpop.f32.mrf.mxu0
      %v904 = vadd.f32 %v734, %v903
      %v905 = vpop.f32.mrf.mxu0
      %906 = vmatprep.mubr.f32.mxu0 0.0
      %907 = vmatmul.mubr.f32.gmra.mxu0 %v741
      %v908 = vpop.f32.mrf.mxu0
      %v909 = vadd.f32 %v734, %v908
      %v910 = vpop.f32.mrf.mxu0
      %911 = vmatprep.mubr.f32.mxu0 0.0
      %912 = vmatmul.mubr.f32.gmra.mxu0 %v744
      %v913 = vpop.f32.mrf.mxu0
      %v914 = vadd.f32 %v734, %v913
      %v915 = vpop.f32.mrf.mxu0
      %916 = vmatprep.mubr.f32.mxu0 0.0
      %917 = vmatmul.mubr.f32.gmra.mxu0 %v747
      %v918 = vpop.f32.mrf.mxu0
      %v919 = vadd.f32 %v734, %v918
      %v920 = vpop.f32.mrf.mxu0
      %921 = vmatprep.mubr.f32.mxu0 0.0
      %922 = vmatmul.mubr.f32.gmra.mxu0 %v750
      %v923 = vpop.f32.mrf.mxu0
      %v924 = vadd.f32 %v734, %v923
      %v925 = vpop.f32.mrf.mxu0
      %926 = vmatprep.mubr.f32.mxu0 0.0
      %927 = vmatmul.mubr.f32.gmra.mxu0 %v753
      %v928 = vpop.f32.mrf.mxu0
      %v929 = vadd.f32 %v734, %v928
      %v930 = vpop.f32.mrf.mxu0
      %931 = vmatprep.mubr.f32.mxu0 0.0
      %932 = vmatmul.mubr.f32.gmra.mxu0 %v756
      %v933 = vpop.f32.mrf.mxu0
      %v934 = vadd.f32 %v734, %v933
      %v935 = vpop.f32.mrf.mxu0
      %936 = vmatprep.mubr.f32.mxu0 0.0
      %937 = vmatmul.mubr.f32.gmra.mxu0 %v759
      %v938 = vpop.f32.mrf.mxu0
      %v939 = vadd.f32 %v734, %v938
      %v940 = vpop.f32.mrf.mxu0
      %941 = vmatprep.mubr.f32.mxu0 0.0
      %942 = vmatmul.mubr.f32.gmra.mxu0 %v762
      %v943 = vpop.f32.mrf.mxu0
      %v944 = vadd.f32 %v734, %v943
      %v945 = vpop.f32.mrf.mxu0
      %946 = vmatprep.mubr.f32.mxu0 0.0
      %947 = vmatmul.mubr.f32.gmra.mxu0 %v765
      %v948 = vpop.f32.mrf.mxu0
      %v949 = vadd.f32 %v734, %v948
      %v950 = vpop.f32.mrf.mxu0
      %951 = vmatprep.mubr.f32.mxu0 0.0
      %952 = vmatmul.mubr.f32.gmra.mxu0 %v768
      %v953 = vpop.f32.mrf.mxu0
      %v954 = vadd.f32 %v734, %v953
      %v955 = vpop.f32.mrf.mxu0
      %956 = vmatprep.mubr.f32.mxu0 0.0
      %957 = vmatmul.mubr.f32.gmra.mxu0 %v771
      %v958 = vpop.f32.mrf.mxu0
      %v959 = vadd.f32 %v734, %v958
      %v960 = vpop.f32.mrf.mxu0
      %961 = vmatprep.mubr.f32.mxu0 0.0
      %962 = vmatmul.mubr.f32.gmra.mxu0 %v774
      %v963 = vpop.f32.mrf.mxu0
      %v964 = vadd.f32 %v734, %v963
      %v965 = vpop.f32.mrf.mxu0
      %966 = vmatprep.mubr.f32.mxu0 0.0
      %967 = vmatmul.mubr.f32.gmra.mxu0 %v777
      %v968 = vpop.f32.mrf.mxu0
      %v969 = vadd.f32 %v734, %v968
      %v970 = vpop.f32.mrf.mxu0
      %971 = vmatprep.mubr.f32.mxu0 0.0
      %972 = vmatmul.mubr.f32.gmra.mxu0 %v780
      %v973 = vpop.f32.mrf.mxu0
      %v974 = vadd.f32 %v734, %v973
      %v975 = vpop.f32.mrf.mxu0
      %976 = vmatprep.mubr.f32.mxu0 0.0
      %977 = vmatmul.mubr.f32.gmra.mxu0 %v783
      %v978 = vpop.f32.mrf.mxu0
      %v979 = vadd.f32 %v734, %v978
      %v980 = vpop.f32.mrf.mxu0
      %981 = vmatprep.mubr.f32.mxu0 0.0
      %982 = vmatmul.mubr.f32.gmra.mxu0 %v786
      %v983 = vpop.f32.mrf.mxu0
      %v984 = vadd.f32 %v734, %v983
      %v985 = vpop.f32.mrf.mxu0
      %986 = vmatprep.mubr.f32.mxu0 0.0
      %987 = vmatmul.mubr.f32.gmra.mxu0 %v789
      %v988 = vpop.f32.mrf.mxu0
      %v989 = vadd.f32 %v734, %v988
      %v990 = vpop.f32.mrf.mxu0
      %991 = vmatprep.mubr.f32.mxu0 0.0
      %992 = vmatmul.mubr.f32.gmra.mxu0 %v792
      %v993 = vpop.f32.mrf.mxu0
      %v994 = vadd.f32 %v734, %v993
      %v995 = vpop.f32.mrf.mxu0
      %996 = vmatprep.mubr.f32.mxu0 0.0
      %997 = vmatmul.mubr.f32.gmra.mxu0 %v795
      %v998 = vpop.f32.mrf.mxu0
      %v999 = vadd.f32 %v734, %v998
      %v1000 = vpop.f32.mrf.mxu0
      %1001 = vmatprep.mubr.f32.mxu0 0.0
      %1002 = vmatmul.mubr.f32.gmra.mxu0 %v798
      %v1003 = vpop.f32.mrf.mxu0
      %v1004 = vadd.f32 %v734, %v1003
      %v1005 = vpop.f32.mrf.mxu0
      %1006 = vmatprep.mubr.f32.mxu0 0.0
      %1007 = vmatmul.mubr.f32.gmra.mxu0 %v801
      %v1008 = vpop.f32.mrf.mxu0
      %v1009 = vadd.f32 %v734, %v1008
      %v1010 = vpop.f32.mrf.mxu0
      %1011 = vmatprep.mubr.f32.mxu0 0.0
      %1012 = vmatmul.mubr.f32.gmra.mxu0 %v804
      %v1013 = vpop.f32.mrf.mxu0
      %v1014 = vadd.f32 %v734, %v1013
      %v1015 = vpop.f32.mrf.mxu0
      %1016 = vmatprep.mubr.f32.mxu0 0.0
      %1017 = vmatmul.mubr.f32.gmra.mxu0 %v807
      %v1018 = vpop.f32.mrf.mxu0
      %v1019 = vadd.f32 %v734, %v1018
      %v1020 = vpop.f32.mrf.mxu0
      %1021 = vmatprep.mubr.f32.mxu0 0.0
      %1022 = vmatmul.mubr.f32.gmra.mxu0 %v810
      %v1023 = vpop.f32.mrf.mxu0
      %v1024 = vadd.f32 %v734, %v1023
      %v1025 = vpop.f32.mrf.mxu0
      %1026 = vmatprep.mubr.f32.mxu0 0.0
      %1027 = vmatmul.mubr.f32.gmra.mxu0 %v813
      %v1028 = vpop.f32.mrf.mxu0
      %v1029 = vadd.f32 %v734, %v1028
      %v1030 = vpop.f32.mrf.mxu0
      %1031 = vmatprep.mubr.f32.mxu0 0.0
      %1032 = vmatmul.mubr.f32.gmra.mxu0 %v816
      %v1033 = vpop.f32.mrf.mxu0
      %v1034 = vadd.f32 %v734, %v1033
      %v1035 = vpop.f32.mrf.mxu0
      %1036 = vmatprep.mubr.f32.mxu0 0.0
      %1037 = vmatmul.mubr.f32.gmra.mxu0 %v819
      %v1038 = vpop.f32.mrf.mxu0
      %v1039 = vadd.f32 %v734, %v1038
      %v1040 = vpop.f32.mrf.mxu0
      %1041 = vmatprep.mubr.f32.mxu0 0.0
      %1042 = vmatmul.mubr.f32.gmra.mxu0 %v822
      %v1043 = vpop.f32.mrf.mxu0
      %v1044 = vadd.f32 %v734, %v1043
      %v1045 = vpop.f32.mrf.mxu0
      %1046 = vmatprep.mubr.f32.mxu0 0.0
      %1047 = vmatmul.mubr.f32.gmra.mxu0 %v825
      %v1048 = vpop.f32.mrf.mxu0
      %v1049 = vadd.f32 %v734, %v1048
      %v1050 = vpop.f32.mrf.mxu0
      %1051 = vmatprep.mubr.f32.mxu0 0.0
      %1052 = vmatmul.mubr.f32.gmra.mxu0 %v828
      %v1053 = vpop.f32.mrf.mxu0
      %v1054 = vadd.f32 %v734, %v1053
      %v1055 = vpop.f32.mrf.mxu0
      %1056 = vmatprep.mubr.f32.mxu0 0.0
      %1057 = vmatmul.mubr.f32.gmra.mxu0 %v831
      %v1058 = vpop.f32.mrf.mxu0
      %v1059 = vadd.f32 %v734, %v1058
      %v1060 = vpop.f32.mrf.mxu0
      %1061 = vdwg.mxu0
      %v1062 = vmul.f32 %v333, %v904
      %v1063 = vmul.f32 %v334, %v909
      %v1064 = vmul.f32 %v335, %v914
      %v1065 = vmul.f32 %v336, %v919
      %v1066 = vmul.f32 %v337, %v924
      %v1067 = vmul.f32 %v338, %v929
      %v1068 = vmul.f32 %v339, %v934
      %v1069 = vmul.f32 %v340, %v939
      %v1070 = vmul.f32 %v341, %v944
      %v1071 = vmul.f32 %v342, %v949
      %v1072 = vmul.f32 %v343, %v954
      %v1073 = vmul.f32 %v344, %v959
      %v1074 = vmul.f32 %v345, %v964
      %v1075 = vmul.f32 %v346, %v969
      %v1076 = vmul.f32 %v347, %v974
      %v1077 = vmul.f32 %v348, %v979
      %v1078 = vmul.f32 %v349, %v984
      %v1079 = vmul.f32 %v350, %v989
      %v1080 = vmul.f32 %v351, %v994
      %v1081 = vmul.f32 %v352, %v999
      %v1082 = vmul.f32 %v353, %v1004
      %v1083 = vmul.f32 %v354, %v1009
      %v1084 = vmul.f32 %v355, %v1014
      %v1085 = vmul.f32 %v356, %v1019
      %v1086 = vmul.f32 %v357, %v1024
      %v1087 = vmul.f32 %v358, %v1029
      %v1088 = vmul.f32 %v359, %v1034
      %v1089 = vmul.f32 %v360, %v1039
      %v1090 = vmul.f32 %v361, %v1044
      %v1091 = vmul.f32 %v362, %v1049
      %v1092 = vmul.f32 %v363, %v1054
      %v1093 = vmul.f32 %v364, %v1059
      %1094 = vst.msk [vmem:[#allocation2] sm:$0xff] %vm374, 0.0
      %1095 = vst.msk [vmem:[#allocation2 + $0x8] sm:$0xff] %vm374, 0.0
      %vm1096 = vcmask 128000
      %1097 = vst.msk [vmem:[#allocation2 + $0x10] sm:$0x3f] %vm1096, 0.0
      %1098 = vst.msk [vmem:[#allocation2 + $0x18] sm:$0xff] %vm374, 0.0
      %1099 = vst.msk [vmem:[#allocation2 + $0x20] sm:$0xff] %vm374, 0.0
      %1100 = vst.msk [vmem:[#allocation2 + $0x28] sm:$0x3f] %vm1096, 0.0
      %1101 = vst.msk [vmem:[#allocation2 + $0x30] sm:$0xff] %vm374, 0.0
      %1102 = vst.msk [vmem:[#allocation2 + $0x38] sm:$0xff] %vm374, 0.0
      %1103 = vst.msk [vmem:[#allocation2 + $0x40] sm:$0x3f] %vm1096, 0.0
      %s1104 = scalar_lea.vmem [#allocation2], 456
      %1105 = vst.msk [vmem:[%s1104] sm:$0xff] %vm374, 0.0
      %1106 = vst.msk [vmem:[%s1104 + $0x8] sm:$0xff] %vm374, 0.0
      %1107 = vst.msk [vmem:[%s1104 + $0x10] sm:$0x3f] %vm1096, 0.0
      %1108 = vst.msk [vmem:[%s1104 + $0x18] sm:$0xff] %vm374, 0.0
      %1109 = vst.msk [vmem:[%s1104 + $0x20] sm:$0xff] %vm374, 0.0
      %1110 = vst.msk [vmem:[%s1104 + $0x28] sm:$0x3f] %vm1096, 0.0
      %1111 = vst.msk [vmem:[%s1104 + $0x30] sm:$0xff] %vm374, 0.0
      %1112 = vst.msk [vmem:[%s1104 + $0x38] sm:$0xff] %vm374, 0.0
      %1113 = vst.msk [vmem:[%s1104 + $0x40] sm:$0x3f] %vm1096, 0.0
      %vm1146 = vcmask 1042432
      %v1147 = vrot.slane %v1062, 5
      %v1148 = vrot.slane %v1063, 5
      %v1149 = vsel %vm1146, %v1147, %v1148
      %v1150 = vrot.slane %v1064, 5
      %v1151 = vrot.slane %v1065, 5
      %v1152 = vsel %vm1146, %v1150, %v1151
      %v1153 = vrot.slane %v1066, 5
      %v1154 = vrot.slane %v1067, 5
      %v1155 = vsel %vm1146, %v1153, %v1154
      %v1156 = vrot.slane %v1068, 5
      %v1157 = vrot.slane %v1069, 5
      %v1158 = vsel %vm1146, %v1156, %v1157
      %v1159 = vrot.slane %v1070, 5
      %v1160 = vrot.slane %v1071, 5
      %v1161 = vsel %vm1146, %v1159, %v1160
      %v1162 = vrot.slane %v1072, 5
      %v1163 = vrot.slane %v1073, 5
      %v1164 = vsel %vm1146, %v1162, %v1163
      %v1165 = vrot.slane %v1074, 5
      %v1166 = vrot.slane %v1075, 5
      %v1167 = vsel %vm1146, %v1165, %v1166
      %v1168 = vrot.slane %v1076, 5
      %v1169 = vrot.slane %v1077, 5
      %v1170 = vsel %vm1146, %v1168, %v1169
      %v1171 = vrot.slane %v1078, 5
      %v1172 = vrot.slane %v1079, 5
      %v1173 = vsel %vm1146, %v1171, %v1172
      %v1174 = vrot.slane %v1080, 5
      %v1175 = vrot.slane %v1081, 5
      %v1176 = vsel %vm1146, %v1174, %v1175
      %v1177 = vrot.slane %v1082, 5
      %v1178 = vrot.slane %v1083, 5
      %v1179 = vsel %vm1146, %v1177, %v1178
      %v1180 = vrot.slane %v1084, 5
      %v1181 = vrot.slane %v1085, 5
      %v1182 = vsel %vm1146, %v1180, %v1181
      %v1183 = vrot.slane %v1086, 5
      %v1184 = vrot.slane %v1087, 5
      %v1185 = vsel %vm1146, %v1183, %v1184
      %v1186 = vrot.slane %v1088, 5
      %v1187 = vrot.slane %v1089, 5
      %v1188 = vsel %vm1146, %v1186, %v1187
      %v1189 = vrot.slane %v1090, 5
      %v1190 = vrot.slane %v1091, 5
      %v1191 = vsel %vm1146, %v1189, %v1190
      %v1192 = vrot.slane %v1092, 5
      %v1193 = vrot.slane %v1093, 5
      %v1194 = vsel %vm1146, %v1192, %v1193
      %v1243 = vsel %vm1146, 0.0, %v1147
      %v1244 = vsel %vm1146, 0.0, %v1150
      %v1245 = vsel %vm1146, 0.0, %v1153
      %v1246 = vsel %vm1146, 0.0, %v1156
      %v1247 = vsel %vm1146, 0.0, %v1159
      %v1248 = vsel %vm1146, 0.0, %v1162
      %v1249 = vsel %vm1146, 0.0, %v1165
      %v1250 = vsel %vm1146, 0.0, %v1168
      %v1251 = vsel %vm1146, 0.0, %v1171
      %v1252 = vsel %vm1146, 0.0, %v1174
      %v1253 = vsel %vm1146, 0.0, %v1177
      %v1254 = vsel %vm1146, 0.0, %v1180
      %v1255 = vsel %vm1146, 0.0, %v1183
      %v1256 = vsel %vm1146, 0.0, %v1186
      %v1257 = vsel %vm1146, 0.0, %v1189
      %v1258 = vsel %vm1146, 0.0, %v1192
      %v1259 = vsel %vm1146, %v1148, 0.0
      %v1260 = vsel %vm1146, %v1151, 0.0
      %v1261 = vsel %vm1146, %v1154, 0.0
      %v1262 = vsel %vm1146, %v1157, 0.0
      %v1263 = vsel %vm1146, %v1160, 0.0
      %v1264 = vsel %vm1146, %v1163, 0.0
      %v1265 = vsel %vm1146, %v1166, 0.0
      %v1266 = vsel %vm1146, %v1169, 0.0
      %v1267 = vsel %vm1146, %v1172, 0.0
      %v1268 = vsel %vm1146, %v1175, 0.0
      %v1269 = vsel %vm1146, %v1178, 0.0
      %v1270 = vsel %vm1146, %v1181, 0.0
      %v1271 = vsel %vm1146, %v1184, 0.0
      %v1272 = vsel %vm1146, %v1187, 0.0
      %v1273 = vsel %vm1146, %v1190, 0.0
      %v1274 = vsel %vm1146, %v1193, 0.0
      %s1275 = scalar_lea.vmem [#allocation2], 72
      %1276 = vst.msk [vmem:[%s1275] sm:$0xff] %vm374, %v1243
      %1277 = vst.msk [vmem:[%s1275 + $0x8] sm:$0xff] %vm374, %v1149
      %1278 = vst.msk [vmem:[%s1275 + $0x10] sm:$0x3f] %vm1096, %v1259
      %1279 = vst.msk [vmem:[%s1275 + $0x18] sm:$0xff] %vm374, %v1244
      %1280 = vst.msk [vmem:[%s1275 + $0x20] sm:$0xff] %vm374, %v1152
      %1281 = vst.msk [vmem:[%s1275 + $0x28] sm:$0x3f] %vm1096, %v1260
      %1282 = vst.msk [vmem:[%s1275 + $0x30] sm:$0xff] %vm374, %v1245
      %1283 = vst.msk [vmem:[%s1275 + $0x38] sm:$0xff] %vm374, %v1155
      %1284 = vst.msk [vmem:[%s1275 + $0x40] sm:$0x3f] %vm1096, %v1261
      %1285 = vst.msk [vmem:[%s1275 + $0x48] sm:$0xff] %vm374, %v1246
      %1286 = vst.msk [vmem:[%s1275 + $0x50] sm:$0xff] %vm374, %v1158
      %1287 = vst.msk [vmem:[%s1275 + $0x58] sm:$0x3f] %vm1096, %v1262
      %1288 = vst.msk [vmem:[%s1275 + $0x60] sm:$0xff] %vm374, %v1247
      %1289 = vst.msk [vmem:[%s1275 + $0x68] sm:$0xff] %vm374, %v1161
      %1290 = vst.msk [vmem:[%s1275 + $0x70] sm:$0x3f] %vm1096, %v1263
      %1291 = vst.msk [vmem:[%s1275 + $0x78] sm:$0xff] %vm374, %v1248
      %1292 = vst.msk [vmem:[%s1275 + $0x80] sm:$0xff] %vm374, %v1164
      %1293 = vst.msk [vmem:[%s1275 + $0x88] sm:$0x3f] %vm1096, %v1264
      %1294 = vst.msk [vmem:[%s1275 + $0x90] sm:$0xff] %vm374, %v1249
      %1295 = vst.msk [vmem:[%s1275 + $0x98] sm:$0xff] %vm374, %v1167
      %1296 = vst.msk [vmem:[%s1275 + $0xa0] sm:$0x3f] %vm1096, %v1265
      %1297 = vst.msk [vmem:[%s1275 + $0xa8] sm:$0xff] %vm374, %v1250
      %1298 = vst.msk [vmem:[%s1275 + $0xb0] sm:$0xff] %vm374, %v1170
      %1299 = vst.msk [vmem:[%s1275 + $0xb8] sm:$0x3f] %vm1096, %v1266
      %1300 = vst.msk [vmem:[%s1275 + $0xc0] sm:$0xff] %vm374, %v1251
      %1301 = vst.msk [vmem:[%s1275 + $0xc8] sm:$0xff] %vm374, %v1173
      %1302 = vst.msk [vmem:[%s1275 + $0xd0] sm:$0x3f] %vm1096, %v1267
      %1303 = vst.msk [vmem:[%s1275 + $0xd8] sm:$0xff] %vm374, %v1252
      %1304 = vst.msk [vmem:[%s1275 + $0xe0] sm:$0xff] %vm374, %v1176
      %1305 = vst.msk [vmem:[%s1275 + $0xe8] sm:$0x3f] %vm1096, %v1268
      %1306 = vst.msk [vmem:[%s1275 + $0xf0] sm:$0xff] %vm374, %v1253
      %1307 = vst.msk [vmem:[%s1275 + $0xf8] sm:$0xff] %vm374, %v1179
      %1308 = vst.msk [vmem:[%s1275 + $0x100] sm:$0x3f] %vm1096, %v1269
      %1309 = vst.msk [vmem:[%s1275 + $0x108] sm:$0xff] %vm374, %v1254
      %1310 = vst.msk [vmem:[%s1275 + $0x110] sm:$0xff] %vm374, %v1182
      %1311 = vst.msk [vmem:[%s1275 + $0x118] sm:$0x3f] %vm1096, %v1270
      %1312 = vst.msk [vmem:[%s1275 + $0x120] sm:$0xff] %vm374, %v1255
      %1313 = vst.msk [vmem:[%s1275 + $0x128] sm:$0xff] %vm374, %v1185
      %1314 = vst.msk [vmem:[%s1275 + $0x130] sm:$0x3f] %vm1096, %v1271
      %1315 = vst.msk [vmem:[%s1275 + $0x138] sm:$0xff] %vm374, %v1256
      %1316 = vst.msk [vmem:[%s1275 + $0x140] sm:$0xff] %vm374, %v1188
      %1317 = vst.msk [vmem:[%s1275 + $0x148] sm:$0x3f] %vm1096, %v1272
      %1318 = vst.msk [vmem:[%s1275 + $0x150] sm:$0xff] %vm374, %v1257
      %1319 = vst.msk [vmem:[%s1275 + $0x158] sm:$0xff] %vm374, %v1191
      %1320 = vst.msk [vmem:[%s1275 + $0x160] sm:$0x3f] %vm1096, %v1273
      %1321 = vst.msk [vmem:[%s1275 + $0x168] sm:$0xff] %vm374, %v1258
      %1322 = vst.msk [vmem:[%s1275 + $0x170] sm:$0xff] %vm374, %v1194
      %1323 = vst.msk [vmem:[%s1275 + $0x178] sm:$0x3f] %vm1096, %v1274
      %v1324 = vld [vmem:[#allocation2] sm:$0xff]
      %v1325 = vld [vmem:[#allocation2 + $0x8] sm:$0xff]
      %v1326 = vld [vmem:[#allocation2 + $0x10] sm:$0x3f]
      %v1327 = vld [vmem:[#allocation2 + $0x18] sm:$0xff]
      %v1328 = vld [vmem:[#allocation2 + $0x20] sm:$0xff]
      %v1329 = vld [vmem:[#allocation2 + $0x28] sm:$0x3f]
      %v1330 = vld [vmem:[#allocation2 + $0x30] sm:$0xff]
      %v1331 = vld [vmem:[#allocation2 + $0x38] sm:$0xff]
      %v1332 = vld [vmem:[#allocation2 + $0x40] sm:$0x3f]
      %v1333 = vld [vmem:[#allocation2 + $0x48] sm:$0xff]
      %v1334 = vld [vmem:[#allocation2 + $0x50] sm:$0xff]
      %v1335 = vld [vmem:[#allocation2 + $0x58] sm:$0x3f]
      %v1336 = vld [vmem:[#allocation2 + $0x60] sm:$0xff]
      %v1337 = vld [vmem:[#allocation2 + $0x68] sm:$0xff]
      %v1338 = vld [vmem:[#allocation2 + $0x70] sm:$0x3f]
      %v1339 = vld [vmem:[#allocation2 + $0x78] sm:$0xff]
      %v1340 = vld [vmem:[#allocation2 + $0x80] sm:$0xff]
      %v1341 = vld [vmem:[#allocation2 + $0x88] sm:$0x3f]
      %v1342 = vld [vmem:[#allocation2 + $0x90] sm:$0xff]
      %v1343 = vld [vmem:[#allocation2 + $0x98] sm:$0xff]
      %v1344 = vld [vmem:[#allocation2 + $0xa0] sm:$0x3f]
      %v1345 = vld [vmem:[#allocation2 + $0xa8] sm:$0xff]
      %v1346 = vld [vmem:[#allocation2 + $0xb0] sm:$0xff]
      %v1347 = vld [vmem:[#allocation2 + $0xb8] sm:$0x3f]
      %v1348 = vld [vmem:[#allocation2 + $0xc0] sm:$0xff]
      %v1349 = vld [vmem:[#allocation2 + $0xc8] sm:$0xff]
      %v1350 = vld [vmem:[#allocation2 + $0xd0] sm:$0x3f]
      %v1351 = vld [vmem:[#allocation2 + $0xd8] sm:$0xff]
      %v1352 = vld [vmem:[#allocation2 + $0xe0] sm:$0xff]
      %v1353 = vld [vmem:[#allocation2 + $0xe8] sm:$0x3f]
      %v1354 = vld [vmem:[#allocation2 + $0xf0] sm:$0xff]
      %v1355 = vld [vmem:[#allocation2 + $0xf8] sm:$0xff]
      %v1356 = vld [vmem:[#allocation2 + $0x100] sm:$0x3f]
      %v1357 = vld [vmem:[#allocation2 + $0x108] sm:$0xff]
      %v1358 = vld [vmem:[#allocation2 + $0x110] sm:$0xff]
      %v1359 = vld [vmem:[#allocation2 + $0x118] sm:$0x3f]
      %v1360 = vld [vmem:[#allocation2 + $0x120] sm:$0xff]
      %v1361 = vld [vmem:[#allocation2 + $0x128] sm:$0xff]
      %v1362 = vld [vmem:[#allocation2 + $0x130] sm:$0x3f]
      %v1363 = vld [vmem:[#allocation2 + $0x138] sm:$0xff]
      %v1364 = vld [vmem:[#allocation2 + $0x140] sm:$0xff]
      %v1365 = vld [vmem:[#allocation2 + $0x148] sm:$0x3f]
      %v1366 = vld [vmem:[#allocation2 + $0x150] sm:$0xff]
      %v1367 = vld [vmem:[#allocation2 + $0x158] sm:$0xff]
      %v1368 = vld [vmem:[#allocation2 + $0x160] sm:$0x3f]
      %v1369 = vld [vmem:[#allocation2 + $0x168] sm:$0xff]
      %v1370 = vld [vmem:[#allocation2 + $0x170] sm:$0xff]
      %v1371 = vld [vmem:[#allocation2 + $0x178] sm:$0x3f]
      %v1372 = vld [vmem:[#allocation2 + $0x180] sm:$0xff]
      %v1373 = vld [vmem:[#allocation2 + $0x188] sm:$0xff]
      %v1374 = vld [vmem:[#allocation2 + $0x190] sm:$0x3f]
      %v1375 = vld [vmem:[#allocation2 + $0x198] sm:$0xff]
      %v1376 = vld [vmem:[#allocation2 + $0x1a0] sm:$0xff]
      %v1377 = vld [vmem:[#allocation2 + $0x1a8] sm:$0x3f]
      %v1378 = vld [vmem:[#allocation2 + $0x1b0] sm:$0xff]
      %v1379 = vld [vmem:[#allocation2 + $0x1b8] sm:$0xff]
      %v1380 = vld [vmem:[#allocation2 + $0x1c0] sm:$0x3f]
      %v1381 = vld [vmem:[#allocation2 + $0x1c8] sm:$0xff]
      %v1382 = vld [vmem:[#allocation2 + $0x1d0] sm:$0xff]
      %v1383 = vld [vmem:[#allocation2 + $0x1d8] sm:$0x3f]
      %v1384 = vld [vmem:[#allocation2 + $0x1e0] sm:$0xff]
      %v1385 = vld [vmem:[#allocation2 + $0x1e8] sm:$0xff]
      %v1386 = vld [vmem:[#allocation2 + $0x1f0] sm:$0x3f]
      %v1387 = vld [vmem:[#allocation2 + $0x1f8] sm:$0xff]
      %v1388 = vld [vmem:[#allocation2 + $0x200] sm:$0xff]
      %v1389 = vld [vmem:[#allocation2 + $0x208] sm:$0x3f]
      %vm1456 = vcmask 1046528
      %v1457 = vrot.slane %v1324, 1
      %v1458 = vrot.slane %v1325, 1
      %v1459 = vsel %vm1456, %v1457, %v1458
      %v1460 = vrot.slane %v1326, 1
      %v1461 = vsel %vm1456, %v1458, %v1460
      %v1462 = vrot.slane %v1327, 1
      %v1463 = vrot.slane %v1328, 1
      %v1464 = vsel %vm1456, %v1462, %v1463
      %v1465 = vrot.slane %v1329, 1
      %v1466 = vsel %vm1456, %v1463, %v1465
      %v1467 = vrot.slane %v1330, 1
      %v1468 = vrot.slane %v1331, 1
      %v1469 = vsel %vm1456, %v1467, %v1468
      %v1470 = vrot.slane %v1332, 1
      %v1471 = vsel %vm1456, %v1468, %v1470
      %v1472 = vrot.slane %v1333, 1
      %v1473 = vrot.slane %v1334, 1
      %v1474 = vsel %vm1456, %v1472, %v1473
      %v1475 = vrot.slane %v1335, 1
      %v1476 = vsel %vm1456, %v1473, %v1475
      %v1477 = vrot.slane %v1336, 1
      %v1478 = vrot.slane %v1337, 1
      %v1479 = vsel %vm1456, %v1477, %v1478
      %v1480 = vrot.slane %v1338, 1
      %v1481 = vsel %vm1456, %v1478, %v1480
      %v1482 = vrot.slane %v1339, 1
      %v1483 = vrot.slane %v1340, 1
      %v1484 = vsel %vm1456, %v1482, %v1483
      %v1485 = vrot.slane %v1341, 1
      %v1486 = vsel %vm1456, %v1483, %v1485
      %v1487 = vrot.slane %v1342, 1
      %v1488 = vrot.slane %v1343, 1
      %v1489 = vsel %vm1456, %v1487, %v1488
      %v1490 = vrot.slane %v1344, 1
      %v1491 = vsel %vm1456, %v1488, %v1490
      %v1492 = vrot.slane %v1345, 1
      %v1493 = vrot.slane %v1346, 1
      %v1494 = vsel %vm1456, %v1492, %v1493
      %v1495 = vrot.slane %v1347, 1
      %v1496 = vsel %vm1456, %v1493, %v1495
      %v1497 = vrot.slane %v1348, 1
      %v1498 = vrot.slane %v1349, 1
      %v1499 = vsel %vm1456, %v1497, %v1498
      %v1500 = vrot.slane %v1350, 1
      %v1501 = vsel %vm1456, %v1498, %v1500
      %v1502 = vrot.slane %v1351, 1
      %v1503 = vrot.slane %v1352, 1
      %v1504 = vsel %vm1456, %v1502, %v1503
      %v1505 = vrot.slane %v1353, 1
      %v1506 = vsel %vm1456, %v1503, %v1505
      %v1507 = vrot.slane %v1354, 1
      %v1508 = vrot.slane %v1355, 1
      %v1509 = vsel %vm1456, %v1507, %v1508
      %v1510 = vrot.slane %v1356, 1
      %v1511 = vsel %vm1456, %v1508, %v1510
      %v1512 = vrot.slane %v1357, 1
      %v1513 = vrot.slane %v1358, 1
      %v1514 = vsel %vm1456, %v1512, %v1513
      %v1515 = vrot.slane %v1359, 1
      %v1516 = vsel %vm1456, %v1513, %v1515
      %v1517 = vrot.slane %v1360, 1
      %v1518 = vrot.slane %v1361, 1
      %v1519 = vsel %vm1456, %v1517, %v1518
      %v1520 = vrot.slane %v1362, 1
      %v1521 = vsel %vm1456, %v1518, %v1520
      %v1522 = vrot.slane %v1363, 1
      %v1523 = vrot.slane %v1364, 1
      %v1524 = vsel %vm1456, %v1522, %v1523
      %v1525 = vrot.slane %v1365, 1
      %v1526 = vsel %vm1456, %v1523, %v1525
      %v1527 = vrot.slane %v1366, 1
      %v1528 = vrot.slane %v1367, 1
      %v1529 = vsel %vm1456, %v1527, %v1528
      %v1530 = vrot.slane %v1368, 1
      %v1531 = vsel %vm1456, %v1528, %v1530
      %v1532 = vrot.slane %v1369, 1
      %v1533 = vrot.slane %v1370, 1
      %v1534 = vsel %vm1456, %v1532, %v1533
      %v1535 = vrot.slane %v1371, 1
      %v1536 = vsel %vm1456, %v1533, %v1535
      %v1537 = vrot.slane %v1372, 1
      %v1538 = vrot.slane %v1373, 1
      %v1539 = vsel %vm1456, %v1537, %v1538
      %v1540 = vrot.slane %v1374, 1
      %v1541 = vsel %vm1456, %v1538, %v1540
      %v1542 = vrot.slane %v1375, 1
      %v1543 = vrot.slane %v1376, 1
      %v1544 = vsel %vm1456, %v1542, %v1543
      %v1545 = vrot.slane %v1377, 1
      %v1546 = vsel %vm1456, %v1543, %v1545
      %v1547 = vrot.slane %v1378, 1
      %v1548 = vrot.slane %v1379, 1
      %v1549 = vsel %vm1456, %v1547, %v1548
      %v1550 = vrot.slane %v1380, 1
      %v1551 = vsel %vm1456, %v1548, %v1550
      %v1552 = vrot.slane %v1381, 1
      %v1553 = vrot.slane %v1382, 1
      %v1554 = vsel %vm1456, %v1552, %v1553
      %v1555 = vrot.slane %v1383, 1
      %v1556 = vsel %vm1456, %v1553, %v1555
      %v1557 = vrot.slane %v1384, 1
      %v1558 = vrot.slane %v1385, 1
      %v1559 = vsel %vm1456, %v1557, %v1558
      %v1560 = vrot.slane %v1386, 1
      %v1561 = vsel %vm1456, %v1558, %v1560
      %v1562 = vrot.slane %v1387, 1
      %v1563 = vrot.slane %v1388, 1
      %v1564 = vsel %vm1456, %v1562, %v1563
      %v1565 = vrot.slane %v1389, 1
      %v1566 = vsel %vm1456, %v1563, %v1565
      %1567 = vrot.lane.b32.xlu0 %v1459, 16
      %v1568 = vpop.permute.xlu0 %1567
      %1569 = vrot.lane.b32.xlu0 %v1461, 16
      %v1570 = vpop.permute.xlu0 %1569
      %1571 = vrot.lane.b32.xlu0 %v1464, 16
      %v1572 = vpop.permute.xlu0 %1571
      %1573 = vrot.lane.b32.xlu0 %v1466, 16
      %v1574 = vpop.permute.xlu0 %1573
      %1575 = vrot.lane.b32.xlu0 %v1469, 16
      %v1576 = vpop.permute.xlu0 %1575
      %1577 = vrot.lane.b32.xlu0 %v1471, 16
      %v1578 = vpop.permute.xlu0 %1577
      %1579 = vrot.lane.b32.xlu0 %v1474, 16
      %v1580 = vpop.permute.xlu0 %1579
      %1581 = vrot.lane.b32.xlu0 %v1476, 16
      %v1582 = vpop.permute.xlu0 %1581
      %1583 = vrot.lane.b32.xlu0 %v1479, 16
      %v1584 = vpop.permute.xlu0 %1583
      %1585 = vrot.lane.b32.xlu0 %v1481, 16
      %v1586 = vpop.permute.xlu0 %1585
      %1587 = vrot.lane.b32.xlu0 %v1484, 16
      %v1588 = vpop.permute.xlu0 %1587
      %1589 = vrot.lane.b32.xlu0 %v1486, 16
      %v1590 = vpop.permute.xlu0 %1589
      %1591 = vrot.lane.b32.xlu0 %v1489, 16
      %v1592 = vpop.permute.xlu0 %1591
      %1593 = vrot.lane.b32.xlu0 %v1491, 16
      %v1594 = vpop.permute.xlu0 %1593
      %1595 = vrot.lane.b32.xlu0 %v1494, 16
      %v1596 = vpop.permute.xlu0 %1595
      %1597 = vrot.lane.b32.xlu0 %v1496, 16
      %v1598 = vpop.permute.xlu0 %1597
      %1599 = vrot.lane.b32.xlu0 %v1499, 16
      %v1600 = vpop.permute.xlu0 %1599
      %1601 = vrot.lane.b32.xlu0 %v1501, 16
      %v1602 = vpop.permute.xlu0 %1601
      %1603 = vrot.lane.b32.xlu0 %v1504, 16
      %v1604 = vpop.permute.xlu0 %1603
      %1605 = vrot.lane.b32.xlu0 %v1506, 16
      %v1606 = vpop.permute.xlu0 %1605
      %1607 = vrot.lane.b32.xlu0 %v1509, 16
      %v1608 = vpop.permute.xlu0 %1607
      %1609 = vrot.lane.b32.xlu0 %v1511, 16
      %v1610 = vpop.permute.xlu0 %1609
      %1611 = vrot.lane.b32.xlu0 %v1514, 16
      %v1612 = vpop.permute.xlu0 %1611
      %1613 = vrot.lane.b32.xlu0 %v1516, 16
      %v1614 = vpop.permute.xlu0 %1613
      %1615 = vrot.lane.b32.xlu0 %v1519, 16
      %v1616 = vpop.permute.xlu0 %1615
      %1617 = vrot.lane.b32.xlu0 %v1521, 16
      %v1618 = vpop.permute.xlu0 %1617
      %1619 = vrot.lane.b32.xlu0 %v1524, 16
      %v1620 = vpop.permute.xlu0 %1619
      %1621 = vrot.lane.b32.xlu0 %v1526, 16
      %v1622 = vpop.permute.xlu0 %1621
      %1623 = vrot.lane.b32.xlu0 %v1529, 16
      %v1624 = vpop.permute.xlu0 %1623
      %1625 = vrot.lane.b32.xlu0 %v1531, 16
      %v1626 = vpop.permute.xlu0 %1625
      %1627 = vrot.lane.b32.xlu0 %v1534, 16
      %v1628 = vpop.permute.xlu0 %1627
      %1629 = vrot.lane.b32.xlu0 %v1536, 16
      %v1630 = vpop.permute.xlu0 %1629
      %1631 = vrot.lane.b32.xlu0 %v1539, 16
      %v1632 = vpop.permute.xlu0 %1631
      %1633 = vrot.lane.b32.xlu0 %v1541, 16
      %v1634 = vpop.permute.xlu0 %1633
      %1635 = vrot.lane.b32.xlu0 %v1544, 16
      %v1636 = vpop.permute.xlu0 %1635
      %1637 = vrot.lane.b32.xlu0 %v1546, 16
      %v1638 = vpop.permute.xlu0 %1637
      %1639 = vrot.lane.b32.xlu0 %v1549, 16
      %v1640 = vpop.permute.xlu0 %1639
      %1641 = vrot.lane.b32.xlu0 %v1551, 16
      %v1642 = vpop.permute.xlu0 %1641
      %1643 = vrot.lane.b32.xlu0 %v1554, 16
      %v1644 = vpop.permute.xlu0 %1643
      %1645 = vrot.lane.b32.xlu0 %v1556, 16
      %v1646 = vpop.permute.xlu0 %1645
      %1647 = vrot.lane.b32.xlu0 %v1559, 16
      %v1648 = vpop.permute.xlu0 %1647
      %1649 = vrot.lane.b32.xlu0 %v1561, 16
      %v1650 = vpop.permute.xlu0 %1649
      %1651 = vrot.lane.b32.xlu0 %v1564, 16
      %v1652 = vpop.permute.xlu0 %1651
      %1653 = vrot.lane.b32.xlu0 %v1566, 16
      %v1654 = vpop.permute.xlu0 %1653
      %vm1699 = vcmask 1045504
      %v1700 = vrot.slane %v1324, 2
      %v1701 = vrot.slane %v1325, 2
      %v1702 = vsel %vm1699, %v1700, %v1701
      %v1703 = vrot.slane %v1326, 2
      %v1704 = vsel %vm1699, %v1701, %v1703
      %v1705 = vrot.slane %v1327, 2
      %v1706 = vrot.slane %v1328, 2
      %v1707 = vsel %vm1699, %v1705, %v1706
      %v1708 = vrot.slane %v1329, 2
      %v1709 = vsel %vm1699, %v1706, %v1708
      %v1710 = vrot.slane %v1330, 2
      %v1711 = vrot.slane %v1331, 2
      %v1712 = vsel %vm1699, %v1710, %v1711
      %v1713 = vrot.slane %v1332, 2
      %v1714 = vsel %vm1699, %v1711, %v1713
      %v1715 = vrot.slane %v1333, 2
      %v1716 = vrot.slane %v1334, 2
      %v1717 = vsel %vm1699, %v1715, %v1716
      %v1718 = vrot.slane %v1335, 2
      %v1719 = vsel %vm1699, %v1716, %v1718
      %v1720 = vrot.slane %v1336, 2
      %v1721 = vrot.slane %v1337, 2
      %v1722 = vsel %vm1699, %v1720, %v1721
      %v1723 = vrot.slane %v1338, 2
      %v1724 = vsel %vm1699, %v1721, %v1723
      %v1725 = vrot.slane %v1339, 2
      %v1726 = vrot.slane %v1340, 2
      %v1727 = vsel %vm1699, %v1725, %v1726
      %v1728 = vrot.slane %v1341, 2
      %v1729 = vsel %vm1699, %v1726, %v1728
      %v1730 = vrot.slane %v1342, 2
      %v1731 = vrot.slane %v1343, 2
      %v1732 = vsel %vm1699, %v1730, %v1731
      %v1733 = vrot.slane %v1344, 2
      %v1734 = vsel %vm1699, %v1731, %v1733
      %v1735 = vrot.slane %v1345, 2
      %v1736 = vrot.slane %v1346, 2
      %v1737 = vsel %vm1699, %v1735, %v1736
      %v1738 = vrot.slane %v1347, 2
      %v1739 = vsel %vm1699, %v1736, %v1738
      %v1740 = vrot.slane %v1348, 2
      %v1741 = vrot.slane %v1349, 2
      %v1742 = vsel %vm1699, %v1740, %v1741
      %v1743 = vrot.slane %v1350, 2
      %v1744 = vsel %vm1699, %v1741, %v1743
      %v1745 = vrot.slane %v1351, 2
      %v1746 = vrot.slane %v1352, 2
      %v1747 = vsel %vm1699, %v1745, %v1746
      %v1748 = vrot.slane %v1353, 2
      %v1749 = vsel %vm1699, %v1746, %v1748
      %v1750 = vrot.slane %v1354, 2
      %v1751 = vrot.slane %v1355, 2
      %v1752 = vsel %vm1699, %v1750, %v1751
      %v1753 = vrot.slane %v1356, 2
      %v1754 = vsel %vm1699, %v1751, %v1753
      %v1755 = vrot.slane %v1357, 2
      %v1756 = vrot.slane %v1358, 2
      %v1757 = vsel %vm1699, %v1755, %v1756
      %v1758 = vrot.slane %v1359, 2
      %v1759 = vsel %vm1699, %v1756, %v1758
      %v1760 = vrot.slane %v1360, 2
      %v1761 = vrot.slane %v1361, 2
      %v1762 = vsel %vm1699, %v1760, %v1761
      %v1763 = vrot.slane %v1362, 2
      %v1764 = vsel %vm1699, %v1761, %v1763
      %v1765 = vrot.slane %v1363, 2
      %v1766 = vrot.slane %v1364, 2
      %v1767 = vsel %vm1699, %v1765, %v1766
      %v1768 = vrot.slane %v1365, 2
      %v1769 = vsel %vm1699, %v1766, %v1768
      %v1770 = vrot.slane %v1366, 2
      %v1771 = vrot.slane %v1367, 2
      %v1772 = vsel %vm1699, %v1770, %v1771
      %v1773 = vrot.slane %v1368, 2
      %v1774 = vsel %vm1699, %v1771, %v1773
      %v1775 = vrot.slane %v1369, 2
      %v1776 = vrot.slane %v1370, 2
      %v1777 = vsel %vm1699, %v1775, %v1776
      %v1778 = vrot.slane %v1371, 2
      %v1779 = vsel %vm1699, %v1776, %v1778
      %v1780 = vrot.slane %v1372, 2
      %v1781 = vrot.slane %v1373, 2
      %v1782 = vsel %vm1699, %v1780, %v1781
      %v1783 = vrot.slane %v1374, 2
      %v1784 = vsel %vm1699, %v1781, %v1783
      %v1785 = vrot.slane %v1375, 2
      %v1786 = vrot.slane %v1376, 2
      %v1787 = vsel %vm1699, %v1785, %v1786
      %v1788 = vrot.slane %v1377, 2
      %v1789 = vsel %vm1699, %v1786, %v1788
      %v1790 = vrot.slane %v1378, 2
      %v1791 = vrot.slane %v1379, 2
      %v1792 = vsel %vm1699, %v1790, %v1791
      %v1793 = vrot.slane %v1380, 2
      %v1794 = vsel %vm1699, %v1791, %v1793
      %v1795 = vrot.slane %v1381, 2
      %v1796 = vrot.slane %v1382, 2
      %v1797 = vsel %vm1699, %v1795, %v1796
      %v1798 = vrot.slane %v1383, 2
      %v1799 = vsel %vm1699, %v1796, %v1798
      %v1800 = vrot.slane %v1384, 2
      %v1801 = vrot.slane %v1385, 2
      %v1802 = vsel %vm1699, %v1800, %v1801
      %v1803 = vrot.slane %v1386, 2
      %v1804 = vsel %vm1699, %v1801, %v1803
      %v1805 = vrot.slane %v1387, 2
      %v1806 = vrot.slane %v1388, 2
      %v1807 = vsel %vm1699, %v1805, %v1806
      %v1808 = vrot.slane %v1389, 2
      %v1809 = vsel %vm1699, %v1806, %v1808
      %1810 = vrot.lane.b32.xlu0 %v1702, 32
      %v1811 = vpop.permute.xlu0 %1810
      %1812 = vrot.lane.b32.xlu0 %v1704, 32
      %v1813 = vpop.permute.xlu0 %1812
      %1814 = vrot.lane.b32.xlu0 %v1707, 32
      %v1815 = vpop.permute.xlu0 %1814
      %1816 = vrot.lane.b32.xlu0 %v1709, 32
      %v1817 = vpop.permute.xlu0 %1816
      %1818 = vrot.lane.b32.xlu0 %v1712, 32
      %v1819 = vpop.permute.xlu0 %1818
      %1820 = vrot.lane.b32.xlu0 %v1714, 32
      %v1821 = vpop.permute.xlu0 %1820
      %1822 = vrot.lane.b32.xlu0 %v1717, 32
      %v1823 = vpop.permute.xlu0 %1822
      %1824 = vrot.lane.b32.xlu0 %v1719, 32
      %v1825 = vpop.permute.xlu0 %1824
      %1826 = vrot.lane.b32.xlu0 %v1722, 32
      %v1827 = vpop.permute.xlu0 %1826
      %1828 = vrot.lane.b32.xlu0 %v1724, 32
      %v1829 = vpop.permute.xlu0 %1828
      %1830 = vrot.lane.b32.xlu0 %v1727, 32
      %v1831 = vpop.permute.xlu0 %1830
      %1832 = vrot.lane.b32.xlu0 %v1729, 32
      %v1833 = vpop.permute.xlu0 %1832
      %1834 = vrot.lane.b32.xlu0 %v1732, 32
      %v1835 = vpop.permute.xlu0 %1834
      %1836 = vrot.lane.b32.xlu0 %v1734, 32
      %v1837 = vpop.permute.xlu0 %1836
      %1838 = vrot.lane.b32.xlu0 %v1737, 32
      %v1839 = vpop.permute.xlu0 %1838
      %1840 = vrot.lane.b32.xlu0 %v1739, 32
      %v1841 = vpop.permute.xlu0 %1840
      %1842 = vrot.lane.b32.xlu0 %v1742, 32
      %v1843 = vpop.permute.xlu0 %1842
      %1844 = vrot.lane.b32.xlu0 %v1744, 32
      %v1845 = vpop.permute.xlu0 %1844
      %1846 = vrot.lane.b32.xlu0 %v1747, 32
      %v1847 = vpop.permute.xlu0 %1846
      %1848 = vrot.lane.b32.xlu0 %v1749, 32
      %v1849 = vpop.permute.xlu0 %1848
      %1850 = vrot.lane.b32.xlu0 %v1752, 32
      %v1851 = vpop.permute.xlu0 %1850
      %1852 = vrot.lane.b32.xlu0 %v1754, 32
      %v1853 = vpop.permute.xlu0 %1852
      %1854 = vrot.lane.b32.xlu0 %v1757, 32
      %v1855 = vpop.permute.xlu0 %1854
      %1856 = vrot.lane.b32.xlu0 %v1759, 32
      %v1857 = vpop.permute.xlu0 %1856
      %1858 = vrot.lane.b32.xlu0 %v1762, 32
      %v1859 = vpop.permute.xlu0 %1858
      %1860 = vrot.lane.b32.xlu0 %v1764, 32
      %v1861 = vpop.permute.xlu0 %1860
      %1862 = vrot.lane.b32.xlu0 %v1767, 32
      %v1863 = vpop.permute.xlu0 %1862
      %1864 = vrot.lane.b32.xlu0 %v1769, 32
      %v1865 = vpop.permute.xlu0 %1864
      %1866 = vrot.lane.b32.xlu0 %v1772, 32
      %v1867 = vpop.permute.xlu0 %1866
      %1868 = vrot.lane.b32.xlu0 %v1774, 32
      %v1869 = vpop.permute.xlu0 %1868
      %1870 = vrot.lane.b32.xlu0 %v1777, 32
      %v1871 = vpop.permute.xlu0 %1870
      %1872 = vrot.lane.b32.xlu0 %v1779, 32
      %v1873 = vpop.permute.xlu0 %1872
      %1874 = vrot.lane.b32.xlu0 %v1782, 32
      %v1875 = vpop.permute.xlu0 %1874
      %1876 = vrot.lane.b32.xlu0 %v1784, 32
      %v1877 = vpop.permute.xlu0 %1876
      %1878 = vrot.lane.b32.xlu0 %v1787, 32
      %v1879 = vpop.permute.xlu0 %1878
      %1880 = vrot.lane.b32.xlu0 %v1789, 32
      %v1881 = vpop.permute.xlu0 %1880
      %1882 = vrot.lane.b32.xlu0 %v1792, 32
      %v1883 = vpop.permute.xlu0 %1882
      %1884 = vrot.lane.b32.xlu0 %v1794, 32
      %v1885 = vpop.permute.xlu0 %1884
      %1886 = vrot.lane.b32.xlu0 %v1797, 32
      %v1887 = vpop.permute.xlu0 %1886
      %1888 = vrot.lane.b32.xlu0 %v1799, 32
      %v1889 = vpop.permute.xlu0 %1888
      %1890 = vrot.lane.b32.xlu0 %v1802, 32
      %v1891 = vpop.permute.xlu0 %1890
      %1892 = vrot.lane.b32.xlu0 %v1804, 32
      %v1893 = vpop.permute.xlu0 %1892
      %1894 = vrot.lane.b32.xlu0 %v1807, 32
      %v1895 = vpop.permute.xlu0 %1894
      %1896 = vrot.lane.b32.xlu0 %v1809, 32
      %v1897 = vpop.permute.xlu0 %1896
      %vm1942 = vcmask 1044480
      %v1943 = vrot.slane %v1324, 3
      %v1944 = vrot.slane %v1325, 3
      %v1945 = vsel %vm1942, %v1943, %v1944
      %v1946 = vrot.slane %v1326, 3
      %v1947 = vsel %vm1942, %v1944, %v1946
      %v1948 = vrot.slane %v1327, 3
      %v1949 = vrot.slane %v1328, 3
      %v1950 = vsel %vm1942, %v1948, %v1949
      %v1951 = vrot.slane %v1329, 3
      %v1952 = vsel %vm1942, %v1949, %v1951
      %v1953 = vrot.slane %v1330, 3
      %v1954 = vrot.slane %v1331, 3
      %v1955 = vsel %vm1942, %v1953, %v1954
      %v1956 = vrot.slane %v1332, 3
      %v1957 = vsel %vm1942, %v1954, %v1956
      %v1958 = vrot.slane %v1333, 3
      %v1959 = vrot.slane %v1334, 3
      %v1960 = vsel %vm1942, %v1958, %v1959
      %v1961 = vrot.slane %v1335, 3
      %v1962 = vsel %vm1942, %v1959, %v1961
      %v1963 = vrot.slane %v1336, 3
      %v1964 = vrot.slane %v1337, 3
      %v1965 = vsel %vm1942, %v1963, %v1964
      %v1966 = vrot.slane %v1338, 3
      %v1967 = vsel %vm1942, %v1964, %v1966
      %v1968 = vrot.slane %v1339, 3
      %v1969 = vrot.slane %v1340, 3
      %v1970 = vsel %vm1942, %v1968, %v1969
      %v1971 = vrot.slane %v1341, 3
      %v1972 = vsel %vm1942, %v1969, %v1971
      %v1973 = vrot.slane %v1342, 3
      %v1974 = vrot.slane %v1343, 3
      %v1975 = vsel %vm1942, %v1973, %v1974
      %v1976 = vrot.slane %v1344, 3
      %v1977 = vsel %vm1942, %v1974, %v1976
      %v1978 = vrot.slane %v1345, 3
      %v1979 = vrot.slane %v1346, 3
      %v1980 = vsel %vm1942, %v1978, %v1979
      %v1981 = vrot.slane %v1347, 3
      %v1982 = vsel %vm1942, %v1979, %v1981
      %v1983 = vrot.slane %v1348, 3
      %v1984 = vrot.slane %v1349, 3
      %v1985 = vsel %vm1942, %v1983, %v1984
      %v1986 = vrot.slane %v1350, 3
      %v1987 = vsel %vm1942, %v1984, %v1986
      %v1988 = vrot.slane %v1351, 3
      %v1989 = vrot.slane %v1352, 3
      %v1990 = vsel %vm1942, %v1988, %v1989
      %v1991 = vrot.slane %v1353, 3
      %v1992 = vsel %vm1942, %v1989, %v1991
      %v1993 = vrot.slane %v1354, 3
      %v1994 = vrot.slane %v1355, 3
      %v1995 = vsel %vm1942, %v1993, %v1994
      %v1996 = vrot.slane %v1356, 3
      %v1997 = vsel %vm1942, %v1994, %v1996
      %v1998 = vrot.slane %v1357, 3
      %v1999 = vrot.slane %v1358, 3
      %v2000 = vsel %vm1942, %v1998, %v1999
      %v2001 = vrot.slane %v1359, 3
      %v2002 = vsel %vm1942, %v1999, %v2001
      %v2003 = vrot.slane %v1360, 3
      %v2004 = vrot.slane %v1361, 3
      %v2005 = vsel %vm1942, %v2003, %v2004
      %v2006 = vrot.slane %v1362, 3
      %v2007 = vsel %vm1942, %v2004, %v2006
      %v2008 = vrot.slane %v1363, 3
      %v2009 = vrot.slane %v1364, 3
      %v2010 = vsel %vm1942, %v2008, %v2009
      %v2011 = vrot.slane %v1365, 3
      %v2012 = vsel %vm1942, %v2009, %v2011
      %v2013 = vrot.slane %v1366, 3
      %v2014 = vrot.slane %v1367, 3
      %v2015 = vsel %vm1942, %v2013, %v2014
      %v2016 = vrot.slane %v1368, 3
      %v2017 = vsel %vm1942, %v2014, %v2016
      %v2018 = vrot.slane %v1369, 3
      %v2019 = vrot.slane %v1370, 3
      %v2020 = vsel %vm1942, %v2018, %v2019
      %v2021 = vrot.slane %v1371, 3
      %v2022 = vsel %vm1942, %v2019, %v2021
      %v2023 = vrot.slane %v1372, 3
      %v2024 = vrot.slane %v1373, 3
      %v2025 = vsel %vm1942, %v2023, %v2024
      %v2026 = vrot.slane %v1374, 3
      %v2027 = vsel %vm1942, %v2024, %v2026
      %v2028 = vrot.slane %v1375, 3
      %v2029 = vrot.slane %v1376, 3
      %v2030 = vsel %vm1942, %v2028, %v2029
      %v2031 = vrot.slane %v1377, 3
      %v2032 = vsel %vm1942, %v2029, %v2031
      %v2033 = vrot.slane %v1378, 3
      %v2034 = vrot.slane %v1379, 3
      %v2035 = vsel %vm1942, %v2033, %v2034
      %v2036 = vrot.slane %v1380, 3
      %v2037 = vsel %vm1942, %v2034, %v2036
      %v2038 = vrot.slane %v1381, 3
      %v2039 = vrot.slane %v1382, 3
      %v2040 = vsel %vm1942, %v2038, %v2039
      %v2041 = vrot.slane %v1383, 3
      %v2042 = vsel %vm1942, %v2039, %v2041
      %v2043 = vrot.slane %v1384, 3
      %v2044 = vrot.slane %v1385, 3
      %v2045 = vsel %vm1942, %v2043, %v2044
      %v2046 = vrot.slane %v1386, 3
      %v2047 = vsel %vm1942, %v2044, %v2046
      %v2048 = vrot.slane %v1387, 3
      %v2049 = vrot.slane %v1388, 3
      %v2050 = vsel %vm1942, %v2048, %v2049
      %v2051 = vrot.slane %v1389, 3
      %v2052 = vsel %vm1942, %v2049, %v2051
      %2053 = vrot.lane.b32.xlu0 %v1945, 48
      %v2054 = vpop.permute.xlu0 %2053
      %2055 = vrot.lane.b32.xlu0 %v1947, 48
      %v2056 = vpop.permute.xlu0 %2055
      %2057 = vrot.lane.b32.xlu0 %v1950, 48
      %v2058 = vpop.permute.xlu0 %2057
      %2059 = vrot.lane.b32.xlu0 %v1952, 48
      %v2060 = vpop.permute.xlu0 %2059
      %2061 = vrot.lane.b32.xlu0 %v1955, 48
      %v2062 = vpop.permute.xlu0 %2061
      %2063 = vrot.lane.b32.xlu0 %v1957, 48
      %v2064 = vpop.permute.xlu0 %2063
      %2065 = vrot.lane.b32.xlu0 %v1960, 48
      %v2066 = vpop.permute.xlu0 %2065
      %2067 = vrot.lane.b32.xlu0 %v1962, 48
      %v2068 = vpop.permute.xlu0 %2067
      %2069 = vrot.lane.b32.xlu0 %v1965, 48
      %v2070 = vpop.permute.xlu0 %2069
      %2071 = vrot.lane.b32.xlu0 %v1967, 48
      %v2072 = vpop.permute.xlu0 %2071
      %2073 = vrot.lane.b32.xlu0 %v1970, 48
      %v2074 = vpop.permute.xlu0 %2073
      %2075 = vrot.lane.b32.xlu0 %v1972, 48
      %v2076 = vpop.permute.xlu0 %2075
      %2077 = vrot.lane.b32.xlu0 %v1975, 48
      %v2078 = vpop.permute.xlu0 %2077
      %2079 = vrot.lane.b32.xlu0 %v1977, 48
      %v2080 = vpop.permute.xlu0 %2079
      %2081 = vrot.lane.b32.xlu0 %v1980, 48
      %v2082 = vpop.permute.xlu0 %2081
      %2083 = vrot.lane.b32.xlu0 %v1982, 48
      %v2084 = vpop.permute.xlu0 %2083
      %2085 = vrot.lane.b32.xlu0 %v1985, 48
      %v2086 = vpop.permute.xlu0 %2085
      %2087 = vrot.lane.b32.xlu0 %v1987, 48
      %v2088 = vpop.permute.xlu0 %2087
      %2089 = vrot.lane.b32.xlu0 %v1990, 48
      %v2090 = vpop.permute.xlu0 %2089
      %2091 = vrot.lane.b32.xlu0 %v1992, 48
      %v2092 = vpop.permute.xlu0 %2091
      %2093 = vrot.lane.b32.xlu0 %v1995, 48
      %v2094 = vpop.permute.xlu0 %2093
      %2095 = vrot.lane.b32.xlu0 %v1997, 48
      %v2096 = vpop.permute.xlu0 %2095
      %2097 = vrot.lane.b32.xlu0 %v2000, 48
      %v2098 = vpop.permute.xlu0 %2097
      %2099 = vrot.lane.b32.xlu0 %v2002, 48
      %v2100 = vpop.permute.xlu0 %2099
      %2101 = vrot.lane.b32.xlu0 %v2005, 48
      %v2102 = vpop.permute.xlu0 %2101
      %2103 = vrot.lane.b32.xlu0 %v2007, 48
      %v2104 = vpop.permute.xlu0 %2103
      %2105 = vrot.lane.b32.xlu0 %v2010, 48
      %v2106 = vpop.permute.xlu0 %2105
      %2107 = vrot.lane.b32.xlu0 %v2012, 48
      %v2108 = vpop.permute.xlu0 %2107
      %2109 = vrot.lane.b32.xlu0 %v2015, 48
      %v2110 = vpop.permute.xlu0 %2109
      %2111 = vrot.lane.b32.xlu0 %v2017, 48
      %v2112 = vpop.permute.xlu0 %2111
      %2113 = vrot.lane.b32.xlu0 %v2020, 48
      %v2114 = vpop.permute.xlu0 %2113
      %2115 = vrot.lane.b32.xlu0 %v2022, 48
      %v2116 = vpop.permute.xlu0 %2115
      %2117 = vrot.lane.b32.xlu0 %v2025, 48
      %v2118 = vpop.permute.xlu0 %2117
      %2119 = vrot.lane.b32.xlu0 %v2027, 48
      %v2120 = vpop.permute.xlu0 %2119
      %2121 = vrot.lane.b32.xlu0 %v2030, 48
      %v2122 = vpop.permute.xlu0 %2121
      %2123 = vrot.lane.b32.xlu0 %v2032, 48
      %v2124 = vpop.permute.xlu0 %2123
      %2125 = vrot.lane.b32.xlu0 %v2035, 48
      %v2126 = vpop.permute.xlu0 %2125
      %2127 = vrot.lane.b32.xlu0 %v2037, 48
      %v2128 = vpop.permute.xlu0 %2127
      %2129 = vrot.lane.b32.xlu0 %v2040, 48
      %v2130 = vpop.permute.xlu0 %2129
      %2131 = vrot.lane.b32.xlu0 %v2042, 48
      %v2132 = vpop.permute.xlu0 %2131
      %2133 = vrot.lane.b32.xlu0 %v2045, 48
      %v2134 = vpop.permute.xlu0 %2133
      %2135 = vrot.lane.b32.xlu0 %v2047, 48
      %v2136 = vpop.permute.xlu0 %2135
      %2137 = vrot.lane.b32.xlu0 %v2050, 48
      %v2138 = vpop.permute.xlu0 %2137
      %2139 = vrot.lane.b32.xlu0 %v2052, 48
      %v2140 = vpop.permute.xlu0 %2139
      %v2185 = vrot.slane %v1324, 4
      %v2186 = vrot.slane %v1325, 4
      %v2187 = vsel %vm833, %v2185, %v2186
      %v2188 = vrot.slane %v1326, 4
      %v2189 = vsel %vm833, %v2186, %v2188
      %v2190 = vrot.slane %v1327, 4
      %v2191 = vrot.slane %v1328, 4
      %v2192 = vsel %vm833, %v2190, %v2191
      %v2193 = vrot.slane %v1329, 4
      %v2194 = vsel %vm833, %v2191, %v2193
      %v2195 = vrot.slane %v1330, 4
      %v2196 = vrot.slane %v1331, 4
      %v2197 = vsel %vm833, %v2195, %v2196
      %v2198 = vrot.slane %v1332, 4
      %v2199 = vsel %vm833, %v2196, %v2198
      %v2200 = vrot.slane %v1333, 4
      %v2201 = vrot.slane %v1334, 4
      %v2202 = vsel %vm833, %v2200, %v2201
      %v2203 = vrot.slane %v1335, 4
      %v2204 = vsel %vm833, %v2201, %v2203
      %v2205 = vrot.slane %v1336, 4
      %v2206 = vrot.slane %v1337, 4
      %v2207 = vsel %vm833, %v2205, %v2206
      %v2208 = vrot.slane %v1338, 4
      %v2209 = vsel %vm833, %v2206, %v2208
      %v2210 = vrot.slane %v1339, 4
      %v2211 = vrot.slane %v1340, 4
      %v2212 = vsel %vm833, %v2210, %v2211
      %v2213 = vrot.slane %v1341, 4
      %v2214 = vsel %vm833, %v2211, %v2213
      %v2215 = vrot.slane %v1342, 4
      %v2216 = vrot.slane %v1343, 4
      %v2217 = vsel %vm833, %v2215, %v2216
      %v2218 = vrot.slane %v1344, 4
      %v2219 = vsel %vm833, %v2216, %v2218
      %v2220 = vrot.slane %v1345, 4
      %v2221 = vrot.slane %v1346, 4
      %v2222 = vsel %vm833, %v2220, %v2221
      %v2223 = vrot.slane %v1347, 4
      %v2224 = vsel %vm833, %v2221, %v2223
      %v2225 = vrot.slane %v1348, 4
      %v2226 = vrot.slane %v1349, 4
      %v2227 = vsel %vm833, %v2225, %v2226
      %v2228 = vrot.slane %v1350, 4
      %v2229 = vsel %vm833, %v2226, %v2228
      %v2230 = vrot.slane %v1351, 4
      %v2231 = vrot.slane %v1352, 4
      %v2232 = vsel %vm833, %v2230, %v2231
      %v2233 = vrot.slane %v1353, 4
      %v2234 = vsel %vm833, %v2231, %v2233
      %v2235 = vrot.slane %v1354, 4
      %v2236 = vrot.slane %v1355, 4
      %v2237 = vsel %vm833, %v2235, %v2236
      %v2238 = vrot.slane %v1356, 4
      %v2239 = vsel %vm833, %v2236, %v2238
      %v2240 = vrot.slane %v1357, 4
      %v2241 = vrot.slane %v1358, 4
      %v2242 = vsel %vm833, %v2240, %v2241
      %v2243 = vrot.slane %v1359, 4
      %v2244 = vsel %vm833, %v2241, %v2243
      %v2245 = vrot.slane %v1360, 4
      %v2246 = vrot.slane %v1361, 4
      %v2247 = vsel %vm833, %v2245, %v2246
      %v2248 = vrot.slane %v1362, 4
      %v2249 = vsel %vm833, %v2246, %v2248
      %v2250 = vrot.slane %v1363, 4
      %v2251 = vrot.slane %v1364, 4
      %v2252 = vsel %vm833, %v2250, %v2251
      %v2253 = vrot.slane %v1365, 4
      %v2254 = vsel %vm833, %v2251, %v2253
      %v2255 = vrot.slane %v1366, 4
      %v2256 = vrot.slane %v1367, 4
      %v2257 = vsel %vm833, %v2255, %v2256
      %v2258 = vrot.slane %v1368, 4
      %v2259 = vsel %vm833, %v2256, %v2258
      %v2260 = vrot.slane %v1369, 4
      %v2261 = vrot.slane %v1370, 4
      %v2262 = vsel %vm833, %v2260, %v2261
      %v2263 = vrot.slane %v1371, 4
      %v2264 = vsel %vm833, %v2261, %v2263
      %v2265 = vrot.slane %v1372, 4
      %v2266 = vrot.slane %v1373, 4
      %v2267 = vsel %vm833, %v2265, %v2266
      %v2268 = vrot.slane %v1374, 4
      %v2269 = vsel %vm833, %v2266, %v2268
      %v2270 = vrot.slane %v1375, 4
      %v2271 = vrot.slane %v1376, 4
      %v2272 = vsel %vm833, %v2270, %v2271
      %v2273 = vrot.slane %v1377, 4
      %v2274 = vsel %vm833, %v2271, %v2273
      %v2275 = vrot.slane %v1378, 4
      %v2276 = vrot.slane %v1379, 4
      %v2277 = vsel %vm833, %v2275, %v2276
      %v2278 = vrot.slane %v1380, 4
      %v2279 = vsel %vm833, %v2276, %v2278
      %v2280 = vrot.slane %v1381, 4
      %v2281 = vrot.slane %v1382, 4
      %v2282 = vsel %vm833, %v2280, %v2281
      %v2283 = vrot.slane %v1383, 4
      %v2284 = vsel %vm833, %v2281, %v2283
      %v2285 = vrot.slane %v1384, 4
      %v2286 = vrot.slane %v1385, 4
      %v2287 = vsel %vm833, %v2285, %v2286
      %v2288 = vrot.slane %v1386, 4
      %v2289 = vsel %vm833, %v2286, %v2288
      %v2290 = vrot.slane %v1387, 4
      %v2291 = vrot.slane %v1388, 4
      %v2292 = vsel %vm833, %v2290, %v2291
      %v2293 = vrot.slane %v1389, 4
      %v2294 = vsel %vm833, %v2291, %v2293
      %2295 = vrot.lane.b32.xlu0 %v2187, 64
      %v2296 = vpop.permute.xlu0 %2295
      %2297 = vrot.lane.b32.xlu0 %v2189, 64
      %v2298 = vpop.permute.xlu0 %2297
      %2299 = vrot.lane.b32.xlu0 %v2192, 64
      %v2300 = vpop.permute.xlu0 %2299
      %2301 = vrot.lane.b32.xlu0 %v2194, 64
      %v2302 = vpop.permute.xlu0 %2301
      %2303 = vrot.lane.b32.xlu0 %v2197, 64
      %v2304 = vpop.permute.xlu0 %2303
      %2305 = vrot.lane.b32.xlu0 %v2199, 64
      %v2306 = vpop.permute.xlu0 %2305
      %2307 = vrot.lane.b32.xlu0 %v2202, 64
      %v2308 = vpop.permute.xlu0 %2307
      %2309 = vrot.lane.b32.xlu0 %v2204, 64
      %v2310 = vpop.permute.xlu0 %2309
      %2311 = vrot.lane.b32.xlu0 %v2207, 64
      %v2312 = vpop.permute.xlu0 %2311
      %2313 = vrot.lane.b32.xlu0 %v2209, 64
      %v2314 = vpop.permute.xlu0 %2313
      %2315 = vrot.lane.b32.xlu0 %v2212, 64
      %v2316 = vpop.permute.xlu0 %2315
      %2317 = vrot.lane.b32.xlu0 %v2214, 64
      %v2318 = vpop.permute.xlu0 %2317
      %2319 = vrot.lane.b32.xlu0 %v2217, 64
      %v2320 = vpop.permute.xlu0 %2319
      %2321 = vrot.lane.b32.xlu0 %v2219, 64
      %v2322 = vpop.permute.xlu0 %2321
      %2323 = vrot.lane.b32.xlu0 %v2222, 64
      %v2324 = vpop.permute.xlu0 %2323
      %2325 = vrot.lane.b32.xlu0 %v2224, 64
      %v2326 = vpop.permute.xlu0 %2325
      %2327 = vrot.lane.b32.xlu0 %v2227, 64
      %v2328 = vpop.permute.xlu0 %2327
      %2329 = vrot.lane.b32.xlu0 %v2229, 64
      %v2330 = vpop.permute.xlu0 %2329
      %2331 = vrot.lane.b32.xlu0 %v2232, 64
      %v2332 = vpop.permute.xlu0 %2331
      %2333 = vrot.lane.b32.xlu0 %v2234, 64
      %v2334 = vpop.permute.xlu0 %2333
      %2335 = vrot.lane.b32.xlu0 %v2237, 64
      %v2336 = vpop.permute.xlu0 %2335
      %2337 = vrot.lane.b32.xlu0 %v2239, 64
      %v2338 = vpop.permute.xlu0 %2337
      %2339 = vrot.lane.b32.xlu0 %v2242, 64
      %v2340 = vpop.permute.xlu0 %2339
      %2341 = vrot.lane.b32.xlu0 %v2244, 64
      %v2342 = vpop.permute.xlu0 %2341
      %2343 = vrot.lane.b32.xlu0 %v2247, 64
      %v2344 = vpop.permute.xlu0 %2343
      %2345 = vrot.lane.b32.xlu0 %v2249, 64
      %v2346 = vpop.permute.xlu0 %2345
      %2347 = vrot.lane.b32.xlu0 %v2252, 64
      %v2348 = vpop.permute.xlu0 %2347
      %2349 = vrot.lane.b32.xlu0 %v2254, 64
      %v2350 = vpop.permute.xlu0 %2349
      %2351 = vrot.lane.b32.xlu0 %v2257, 64
      %v2352 = vpop.permute.xlu0 %2351
      %2353 = vrot.lane.b32.xlu0 %v2259, 64
      %v2354 = vpop.permute.xlu0 %2353
      %2355 = vrot.lane.b32.xlu0 %v2262, 64
      %v2356 = vpop.permute.xlu0 %2355
      %2357 = vrot.lane.b32.xlu0 %v2264, 64
      %v2358 = vpop.permute.xlu0 %2357
      %2359 = vrot.lane.b32.xlu0 %v2267, 64
      %v2360 = vpop.permute.xlu0 %2359
      %2361 = vrot.lane.b32.xlu0 %v2269, 64
      %v2362 = vpop.permute.xlu0 %2361
      %2363 = vrot.lane.b32.xlu0 %v2272, 64
      %v2364 = vpop.permute.xlu0 %2363
      %2365 = vrot.lane.b32.xlu0 %v2274, 64
      %v2366 = vpop.permute.xlu0 %2365
      %2367 = vrot.lane.b32.xlu0 %v2277, 64
      %v2368 = vpop.permute.xlu0 %2367
      %2369 = vrot.lane.b32.xlu0 %v2279, 64
      %v2370 = vpop.permute.xlu0 %2369
      %2371 = vrot.lane.b32.xlu0 %v2282, 64
      %v2372 = vpop.permute.xlu0 %2371
      %2373 = vrot.lane.b32.xlu0 %v2284, 64
      %v2374 = vpop.permute.xlu0 %2373
      %2375 = vrot.lane.b32.xlu0 %v2287, 64
      %v2376 = vpop.permute.xlu0 %2375
      %2377 = vrot.lane.b32.xlu0 %v2289, 64
      %v2378 = vpop.permute.xlu0 %2377
      %2379 = vrot.lane.b32.xlu0 %v2292, 64
      %v2380 = vpop.permute.xlu0 %2379
      %2381 = vrot.lane.b32.xlu0 %v2294, 64
      %v2382 = vpop.permute.xlu0 %2381
      %v2427 = vrot.slane %v1324, 5
      %v2428 = vrot.slane %v1325, 5
      %v2429 = vsel %vm1146, %v2427, %v2428
      %v2430 = vrot.slane %v1326, 5
      %v2431 = vsel %vm1146, %v2428, %v2430
      %v2432 = vrot.slane %v1327, 5
      %v2433 = vrot.slane %v1328, 5
      %v2434 = vsel %vm1146, %v2432, %v2433
      %v2435 = vrot.slane %v1329, 5
      %v2436 = vsel %vm1146, %v2433, %v2435
      %v2437 = vrot.slane %v1330, 5
      %v2438 = vrot.slane %v1331, 5
      %v2439 = vsel %vm1146, %v2437, %v2438
      %v2440 = vrot.slane %v1332, 5
      %v2441 = vsel %vm1146, %v2438, %v2440
      %v2442 = vrot.slane %v1333, 5
      %v2443 = vrot.slane %v1334, 5
      %v2444 = vsel %vm1146, %v2442, %v2443
      %v2445 = vrot.slane %v1335, 5
      %v2446 = vsel %vm1146, %v2443, %v2445
      %v2447 = vrot.slane %v1336, 5
      %v2448 = vrot.slane %v1337, 5
      %v2449 = vsel %vm1146, %v2447, %v2448
      %v2450 = vrot.slane %v1338, 5
      %v2451 = vsel %vm1146, %v2448, %v2450
      %v2452 = vrot.slane %v1339, 5
      %v2453 = vrot.slane %v1340, 5
      %v2454 = vsel %vm1146, %v2452, %v2453
      %v2455 = vrot.slane %v1341, 5
      %v2456 = vsel %vm1146, %v2453, %v2455
      %v2457 = vrot.slane %v1342, 5
      %v2458 = vrot.slane %v1343, 5
      %v2459 = vsel %vm1146, %v2457, %v2458
      %v2460 = vrot.slane %v1344, 5
      %v2461 = vsel %vm1146, %v2458, %v2460
      %v2462 = vrot.slane %v1345, 5
      %v2463 = vrot.slane %v1346, 5
      %v2464 = vsel %vm1146, %v2462, %v2463
      %v2465 = vrot.slane %v1347, 5
      %v2466 = vsel %vm1146, %v2463, %v2465
      %v2467 = vrot.slane %v1348, 5
      %v2468 = vrot.slane %v1349, 5
      %v2469 = vsel %vm1146, %v2467, %v2468
      %v2470 = vrot.slane %v1350, 5
      %v2471 = vsel %vm1146, %v2468, %v2470
      %v2472 = vrot.slane %v1351, 5
      %v2473 = vrot.slane %v1352, 5
      %v2474 = vsel %vm1146, %v2472, %v2473
      %v2475 = vrot.slane %v1353, 5
      %v2476 = vsel %vm1146, %v2473, %v2475
      %v2477 = vrot.slane %v1354, 5
      %v2478 = vrot.slane %v1355, 5
      %v2479 = vsel %vm1146, %v2477, %v2478
      %v2480 = vrot.slane %v1356, 5
      %v2481 = vsel %vm1146, %v2478, %v2480
      %v2482 = vrot.slane %v1357, 5
      %v2483 = vrot.slane %v1358, 5
      %v2484 = vsel %vm1146, %v2482, %v2483
      %v2485 = vrot.slane %v1359, 5
      %v2486 = vsel %vm1146, %v2483, %v2485
      %v2487 = vrot.slane %v1360, 5
      %v2488 = vrot.slane %v1361, 5
      %v2489 = vsel %vm1146, %v2487, %v2488
      %v2490 = vrot.slane %v1362, 5
      %v2491 = vsel %vm1146, %v2488, %v2490
      %v2492 = vrot.slane %v1363, 5
      %v2493 = vrot.slane %v1364, 5
      %v2494 = vsel %vm1146, %v2492, %v2493
      %v2495 = vrot.slane %v1365, 5
      %v2496 = vsel %vm1146, %v2493, %v2495
      %v2497 = vrot.slane %v1366, 5
      %v2498 = vrot.slane %v1367, 5
      %v2499 = vsel %vm1146, %v2497, %v2498
      %v2500 = vrot.slane %v1368, 5
      %v2501 = vsel %vm1146, %v2498, %v2500
      %v2502 = vrot.slane %v1369, 5
      %v2503 = vrot.slane %v1370, 5
      %v2504 = vsel %vm1146, %v2502, %v2503
      %v2505 = vrot.slane %v1371, 5
      %v2506 = vsel %vm1146, %v2503, %v2505
      %v2507 = vrot.slane %v1372, 5
      %v2508 = vrot.slane %v1373, 5
      %v2509 = vsel %vm1146, %v2507, %v2508
      %v2510 = vrot.slane %v1374, 5
      %v2511 = vsel %vm1146, %v2508, %v2510
      %v2512 = vrot.slane %v1375, 5
      %v2513 = vrot.slane %v1376, 5
      %v2514 = vsel %vm1146, %v2512, %v2513
      %v2515 = vrot.slane %v1377, 5
      %v2516 = vsel %vm1146, %v2513, %v2515
      %v2517 = vrot.slane %v1378, 5
      %v2518 = vrot.slane %v1379, 5
      %v2519 = vsel %vm1146, %v2517, %v2518
      %v2520 = vrot.slane %v1380, 5
      %v2521 = vsel %vm1146, %v2518, %v2520
      %v2522 = vrot.slane %v1381, 5
      %v2523 = vrot.slane %v1382, 5
      %v2524 = vsel %vm1146, %v2522, %v2523
      %v2525 = vrot.slane %v1383, 5
      %v2526 = vsel %vm1146, %v2523, %v2525
      %v2527 = vrot.slane %v1384, 5
      %v2528 = vrot.slane %v1385, 5
      %v2529 = vsel %vm1146, %v2527, %v2528
      %v2530 = vrot.slane %v1386, 5
      %v2531 = vsel %vm1146, %v2528, %v2530
      %v2532 = vrot.slane %v1387, 5
      %v2533 = vrot.slane %v1388, 5
      %v2534 = vsel %vm1146, %v2532, %v2533
      %v2535 = vrot.slane %v1389, 5
      %v2536 = vsel %vm1146, %v2533, %v2535
      %2537 = vrot.lane.b32.xlu0 %v2429, 80
      %v2538 = vpop.permute.xlu0 %2537
      %2539 = vrot.lane.b32.xlu0 %v2431, 80
      %v2540 = vpop.permute.xlu0 %2539
      %2541 = vrot.lane.b32.xlu0 %v2434, 80
      %v2542 = vpop.permute.xlu0 %2541
      %2543 = vrot.lane.b32.xlu0 %v2436, 80
      %v2544 = vpop.permute.xlu0 %2543
      %2545 = vrot.lane.b32.xlu0 %v2439, 80
      %v2546 = vpop.permute.xlu0 %2545
      %2547 = vrot.lane.b32.xlu0 %v2441, 80
      %v2548 = vpop.permute.xlu0 %2547
      %2549 = vrot.lane.b32.xlu0 %v2444, 80
      %v2550 = vpop.permute.xlu0 %2549
      %2551 = vrot.lane.b32.xlu0 %v2446, 80
      %v2552 = vpop.permute.xlu0 %2551
      %2553 = vrot.lane.b32.xlu0 %v2449, 80
      %v2554 = vpop.permute.xlu0 %2553
      %2555 = vrot.lane.b32.xlu0 %v2451, 80
      %v2556 = vpop.permute.xlu0 %2555
      %2557 = vrot.lane.b32.xlu0 %v2454, 80
      %v2558 = vpop.permute.xlu0 %2557
      %2559 = vrot.lane.b32.xlu0 %v2456, 80
      %v2560 = vpop.permute.xlu0 %2559
      %2561 = vrot.lane.b32.xlu0 %v2459, 80
      %v2562 = vpop.permute.xlu0 %2561
      %2563 = vrot.lane.b32.xlu0 %v2461, 80
      %v2564 = vpop.permute.xlu0 %2563
      %2565 = vrot.lane.b32.xlu0 %v2464, 80
      %v2566 = vpop.permute.xlu0 %2565
      %2567 = vrot.lane.b32.xlu0 %v2466, 80
      %v2568 = vpop.permute.xlu0 %2567
      %2569 = vrot.lane.b32.xlu0 %v2469, 80
      %v2570 = vpop.permute.xlu0 %2569
      %2571 = vrot.lane.b32.xlu0 %v2471, 80
      %v2572 = vpop.permute.xlu0 %2571
      %2573 = vrot.lane.b32.xlu0 %v2474, 80
      %v2574 = vpop.permute.xlu0 %2573
      %2575 = vrot.lane.b32.xlu0 %v2476, 80
      %v2576 = vpop.permute.xlu0 %2575
      %2577 = vrot.lane.b32.xlu0 %v2479, 80
      %v2578 = vpop.permute.xlu0 %2577
      %2579 = vrot.lane.b32.xlu0 %v2481, 80
      %v2580 = vpop.permute.xlu0 %2579
      %2581 = vrot.lane.b32.xlu0 %v2484, 80
      %v2582 = vpop.permute.xlu0 %2581
      %2583 = vrot.lane.b32.xlu0 %v2486, 80
      %v2584 = vpop.permute.xlu0 %2583
      %2585 = vrot.lane.b32.xlu0 %v2489, 80
      %v2586 = vpop.permute.xlu0 %2585
      %2587 = vrot.lane.b32.xlu0 %v2491, 80
      %v2588 = vpop.permute.xlu0 %2587
      %2589 = vrot.lane.b32.xlu0 %v2494, 80
      %v2590 = vpop.permute.xlu0 %2589
      %2591 = vrot.lane.b32.xlu0 %v2496, 80
      %v2592 = vpop.permute.xlu0 %2591
      %2593 = vrot.lane.b32.xlu0 %v2499, 80
      %v2594 = vpop.permute.xlu0 %2593
      %2595 = vrot.lane.b32.xlu0 %v2501, 80
      %v2596 = vpop.permute.xlu0 %2595
      %2597 = vrot.lane.b32.xlu0 %v2504, 80
      %v2598 = vpop.permute.xlu0 %2597
      %2599 = vrot.lane.b32.xlu0 %v2506, 80
      %v2600 = vpop.permute.xlu0 %2599
      %2601 = vrot.lane.b32.xlu0 %v2509, 80
      %v2602 = vpop.permute.xlu0 %2601
      %2603 = vrot.lane.b32.xlu0 %v2511, 80
      %v2604 = vpop.permute.xlu0 %2603
      %2605 = vrot.lane.b32.xlu0 %v2514, 80
      %v2606 = vpop.permute.xlu0 %2605
      %2607 = vrot.lane.b32.xlu0 %v2516, 80
      %v2608 = vpop.permute.xlu0 %2607
      %2609 = vrot.lane.b32.xlu0 %v2519, 80
      %v2610 = vpop.permute.xlu0 %2609
      %2611 = vrot.lane.b32.xlu0 %v2521, 80
      %v2612 = vpop.permute.xlu0 %2611
      %2613 = vrot.lane.b32.xlu0 %v2524, 80
      %v2614 = vpop.permute.xlu0 %2613
      %2615 = vrot.lane.b32.xlu0 %v2526, 80
      %v2616 = vpop.permute.xlu0 %2615
      %2617 = vrot.lane.b32.xlu0 %v2529, 80
      %v2618 = vpop.permute.xlu0 %2617
      %2619 = vrot.lane.b32.xlu0 %v2531, 80
      %v2620 = vpop.permute.xlu0 %2619
      %2621 = vrot.lane.b32.xlu0 %v2534, 80
      %v2622 = vpop.permute.xlu0 %2621
      %2623 = vrot.lane.b32.xlu0 %v2536, 80
      %v2624 = vpop.permute.xlu0 %2623
      %vm2669 = vcmask 1041408
      %v2670 = vrot.slane %v1324, 6
      %v2671 = vrot.slane %v1325, 6
      %v2672 = vsel %vm2669, %v2670, %v2671
      %v2673 = vrot.slane %v1326, 6
      %v2674 = vsel %vm2669, %v2671, %v2673
      %v2675 = vrot.slane %v1327, 6
      %v2676 = vrot.slane %v1328, 6
      %v2677 = vsel %vm2669, %v2675, %v2676
      %v2678 = vrot.slane %v1329, 6
      %v2679 = vsel %vm2669, %v2676, %v2678
      %v2680 = vrot.slane %v1330, 6
      %v2681 = vrot.slane %v1331, 6
      %v2682 = vsel %vm2669, %v2680, %v2681
      %v2683 = vrot.slane %v1332, 6
      %v2684 = vsel %vm2669, %v2681, %v2683
      %v2685 = vrot.slane %v1333, 6
      %v2686 = vrot.slane %v1334, 6
      %v2687 = vsel %vm2669, %v2685, %v2686
      %v2688 = vrot.slane %v1335, 6
      %v2689 = vsel %vm2669, %v2686, %v2688
      %v2690 = vrot.slane %v1336, 6
      %v2691 = vrot.slane %v1337, 6
      %v2692 = vsel %vm2669, %v2690, %v2691
      %v2693 = vrot.slane %v1338, 6
      %v2694 = vsel %vm2669, %v2691, %v2693
      %v2695 = vrot.slane %v1339, 6
      %v2696 = vrot.slane %v1340, 6
      %v2697 = vsel %vm2669, %v2695, %v2696
      %v2698 = vrot.slane %v1341, 6
      %v2699 = vsel %vm2669, %v2696, %v2698
      %v2700 = vrot.slane %v1342, 6
      %v2701 = vrot.slane %v1343, 6
      %v2702 = vsel %vm2669, %v2700, %v2701
      %v2703 = vrot.slane %v1344, 6
      %v2704 = vsel %vm2669, %v2701, %v2703
      %v2705 = vrot.slane %v1345, 6
      %v2706 = vrot.slane %v1346, 6
      %v2707 = vsel %vm2669, %v2705, %v2706
      %v2708 = vrot.slane %v1347, 6
      %v2709 = vsel %vm2669, %v2706, %v2708
      %v2710 = vrot.slane %v1348, 6
      %v2711 = vrot.slane %v1349, 6
      %v2712 = vsel %vm2669, %v2710, %v2711
      %v2713 = vrot.slane %v1350, 6
      %v2714 = vsel %vm2669, %v2711, %v2713
      %v2715 = vrot.slane %v1351, 6
      %v2716 = vrot.slane %v1352, 6
      %v2717 = vsel %vm2669, %v2715, %v2716
      %v2718 = vrot.slane %v1353, 6
      %v2719 = vsel %vm2669, %v2716, %v2718
      %v2720 = vrot.slane %v1354, 6
      %v2721 = vrot.slane %v1355, 6
      %v2722 = vsel %vm2669, %v2720, %v2721
      %v2723 = vrot.slane %v1356, 6
      %v2724 = vsel %vm2669, %v2721, %v2723
      %v2725 = vrot.slane %v1357, 6
      %v2726 = vrot.slane %v1358, 6
      %v2727 = vsel %vm2669, %v2725, %v2726
      %v2728 = vrot.slane %v1359, 6
      %v2729 = vsel %vm2669, %v2726, %v2728
      %v2730 = vrot.slane %v1360, 6
      %v2731 = vrot.slane %v1361, 6
      %v2732 = vsel %vm2669, %v2730, %v2731
      %v2733 = vrot.slane %v1362, 6
      %v2734 = vsel %vm2669, %v2731, %v2733
      %v2735 = vrot.slane %v1363, 6
      %v2736 = vrot.slane %v1364, 6
      %v2737 = vsel %vm2669, %v2735, %v2736
      %v2738 = vrot.slane %v1365, 6
      %v2739 = vsel %vm2669, %v2736, %v2738
      %v2740 = vrot.slane %v1366, 6
      %v2741 = vrot.slane %v1367, 6
      %v2742 = vsel %vm2669, %v2740, %v2741
      %v2743 = vrot.slane %v1368, 6
      %v2744 = vsel %vm2669, %v2741, %v2743
      %v2745 = vrot.slane %v1369, 6
      %v2746 = vrot.slane %v1370, 6
      %v2747 = vsel %vm2669, %v2745, %v2746
      %v2748 = vrot.slane %v1371, 6
      %v2749 = vsel %vm2669, %v2746, %v2748
      %v2750 = vrot.slane %v1372, 6
      %v2751 = vrot.slane %v1373, 6
      %v2752 = vsel %vm2669, %v2750, %v2751
      %v2753 = vrot.slane %v1374, 6
      %v2754 = vsel %vm2669, %v2751, %v2753
      %v2755 = vrot.slane %v1375, 6
      %v2756 = vrot.slane %v1376, 6
      %v2757 = vsel %vm2669, %v2755, %v2756
      %v2758 = vrot.slane %v1377, 6
      %v2759 = vsel %vm2669, %v2756, %v2758
      %v2760 = vrot.slane %v1378, 6
      %v2761 = vrot.slane %v1379, 6
      %v2762 = vsel %vm2669, %v2760, %v2761
      %v2763 = vrot.slane %v1380, 6
      %v2764 = vsel %vm2669, %v2761, %v2763
      %v2765 = vrot.slane %v1381, 6
      %v2766 = vrot.slane %v1382, 6
      %v2767 = vsel %vm2669, %v2765, %v2766
      %v2768 = vrot.slane %v1383, 6
      %v2769 = vsel %vm2669, %v2766, %v2768
      %v2770 = vrot.slane %v1384, 6
      %v2771 = vrot.slane %v1385, 6
      %v2772 = vsel %vm2669, %v2770, %v2771
      %v2773 = vrot.slane %v1386, 6
      %v2774 = vsel %vm2669, %v2771, %v2773
      %v2775 = vrot.slane %v1387, 6
      %v2776 = vrot.slane %v1388, 6
      %v2777 = vsel %vm2669, %v2775, %v2776
      %v2778 = vrot.slane %v1389, 6
      %v2779 = vsel %vm2669, %v2776, %v2778
      %2780 = vrot.lane.b32.xlu0 %v2672, 96
      %v2781 = vpop.permute.xlu0 %2780
      %2782 = vrot.lane.b32.xlu0 %v2674, 96
      %v2783 = vpop.permute.xlu0 %2782
      %2784 = vrot.lane.b32.xlu0 %v2677, 96
      %v2785 = vpop.permute.xlu0 %2784
      %2786 = vrot.lane.b32.xlu0 %v2679, 96
      %v2787 = vpop.permute.xlu0 %2786
      %2788 = vrot.lane.b32.xlu0 %v2682, 96
      %v2789 = vpop.permute.xlu0 %2788
      %2790 = vrot.lane.b32.xlu0 %v2684, 96
      %v2791 = vpop.permute.xlu0 %2790
      %2792 = vrot.lane.b32.xlu0 %v2687, 96
      %v2793 = vpop.permute.xlu0 %2792
      %2794 = vrot.lane.b32.xlu0 %v2689, 96
      %v2795 = vpop.permute.xlu0 %2794
      %2796 = vrot.lane.b32.xlu0 %v2692, 96
      %v2797 = vpop.permute.xlu0 %2796
      %2798 = vrot.lane.b32.xlu0 %v2694, 96
      %v2799 = vpop.permute.xlu0 %2798
      %2800 = vrot.lane.b32.xlu0 %v2697, 96
      %v2801 = vpop.permute.xlu0 %2800
      %2802 = vrot.lane.b32.xlu0 %v2699, 96
      %v2803 = vpop.permute.xlu0 %2802
      %2804 = vrot.lane.b32.xlu0 %v2702, 96
      %v2805 = vpop.permute.xlu0 %2804
      %2806 = vrot.lane.b32.xlu0 %v2704, 96
      %v2807 = vpop.permute.xlu0 %2806
      %2808 = vrot.lane.b32.xlu0 %v2707, 96
      %v2809 = vpop.permute.xlu0 %2808
      %2810 = vrot.lane.b32.xlu0 %v2709, 96
      %v2811 = vpop.permute.xlu0 %2810
      %2812 = vrot.lane.b32.xlu0 %v2712, 96
      %v2813 = vpop.permute.xlu0 %2812
      %2814 = vrot.lane.b32.xlu0 %v2714, 96
      %v2815 = vpop.permute.xlu0 %2814
      %2816 = vrot.lane.b32.xlu0 %v2717, 96
      %v2817 = vpop.permute.xlu0 %2816
      %2818 = vrot.lane.b32.xlu0 %v2719, 96
      %v2819 = vpop.permute.xlu0 %2818
      %2820 = vrot.lane.b32.xlu0 %v2722, 96
      %v2821 = vpop.permute.xlu0 %2820
      %2822 = vrot.lane.b32.xlu0 %v2724, 96
      %v2823 = vpop.permute.xlu0 %2822
      %2824 = vrot.lane.b32.xlu0 %v2727, 96
      %v2825 = vpop.permute.xlu0 %2824
      %2826 = vrot.lane.b32.xlu0 %v2729, 96
      %v2827 = vpop.permute.xlu0 %2826
      %2828 = vrot.lane.b32.xlu0 %v2732, 96
      %v2829 = vpop.permute.xlu0 %2828
      %2830 = vrot.lane.b32.xlu0 %v2734, 96
      %v2831 = vpop.permute.xlu0 %2830
      %2832 = vrot.lane.b32.xlu0 %v2737, 96
      %v2833 = vpop.permute.xlu0 %2832
      %2834 = vrot.lane.b32.xlu0 %v2739, 96
      %v2835 = vpop.permute.xlu0 %2834
      %2836 = vrot.lane.b32.xlu0 %v2742, 96
      %v2837 = vpop.permute.xlu0 %2836
      %2838 = vrot.lane.b32.xlu0 %v2744, 96
      %v2839 = vpop.permute.xlu0 %2838
      %2840 = vrot.lane.b32.xlu0 %v2747, 96
      %v2841 = vpop.permute.xlu0 %2840
      %2842 = vrot.lane.b32.xlu0 %v2749, 96
      %v2843 = vpop.permute.xlu0 %2842
      %2844 = vrot.lane.b32.xlu0 %v2752, 96
      %v2845 = vpop.permute.xlu0 %2844
      %2846 = vrot.lane.b32.xlu0 %v2754, 96
      %v2847 = vpop.permute.xlu0 %2846
      %2848 = vrot.lane.b32.xlu0 %v2757, 96
      %v2849 = vpop.permute.xlu0 %2848
      %2850 = vrot.lane.b32.xlu0 %v2759, 96
      %v2851 = vpop.permute.xlu0 %2850
      %2852 = vrot.lane.b32.xlu0 %v2762, 96
      %v2853 = vpop.permute.xlu0 %2852
      %2854 = vrot.lane.b32.xlu0 %v2764, 96
      %v2855 = vpop.permute.xlu0 %2854
      %2856 = vrot.lane.b32.xlu0 %v2767, 96
      %v2857 = vpop.permute.xlu0 %2856
      %2858 = vrot.lane.b32.xlu0 %v2769, 96
      %v2859 = vpop.permute.xlu0 %2858
      %2860 = vrot.lane.b32.xlu0 %v2772, 96
      %v2861 = vpop.permute.xlu0 %2860
      %2862 = vrot.lane.b32.xlu0 %v2774, 96
      %v2863 = vpop.permute.xlu0 %2862
      %2864 = vrot.lane.b32.xlu0 %v2777, 96
      %v2865 = vpop.permute.xlu0 %2864
      %2866 = vrot.lane.b32.xlu0 %v2779, 96
      %v2867 = vpop.permute.xlu0 %2866
      %v2912 = vsel %vm374, %v1324, %v1568
      %v2913 = vsel %vm374, %v1325, %v1570
      %v2914 = vsel %vm374, %v1327, %v1572
      %v2915 = vsel %vm374, %v1328, %v1574
      %v2916 = vsel %vm374, %v1330, %v1576
      %v2917 = vsel %vm374, %v1331, %v1578
      %v2918 = vsel %vm374, %v1333, %v1580
      %v2919 = vsel %vm374, %v1334, %v1582
      %v2920 = vsel %vm374, %v1336, %v1584
      %v2921 = vsel %vm374, %v1337, %v1586
      %v2922 = vsel %vm374, %v1339, %v1588
      %v2923 = vsel %vm374, %v1340, %v1590
      %v2924 = vsel %vm374, %v1342, %v1592
      %v2925 = vsel %vm374, %v1343, %v1594
      %v2926 = vsel %vm374, %v1345, %v1596
      %v2927 = vsel %vm374, %v1346, %v1598
      %v2928 = vsel %vm374, %v1348, %v1600
      %v2929 = vsel %vm374, %v1349, %v1602
      %v2930 = vsel %vm374, %v1351, %v1604
      %v2931 = vsel %vm374, %v1352, %v1606
      %v2932 = vsel %vm374, %v1354, %v1608
      %v2933 = vsel %vm374, %v1355, %v1610
      %v2934 = vsel %vm374, %v1357, %v1612
      %v2935 = vsel %vm374, %v1358, %v1614
      %v2936 = vsel %vm374, %v1360, %v1616
      %v2937 = vsel %vm374, %v1361, %v1618
      %v2938 = vsel %vm374, %v1363, %v1620
      %v2939 = vsel %vm374, %v1364, %v1622
      %v2940 = vsel %vm374, %v1366, %v1624
      %v2941 = vsel %vm374, %v1367, %v1626
      %v2942 = vsel %vm374, %v1369, %v1628
      %v2943 = vsel %vm374, %v1370, %v1630
      %v2944 = vsel %vm374, %v1372, %v1632
      %v2945 = vsel %vm374, %v1373, %v1634
      %v2946 = vsel %vm374, %v1375, %v1636
      %v2947 = vsel %vm374, %v1376, %v1638
      %v2948 = vsel %vm374, %v1378, %v1640
      %v2949 = vsel %vm374, %v1379, %v1642
      %v2950 = vsel %vm374, %v1381, %v1644
      %v2951 = vsel %vm374, %v1382, %v1646
      %v2952 = vsel %vm374, %v1384, %v1648
      %v2953 = vsel %vm374, %v1385, %v1650
      %v2954 = vsel %vm374, %v1387, %v1652
      %v2955 = vsel %vm374, %v1388, %v1654
      %vm2956 = vcmask 261120
      %v2957 = vsel %vm2956, %v2912, %v1811
      %v2958 = vsel %vm2956, %v2913, %v1813
      %v2959 = vsel %vm2956, %v2914, %v1815
      %v2960 = vsel %vm2956, %v2915, %v1817
      %v2961 = vsel %vm2956, %v2916, %v1819
      %v2962 = vsel %vm2956, %v2917, %v1821
      %v2963 = vsel %vm2956, %v2918, %v1823
      %v2964 = vsel %vm2956, %v2919, %v1825
      %v2965 = vsel %vm2956, %v2920, %v1827
      %v2966 = vsel %vm2956, %v2921, %v1829
      %v2967 = vsel %vm2956, %v2922, %v1831
      %v2968 = vsel %vm2956, %v2923, %v1833
      %v2969 = vsel %vm2956, %v2924, %v1835
      %v2970 = vsel %vm2956, %v2925, %v1837
      %v2971 = vsel %vm2956, %v2926, %v1839
      %v2972 = vsel %vm2956, %v2927, %v1841
      %v2973 = vsel %vm2956, %v2928, %v1843
      %v2974 = vsel %vm2956, %v2929, %v1845
      %v2975 = vsel %vm2956, %v2930, %v1847
      %v2976 = vsel %vm2956, %v2931, %v1849
      %v2977 = vsel %vm2956, %v2932, %v1851
      %v2978 = vsel %vm2956, %v2933, %v1853
      %v2979 = vsel %vm2956, %v2934, %v1855
      %v2980 = vsel %vm2956, %v2935, %v1857
      %v2981 = vsel %vm2956, %v2936, %v1859
      %v2982 = vsel %vm2956, %v2937, %v1861
      %v2983 = vsel %vm2956, %v2938, %v1863
      %v2984 = vsel %vm2956, %v2939, %v1865
      %v2985 = vsel %vm2956, %v2940, %v1867
      %v2986 = vsel %vm2956, %v2941, %v1869
      %v2987 = vsel %vm2956, %v2942, %v1871
      %v2988 = vsel %vm2956, %v2943, %v1873
      %v2989 = vsel %vm2956, %v2944, %v1875
      %v2990 = vsel %vm2956, %v2945, %v1877
      %v2991 = vsel %vm2956, %v2946, %v1879
      %v2992 = vsel %vm2956, %v2947, %v1881
      %v2993 = vsel %vm2956, %v2948, %v1883
      %v2994 = vsel %vm2956, %v2949, %v1885
      %v2995 = vsel %vm2956, %v2950, %v1887
      %v2996 = vsel %vm2956, %v2951, %v1889
      %v2997 = vsel %vm2956, %v2952, %v1891
      %v2998 = vsel %vm2956, %v2953, %v1893
      %v2999 = vsel %vm2956, %v2954, %v1895
      %v3000 = vsel %vm2956, %v2955, %v1897
      %vm3001 = vcmask 392192
      %v3002 = vsel %vm3001, %v2957, %v2054
      %v3003 = vsel %vm3001, %v2958, %v2056
      %v3004 = vsel %vm3001, %v2959, %v2058
      %v3005 = vsel %vm3001, %v2960, %v2060
      %v3006 = vsel %vm3001, %v2961, %v2062
      %v3007 = vsel %vm3001, %v2962, %v2064
      %v3008 = vsel %vm3001, %v2963, %v2066
      %v3009 = vsel %vm3001, %v2964, %v2068
      %v3010 = vsel %vm3001, %v2965, %v2070
      %v3011 = vsel %vm3001, %v2966, %v2072
      %v3012 = vsel %vm3001, %v2967, %v2074
      %v3013 = vsel %vm3001, %v2968, %v2076
      %v3014 = vsel %vm3001, %v2969, %v2078
      %v3015 = vsel %vm3001, %v2970, %v2080
      %v3016 = vsel %vm3001, %v2971, %v2082
      %v3017 = vsel %vm3001, %v2972, %v2084
      %v3018 = vsel %vm3001, %v2973, %v2086
      %v3019 = vsel %vm3001, %v2974, %v2088
      %v3020 = vsel %vm3001, %v2975, %v2090
      %v3021 = vsel %vm3001, %v2976, %v2092
      %v3022 = vsel %vm3001, %v2977, %v2094
      %v3023 = vsel %vm3001, %v2978, %v2096
      %v3024 = vsel %vm3001, %v2979, %v2098
      %v3025 = vsel %vm3001, %v2980, %v2100
      %v3026 = vsel %vm3001, %v2981, %v2102
      %v3027 = vsel %vm3001, %v2982, %v2104
      %v3028 = vsel %vm3001, %v2983, %v2106
      %v3029 = vsel %vm3001, %v2984, %v2108
      %v3030 = vsel %vm3001, %v2985, %v2110
      %v3031 = vsel %vm3001, %v2986, %v2112
      %v3032 = vsel %vm3001, %v2987, %v2114
      %v3033 = vsel %vm3001, %v2988, %v2116
      %v3034 = vsel %vm3001, %v2989, %v2118
      %v3035 = vsel %vm3001, %v2990, %v2120
      %v3036 = vsel %vm3001, %v2991, %v2122
      %v3037 = vsel %vm3001, %v2992, %v2124
      %v3038 = vsel %vm3001, %v2993, %v2126
      %v3039 = vsel %vm3001, %v2994, %v2128
      %v3040 = vsel %vm3001, %v2995, %v2130
      %v3041 = vsel %vm3001, %v2996, %v2132
      %v3042 = vsel %vm3001, %v2997, %v2134
      %v3043 = vsel %vm3001, %v2998, %v2136
      %v3044 = vsel %vm3001, %v2999, %v2138
      %v3045 = vsel %vm3001, %v3000, %v2140
      %vm3046 = vcmask 523264
      %v3047 = vsel %vm3046, %v3002, %v2296
      %v3048 = vsel %vm3046, %v3003, %v2298
      %v3049 = vsel %vm3046, %v3004, %v2300
      %v3050 = vsel %vm3046, %v3005, %v2302
      %v3051 = vsel %vm3046, %v3006, %v2304
      %v3052 = vsel %vm3046, %v3007, %v2306
      %v3053 = vsel %vm3046, %v3008, %v2308
      %v3054 = vsel %vm3046, %v3009, %v2310
      %v3055 = vsel %vm3046, %v3010, %v2312
      %v3056 = vsel %vm3046, %v3011, %v2314
      %v3057 = vsel %vm3046, %v3012, %v2316
      %v3058 = vsel %vm3046, %v3013, %v2318
      %v3059 = vsel %vm3046, %v3014, %v2320
      %v3060 = vsel %vm3046, %v3015, %v2322
      %v3061 = vsel %vm3046, %v3016, %v2324
      %v3062 = vsel %vm3046, %v3017, %v2326
      %v3063 = vsel %vm3046, %v3018, %v2328
      %v3064 = vsel %vm3046, %v3019, %v2330
      %v3065 = vsel %vm3046, %v3020, %v2332
      %v3066 = vsel %vm3046, %v3021, %v2334
      %v3067 = vsel %vm3046, %v3022, %v2336
      %v3068 = vsel %vm3046, %v3023, %v2338
      %v3069 = vsel %vm3046, %v3024, %v2340
      %v3070 = vsel %vm3046, %v3025, %v2342
      %v3071 = vsel %vm3046, %v3026, %v2344
      %v3072 = vsel %vm3046, %v3027, %v2346
      %v3073 = vsel %vm3046, %v3028, %v2348
      %v3074 = vsel %vm3046, %v3029, %v2350
      %v3075 = vsel %vm3046, %v3030, %v2352
      %v3076 = vsel %vm3046, %v3031, %v2354
      %v3077 = vsel %vm3046, %v3032, %v2356
      %v3078 = vsel %vm3046, %v3033, %v2358
      %v3079 = vsel %vm3046, %v3034, %v2360
      %v3080 = vsel %vm3046, %v3035, %v2362
      %v3081 = vsel %vm3046, %v3036, %v2364
      %v3082 = vsel %vm3046, %v3037, %v2366
      %v3083 = vsel %vm3046, %v3038, %v2368
      %v3084 = vsel %vm3046, %v3039, %v2370
      %v3085 = vsel %vm3046, %v3040, %v2372
      %v3086 = vsel %vm3046, %v3041, %v2374
      %v3087 = vsel %vm3046, %v3042, %v2376
      %v3088 = vsel %vm3046, %v3043, %v2378
      %v3089 = vsel %vm3046, %v3044, %v2380
      %v3090 = vsel %vm3046, %v3045, %v2382
      %vm3091 = vcmask 654336
      %v3092 = vsel %vm3091, %v3047, %v2538
      %v3093 = vsel %vm3091, %v3048, %v2540
      %v3094 = vsel %vm3091, %v3049, %v2542
      %v3095 = vsel %vm3091, %v3050, %v2544
      %v3096 = vsel %vm3091, %v3051, %v2546
      %v3097 = vsel %vm3091, %v3052, %v2548
      %v3098 = vsel %vm3091, %v3053, %v2550
      %v3099 = vsel %vm3091, %v3054, %v2552
      %v3100 = vsel %vm3091, %v3055, %v2554
      %v3101 = vsel %vm3091, %v3056, %v2556
      %v3102 = vsel %vm3091, %v3057, %v2558
      %v3103 = vsel %vm3091, %v3058, %v2560
      %v3104 = vsel %vm3091, %v3059, %v2562
      %v3105 = vsel %vm3091, %v3060, %v2564
      %v3106 = vsel %vm3091, %v3061, %v2566
      %v3107 = vsel %vm3091, %v3062, %v2568
      %v3108 = vsel %vm3091, %v3063, %v2570
      %v3109 = vsel %vm3091, %v3064, %v2572
      %v3110 = vsel %vm3091, %v3065, %v2574
      %v3111 = vsel %vm3091, %v3066, %v2576
      %v3112 = vsel %vm3091, %v3067, %v2578
      %v3113 = vsel %vm3091, %v3068, %v2580
      %v3114 = vsel %vm3091, %v3069, %v2582
      %v3115 = vsel %vm3091, %v3070, %v2584
      %v3116 = vsel %vm3091, %v3071, %v2586
      %v3117 = vsel %vm3091, %v3072, %v2588
      %v3118 = vsel %vm3091, %v3073, %v2590
      %v3119 = vsel %vm3091, %v3074, %v2592
      %v3120 = vsel %vm3091, %v3075, %v2594
      %v3121 = vsel %vm3091, %v3076, %v2596
      %v3122 = vsel %vm3091, %v3077, %v2598
      %v3123 = vsel %vm3091, %v3078, %v2600
      %v3124 = vsel %vm3091, %v3079, %v2602
      %v3125 = vsel %vm3091, %v3080, %v2604
      %v3126 = vsel %vm3091, %v3081, %v2606
      %v3127 = vsel %vm3091, %v3082, %v2608
      %v3128 = vsel %vm3091, %v3083, %v2610
      %v3129 = vsel %vm3091, %v3084, %v2612
      %v3130 = vsel %vm3091, %v3085, %v2614
      %v3131 = vsel %vm3091, %v3086, %v2616
      %v3132 = vsel %vm3091, %v3087, %v2618
      %v3133 = vsel %vm3091, %v3088, %v2620
      %v3134 = vsel %vm3091, %v3089, %v2622
      %v3135 = vsel %vm3091, %v3090, %v2624
      %vm3136 = vcmask 785408
      %v3137 = vsel %vm3136, %v3092, %v2781
      %v3138 = vsel %vm3136, %v3093, %v2783
      %v3139 = vsel %vm3136, %v3094, %v2785
      %v3140 = vsel %vm3136, %v3095, %v2787
      %v3141 = vsel %vm3136, %v3096, %v2789
      %v3142 = vsel %vm3136, %v3097, %v2791
      %v3143 = vsel %vm3136, %v3098, %v2793
      %v3144 = vsel %vm3136, %v3099, %v2795
      %v3145 = vsel %vm3136, %v3100, %v2797
      %v3146 = vsel %vm3136, %v3101, %v2799
      %v3147 = vsel %vm3136, %v3102, %v2801
      %v3148 = vsel %vm3136, %v3103, %v2803
      %v3149 = vsel %vm3136, %v3104, %v2805
      %v3150 = vsel %vm3136, %v3105, %v2807
      %v3151 = vsel %vm3136, %v3106, %v2809
      %v3152 = vsel %vm3136, %v3107, %v2811
      %v3153 = vsel %vm3136, %v3108, %v2813
      %v3154 = vsel %vm3136, %v3109, %v2815
      %v3155 = vsel %vm3136, %v3110, %v2817
      %v3156 = vsel %vm3136, %v3111, %v2819
      %v3157 = vsel %vm3136, %v3112, %v2821
      %v3158 = vsel %vm3136, %v3113, %v2823
      %v3159 = vsel %vm3136, %v3114, %v2825
      %v3160 = vsel %vm3136, %v3115, %v2827
      %v3161 = vsel %vm3136, %v3116, %v2829
      %v3162 = vsel %vm3136, %v3117, %v2831
      %v3163 = vsel %vm3136, %v3118, %v2833
      %v3164 = vsel %vm3136, %v3119, %v2835
      %v3165 = vsel %vm3136, %v3120, %v2837
      %v3166 = vsel %vm3136, %v3121, %v2839
      %v3167 = vsel %vm3136, %v3122, %v2841
      %v3168 = vsel %vm3136, %v3123, %v2843
      %v3169 = vsel %vm3136, %v3124, %v2845
      %v3170 = vsel %vm3136, %v3125, %v2847
      %v3171 = vsel %vm3136, %v3126, %v2849
      %v3172 = vsel %vm3136, %v3127, %v2851
      %v3173 = vsel %vm3136, %v3128, %v2853
      %v3174 = vsel %vm3136, %v3129, %v2855
      %v3175 = vsel %vm3136, %v3130, %v2857
      %v3176 = vsel %vm3136, %v3131, %v2859
      %v3177 = vsel %vm3136, %v3132, %v2861
      %v3178 = vsel %vm3136, %v3133, %v2863
      %v3179 = vsel %vm3136, %v3134, %v2865
      %v3180 = vsel %vm3136, %v3135, %v2867
      %v3181 = vld [vmem:[%s5] sm:$0xff]
      %v3182 = vld [vmem:[%s5 + $0x8] sm:$0xff]
      %v3183 = vld [vmem:[%s5 + $0x10] sm:$0xff]
      %v3184 = vld [vmem:[%s5 + $0x18] sm:$0xff]
      %v3185 = vld [vmem:[%s5 + $0x20] sm:$0xff]
      %v3186 = vld [vmem:[%s5 + $0x28] sm:$0xff]
      %v3187 = vld [vmem:[%s5 + $0x30] sm:$0xff]
      %v3188 = vld [vmem:[%s5 + $0x38] sm:$0xff]
      %v3189 = vld [vmem:[%s5 + $0x40] sm:$0xff]
      %v3190 = vld [vmem:[%s5 + $0x48] sm:$0xff]
      %v3191 = vld [vmem:[%s5 + $0x50] sm:$0xff]
      %v3192 = vld [vmem:[%s5 + $0x58] sm:$0xff]
      %v3193 = vld [vmem:[%s5 + $0x60] sm:$0xff]
      %v3194 = vld [vmem:[%s5 + $0x68] sm:$0xff]
      %v3195 = vld [vmem:[%s6] sm:$0x1]
      %v3197 = vlaneseq
      %v3198 = vshrl.u32 %v3197, 7
      %v3199 = vsub.s32 0, %v3198
      %v3200 = vrot.slane %v3195, %v3199
      %vm3202 = vcmask 916480
      %v3204 = vsel %vm3202, %v3137, 0
      %v3207 = vsel %vm3202, %v3138, 0
      %v3210 = vsel %vm3202, %v3139, 0
      %v3213 = vsel %vm3202, %v3140, 0
      %v3216 = vsel %vm3202, %v3141, 0
      %v3219 = vsel %vm3202, %v3142, 0
      %v3222 = vsel %vm3202, %v3143, 0
      %v3225 = vsel %vm3202, %v3144, 0
      %v3228 = vsel %vm3202, %v3145, 0
      %v3231 = vsel %vm3202, %v3146, 0
      %v3234 = vsel %vm3202, %v3147, 0
      %v3237 = vsel %vm3202, %v3148, 0
      %v3240 = vsel %vm3202, %v3149, 0
      %v3243 = vsel %vm3202, %v3150, 0
      %v3246 = vsel %vm3202, %v3151, 0
      %v3249 = vsel %vm3202, %v3152, 0
      %v3252 = vsel %vm3202, %v3153, 0
      %v3255 = vsel %vm3202, %v3154, 0
      %v3258 = vsel %vm3202, %v3155, 0
      %v3261 = vsel %vm3202, %v3156, 0
      %v3264 = vsel %vm3202, %v3157, 0
      %v3267 = vsel %vm3202, %v3158, 0
      %v3270 = vsel %vm3202, %v3159, 0
      %v3273 = vsel %vm3202, %v3160, 0
      %v3276 = vsel %vm3202, %v3161, 0
      %v3279 = vsel %vm3202, %v3162, 0
      %v3282 = vsel %vm3202, %v3163, 0
      %v3285 = vsel %vm3202, %v3164, 0
      %v3288 = vsel %vm3202, %v3165, 0
      %v3291 = vsel %vm3202, %v3166, 0
      %v3294 = vsel %vm3202, %v3167, 0
      %v3297 = vsel %vm3202, %v3168, 0
      %3299 = vmatprep.subr.mxu0 0.0
      %3300 = vmatpush1.msra.mxu0 0.0
      %3301 = vmatprep.subr.mxu0 0.0
      %3302 = vmatpush1.msra.mxu0 0.0
      %3303 = vmatprep.subr.mxu0 0.0
      %3304 = vmatpush1.msra.mxu0 %v3194
      %3305 = vmatprep.subr.mxu0 0.0
      %3306 = vmatpush1.msra.mxu0 %v3193
      %3307 = vmatprep.subr.mxu0 0.0
      %3308 = vmatpush1.msra.mxu0 %v3192
      %3309 = vmatprep.subr.mxu0 0.0
      %3310 = vmatpush1.msra.mxu0 %v3191
      %3311 = vmatprep.subr.mxu0 0.0
      %3312 = vmatpush1.msra.mxu0 %v3190
      %3313 = vmatprep.subr.mxu0 0.0
      %3314 = vmatpush1.msra.mxu0 %v3189
      %3315 = vmatprep.subr.mxu0 0.0
      %3316 = vmatpush1.msra.mxu0 %v3188
      %3317 = vmatprep.subr.mxu0 0.0
      %3318 = vmatpush1.msra.mxu0 %v3187
      %3319 = vmatprep.subr.mxu0 0.0
      %3320 = vmatpush1.msra.mxu0 %v3186
      %3321 = vmatprep.subr.mxu0 0.0
      %3322 = vmatpush1.msra.mxu0 %v3185
      %3323 = vmatprep.subr.mxu0 0.0
      %3324 = vmatpush1.msra.mxu0 %v3184
      %3325 = vmatprep.subr.mxu0 0.0
      %3326 = vmatpush1.msra.mxu0 %v3183
      %3327 = vmatprep.subr.mxu0 0.0
      %3328 = vmatpush1.msra.mxu0 %v3182
      %3329 = vmatprep.subr.mxu0 0.0
      %3330 = vmatpush1.msra.mxu0 %v3181
      %3331 = vmatprep.subr.mxu0 0.0
      %3332 = vmatpush2.msra.mxu0 0.0
      %3333 = vmatprep.subr.mxu0 0.0
      %3334 = vmatpush2.msra.mxu0 0.0
      %3335 = vmatprep.subr.mxu0 0.0
      %3336 = vmatpush2.msra.mxu0 0.0
      %3337 = vmatprep.subr.mxu0 0.0
      %3338 = vmatpush2.msra.mxu0 0.0
      %3339 = vmatprep.subr.mxu0 0.0
      %3340 = vmatpush2.msra.mxu0 0.0
      %3341 = vmatprep.subr.mxu0 0.0
      %3342 = vmatpush2.msra.mxu0 0.0
      %3343 = vmatprep.subr.mxu0 0.0
      %3344 = vmatpush2.msra.mxu0 0.0
      %3345 = vmatprep.subr.mxu0 0.0
      %3346 = vmatpush2.msra.mxu0 0.0
      %3347 = vmatprep.subr.mxu0 0.0
      %3348 = vmatpush2.msra.mxu0 0.0
      %3349 = vmatprep.subr.mxu0 0.0
      %3350 = vmatpush2.msra.mxu0 0.0
      %3351 = vmatprep.subr.mxu0 0.0
      %3352 = vmatpush2.msra.mxu0 0.0
      %3353 = vmatprep.subr.mxu0 0.0
      %3354 = vmatpush2.msra.mxu0 0.0
      %3355 = vmatprep.subr.mxu0 0.0
      %3356 = vmatpush2.msra.mxu0 0.0
      %3357 = vmatprep.subr.mxu0 0.0
      %3358 = vmatpush2.msra.mxu0 0.0
      %3359 = vmatprep.subr.mxu0 0.0
      %3360 = vmatpush2.msra.mxu0 0.0
      %3361 = vmatprep.subr.mxu0 0.0
      %3362 = vmatpush2.msra.mxu0 0.0
      %3363 = vmatprep.mubr.f32.mxu0 0.0
      %3364 = vmatmul.mubr.f32.gmra.mxu0 %v3204
      %v3365 = vpop.f32.mrf.mxu0
      %v3366 = vadd.f32 %v3200, %v3365
      %v3367 = vpop.f32.mrf.mxu0
      %3368 = vmatprep.mubr.f32.mxu0 0.0
      %3369 = vmatmul.mubr.f32.gmra.mxu0 %v3207
      %v3370 = vpop.f32.mrf.mxu0
      %v3371 = vadd.f32 %v3200, %v3370
      %v3372 = vpop.f32.mrf.mxu0
      %3373 = vmatprep.mubr.f32.mxu0 0.0
      %3374 = vmatmul.mubr.f32.gmra.mxu0 %v3210
      %v3375 = vpop.f32.mrf.mxu0
      %v3376 = vadd.f32 %v3200, %v3375
      %v3377 = vpop.f32.mrf.mxu0
      %3378 = vmatprep.mubr.f32.mxu0 0.0
      %3379 = vmatmul.mubr.f32.gmra.mxu0 %v3213
      %v3380 = vpop.f32.mrf.mxu0
      %v3381 = vadd.f32 %v3200, %v3380
      %v3382 = vpop.f32.mrf.mxu0
      %3383 = vmatprep.mubr.f32.mxu0 0.0
      %3384 = vmatmul.mubr.f32.gmra.mxu0 %v3216
      %v3385 = vpop.f32.mrf.mxu0
      %v3386 = vadd.f32 %v3200, %v3385
      %v3387 = vpop.f32.mrf.mxu0
      %3388 = vmatprep.mubr.f32.mxu0 0.0
      %3389 = vmatmul.mubr.f32.gmra.mxu0 %v3219
      %v3390 = vpop.f32.mrf.mxu0
      %v3391 = vadd.f32 %v3200, %v3390
      %v3392 = vpop.f32.mrf.mxu0
      %3393 = vmatprep.mubr.f32.mxu0 0.0
      %3394 = vmatmul.mubr.f32.gmra.mxu0 %v3222
      %v3395 = vpop.f32.mrf.mxu0
      %v3396 = vadd.f32 %v3200, %v3395
      %v3397 = vpop.f32.mrf.mxu0
      %3398 = vmatprep.mubr.f32.mxu0 0.0
      %3399 = vmatmul.mubr.f32.gmra.mxu0 %v3225
      %v3400 = vpop.f32.mrf.mxu0
      %v3401 = vadd.f32 %v3200, %v3400
      %v3402 = vpop.f32.mrf.mxu0
      %3403 = vmatprep.mubr.f32.mxu0 0.0
      %3404 = vmatmul.mubr.f32.gmra.mxu0 %v3228
      %v3405 = vpop.f32.mrf.mxu0
      %v3406 = vadd.f32 %v3200, %v3405
      %v3407 = vpop.f32.mrf.mxu0
      %3408 = vmatprep.mubr.f32.mxu0 0.0
      %3409 = vmatmul.mubr.f32.gmra.mxu0 %v3231
      %v3410 = vpop.f32.mrf.mxu0
      %v3411 = vadd.f32 %v3200, %v3410
      %v3412 = vpop.f32.mrf.mxu0
      %3413 = vmatprep.mubr.f32.mxu0 0.0
      %3414 = vmatmul.mubr.f32.gmra.mxu0 %v3234
      %v3415 = vpop.f32.mrf.mxu0
      %v3416 = vadd.f32 %v3200, %v3415
      %v3417 = vpop.f32.mrf.mxu0
      %3418 = vmatprep.mubr.f32.mxu0 0.0
      %3419 = vmatmul.mubr.f32.gmra.mxu0 %v3237
      %v3420 = vpop.f32.mrf.mxu0
      %v3421 = vadd.f32 %v3200, %v3420
      %v3422 = vpop.f32.mrf.mxu0
      %3423 = vmatprep.mubr.f32.mxu0 0.0
      %3424 = vmatmul.mubr.f32.gmra.mxu0 %v3240
      %v3425 = vpop.f32.mrf.mxu0
      %v3426 = vadd.f32 %v3200, %v3425
      %v3427 = vpop.f32.mrf.mxu0
      %3428 = vmatprep.mubr.f32.mxu0 0.0
      %3429 = vmatmul.mubr.f32.gmra.mxu0 %v3243
      %v3430 = vpop.f32.mrf.mxu0
      %v3431 = vadd.f32 %v3200, %v3430
      %v3432 = vpop.f32.mrf.mxu0
      %3433 = vmatprep.mubr.f32.mxu0 0.0
      %3434 = vmatmul.mubr.f32.gmra.mxu0 %v3246
      %v3435 = vpop.f32.mrf.mxu0
      %v3436 = vadd.f32 %v3200, %v3435
      %v3437 = vpop.f32.mrf.mxu0
      %3438 = vmatprep.mubr.f32.mxu0 0.0
      %3439 = vmatmul.mubr.f32.gmra.mxu0 %v3249
      %v3440 = vpop.f32.mrf.mxu0
      %v3441 = vadd.f32 %v3200, %v3440
      %v3442 = vpop.f32.mrf.mxu0
      %3443 = vmatprep.mubr.f32.mxu0 0.0
      %3444 = vmatmul.mubr.f32.gmra.mxu0 %v3252
      %v3445 = vpop.f32.mrf.mxu0
      %v3446 = vadd.f32 %v3200, %v3445
      %v3447 = vpop.f32.mrf.mxu0
      %3448 = vmatprep.mubr.f32.mxu0 0.0
      %3449 = vmatmul.mubr.f32.gmra.mxu0 %v3255
      %v3450 = vpop.f32.mrf.mxu0
      %v3451 = vadd.f32 %v3200, %v3450
      %v3452 = vpop.f32.mrf.mxu0
      %3453 = vmatprep.mubr.f32.mxu0 0.0
      %3454 = vmatmul.mubr.f32.gmra.mxu0 %v3258
      %v3455 = vpop.f32.mrf.mxu0
      %v3456 = vadd.f32 %v3200, %v3455
      %v3457 = vpop.f32.mrf.mxu0
      %3458 = vmatprep.mubr.f32.mxu0 0.0
      %3459 = vmatmul.mubr.f32.gmra.mxu0 %v3261
      %v3460 = vpop.f32.mrf.mxu0
      %v3461 = vadd.f32 %v3200, %v3460
      %v3462 = vpop.f32.mrf.mxu0
      %3463 = vmatprep.mubr.f32.mxu0 0.0
      %3464 = vmatmul.mubr.f32.gmra.mxu0 %v3264
      %v3465 = vpop.f32.mrf.mxu0
      %v3466 = vadd.f32 %v3200, %v3465
      %v3467 = vpop.f32.mrf.mxu0
      %3468 = vmatprep.mubr.f32.mxu0 0.0
      %3469 = vmatmul.mubr.f32.gmra.mxu0 %v3267
      %v3470 = vpop.f32.mrf.mxu0
      %v3471 = vadd.f32 %v3200, %v3470
      %v3472 = vpop.f32.mrf.mxu0
      %3473 = vmatprep.mubr.f32.mxu0 0.0
      %3474 = vmatmul.mubr.f32.gmra.mxu0 %v3270
      %v3475 = vpop.f32.mrf.mxu0
      %v3476 = vadd.f32 %v3200, %v3475
      %v3477 = vpop.f32.mrf.mxu0
      %3478 = vmatprep.mubr.f32.mxu0 0.0
      %3479 = vmatmul.mubr.f32.gmra.mxu0 %v3273
      %v3480 = vpop.f32.mrf.mxu0
      %v3481 = vadd.f32 %v3200, %v3480
      %v3482 = vpop.f32.mrf.mxu0
      %3483 = vmatprep.mubr.f32.mxu0 0.0
      %3484 = vmatmul.mubr.f32.gmra.mxu0 %v3276
      %v3485 = vpop.f32.mrf.mxu0
      %v3486 = vadd.f32 %v3200, %v3485
      %v3487 = vpop.f32.mrf.mxu0
      %3488 = vmatprep.mubr.f32.mxu0 0.0
      %3489 = vmatmul.mubr.f32.gmra.mxu0 %v3279
      %v3490 = vpop.f32.mrf.mxu0
      %v3491 = vadd.f32 %v3200, %v3490
      %v3492 = vpop.f32.mrf.mxu0
      %3493 = vmatprep.mubr.f32.mxu0 0.0
      %3494 = vmatmul.mubr.f32.gmra.mxu0 %v3282
      %v3495 = vpop.f32.mrf.mxu0
      %v3496 = vadd.f32 %v3200, %v3495
      %v3497 = vpop.f32.mrf.mxu0
      %3498 = vmatprep.mubr.f32.mxu0 0.0
      %3499 = vmatmul.mubr.f32.gmra.mxu0 %v3285
      %v3500 = vpop.f32.mrf.mxu0
      %v3501 = vadd.f32 %v3200, %v3500
      %v3502 = vpop.f32.mrf.mxu0
      %3503 = vmatprep.mubr.f32.mxu0 0.0
      %3504 = vmatmul.mubr.f32.gmra.mxu0 %v3288
      %v3505 = vpop.f32.mrf.mxu0
      %v3506 = vadd.f32 %v3200, %v3505
      %v3507 = vpop.f32.mrf.mxu0
      %3508 = vmatprep.mubr.f32.mxu0 0.0
      %3509 = vmatmul.mubr.f32.gmra.mxu0 %v3291
      %v3510 = vpop.f32.mrf.mxu0
      %v3511 = vadd.f32 %v3200, %v3510
      %v3512 = vpop.f32.mrf.mxu0
      %3513 = vmatprep.mubr.f32.mxu0 0.0
      %3514 = vmatmul.mubr.f32.gmra.mxu0 %v3294
      %v3515 = vpop.f32.mrf.mxu0
      %v3516 = vadd.f32 %v3200, %v3515
      %v3517 = vpop.f32.mrf.mxu0
      %3518 = vmatprep.mubr.f32.mxu0 0.0
      %3519 = vmatmul.mubr.f32.gmra.mxu0 %v3297
      %v3520 = vpop.f32.mrf.mxu0
      %v3521 = vadd.f32 %v3200, %v3520
      %v3522 = vpop.f32.mrf.mxu0
      %3523 = vdwg.mxu0
      %s3524 = scalar_lea.vmem %s5, 112
      %v3525 = vld [vmem:[%s3524] sm:$0xff]
      %v3526 = vld [vmem:[%s3524 + $0x8] sm:$0xff]
      %v3527 = vld [vmem:[%s3524 + $0x10] sm:$0xff]
      %v3528 = vld [vmem:[%s3524 + $0x18] sm:$0xff]
      %v3529 = vld [vmem:[%s3524 + $0x20] sm:$0xff]
      %v3530 = vld [vmem:[%s3524 + $0x28] sm:$0xff]
      %v3531 = vld [vmem:[%s3524 + $0x30] sm:$0xff]
      %v3532 = vld [vmem:[%s3524 + $0x38] sm:$0xff]
      %v3533 = vld [vmem:[%s3524 + $0x40] sm:$0xff]
      %v3534 = vld [vmem:[%s3524 + $0x48] sm:$0xff]
      %v3535 = vld [vmem:[%s3524 + $0x50] sm:$0xff]
      %v3536 = vld [vmem:[%s3524 + $0x58] sm:$0xff]
      %v3537 = vld [vmem:[%s3524 + $0x60] sm:$0xff]
      %v3538 = vld [vmem:[%s3524 + $0x68] sm:$0xff]
      %v3540 = vsel %vm3202, %v3169, 0
      %v3543 = vsel %vm3202, %v3170, 0
      %3545 = vmatprep.subr.mxu0 0.0
      %3546 = vmatpush1.msra.mxu0 0.0
      %3547 = vmatprep.subr.mxu0 0.0
      %3548 = vmatpush1.msra.mxu0 0.0
      %3549 = vmatprep.subr.mxu0 0.0
      %3550 = vmatpush1.msra.mxu0 %v3538
      %3551 = vmatprep.subr.mxu0 0.0
      %3552 = vmatpush1.msra.mxu0 %v3537
      %3553 = vmatprep.subr.mxu0 0.0
      %3554 = vmatpush1.msra.mxu0 %v3536
      %3555 = vmatprep.subr.mxu0 0.0
      %3556 = vmatpush1.msra.mxu0 %v3535
      %3557 = vmatprep.subr.mxu0 0.0
      %3558 = vmatpush1.msra.mxu0 %v3534
      %3559 = vmatprep.subr.mxu0 0.0
      %3560 = vmatpush1.msra.mxu0 %v3533
      %3561 = vmatprep.subr.mxu0 0.0
      %3562 = vmatpush1.msra.mxu0 %v3532
      %3563 = vmatprep.subr.mxu0 0.0
      %3564 = vmatpush1.msra.mxu0 %v3531
      %3565 = vmatprep.subr.mxu0 0.0
      %3566 = vmatpush1.msra.mxu0 %v3530
      %3567 = vmatprep.subr.mxu0 0.0
      %3568 = vmatpush1.msra.mxu0 %v3529
      %3569 = vmatprep.subr.mxu0 0.0
      %3570 = vmatpush1.msra.mxu0 %v3528
      %3571 = vmatprep.subr.mxu0 0.0
      %3572 = vmatpush1.msra.mxu0 %v3527
      %3573 = vmatprep.subr.mxu0 0.0
      %3574 = vmatpush1.msra.mxu0 %v3526
      %3575 = vmatprep.subr.mxu0 0.0
      %3576 = vmatpush1.msra.mxu0 %v3525
      %3577 = vmatprep.subr.mxu0 0.0
      %3578 = vmatpush2.msra.mxu0 0.0
      %3579 = vmatprep.subr.mxu0 0.0
      %3580 = vmatpush2.msra.mxu0 0.0
      %3581 = vmatprep.subr.mxu0 0.0
      %3582 = vmatpush2.msra.mxu0 0.0
      %3583 = vmatprep.subr.mxu0 0.0
      %3584 = vmatpush2.msra.mxu0 0.0
      %3585 = vmatprep.subr.mxu0 0.0
      %3586 = vmatpush2.msra.mxu0 0.0
      %3587 = vmatprep.subr.mxu0 0.0
      %3588 = vmatpush2.msra.mxu0 0.0
      %3589 = vmatprep.subr.mxu0 0.0
      %3590 = vmatpush2.msra.mxu0 0.0
      %3591 = vmatprep.subr.mxu0 0.0
      %3592 = vmatpush2.msra.mxu0 0.0
      %3593 = vmatprep.subr.mxu0 0.0
      %3594 = vmatpush2.msra.mxu0 0.0
      %3595 = vmatprep.subr.mxu0 0.0
      %3596 = vmatpush2.msra.mxu0 0.0
      %3597 = vmatprep.subr.mxu0 0.0
      %3598 = vmatpush2.msra.mxu0 0.0
      %3599 = vmatprep.subr.mxu0 0.0
      %3600 = vmatpush2.msra.mxu0 0.0
      %3601 = vmatprep.subr.mxu0 0.0
      %3602 = vmatpush2.msra.mxu0 0.0
      %3603 = vmatprep.subr.mxu0 0.0
      %3604 = vmatpush2.msra.mxu0 0.0
      %3605 = vmatprep.subr.mxu0 0.0
      %3606 = vmatpush2.msra.mxu0 0.0
      %3607 = vmatprep.subr.mxu0 0.0
      %3608 = vmatpush2.msra.mxu0 0.0
      %3609 = vmatprep.mubr.f32.mxu0 0.0
      %3610 = vmatmul.mubr.f32.gmra.mxu0 %v3210
      %v3611 = vpop.f32.mrf.mxu0
      %v3612 = vadd.f32 0.0, %v3611
      %v3613 = vpop.f32.mrf.mxu0
      %3614 = vmatprep.mubr.f32.mxu0 0.0
      %3615 = vmatmul.mubr.f32.gmra.mxu0 %v3213
      %v3616 = vpop.f32.mrf.mxu0
      %v3617 = vadd.f32 0.0, %v3616
      %v3618 = vpop.f32.mrf.mxu0
      %3619 = vmatprep.mubr.f32.mxu0 0.0
      %3620 = vmatmul.mubr.f32.gmra.mxu0 %v3216
      %v3621 = vpop.f32.mrf.mxu0
      %v3622 = vadd.f32 0.0, %v3621
      %v3623 = vpop.f32.mrf.mxu0
      %3624 = vmatprep.mubr.f32.mxu0 0.0
      %3625 = vmatmul.mubr.f32.gmra.mxu0 %v3219
      %v3626 = vpop.f32.mrf.mxu0
      %v3627 = vadd.f32 0.0, %v3626
      %v3628 = vpop.f32.mrf.mxu0
      %3629 = vmatprep.mubr.f32.mxu0 0.0
      %3630 = vmatmul.mubr.f32.gmra.mxu0 %v3222
      %v3631 = vpop.f32.mrf.mxu0
      %v3632 = vadd.f32 0.0, %v3631
      %v3633 = vpop.f32.mrf.mxu0
      %3634 = vmatprep.mubr.f32.mxu0 0.0
      %3635 = vmatmul.mubr.f32.gmra.mxu0 %v3225
      %v3636 = vpop.f32.mrf.mxu0
      %v3637 = vadd.f32 0.0, %v3636
      %v3638 = vpop.f32.mrf.mxu0
      %3639 = vmatprep.mubr.f32.mxu0 0.0
      %3640 = vmatmul.mubr.f32.gmra.mxu0 %v3228
      %v3641 = vpop.f32.mrf.mxu0
      %v3642 = vadd.f32 0.0, %v3641
      %v3643 = vpop.f32.mrf.mxu0
      %3644 = vmatprep.mubr.f32.mxu0 0.0
      %3645 = vmatmul.mubr.f32.gmra.mxu0 %v3231
      %v3646 = vpop.f32.mrf.mxu0
      %v3647 = vadd.f32 0.0, %v3646
      %v3648 = vpop.f32.mrf.mxu0
      %3649 = vmatprep.mubr.f32.mxu0 0.0
      %3650 = vmatmul.mubr.f32.gmra.mxu0 %v3234
      %v3651 = vpop.f32.mrf.mxu0
      %v3652 = vadd.f32 0.0, %v3651
      %v3653 = vpop.f32.mrf.mxu0
      %3654 = vmatprep.mubr.f32.mxu0 0.0
      %3655 = vmatmul.mubr.f32.gmra.mxu0 %v3237
      %v3656 = vpop.f32.mrf.mxu0
      %v3657 = vadd.f32 0.0, %v3656
      %v3658 = vpop.f32.mrf.mxu0
      %3659 = vmatprep.mubr.f32.mxu0 0.0
      %3660 = vmatmul.mubr.f32.gmra.mxu0 %v3240
      %v3661 = vpop.f32.mrf.mxu0
      %v3662 = vadd.f32 0.0, %v3661
      %v3663 = vpop.f32.mrf.mxu0
      %3664 = vmatprep.mubr.f32.mxu0 0.0
      %3665 = vmatmul.mubr.f32.gmra.mxu0 %v3243
      %v3666 = vpop.f32.mrf.mxu0
      %v3667 = vadd.f32 0.0, %v3666
      %v3668 = vpop.f32.mrf.mxu0
      %3669 = vmatprep.mubr.f32.mxu0 0.0
      %3670 = vmatmul.mubr.f32.gmra.mxu0 %v3246
      %v3671 = vpop.f32.mrf.mxu0
      %v3672 = vadd.f32 0.0, %v3671
      %v3673 = vpop.f32.mrf.mxu0
      %3674 = vmatprep.mubr.f32.mxu0 0.0
      %3675 = vmatmul.mubr.f32.gmra.mxu0 %v3249
      %v3676 = vpop.f32.mrf.mxu0
      %v3677 = vadd.f32 0.0, %v3676
      %v3678 = vpop.f32.mrf.mxu0
      %3679 = vmatprep.mubr.f32.mxu0 0.0
      %3680 = vmatmul.mubr.f32.gmra.mxu0 %v3252
      %v3681 = vpop.f32.mrf.mxu0
      %v3682 = vadd.f32 0.0, %v3681
      %v3683 = vpop.f32.mrf.mxu0
      %3684 = vmatprep.mubr.f32.mxu0 0.0
      %3685 = vmatmul.mubr.f32.gmra.mxu0 %v3255
      %v3686 = vpop.f32.mrf.mxu0
      %v3687 = vadd.f32 0.0, %v3686
      %v3688 = vpop.f32.mrf.mxu0
      %3689 = vmatprep.mubr.f32.mxu0 0.0
      %3690 = vmatmul.mubr.f32.gmra.mxu0 %v3258
      %v3691 = vpop.f32.mrf.mxu0
      %v3692 = vadd.f32 0.0, %v3691
      %v3693 = vpop.f32.mrf.mxu0
      %3694 = vmatprep.mubr.f32.mxu0 0.0
      %3695 = vmatmul.mubr.f32.gmra.mxu0 %v3261
      %v3696 = vpop.f32.mrf.mxu0
      %v3697 = vadd.f32 0.0, %v3696
      %v3698 = vpop.f32.mrf.mxu0
      %3699 = vmatprep.mubr.f32.mxu0 0.0
      %3700 = vmatmul.mubr.f32.gmra.mxu0 %v3264
      %v3701 = vpop.f32.mrf.mxu0
      %v3702 = vadd.f32 0.0, %v3701
      %v3703 = vpop.f32.mrf.mxu0
      %3704 = vmatprep.mubr.f32.mxu0 0.0
      %3705 = vmatmul.mubr.f32.gmra.mxu0 %v3267
      %v3706 = vpop.f32.mrf.mxu0
      %v3707 = vadd.f32 0.0, %v3706
      %v3708 = vpop.f32.mrf.mxu0
      %3709 = vmatprep.mubr.f32.mxu0 0.0
      %3710 = vmatmul.mubr.f32.gmra.mxu0 %v3270
      %v3711 = vpop.f32.mrf.mxu0
      %v3712 = vadd.f32 0.0, %v3711
      %v3713 = vpop.f32.mrf.mxu0
      %3714 = vmatprep.mubr.f32.mxu0 0.0
      %3715 = vmatmul.mubr.f32.gmra.mxu0 %v3273
      %v3716 = vpop.f32.mrf.mxu0
      %v3717 = vadd.f32 0.0, %v3716
      %v3718 = vpop.f32.mrf.mxu0
      %3719 = vmatprep.mubr.f32.mxu0 0.0
      %3720 = vmatmul.mubr.f32.gmra.mxu0 %v3276
      %v3721 = vpop.f32.mrf.mxu0
      %v3722 = vadd.f32 0.0, %v3721
      %v3723 = vpop.f32.mrf.mxu0
      %3724 = vmatprep.mubr.f32.mxu0 0.0
      %3725 = vmatmul.mubr.f32.gmra.mxu0 %v3279
      %v3726 = vpop.f32.mrf.mxu0
      %v3727 = vadd.f32 0.0, %v3726
      %v3728 = vpop.f32.mrf.mxu0
      %3729 = vmatprep.mubr.f32.mxu0 0.0
      %3730 = vmatmul.mubr.f32.gmra.mxu0 %v3282
      %v3731 = vpop.f32.mrf.mxu0
      %v3732 = vadd.f32 0.0, %v3731
      %v3733 = vpop.f32.mrf.mxu0
      %3734 = vmatprep.mubr.f32.mxu0 0.0
      %3735 = vmatmul.mubr.f32.gmra.mxu0 %v3285
      %v3736 = vpop.f32.mrf.mxu0
      %v3737 = vadd.f32 0.0, %v3736
      %v3738 = vpop.f32.mrf.mxu0
      %3739 = vmatprep.mubr.f32.mxu0 0.0
      %3740 = vmatmul.mubr.f32.gmra.mxu0 %v3288
      %v3741 = vpop.f32.mrf.mxu0
      %v3742 = vadd.f32 0.0, %v3741
      %v3743 = vpop.f32.mrf.mxu0
      %3744 = vmatprep.mubr.f32.mxu0 0.0
      %3745 = vmatmul.mubr.f32.gmra.mxu0 %v3291
      %v3746 = vpop.f32.mrf.mxu0
      %v3747 = vadd.f32 0.0, %v3746
      %v3748 = vpop.f32.mrf.mxu0
      %3749 = vmatprep.mubr.f32.mxu0 0.0
      %3750 = vmatmul.mubr.f32.gmra.mxu0 %v3294
      %v3751 = vpop.f32.mrf.mxu0
      %v3752 = vadd.f32 0.0, %v3751
      %v3753 = vpop.f32.mrf.mxu0
      %3754 = vmatprep.mubr.f32.mxu0 0.0
      %3755 = vmatmul.mubr.f32.gmra.mxu0 %v3297
      %v3756 = vpop.f32.mrf.mxu0
      %v3757 = vadd.f32 0.0, %v3756
      %v3758 = vpop.f32.mrf.mxu0
      %3759 = vmatprep.mubr.f32.mxu0 0.0
      %3760 = vmatmul.mubr.f32.gmra.mxu0 %v3540
      %v3761 = vpop.f32.mrf.mxu0
      %v3762 = vadd.f32 0.0, %v3761
      %v3763 = vpop.f32.mrf.mxu0
      %3764 = vmatprep.mubr.f32.mxu0 0.0
      %3765 = vmatmul.mubr.f32.gmra.mxu0 %v3543
      %v3766 = vpop.f32.mrf.mxu0
      %v3767 = vadd.f32 0.0, %v3766
      %v3768 = vpop.f32.mrf.mxu0
      %3769 = vdwg.mxu0
      %v3770 = vadd.f32 %v3366, %v3612
      %v3771 = vadd.f32 %v3371, %v3617
      %v3772 = vadd.f32 %v3376, %v3622
      %v3773 = vadd.f32 %v3381, %v3627
      %v3774 = vadd.f32 %v3386, %v3632
      %v3775 = vadd.f32 %v3391, %v3637
      %v3776 = vadd.f32 %v3396, %v3642
      %v3777 = vadd.f32 %v3401, %v3647
      %v3778 = vadd.f32 %v3406, %v3652
      %v3779 = vadd.f32 %v3411, %v3657
      %v3780 = vadd.f32 %v3416, %v3662
      %v3781 = vadd.f32 %v3421, %v3667
      %v3782 = vadd.f32 %v3426, %v3672
      %v3783 = vadd.f32 %v3431, %v3677
      %v3784 = vadd.f32 %v3436, %v3682
      %v3785 = vadd.f32 %v3441, %v3687
      %v3786 = vadd.f32 %v3446, %v3692
      %v3787 = vadd.f32 %v3451, %v3697
      %v3788 = vadd.f32 %v3456, %v3702
      %v3789 = vadd.f32 %v3461, %v3707
      %v3790 = vadd.f32 %v3466, %v3712
      %v3791 = vadd.f32 %v3471, %v3717
      %v3792 = vadd.f32 %v3476, %v3722
      %v3793 = vadd.f32 %v3481, %v3727
      %v3794 = vadd.f32 %v3486, %v3732
      %v3795 = vadd.f32 %v3491, %v3737
      %v3796 = vadd.f32 %v3496, %v3742
      %v3797 = vadd.f32 %v3501, %v3747
      %v3798 = vadd.f32 %v3506, %v3752
      %v3799 = vadd.f32 %v3511, %v3757
      %v3800 = vadd.f32 %v3516, %v3762
      %v3801 = vadd.f32 %v3521, %v3767
      %s3802 = scalar_lea.vmem %s5, 224
      %v3803 = vld [vmem:[%s3802] sm:$0xff]
      %v3804 = vld [vmem:[%s3802 + $0x8] sm:$0xff]
      %v3805 = vld [vmem:[%s3802 + $0x10] sm:$0xff]
      %v3806 = vld [vmem:[%s3802 + $0x18] sm:$0xff]
      %v3807 = vld [vmem:[%s3802 + $0x20] sm:$0xff]
      %v3808 = vld [vmem:[%s3802 + $0x28] sm:$0xff]
      %v3809 = vld [vmem:[%s3802 + $0x30] sm:$0xff]
      %v3810 = vld [vmem:[%s3802 + $0x38] sm:$0xff]
      %v3811 = vld [vmem:[%s3802 + $0x40] sm:$0xff]
      %v3812 = vld [vmem:[%s3802 + $0x48] sm:$0xff]
      %v3813 = vld [vmem:[%s3802 + $0x50] sm:$0xff]
      %v3814 = vld [vmem:[%s3802 + $0x58] sm:$0xff]
      %v3815 = vld [vmem:[%s3802 + $0x60] sm:$0xff]
      %v3816 = vld [vmem:[%s3802 + $0x68] sm:$0xff]
      %v3818 = vsel %vm3202, %v3171, 0
      %v3821 = vsel %vm3202, %v3172, 0
      %3823 = vmatprep.subr.mxu0 0.0
      %3824 = vmatpush1.msra.mxu0 0.0
      %3825 = vmatprep.subr.mxu0 0.0
      %3826 = vmatpush1.msra.mxu0 0.0
      %3827 = vmatprep.subr.mxu0 0.0
      %3828 = vmatpush1.msra.mxu0 %v3816
      %3829 = vmatprep.subr.mxu0 0.0
      %3830 = vmatpush1.msra.mxu0 %v3815
      %3831 = vmatprep.subr.mxu0 0.0
      %3832 = vmatpush1.msra.mxu0 %v3814
      %3833 = vmatprep.subr.mxu0 0.0
      %3834 = vmatpush1.msra.mxu0 %v3813
      %3835 = vmatprep.subr.mxu0 0.0
      %3836 = vmatpush1.msra.mxu0 %v3812
      %3837 = vmatprep.subr.mxu0 0.0
      %3838 = vmatpush1.msra.mxu0 %v3811
      %3839 = vmatprep.subr.mxu0 0.0
      %3840 = vmatpush1.msra.mxu0 %v3810
      %3841 = vmatprep.subr.mxu0 0.0
      %3842 = vmatpush1.msra.mxu0 %v3809
      %3843 = vmatprep.subr.mxu0 0.0
      %3844 = vmatpush1.msra.mxu0 %v3808
      %3845 = vmatprep.subr.mxu0 0.0
      %3846 = vmatpush1.msra.mxu0 %v3807
      %3847 = vmatprep.subr.mxu0 0.0
      %3848 = vmatpush1.msra.mxu0 %v3806
      %3849 = vmatprep.subr.mxu0 0.0
      %3850 = vmatpush1.msra.mxu0 %v3805
      %3851 = vmatprep.subr.mxu0 0.0
      %3852 = vmatpush1.msra.mxu0 %v3804
      %3853 = vmatprep.subr.mxu0 0.0
      %3854 = vmatpush1.msra.mxu0 %v3803
      %3855 = vmatprep.subr.mxu0 0.0
      %3856 = vmatpush2.msra.mxu0 0.0
      %3857 = vmatprep.subr.mxu0 0.0
      %3858 = vmatpush2.msra.mxu0 0.0
      %3859 = vmatprep.subr.mxu0 0.0
      %3860 = vmatpush2.msra.mxu0 0.0
      %3861 = vmatprep.subr.mxu0 0.0
      %3862 = vmatpush2.msra.mxu0 0.0
      %3863 = vmatprep.subr.mxu0 0.0
      %3864 = vmatpush2.msra.mxu0 0.0
      %3865 = vmatprep.subr.mxu0 0.0
      %3866 = vmatpush2.msra.mxu0 0.0
      %3867 = vmatprep.subr.mxu0 0.0
      %3868 = vmatpush2.msra.mxu0 0.0
      %3869 = vmatprep.subr.mxu0 0.0
      %3870 = vmatpush2.msra.mxu0 0.0
      %3871 = vmatprep.subr.mxu0 0.0
      %3872 = vmatpush2.msra.mxu0 0.0
      %3873 = vmatprep.subr.mxu0 0.0
      %3874 = vmatpush2.msra.mxu0 0.0
      %3875 = vmatprep.subr.mxu0 0.0
      %3876 = vmatpush2.msra.mxu0 0.0
      %3877 = vmatprep.subr.mxu0 0.0
      %3878 = vmatpush2.msra.mxu0 0.0
      %3879 = vmatprep.subr.mxu0 0.0
      %3880 = vmatpush2.msra.mxu0 0.0
      %3881 = vmatprep.subr.mxu0 0.0
      %3882 = vmatpush2.msra.mxu0 0.0
      %3883 = vmatprep.subr.mxu0 0.0
      %3884 = vmatpush2.msra.mxu0 0.0
      %3885 = vmatprep.subr.mxu0 0.0
      %3886 = vmatpush2.msra.mxu0 0.0
      %3887 = vmatprep.mubr.f32.mxu0 0.0
      %3888 = vmatmul.mubr.f32.gmra.mxu0 %v3216
      %v3889 = vpop.f32.mrf.mxu0
      %v3890 = vadd.f32 0.0, %v3889
      %v3891 = vpop.f32.mrf.mxu0
      %3892 = vmatprep.mubr.f32.mxu0 0.0
      %3893 = vmatmul.mubr.f32.gmra.mxu0 %v3219
      %v3894 = vpop.f32.mrf.mxu0
      %v3895 = vadd.f32 0.0, %v3894
      %v3896 = vpop.f32.mrf.mxu0
      %3897 = vmatprep.mubr.f32.mxu0 0.0
      %3898 = vmatmul.mubr.f32.gmra.mxu0 %v3222
      %v3899 = vpop.f32.mrf.mxu0
      %v3900 = vadd.f32 0.0, %v3899
      %v3901 = vpop.f32.mrf.mxu0
      %3902 = vmatprep.mubr.f32.mxu0 0.0
      %3903 = vmatmul.mubr.f32.gmra.mxu0 %v3225
      %v3904 = vpop.f32.mrf.mxu0
      %v3905 = vadd.f32 0.0, %v3904
      %v3906 = vpop.f32.mrf.mxu0
      %3907 = vmatprep.mubr.f32.mxu0 0.0
      %3908 = vmatmul.mubr.f32.gmra.mxu0 %v3228
      %v3909 = vpop.f32.mrf.mxu0
      %v3910 = vadd.f32 0.0, %v3909
      %v3911 = vpop.f32.mrf.mxu0
      %3912 = vmatprep.mubr.f32.mxu0 0.0
      %3913 = vmatmul.mubr.f32.gmra.mxu0 %v3231
      %v3914 = vpop.f32.mrf.mxu0
      %v3915 = vadd.f32 0.0, %v3914
      %v3916 = vpop.f32.mrf.mxu0
      %3917 = vmatprep.mubr.f32.mxu0 0.0
      %3918 = vmatmul.mubr.f32.gmra.mxu0 %v3234
      %v3919 = vpop.f32.mrf.mxu0
      %v3920 = vadd.f32 0.0, %v3919
      %v3921 = vpop.f32.mrf.mxu0
      %3922 = vmatprep.mubr.f32.mxu0 0.0
      %3923 = vmatmul.mubr.f32.gmra.mxu0 %v3237
      %v3924 = vpop.f32.mrf.mxu0
      %v3925 = vadd.f32 0.0, %v3924
      %v3926 = vpop.f32.mrf.mxu0
      %3927 = vmatprep.mubr.f32.mxu0 0.0
      %3928 = vmatmul.mubr.f32.gmra.mxu0 %v3240
      %v3929 = vpop.f32.mrf.mxu0
      %v3930 = vadd.f32 0.0, %v3929
      %v3931 = vpop.f32.mrf.mxu0
      %3932 = vmatprep.mubr.f32.mxu0 0.0
      %3933 = vmatmul.mubr.f32.gmra.mxu0 %v3243
      %v3934 = vpop.f32.mrf.mxu0
      %v3935 = vadd.f32 0.0, %v3934
      %v3936 = vpop.f32.mrf.mxu0
      %3937 = vmatprep.mubr.f32.mxu0 0.0
      %3938 = vmatmul.mubr.f32.gmra.mxu0 %v3246
      %v3939 = vpop.f32.mrf.mxu0
      %v3940 = vadd.f32 0.0, %v3939
      %v3941 = vpop.f32.mrf.mxu0
      %3942 = vmatprep.mubr.f32.mxu0 0.0
      %3943 = vmatmul.mubr.f32.gmra.mxu0 %v3249
      %v3944 = vpop.f32.mrf.mxu0
      %v3945 = vadd.f32 0.0, %v3944
      %v3946 = vpop.f32.mrf.mxu0
      %3947 = vmatprep.mubr.f32.mxu0 0.0
      %3948 = vmatmul.mubr.f32.gmra.mxu0 %v3252
      %v3949 = vpop.f32.mrf.mxu0
      %v3950 = vadd.f32 0.0, %v3949
      %v3951 = vpop.f32.mrf.mxu0
      %3952 = vmatprep.mubr.f32.mxu0 0.0
      %3953 = vmatmul.mubr.f32.gmra.mxu0 %v3255
      %v3954 = vpop.f32.mrf.mxu0
      %v3955 = vadd.f32 0.0, %v3954
      %v3956 = vpop.f32.mrf.mxu0
      %3957 = vmatprep.mubr.f32.mxu0 0.0
      %3958 = vmatmul.mubr.f32.gmra.mxu0 %v3258
      %v3959 = vpop.f32.mrf.mxu0
      %v3960 = vadd.f32 0.0, %v3959
      %v3961 = vpop.f32.mrf.mxu0
      %3962 = vmatprep.mubr.f32.mxu0 0.0
      %3963 = vmatmul.mubr.f32.gmra.mxu0 %v3261
      %v3964 = vpop.f32.mrf.mxu0
      %v3965 = vadd.f32 0.0, %v3964
      %v3966 = vpop.f32.mrf.mxu0
      %3967 = vmatprep.mubr.f32.mxu0 0.0
      %3968 = vmatmul.mubr.f32.gmra.mxu0 %v3264
      %v3969 = vpop.f32.mrf.mxu0
      %v3970 = vadd.f32 0.0, %v3969
      %v3971 = vpop.f32.mrf.mxu0
      %3972 = vmatprep.mubr.f32.mxu0 0.0
      %3973 = vmatmul.mubr.f32.gmra.mxu0 %v3267
      %v3974 = vpop.f32.mrf.mxu0
      %v3975 = vadd.f32 0.0, %v3974
      %v3976 = vpop.f32.mrf.mxu0
      %3977 = vmatprep.mubr.f32.mxu0 0.0
      %3978 = vmatmul.mubr.f32.gmra.mxu0 %v3270
      %v3979 = vpop.f32.mrf.mxu0
      %v3980 = vadd.f32 0.0, %v3979
      %v3981 = vpop.f32.mrf.mxu0
      %3982 = vmatprep.mubr.f32.mxu0 0.0
      %3983 = vmatmul.mubr.f32.gmra.mxu0 %v3273
      %v3984 = vpop.f32.mrf.mxu0
      %v3985 = vadd.f32 0.0, %v3984
      %v3986 = vpop.f32.mrf.mxu0
      %3987 = vmatprep.mubr.f32.mxu0 0.0
      %3988 = vmatmul.mubr.f32.gmra.mxu0 %v3276
      %v3989 = vpop.f32.mrf.mxu0
      %v3990 = vadd.f32 0.0, %v3989
      %v3991 = vpop.f32.mrf.mxu0
      %3992 = vmatprep.mubr.f32.mxu0 0.0
      %3993 = vmatmul.mubr.f32.gmra.mxu0 %v3279
      %v3994 = vpop.f32.mrf.mxu0
      %v3995 = vadd.f32 0.0, %v3994
      %v3996 = vpop.f32.mrf.mxu0
      %3997 = vmatprep.mubr.f32.mxu0 0.0
      %3998 = vmatmul.mubr.f32.gmra.mxu0 %v3282
      %v3999 = vpop.f32.mrf.mxu0
      %v4000 = vadd.f32 0.0, %v3999
      %v4001 = vpop.f32.mrf.mxu0
      %4002 = vmatprep.mubr.f32.mxu0 0.0
      %4003 = vmatmul.mubr.f32.gmra.mxu0 %v3285
      %v4004 = vpop.f32.mrf.mxu0
      %v4005 = vadd.f32 0.0, %v4004
      %v4006 = vpop.f32.mrf.mxu0
      %4007 = vmatprep.mubr.f32.mxu0 0.0
      %4008 = vmatmul.mubr.f32.gmra.mxu0 %v3288
      %v4009 = vpop.f32.mrf.mxu0
      %v4010 = vadd.f32 0.0, %v4009
      %v4011 = vpop.f32.mrf.mxu0
      %4012 = vmatprep.mubr.f32.mxu0 0.0
      %4013 = vmatmul.mubr.f32.gmra.mxu0 %v3291
      %v4014 = vpop.f32.mrf.mxu0
      %v4015 = vadd.f32 0.0, %v4014
      %v4016 = vpop.f32.mrf.mxu0
      %4017 = vmatprep.mubr.f32.mxu0 0.0
      %4018 = vmatmul.mubr.f32.gmra.mxu0 %v3294
      %v4019 = vpop.f32.mrf.mxu0
      %v4020 = vadd.f32 0.0, %v4019
      %v4021 = vpop.f32.mrf.mxu0
      %4022 = vmatprep.mubr.f32.mxu0 0.0
      %4023 = vmatmul.mubr.f32.gmra.mxu0 %v3297
      %v4024 = vpop.f32.mrf.mxu0
      %v4025 = vadd.f32 0.0, %v4024
      %v4026 = vpop.f32.mrf.mxu0
      %4027 = vmatprep.mubr.f32.mxu0 0.0
      %4028 = vmatmul.mubr.f32.gmra.mxu0 %v3540
      %v4029 = vpop.f32.mrf.mxu0
      %v4030 = vadd.f32 0.0, %v4029
      %v4031 = vpop.f32.mrf.mxu0
      %4032 = vmatprep.mubr.f32.mxu0 0.0
      %4033 = vmatmul.mubr.f32.gmra.mxu0 %v3543
      %v4034 = vpop.f32.mrf.mxu0
      %v4035 = vadd.f32 0.0, %v4034
      %v4036 = vpop.f32.mrf.mxu0
      %4037 = vmatprep.mubr.f32.mxu0 0.0
      %4038 = vmatmul.mubr.f32.gmra.mxu0 %v3818
      %v4039 = vpop.f32.mrf.mxu0
      %v4040 = vadd.f32 0.0, %v4039
      %v4041 = vpop.f32.mrf.mxu0
      %4042 = vmatprep.mubr.f32.mxu0 0.0
      %4043 = vmatmul.mubr.f32.gmra.mxu0 %v3821
      %v4044 = vpop.f32.mrf.mxu0
      %v4045 = vadd.f32 0.0, %v4044
      %v4046 = vpop.f32.mrf.mxu0
      %4047 = vdwg.mxu0
      %v4048 = vadd.f32 %v3770, %v3890
      %v4049 = vadd.f32 %v3771, %v3895
      %v4050 = vadd.f32 %v3772, %v3900
      %v4051 = vadd.f32 %v3773, %v3905
      %v4052 = vadd.f32 %v3774, %v3910
      %v4053 = vadd.f32 %v3775, %v3915
      %v4054 = vadd.f32 %v3776, %v3920
      %v4055 = vadd.f32 %v3777, %v3925
      %v4056 = vadd.f32 %v3778, %v3930
      %v4057 = vadd.f32 %v3779, %v3935
      %v4058 = vadd.f32 %v3780, %v3940
      %v4059 = vadd.f32 %v3781, %v3945
      %v4060 = vadd.f32 %v3782, %v3950
      %v4061 = vadd.f32 %v3783, %v3955
      %v4062 = vadd.f32 %v3784, %v3960
      %v4063 = vadd.f32 %v3785, %v3965
      %v4064 = vadd.f32 %v3786, %v3970
      %v4065 = vadd.f32 %v3787, %v3975
      %v4066 = vadd.f32 %v3788, %v3980
      %v4067 = vadd.f32 %v3789, %v3985
      %v4068 = vadd.f32 %v3790, %v3990
      %v4069 = vadd.f32 %v3791, %v3995
      %v4070 = vadd.f32 %v3792, %v4000
      %v4071 = vadd.f32 %v3793, %v4005
      %v4072 = vadd.f32 %v3794, %v4010
      %v4073 = vadd.f32 %v3795, %v4015
      %v4074 = vadd.f32 %v3796, %v4020
      %v4075 = vadd.f32 %v3797, %v4025
      %v4076 = vadd.f32 %v3798, %v4030
      %v4077 = vadd.f32 %v3799, %v4035
      %v4078 = vadd.f32 %v3800, %v4040
      %v4079 = vadd.f32 %v3801, %v4045
      %s4080 = scalar_lea.vmem %s5, 336
      %v4081 = vld [vmem:[%s4080] sm:$0xff]
      %v4082 = vld [vmem:[%s4080 + $0x8] sm:$0xff]
      %v4083 = vld [vmem:[%s4080 + $0x10] sm:$0xff]
      %v4084 = vld [vmem:[%s4080 + $0x18] sm:$0xff]
      %v4085 = vld [vmem:[%s4080 + $0x20] sm:$0xff]
      %v4086 = vld [vmem:[%s4080 + $0x28] sm:$0xff]
      %v4087 = vld [vmem:[%s4080 + $0x30] sm:$0xff]
      %v4088 = vld [vmem:[%s4080 + $0x38] sm:$0xff]
      %v4089 = vld [vmem:[%s4080 + $0x40] sm:$0xff]
      %v4090 = vld [vmem:[%s4080 + $0x48] sm:$0xff]
      %v4091 = vld [vmem:[%s4080 + $0x50] sm:$0xff]
      %v4092 = vld [vmem:[%s4080 + $0x58] sm:$0xff]
      %v4093 = vld [vmem:[%s4080 + $0x60] sm:$0xff]
      %v4094 = vld [vmem:[%s4080 + $0x68] sm:$0xff]
      %v4096 = vsel %vm3202, %v3173, 0
      %v4099 = vsel %vm3202, %v3174, 0
      %4101 = vmatprep.subr.mxu0 0.0
      %4102 = vmatpush1.msra.mxu0 0.0
      %4103 = vmatprep.subr.mxu0 0.0
      %4104 = vmatpush1.msra.mxu0 0.0
      %4105 = vmatprep.subr.mxu0 0.0
      %4106 = vmatpush1.msra.mxu0 %v4094
      %4107 = vmatprep.subr.mxu0 0.0
      %4108 = vmatpush1.msra.mxu0 %v4093
      %4109 = vmatprep.subr.mxu0 0.0
      %4110 = vmatpush1.msra.mxu0 %v4092
      %4111 = vmatprep.subr.mxu0 0.0
      %4112 = vmatpush1.msra.mxu0 %v4091
      %4113 = vmatprep.subr.mxu0 0.0
      %4114 = vmatpush1.msra.mxu0 %v4090
      %4115 = vmatprep.subr.mxu0 0.0
      %4116 = vmatpush1.msra.mxu0 %v4089
      %4117 = vmatprep.subr.mxu0 0.0
      %4118 = vmatpush1.msra.mxu0 %v4088
      %4119 = vmatprep.subr.mxu0 0.0
      %4120 = vmatpush1.msra.mxu0 %v4087
      %4121 = vmatprep.subr.mxu0 0.0
      %4122 = vmatpush1.msra.mxu0 %v4086
      %4123 = vmatprep.subr.mxu0 0.0
      %4124 = vmatpush1.msra.mxu0 %v4085
      %4125 = vmatprep.subr.mxu0 0.0
      %4126 = vmatpush1.msra.mxu0 %v4084
      %4127 = vmatprep.subr.mxu0 0.0
      %4128 = vmatpush1.msra.mxu0 %v4083
      %4129 = vmatprep.subr.mxu0 0.0
      %4130 = vmatpush1.msra.mxu0 %v4082
      %4131 = vmatprep.subr.mxu0 0.0
      %4132 = vmatpush1.msra.mxu0 %v4081
      %4133 = vmatprep.subr.mxu0 0.0
      %4134 = vmatpush2.msra.mxu0 0.0
      %4135 = vmatprep.subr.mxu0 0.0
      %4136 = vmatpush2.msra.mxu0 0.0
      %4137 = vmatprep.subr.mxu0 0.0
      %4138 = vmatpush2.msra.mxu0 0.0
      %4139 = vmatprep.subr.mxu0 0.0
      %4140 = vmatpush2.msra.mxu0 0.0
      %4141 = vmatprep.subr.mxu0 0.0
      %4142 = vmatpush2.msra.mxu0 0.0
      %4143 = vmatprep.subr.mxu0 0.0
      %4144 = vmatpush2.msra.mxu0 0.0
      %4145 = vmatprep.subr.mxu0 0.0
      %4146 = vmatpush2.msra.mxu0 0.0
      %4147 = vmatprep.subr.mxu0 0.0
      %4148 = vmatpush2.msra.mxu0 0.0
      %4149 = vmatprep.subr.mxu0 0.0
      %4150 = vmatpush2.msra.mxu0 0.0
      %4151 = vmatprep.subr.mxu0 0.0
      %4152 = vmatpush2.msra.mxu0 0.0
      %4153 = vmatprep.subr.mxu0 0.0
      %4154 = vmatpush2.msra.mxu0 0.0
      %4155 = vmatprep.subr.mxu0 0.0
      %4156 = vmatpush2.msra.mxu0 0.0
      %4157 = vmatprep.subr.mxu0 0.0
      %4158 = vmatpush2.msra.mxu0 0.0
      %4159 = vmatprep.subr.mxu0 0.0
      %4160 = vmatpush2.msra.mxu0 0.0
      %4161 = vmatprep.subr.mxu0 0.0
      %4162 = vmatpush2.msra.mxu0 0.0
      %4163 = vmatprep.subr.mxu0 0.0
      %4164 = vmatpush2.msra.mxu0 0.0
      %4165 = vmatprep.mubr.f32.mxu0 0.0
      %4166 = vmatmul.mubr.f32.gmra.mxu0 %v3222
      %v4167 = vpop.f32.mrf.mxu0
      %v4168 = vadd.f32 0.0, %v4167
      %v4169 = vpop.f32.mrf.mxu0
      %4170 = vmatprep.mubr.f32.mxu0 0.0
      %4171 = vmatmul.mubr.f32.gmra.mxu0 %v3225
      %v4172 = vpop.f32.mrf.mxu0
      %v4173 = vadd.f32 0.0, %v4172
      %v4174 = vpop.f32.mrf.mxu0
      %4175 = vmatprep.mubr.f32.mxu0 0.0
      %4176 = vmatmul.mubr.f32.gmra.mxu0 %v3228
      %v4177 = vpop.f32.mrf.mxu0
      %v4178 = vadd.f32 0.0, %v4177
      %v4179 = vpop.f32.mrf.mxu0
      %4180 = vmatprep.mubr.f32.mxu0 0.0
      %4181 = vmatmul.mubr.f32.gmra.mxu0 %v3231
      %v4182 = vpop.f32.mrf.mxu0
      %v4183 = vadd.f32 0.0, %v4182
      %v4184 = vpop.f32.mrf.mxu0
      %4185 = vmatprep.mubr.f32.mxu0 0.0
      %4186 = vmatmul.mubr.f32.gmra.mxu0 %v3234
      %v4187 = vpop.f32.mrf.mxu0
      %v4188 = vadd.f32 0.0, %v4187
      %v4189 = vpop.f32.mrf.mxu0
      %4190 = vmatprep.mubr.f32.mxu0 0.0
      %4191 = vmatmul.mubr.f32.gmra.mxu0 %v3237
      %v4192 = vpop.f32.mrf.mxu0
      %v4193 = vadd.f32 0.0, %v4192
      %v4194 = vpop.f32.mrf.mxu0
      %4195 = vmatprep.mubr.f32.mxu0 0.0
      %4196 = vmatmul.mubr.f32.gmra.mxu0 %v3240
      %v4197 = vpop.f32.mrf.mxu0
      %v4198 = vadd.f32 0.0, %v4197
      %v4199 = vpop.f32.mrf.mxu0
      %4200 = vmatprep.mubr.f32.mxu0 0.0
      %4201 = vmatmul.mubr.f32.gmra.mxu0 %v3243
      %v4202 = vpop.f32.mrf.mxu0
      %v4203 = vadd.f32 0.0, %v4202
      %v4204 = vpop.f32.mrf.mxu0
      %4205 = vmatprep.mubr.f32.mxu0 0.0
      %4206 = vmatmul.mubr.f32.gmra.mxu0 %v3246
      %v4207 = vpop.f32.mrf.mxu0
      %v4208 = vadd.f32 0.0, %v4207
      %v4209 = vpop.f32.mrf.mxu0
      %4210 = vmatprep.mubr.f32.mxu0 0.0
      %4211 = vmatmul.mubr.f32.gmra.mxu0 %v3249
      %v4212 = vpop.f32.mrf.mxu0
      %v4213 = vadd.f32 0.0, %v4212
      %v4214 = vpop.f32.mrf.mxu0
      %4215 = vmatprep.mubr.f32.mxu0 0.0
      %4216 = vmatmul.mubr.f32.gmra.mxu0 %v3252
      %v4217 = vpop.f32.mrf.mxu0
      %v4218 = vadd.f32 0.0, %v4217
      %v4219 = vpop.f32.mrf.mxu0
      %4220 = vmatprep.mubr.f32.mxu0 0.0
      %4221 = vmatmul.mubr.f32.gmra.mxu0 %v3255
      %v4222 = vpop.f32.mrf.mxu0
      %v4223 = vadd.f32 0.0, %v4222
      %v4224 = vpop.f32.mrf.mxu0
      %4225 = vmatprep.mubr.f32.mxu0 0.0
      %4226 = vmatmul.mubr.f32.gmra.mxu0 %v3258
      %v4227 = vpop.f32.mrf.mxu0
      %v4228 = vadd.f32 0.0, %v4227
      %v4229 = vpop.f32.mrf.mxu0
      %4230 = vmatprep.mubr.f32.mxu0 0.0
      %4231 = vmatmul.mubr.f32.gmra.mxu0 %v3261
      %v4232 = vpop.f32.mrf.mxu0
      %v4233 = vadd.f32 0.0, %v4232
      %v4234 = vpop.f32.mrf.mxu0
      %4235 = vmatprep.mubr.f32.mxu0 0.0
      %4236 = vmatmul.mubr.f32.gmra.mxu0 %v3264
      %v4237 = vpop.f32.mrf.mxu0
      %v4238 = vadd.f32 0.0, %v4237
      %v4239 = vpop.f32.mrf.mxu0
      %4240 = vmatprep.mubr.f32.mxu0 0.0
      %4241 = vmatmul.mubr.f32.gmra.mxu0 %v3267
      %v4242 = vpop.f32.mrf.mxu0
      %v4243 = vadd.f32 0.0, %v4242
      %v4244 = vpop.f32.mrf.mxu0
      %4245 = vmatprep.mubr.f32.mxu0 0.0
      %4246 = vmatmul.mubr.f32.gmra.mxu0 %v3270
      %v4247 = vpop.f32.mrf.mxu0
      %v4248 = vadd.f32 0.0, %v4247
      %v4249 = vpop.f32.mrf.mxu0
      %4250 = vmatprep.mubr.f32.mxu0 0.0
      %4251 = vmatmul.mubr.f32.gmra.mxu0 %v3273
      %v4252 = vpop.f32.mrf.mxu0
      %v4253 = vadd.f32 0.0, %v4252
      %v4254 = vpop.f32.mrf.mxu0
      %4255 = vmatprep.mubr.f32.mxu0 0.0
      %4256 = vmatmul.mubr.f32.gmra.mxu0 %v3276
      %v4257 = vpop.f32.mrf.mxu0
      %v4258 = vadd.f32 0.0, %v4257
      %v4259 = vpop.f32.mrf.mxu0
      %4260 = vmatprep.mubr.f32.mxu0 0.0
      %4261 = vmatmul.mubr.f32.gmra.mxu0 %v3279
      %v4262 = vpop.f32.mrf.mxu0
      %v4263 = vadd.f32 0.0, %v4262
      %v4264 = vpop.f32.mrf.mxu0
      %4265 = vmatprep.mubr.f32.mxu0 0.0
      %4266 = vmatmul.mubr.f32.gmra.mxu0 %v3282
      %v4267 = vpop.f32.mrf.mxu0
      %v4268 = vadd.f32 0.0, %v4267
      %v4269 = vpop.f32.mrf.mxu0
      %4270 = vmatprep.mubr.f32.mxu0 0.0
      %4271 = vmatmul.mubr.f32.gmra.mxu0 %v3285
      %v4272 = vpop.f32.mrf.mxu0
      %v4273 = vadd.f32 0.0, %v4272
      %v4274 = vpop.f32.mrf.mxu0
      %4275 = vmatprep.mubr.f32.mxu0 0.0
      %4276 = vmatmul.mubr.f32.gmra.mxu0 %v3288
      %v4277 = vpop.f32.mrf.mxu0
      %v4278 = vadd.f32 0.0, %v4277
      %v4279 = vpop.f32.mrf.mxu0
      %4280 = vmatprep.mubr.f32.mxu0 0.0
      %4281 = vmatmul.mubr.f32.gmra.mxu0 %v3291
      %v4282 = vpop.f32.mrf.mxu0
      %v4283 = vadd.f32 0.0, %v4282
      %v4284 = vpop.f32.mrf.mxu0
      %4285 = vmatprep.mubr.f32.mxu0 0.0
      %4286 = vmatmul.mubr.f32.gmra.mxu0 %v3294
      %v4287 = vpop.f32.mrf.mxu0
      %v4288 = vadd.f32 0.0, %v4287
      %v4289 = vpop.f32.mrf.mxu0
      %4290 = vmatprep.mubr.f32.mxu0 0.0
      %4291 = vmatmul.mubr.f32.gmra.mxu0 %v3297
      %v4292 = vpop.f32.mrf.mxu0
      %v4293 = vadd.f32 0.0, %v4292
      %v4294 = vpop.f32.mrf.mxu0
      %4295 = vmatprep.mubr.f32.mxu0 0.0
      %4296 = vmatmul.mubr.f32.gmra.mxu0 %v3540
      %v4297 = vpop.f32.mrf.mxu0
      %v4298 = vadd.f32 0.0, %v4297
      %v4299 = vpop.f32.mrf.mxu0
      %4300 = vmatprep.mubr.f32.mxu0 0.0
      %4301 = vmatmul.mubr.f32.gmra.mxu0 %v3543
      %v4302 = vpop.f32.mrf.mxu0
      %v4303 = vadd.f32 0.0, %v4302
      %v4304 = vpop.f32.mrf.mxu0
      %4305 = vmatprep.mubr.f32.mxu0 0.0
      %4306 = vmatmul.mubr.f32.gmra.mxu0 %v3818
      %v4307 = vpop.f32.mrf.mxu0
      %v4308 = vadd.f32 0.0, %v4307
      %v4309 = vpop.f32.mrf.mxu0
      %4310 = vmatprep.mubr.f32.mxu0 0.0
      %4311 = vmatmul.mubr.f32.gmra.mxu0 %v3821
      %v4312 = vpop.f32.mrf.mxu0
      %v4313 = vadd.f32 0.0, %v4312
      %v4314 = vpop.f32.mrf.mxu0
      %4315 = vmatprep.mubr.f32.mxu0 0.0
      %4316 = vmatmul.mubr.f32.gmra.mxu0 %v4096
      %v4317 = vpop.f32.mrf.mxu0
      %v4318 = vadd.f32 0.0, %v4317
      %v4319 = vpop.f32.mrf.mxu0
      %4320 = vmatprep.mubr.f32.mxu0 0.0
      %4321 = vmatmul.mubr.f32.gmra.mxu0 %v4099
      %v4322 = vpop.f32.mrf.mxu0
      %v4323 = vadd.f32 0.0, %v4322
      %v4324 = vpop.f32.mrf.mxu0
      %4325 = vdwg.mxu0
      %v4326 = vadd.f32 %v4048, %v4168
      %v4327 = vadd.f32 %v4049, %v4173
      %v4328 = vadd.f32 %v4050, %v4178
      %v4329 = vadd.f32 %v4051, %v4183
      %v4330 = vadd.f32 %v4052, %v4188
      %v4331 = vadd.f32 %v4053, %v4193
      %v4332 = vadd.f32 %v4054, %v4198
      %v4333 = vadd.f32 %v4055, %v4203
      %v4334 = vadd.f32 %v4056, %v4208
      %v4335 = vadd.f32 %v4057, %v4213
      %v4336 = vadd.f32 %v4058, %v4218
      %v4337 = vadd.f32 %v4059, %v4223
      %v4338 = vadd.f32 %v4060, %v4228
      %v4339 = vadd.f32 %v4061, %v4233
      %v4340 = vadd.f32 %v4062, %v4238
      %v4341 = vadd.f32 %v4063, %v4243
      %v4342 = vadd.f32 %v4064, %v4248
      %v4343 = vadd.f32 %v4065, %v4253
      %v4344 = vadd.f32 %v4066, %v4258
      %v4345 = vadd.f32 %v4067, %v4263
      %v4346 = vadd.f32 %v4068, %v4268
      %v4347 = vadd.f32 %v4069, %v4273
      %v4348 = vadd.f32 %v4070, %v4278
      %v4349 = vadd.f32 %v4071, %v4283
      %v4350 = vadd.f32 %v4072, %v4288
      %v4351 = vadd.f32 %v4073, %v4293
      %v4352 = vadd.f32 %v4074, %v4298
      %v4353 = vadd.f32 %v4075, %v4303
      %v4354 = vadd.f32 %v4076, %v4308
      %v4355 = vadd.f32 %v4077, %v4313
      %v4356 = vadd.f32 %v4078, %v4318
      %v4357 = vadd.f32 %v4079, %v4323
      %s4358 = scalar_lea.vmem %s5, 448
      %v4359 = vld [vmem:[%s4358] sm:$0xff]
      %v4360 = vld [vmem:[%s4358 + $0x8] sm:$0xff]
      %v4361 = vld [vmem:[%s4358 + $0x10] sm:$0xff]
      %v4362 = vld [vmem:[%s4358 + $0x18] sm:$0xff]
      %v4363 = vld [vmem:[%s4358 + $0x20] sm:$0xff]
      %v4364 = vld [vmem:[%s4358 + $0x28] sm:$0xff]
      %v4365 = vld [vmem:[%s4358 + $0x30] sm:$0xff]
      %v4366 = vld [vmem:[%s4358 + $0x38] sm:$0xff]
      %v4367 = vld [vmem:[%s4358 + $0x40] sm:$0xff]
      %v4368 = vld [vmem:[%s4358 + $0x48] sm:$0xff]
      %v4369 = vld [vmem:[%s4358 + $0x50] sm:$0xff]
      %v4370 = vld [vmem:[%s4358 + $0x58] sm:$0xff]
      %v4371 = vld [vmem:[%s4358 + $0x60] sm:$0xff]
      %v4372 = vld [vmem:[%s4358 + $0x68] sm:$0xff]
      %v4374 = vsel %vm3202, %v3175, 0
      %v4377 = vsel %vm3202, %v3176, 0
      %4379 = vmatprep.subr.mxu0 0.0
      %4380 = vmatpush1.msra.mxu0 0.0
      %4381 = vmatprep.subr.mxu0 0.0
      %4382 = vmatpush1.msra.mxu0 0.0
      %4383 = vmatprep.subr.mxu0 0.0
      %4384 = vmatpush1.msra.mxu0 %v4372
      %4385 = vmatprep.subr.mxu0 0.0
      %4386 = vmatpush1.msra.mxu0 %v4371
      %4387 = vmatprep.subr.mxu0 0.0
      %4388 = vmatpush1.msra.mxu0 %v4370
      %4389 = vmatprep.subr.mxu0 0.0
      %4390 = vmatpush1.msra.mxu0 %v4369
      %4391 = vmatprep.subr.mxu0 0.0
      %4392 = vmatpush1.msra.mxu0 %v4368
      %4393 = vmatprep.subr.mxu0 0.0
      %4394 = vmatpush1.msra.mxu0 %v4367
      %4395 = vmatprep.subr.mxu0 0.0
      %4396 = vmatpush1.msra.mxu0 %v4366
      %4397 = vmatprep.subr.mxu0 0.0
      %4398 = vmatpush1.msra.mxu0 %v4365
      %4399 = vmatprep.subr.mxu0 0.0
      %4400 = vmatpush1.msra.mxu0 %v4364
      %4401 = vmatprep.subr.mxu0 0.0
      %4402 = vmatpush1.msra.mxu0 %v4363
      %4403 = vmatprep.subr.mxu0 0.0
      %4404 = vmatpush1.msra.mxu0 %v4362
      %4405 = vmatprep.subr.mxu0 0.0
      %4406 = vmatpush1.msra.mxu0 %v4361
      %4407 = vmatprep.subr.mxu0 0.0
      %4408 = vmatpush1.msra.mxu0 %v4360
      %4409 = vmatprep.subr.mxu0 0.0
      %4410 = vmatpush1.msra.mxu0 %v4359
      %4411 = vmatprep.subr.mxu0 0.0
      %4412 = vmatpush2.msra.mxu0 0.0
      %4413 = vmatprep.subr.mxu0 0.0
      %4414 = vmatpush2.msra.mxu0 0.0
      %4415 = vmatprep.subr.mxu0 0.0
      %4416 = vmatpush2.msra.mxu0 0.0
      %4417 = vmatprep.subr.mxu0 0.0
      %4418 = vmatpush2.msra.mxu0 0.0
      %4419 = vmatprep.subr.mxu0 0.0
      %4420 = vmatpush2.msra.mxu0 0.0
      %4421 = vmatprep.subr.mxu0 0.0
      %4422 = vmatpush2.msra.mxu0 0.0
      %4423 = vmatprep.subr.mxu0 0.0
      %4424 = vmatpush2.msra.mxu0 0.0
      %4425 = vmatprep.subr.mxu0 0.0
      %4426 = vmatpush2.msra.mxu0 0.0
      %4427 = vmatprep.subr.mxu0 0.0
      %4428 = vmatpush2.msra.mxu0 0.0
      %4429 = vmatprep.subr.mxu0 0.0
      %4430 = vmatpush2.msra.mxu0 0.0
      %4431 = vmatprep.subr.mxu0 0.0
      %4432 = vmatpush2.msra.mxu0 0.0
      %4433 = vmatprep.subr.mxu0 0.0
      %4434 = vmatpush2.msra.mxu0 0.0
      %4435 = vmatprep.subr.mxu0 0.0
      %4436 = vmatpush2.msra.mxu0 0.0
      %4437 = vmatprep.subr.mxu0 0.0
      %4438 = vmatpush2.msra.mxu0 0.0
      %4439 = vmatprep.subr.mxu0 0.0
      %4440 = vmatpush2.msra.mxu0 0.0
      %4441 = vmatprep.subr.mxu0 0.0
      %4442 = vmatpush2.msra.mxu0 0.0
      %4443 = vmatprep.mubr.f32.mxu0 0.0
      %4444 = vmatmul.mubr.f32.gmra.mxu0 %v3228
      %v4445 = vpop.f32.mrf.mxu0
      %v4446 = vadd.f32 0.0, %v4445
      %v4447 = vpop.f32.mrf.mxu0
      %4448 = vmatprep.mubr.f32.mxu0 0.0
      %4449 = vmatmul.mubr.f32.gmra.mxu0 %v3231
      %v4450 = vpop.f32.mrf.mxu0
      %v4451 = vadd.f32 0.0, %v4450
      %v4452 = vpop.f32.mrf.mxu0
      %4453 = vmatprep.mubr.f32.mxu0 0.0
      %4454 = vmatmul.mubr.f32.gmra.mxu0 %v3234
      %v4455 = vpop.f32.mrf.mxu0
      %v4456 = vadd.f32 0.0, %v4455
      %v4457 = vpop.f32.mrf.mxu0
      %4458 = vmatprep.mubr.f32.mxu0 0.0
      %4459 = vmatmul.mubr.f32.gmra.mxu0 %v3237
      %v4460 = vpop.f32.mrf.mxu0
      %v4461 = vadd.f32 0.0, %v4460
      %v4462 = vpop.f32.mrf.mxu0
      %4463 = vmatprep.mubr.f32.mxu0 0.0
      %4464 = vmatmul.mubr.f32.gmra.mxu0 %v3240
      %v4465 = vpop.f32.mrf.mxu0
      %v4466 = vadd.f32 0.0, %v4465
      %v4467 = vpop.f32.mrf.mxu0
      %4468 = vmatprep.mubr.f32.mxu0 0.0
      %4469 = vmatmul.mubr.f32.gmra.mxu0 %v3243
      %v4470 = vpop.f32.mrf.mxu0
      %v4471 = vadd.f32 0.0, %v4470
      %v4472 = vpop.f32.mrf.mxu0
      %4473 = vmatprep.mubr.f32.mxu0 0.0
      %4474 = vmatmul.mubr.f32.gmra.mxu0 %v3246
      %v4475 = vpop.f32.mrf.mxu0
      %v4476 = vadd.f32 0.0, %v4475
      %v4477 = vpop.f32.mrf.mxu0
      %4478 = vmatprep.mubr.f32.mxu0 0.0
      %4479 = vmatmul.mubr.f32.gmra.mxu0 %v3249
      %v4480 = vpop.f32.mrf.mxu0
      %v4481 = vadd.f32 0.0, %v4480
      %v4482 = vpop.f32.mrf.mxu0
      %4483 = vmatprep.mubr.f32.mxu0 0.0
      %4484 = vmatmul.mubr.f32.gmra.mxu0 %v3252
      %v4485 = vpop.f32.mrf.mxu0
      %v4486 = vadd.f32 0.0, %v4485
      %v4487 = vpop.f32.mrf.mxu0
      %4488 = vmatprep.mubr.f32.mxu0 0.0
      %4489 = vmatmul.mubr.f32.gmra.mxu0 %v3255
      %v4490 = vpop.f32.mrf.mxu0
      %v4491 = vadd.f32 0.0, %v4490
      %v4492 = vpop.f32.mrf.mxu0
      %4493 = vmatprep.mubr.f32.mxu0 0.0
      %4494 = vmatmul.mubr.f32.gmra.mxu0 %v3258
      %v4495 = vpop.f32.mrf.mxu0
      %v4496 = vadd.f32 0.0, %v4495
      %v4497 = vpop.f32.mrf.mxu0
      %4498 = vmatprep.mubr.f32.mxu0 0.0
      %4499 = vmatmul.mubr.f32.gmra.mxu0 %v3261
      %v4500 = vpop.f32.mrf.mxu0
      %v4501 = vadd.f32 0.0, %v4500
      %v4502 = vpop.f32.mrf.mxu0
      %4503 = vmatprep.mubr.f32.mxu0 0.0
      %4504 = vmatmul.mubr.f32.gmra.mxu0 %v3264
      %v4505 = vpop.f32.mrf.mxu0
      %v4506 = vadd.f32 0.0, %v4505
      %v4507 = vpop.f32.mrf.mxu0
      %4508 = vmatprep.mubr.f32.mxu0 0.0
      %4509 = vmatmul.mubr.f32.gmra.mxu0 %v3267
      %v4510 = vpop.f32.mrf.mxu0
      %v4511 = vadd.f32 0.0, %v4510
      %v4512 = vpop.f32.mrf.mxu0
      %4513 = vmatprep.mubr.f32.mxu0 0.0
      %4514 = vmatmul.mubr.f32.gmra.mxu0 %v3270
      %v4515 = vpop.f32.mrf.mxu0
      %v4516 = vadd.f32 0.0, %v4515
      %v4517 = vpop.f32.mrf.mxu0
      %4518 = vmatprep.mubr.f32.mxu0 0.0
      %4519 = vmatmul.mubr.f32.gmra.mxu0 %v3273
      %v4520 = vpop.f32.mrf.mxu0
      %v4521 = vadd.f32 0.0, %v4520
      %v4522 = vpop.f32.mrf.mxu0
      %4523 = vmatprep.mubr.f32.mxu0 0.0
      %4524 = vmatmul.mubr.f32.gmra.mxu0 %v3276
      %v4525 = vpop.f32.mrf.mxu0
      %v4526 = vadd.f32 0.0, %v4525
      %v4527 = vpop.f32.mrf.mxu0
      %4528 = vmatprep.mubr.f32.mxu0 0.0
      %4529 = vmatmul.mubr.f32.gmra.mxu0 %v3279
      %v4530 = vpop.f32.mrf.mxu0
      %v4531 = vadd.f32 0.0, %v4530
      %v4532 = vpop.f32.mrf.mxu0
      %4533 = vmatprep.mubr.f32.mxu0 0.0
      %4534 = vmatmul.mubr.f32.gmra.mxu0 %v3282
      %v4535 = vpop.f32.mrf.mxu0
      %v4536 = vadd.f32 0.0, %v4535
      %v4537 = vpop.f32.mrf.mxu0
      %4538 = vmatprep.mubr.f32.mxu0 0.0
      %4539 = vmatmul.mubr.f32.gmra.mxu0 %v3285
      %v4540 = vpop.f32.mrf.mxu0
      %v4541 = vadd.f32 0.0, %v4540
      %v4542 = vpop.f32.mrf.mxu0
      %4543 = vmatprep.mubr.f32.mxu0 0.0
      %4544 = vmatmul.mubr.f32.gmra.mxu0 %v3288
      %v4545 = vpop.f32.mrf.mxu0
      %v4546 = vadd.f32 0.0, %v4545
      %v4547 = vpop.f32.mrf.mxu0
      %4548 = vmatprep.mubr.f32.mxu0 0.0
      %4549 = vmatmul.mubr.f32.gmra.mxu0 %v3291
      %v4550 = vpop.f32.mrf.mxu0
      %v4551 = vadd.f32 0.0, %v4550
      %v4552 = vpop.f32.mrf.mxu0
      %4553 = vmatprep.mubr.f32.mxu0 0.0
      %4554 = vmatmul.mubr.f32.gmra.mxu0 %v3294
      %v4555 = vpop.f32.mrf.mxu0
      %v4556 = vadd.f32 0.0, %v4555
      %v4557 = vpop.f32.mrf.mxu0
      %4558 = vmatprep.mubr.f32.mxu0 0.0
      %4559 = vmatmul.mubr.f32.gmra.mxu0 %v3297
      %v4560 = vpop.f32.mrf.mxu0
      %v4561 = vadd.f32 0.0, %v4560
      %v4562 = vpop.f32.mrf.mxu0
      %4563 = vmatprep.mubr.f32.mxu0 0.0
      %4564 = vmatmul.mubr.f32.gmra.mxu0 %v3540
      %v4565 = vpop.f32.mrf.mxu0
      %v4566 = vadd.f32 0.0, %v4565
      %v4567 = vpop.f32.mrf.mxu0
      %4568 = vmatprep.mubr.f32.mxu0 0.0
      %4569 = vmatmul.mubr.f32.gmra.mxu0 %v3543
      %v4570 = vpop.f32.mrf.mxu0
      %v4571 = vadd.f32 0.0, %v4570
      %v4572 = vpop.f32.mrf.mxu0
      %4573 = vmatprep.mubr.f32.mxu0 0.0
      %4574 = vmatmul.mubr.f32.gmra.mxu0 %v3818
      %v4575 = vpop.f32.mrf.mxu0
      %v4576 = vadd.f32 0.0, %v4575
      %v4577 = vpop.f32.mrf.mxu0
      %4578 = vmatprep.mubr.f32.mxu0 0.0
      %4579 = vmatmul.mubr.f32.gmra.mxu0 %v3821
      %v4580 = vpop.f32.mrf.mxu0
      %v4581 = vadd.f32 0.0, %v4580
      %v4582 = vpop.f32.mrf.mxu0
      %4583 = vmatprep.mubr.f32.mxu0 0.0
      %4584 = vmatmul.mubr.f32.gmra.mxu0 %v4096
      %v4585 = vpop.f32.mrf.mxu0
      %v4586 = vadd.f32 0.0, %v4585
      %v4587 = vpop.f32.mrf.mxu0
      %4588 = vmatprep.mubr.f32.mxu0 0.0
      %4589 = vmatmul.mubr.f32.gmra.mxu0 %v4099
      %v4590 = vpop.f32.mrf.mxu0
      %v4591 = vadd.f32 0.0, %v4590
      %v4592 = vpop.f32.mrf.mxu0
      %4593 = vmatprep.mubr.f32.mxu0 0.0
      %4594 = vmatmul.mubr.f32.gmra.mxu0 %v4374
      %v4595 = vpop.f32.mrf.mxu0
      %v4596 = vadd.f32 0.0, %v4595
      %v4597 = vpop.f32.mrf.mxu0
      %4598 = vmatprep.mubr.f32.mxu0 0.0
      %4599 = vmatmul.mubr.f32.gmra.mxu0 %v4377
      %v4600 = vpop.f32.mrf.mxu0
      %v4601 = vadd.f32 0.0, %v4600
      %v4602 = vpop.f32.mrf.mxu0
      %4603 = vdwg.mxu0
      %v4604 = vadd.f32 %v4326, %v4446
      %v4605 = vadd.f32 %v4327, %v4451
      %v4606 = vadd.f32 %v4328, %v4456
      %v4607 = vadd.f32 %v4329, %v4461
      %v4608 = vadd.f32 %v4330, %v4466
      %v4609 = vadd.f32 %v4331, %v4471
      %v4610 = vadd.f32 %v4332, %v4476
      %v4611 = vadd.f32 %v4333, %v4481
      %v4612 = vadd.f32 %v4334, %v4486
      %v4613 = vadd.f32 %v4335, %v4491
      %v4614 = vadd.f32 %v4336, %v4496
      %v4615 = vadd.f32 %v4337, %v4501
      %v4616 = vadd.f32 %v4338, %v4506
      %v4617 = vadd.f32 %v4339, %v4511
      %v4618 = vadd.f32 %v4340, %v4516
      %v4619 = vadd.f32 %v4341, %v4521
      %v4620 = vadd.f32 %v4342, %v4526
      %v4621 = vadd.f32 %v4343, %v4531
      %v4622 = vadd.f32 %v4344, %v4536
      %v4623 = vadd.f32 %v4345, %v4541
      %v4624 = vadd.f32 %v4346, %v4546
      %v4625 = vadd.f32 %v4347, %v4551
      %v4626 = vadd.f32 %v4348, %v4556
      %v4627 = vadd.f32 %v4349, %v4561
      %v4628 = vadd.f32 %v4350, %v4566
      %v4629 = vadd.f32 %v4351, %v4571
      %v4630 = vadd.f32 %v4352, %v4576
      %v4631 = vadd.f32 %v4353, %v4581
      %v4632 = vadd.f32 %v4354, %v4586
      %v4633 = vadd.f32 %v4355, %v4591
      %v4634 = vadd.f32 %v4356, %v4596
      %v4635 = vadd.f32 %v4357, %v4601
      %s4636 = scalar_lea.vmem %s5, 560
      %v4637 = vld [vmem:[%s4636] sm:$0xff]
      %v4638 = vld [vmem:[%s4636 + $0x8] sm:$0xff]
      %v4639 = vld [vmem:[%s4636 + $0x10] sm:$0xff]
      %v4640 = vld [vmem:[%s4636 + $0x18] sm:$0xff]
      %v4641 = vld [vmem:[%s4636 + $0x20] sm:$0xff]
      %v4642 = vld [vmem:[%s4636 + $0x28] sm:$0xff]
      %v4643 = vld [vmem:[%s4636 + $0x30] sm:$0xff]
      %v4644 = vld [vmem:[%s4636 + $0x38] sm:$0xff]
      %v4645 = vld [vmem:[%s4636 + $0x40] sm:$0xff]
      %v4646 = vld [vmem:[%s4636 + $0x48] sm:$0xff]
      %v4647 = vld [vmem:[%s4636 + $0x50] sm:$0xff]
      %v4648 = vld [vmem:[%s4636 + $0x58] sm:$0xff]
      %v4649 = vld [vmem:[%s4636 + $0x60] sm:$0xff]
      %v4650 = vld [vmem:[%s4636 + $0x68] sm:$0xff]
      %v4652 = vsel %vm3202, %v3177, 0
      %v4655 = vsel %vm3202, %v3178, 0
      %4657 = vmatprep.subr.mxu0 0.0
      %4658 = vmatpush1.msra.mxu0 0.0
      %4659 = vmatprep.subr.mxu0 0.0
      %4660 = vmatpush1.msra.mxu0 0.0
      %4661 = vmatprep.subr.mxu0 0.0
      %4662 = vmatpush1.msra.mxu0 %v4650
      %4663 = vmatprep.subr.mxu0 0.0
      %4664 = vmatpush1.msra.mxu0 %v4649
      %4665 = vmatprep.subr.mxu0 0.0
      %4666 = vmatpush1.msra.mxu0 %v4648
      %4667 = vmatprep.subr.mxu0 0.0
      %4668 = vmatpush1.msra.mxu0 %v4647
      %4669 = vmatprep.subr.mxu0 0.0
      %4670 = vmatpush1.msra.mxu0 %v4646
      %4671 = vmatprep.subr.mxu0 0.0
      %4672 = vmatpush1.msra.mxu0 %v4645
      %4673 = vmatprep.subr.mxu0 0.0
      %4674 = vmatpush1.msra.mxu0 %v4644
      %4675 = vmatprep.subr.mxu0 0.0
      %4676 = vmatpush1.msra.mxu0 %v4643
      %4677 = vmatprep.subr.mxu0 0.0
      %4678 = vmatpush1.msra.mxu0 %v4642
      %4679 = vmatprep.subr.mxu0 0.0
      %4680 = vmatpush1.msra.mxu0 %v4641
      %4681 = vmatprep.subr.mxu0 0.0
      %4682 = vmatpush1.msra.mxu0 %v4640
      %4683 = vmatprep.subr.mxu0 0.0
      %4684 = vmatpush1.msra.mxu0 %v4639
      %4685 = vmatprep.subr.mxu0 0.0
      %4686 = vmatpush1.msra.mxu0 %v4638
      %4687 = vmatprep.subr.mxu0 0.0
      %4688 = vmatpush1.msra.mxu0 %v4637
      %4689 = vmatprep.subr.mxu0 0.0
      %4690 = vmatpush2.msra.mxu0 0.0
      %4691 = vmatprep.subr.mxu0 0.0
      %4692 = vmatpush2.msra.mxu0 0.0
      %4693 = vmatprep.subr.mxu0 0.0
      %4694 = vmatpush2.msra.mxu0 0.0
      %4695 = vmatprep.subr.mxu0 0.0
      %4696 = vmatpush2.msra.mxu0 0.0
      %4697 = vmatprep.subr.mxu0 0.0
      %4698 = vmatpush2.msra.mxu0 0.0
      %4699 = vmatprep.subr.mxu0 0.0
      %4700 = vmatpush2.msra.mxu0 0.0
      %4701 = vmatprep.subr.mxu0 0.0
      %4702 = vmatpush2.msra.mxu0 0.0
      %4703 = vmatprep.subr.mxu0 0.0
      %4704 = vmatpush2.msra.mxu0 0.0
      %4705 = vmatprep.subr.mxu0 0.0
      %4706 = vmatpush2.msra.mxu0 0.0
      %4707 = vmatprep.subr.mxu0 0.0
      %4708 = vmatpush2.msra.mxu0 0.0
      %4709 = vmatprep.subr.mxu0 0.0
      %4710 = vmatpush2.msra.mxu0 0.0
      %4711 = vmatprep.subr.mxu0 0.0
      %4712 = vmatpush2.msra.mxu0 0.0
      %4713 = vmatprep.subr.mxu0 0.0
      %4714 = vmatpush2.msra.mxu0 0.0
      %4715 = vmatprep.subr.mxu0 0.0
      %4716 = vmatpush2.msra.mxu0 0.0
      %4717 = vmatprep.subr.mxu0 0.0
      %4718 = vmatpush2.msra.mxu0 0.0
      %4719 = vmatprep.subr.mxu0 0.0
      %4720 = vmatpush2.msra.mxu0 0.0
      %4721 = vmatprep.mubr.f32.mxu0 0.0
      %4722 = vmatmul.mubr.f32.gmra.mxu0 %v3234
      %v4723 = vpop.f32.mrf.mxu0
      %v4724 = vadd.f32 0.0, %v4723
      %v4725 = vpop.f32.mrf.mxu0
      %4726 = vmatprep.mubr.f32.mxu0 0.0
      %4727 = vmatmul.mubr.f32.gmra.mxu0 %v3237
      %v4728 = vpop.f32.mrf.mxu0
      %v4729 = vadd.f32 0.0, %v4728
      %v4730 = vpop.f32.mrf.mxu0
      %4731 = vmatprep.mubr.f32.mxu0 0.0
      %4732 = vmatmul.mubr.f32.gmra.mxu0 %v3240
      %v4733 = vpop.f32.mrf.mxu0
      %v4734 = vadd.f32 0.0, %v4733
      %v4735 = vpop.f32.mrf.mxu0
      %4736 = vmatprep.mubr.f32.mxu0 0.0
      %4737 = vmatmul.mubr.f32.gmra.mxu0 %v3243
      %v4738 = vpop.f32.mrf.mxu0
      %v4739 = vadd.f32 0.0, %v4738
      %v4740 = vpop.f32.mrf.mxu0
      %4741 = vmatprep.mubr.f32.mxu0 0.0
      %4742 = vmatmul.mubr.f32.gmra.mxu0 %v3246
      %v4743 = vpop.f32.mrf.mxu0
      %v4744 = vadd.f32 0.0, %v4743
      %v4745 = vpop.f32.mrf.mxu0
      %4746 = vmatprep.mubr.f32.mxu0 0.0
      %4747 = vmatmul.mubr.f32.gmra.mxu0 %v3249
      %v4748 = vpop.f32.mrf.mxu0
      %v4749 = vadd.f32 0.0, %v4748
      %v4750 = vpop.f32.mrf.mxu0
      %4751 = vmatprep.mubr.f32.mxu0 0.0
      %4752 = vmatmul.mubr.f32.gmra.mxu0 %v3252
      %v4753 = vpop.f32.mrf.mxu0
      %v4754 = vadd.f32 0.0, %v4753
      %v4755 = vpop.f32.mrf.mxu0
      %4756 = vmatprep.mubr.f32.mxu0 0.0
      %4757 = vmatmul.mubr.f32.gmra.mxu0 %v3255
      %v4758 = vpop.f32.mrf.mxu0
      %v4759 = vadd.f32 0.0, %v4758
      %v4760 = vpop.f32.mrf.mxu0
      %4761 = vmatprep.mubr.f32.mxu0 0.0
      %4762 = vmatmul.mubr.f32.gmra.mxu0 %v3258
      %v4763 = vpop.f32.mrf.mxu0
      %v4764 = vadd.f32 0.0, %v4763
      %v4765 = vpop.f32.mrf.mxu0
      %4766 = vmatprep.mubr.f32.mxu0 0.0
      %4767 = vmatmul.mubr.f32.gmra.mxu0 %v3261
      %v4768 = vpop.f32.mrf.mxu0
      %v4769 = vadd.f32 0.0, %v4768
      %v4770 = vpop.f32.mrf.mxu0
      %4771 = vmatprep.mubr.f32.mxu0 0.0
      %4772 = vmatmul.mubr.f32.gmra.mxu0 %v3264
      %v4773 = vpop.f32.mrf.mxu0
      %v4774 = vadd.f32 0.0, %v4773
      %v4775 = vpop.f32.mrf.mxu0
      %4776 = vmatprep.mubr.f32.mxu0 0.0
      %4777 = vmatmul.mubr.f32.gmra.mxu0 %v3267
      %v4778 = vpop.f32.mrf.mxu0
      %v4779 = vadd.f32 0.0, %v4778
      %v4780 = vpop.f32.mrf.mxu0
      %4781 = vmatprep.mubr.f32.mxu0 0.0
      %4782 = vmatmul.mubr.f32.gmra.mxu0 %v3270
      %v4783 = vpop.f32.mrf.mxu0
      %v4784 = vadd.f32 0.0, %v4783
      %v4785 = vpop.f32.mrf.mxu0
      %4786 = vmatprep.mubr.f32.mxu0 0.0
      %4787 = vmatmul.mubr.f32.gmra.mxu0 %v3273
      %v4788 = vpop.f32.mrf.mxu0
      %v4789 = vadd.f32 0.0, %v4788
      %v4790 = vpop.f32.mrf.mxu0
      %4791 = vmatprep.mubr.f32.mxu0 0.0
      %4792 = vmatmul.mubr.f32.gmra.mxu0 %v3276
      %v4793 = vpop.f32.mrf.mxu0
      %v4794 = vadd.f32 0.0, %v4793
      %v4795 = vpop.f32.mrf.mxu0
      %4796 = vmatprep.mubr.f32.mxu0 0.0
      %4797 = vmatmul.mubr.f32.gmra.mxu0 %v3279
      %v4798 = vpop.f32.mrf.mxu0
      %v4799 = vadd.f32 0.0, %v4798
      %v4800 = vpop.f32.mrf.mxu0
      %4801 = vmatprep.mubr.f32.mxu0 0.0
      %4802 = vmatmul.mubr.f32.gmra.mxu0 %v3282
      %v4803 = vpop.f32.mrf.mxu0
      %v4804 = vadd.f32 0.0, %v4803
      %v4805 = vpop.f32.mrf.mxu0
      %4806 = vmatprep.mubr.f32.mxu0 0.0
      %4807 = vmatmul.mubr.f32.gmra.mxu0 %v3285
      %v4808 = vpop.f32.mrf.mxu0
      %v4809 = vadd.f32 0.0, %v4808
      %v4810 = vpop.f32.mrf.mxu0
      %4811 = vmatprep.mubr.f32.mxu0 0.0
      %4812 = vmatmul.mubr.f32.gmra.mxu0 %v3288
      %v4813 = vpop.f32.mrf.mxu0
      %v4814 = vadd.f32 0.0, %v4813
      %v4815 = vpop.f32.mrf.mxu0
      %4816 = vmatprep.mubr.f32.mxu0 0.0
      %4817 = vmatmul.mubr.f32.gmra.mxu0 %v3291
      %v4818 = vpop.f32.mrf.mxu0
      %v4819 = vadd.f32 0.0, %v4818
      %v4820 = vpop.f32.mrf.mxu0
      %4821 = vmatprep.mubr.f32.mxu0 0.0
      %4822 = vmatmul.mubr.f32.gmra.mxu0 %v3294
      %v4823 = vpop.f32.mrf.mxu0
      %v4824 = vadd.f32 0.0, %v4823
      %v4825 = vpop.f32.mrf.mxu0
      %4826 = vmatprep.mubr.f32.mxu0 0.0
      %4827 = vmatmul.mubr.f32.gmra.mxu0 %v3297
      %v4828 = vpop.f32.mrf.mxu0
      %v4829 = vadd.f32 0.0, %v4828
      %v4830 = vpop.f32.mrf.mxu0
      %4831 = vmatprep.mubr.f32.mxu0 0.0
      %4832 = vmatmul.mubr.f32.gmra.mxu0 %v3540
      %v4833 = vpop.f32.mrf.mxu0
      %v4834 = vadd.f32 0.0, %v4833
      %v4835 = vpop.f32.mrf.mxu0
      %4836 = vmatprep.mubr.f32.mxu0 0.0
      %4837 = vmatmul.mubr.f32.gmra.mxu0 %v3543
      %v4838 = vpop.f32.mrf.mxu0
      %v4839 = vadd.f32 0.0, %v4838
      %v4840 = vpop.f32.mrf.mxu0
      %4841 = vmatprep.mubr.f32.mxu0 0.0
      %4842 = vmatmul.mubr.f32.gmra.mxu0 %v3818
      %v4843 = vpop.f32.mrf.mxu0
      %v4844 = vadd.f32 0.0, %v4843
      %v4845 = vpop.f32.mrf.mxu0
      %4846 = vmatprep.mubr.f32.mxu0 0.0
      %4847 = vmatmul.mubr.f32.gmra.mxu0 %v3821
      %v4848 = vpop.f32.mrf.mxu0
      %v4849 = vadd.f32 0.0, %v4848
      %v4850 = vpop.f32.mrf.mxu0
      %4851 = vmatprep.mubr.f32.mxu0 0.0
      %4852 = vmatmul.mubr.f32.gmra.mxu0 %v4096
      %v4853 = vpop.f32.mrf.mxu0
      %v4854 = vadd.f32 0.0, %v4853
      %v4855 = vpop.f32.mrf.mxu0
      %4856 = vmatprep.mubr.f32.mxu0 0.0
      %4857 = vmatmul.mubr.f32.gmra.mxu0 %v4099
      %v4858 = vpop.f32.mrf.mxu0
      %v4859 = vadd.f32 0.0, %v4858
      %v4860 = vpop.f32.mrf.mxu0
      %4861 = vmatprep.mubr.f32.mxu0 0.0
      %4862 = vmatmul.mubr.f32.gmra.mxu0 %v4374
      %v4863 = vpop.f32.mrf.mxu0
      %v4864 = vadd.f32 0.0, %v4863
      %v4865 = vpop.f32.mrf.mxu0
      %4866 = vmatprep.mubr.f32.mxu0 0.0
      %4867 = vmatmul.mubr.f32.gmra.mxu0 %v4377
      %v4868 = vpop.f32.mrf.mxu0
      %v4869 = vadd.f32 0.0, %v4868
      %v4870 = vpop.f32.mrf.mxu0
      %4871 = vmatprep.mubr.f32.mxu0 0.0
      %4872 = vmatmul.mubr.f32.gmra.mxu0 %v4652
      %v4873 = vpop.f32.mrf.mxu0
      %v4874 = vadd.f32 0.0, %v4873
      %v4875 = vpop.f32.mrf.mxu0
      %4876 = vmatprep.mubr.f32.mxu0 0.0
      %4877 = vmatmul.mubr.f32.gmra.mxu0 %v4655
      %v4878 = vpop.f32.mrf.mxu0
      %v4879 = vadd.f32 0.0, %v4878
      %v4880 = vpop.f32.mrf.mxu0
      %4881 = vdwg.mxu0
      %v4882 = vadd.f32 %v4604, %v4724
      %v4883 = vadd.f32 %v4605, %v4729
      %v4884 = vadd.f32 %v4606, %v4734
      %v4885 = vadd.f32 %v4607, %v4739
      %v4886 = vadd.f32 %v4608, %v4744
      %v4887 = vadd.f32 %v4609, %v4749
      %v4888 = vadd.f32 %v4610, %v4754
      %v4889 = vadd.f32 %v4611, %v4759
      %v4890 = vadd.f32 %v4612, %v4764
      %v4891 = vadd.f32 %v4613, %v4769
      %v4892 = vadd.f32 %v4614, %v4774
      %v4893 = vadd.f32 %v4615, %v4779
      %v4894 = vadd.f32 %v4616, %v4784
      %v4895 = vadd.f32 %v4617, %v4789
      %v4896 = vadd.f32 %v4618, %v4794
      %v4897 = vadd.f32 %v4619, %v4799
      %v4898 = vadd.f32 %v4620, %v4804
      %v4899 = vadd.f32 %v4621, %v4809
      %v4900 = vadd.f32 %v4622, %v4814
      %v4901 = vadd.f32 %v4623, %v4819
      %v4902 = vadd.f32 %v4624, %v4824
      %v4903 = vadd.f32 %v4625, %v4829
      %v4904 = vadd.f32 %v4626, %v4834
      %v4905 = vadd.f32 %v4627, %v4839
      %v4906 = vadd.f32 %v4628, %v4844
      %v4907 = vadd.f32 %v4629, %v4849
      %v4908 = vadd.f32 %v4630, %v4854
      %v4909 = vadd.f32 %v4631, %v4859
      %v4910 = vadd.f32 %v4632, %v4864
      %v4911 = vadd.f32 %v4633, %v4869
      %v4912 = vadd.f32 %v4634, %v4874
      %v4913 = vadd.f32 %v4635, %v4879
      %s4914 = scalar_lea.vmem %s5, 672
      %v4915 = vld [vmem:[%s4914] sm:$0xff]
      %v4916 = vld [vmem:[%s4914 + $0x8] sm:$0xff]
      %v4917 = vld [vmem:[%s4914 + $0x10] sm:$0xff]
      %v4918 = vld [vmem:[%s4914 + $0x18] sm:$0xff]
      %v4919 = vld [vmem:[%s4914 + $0x20] sm:$0xff]
      %v4920 = vld [vmem:[%s4914 + $0x28] sm:$0xff]
      %v4921 = vld [vmem:[%s4914 + $0x30] sm:$0xff]
      %v4922 = vld [vmem:[%s4914 + $0x38] sm:$0xff]
      %v4923 = vld [vmem:[%s4914 + $0x40] sm:$0xff]
      %v4924 = vld [vmem:[%s4914 + $0x48] sm:$0xff]
      %v4925 = vld [vmem:[%s4914 + $0x50] sm:$0xff]
      %v4926 = vld [vmem:[%s4914 + $0x58] sm:$0xff]
      %v4927 = vld [vmem:[%s4914 + $0x60] sm:$0xff]
      %v4928 = vld [vmem:[%s4914 + $0x68] sm:$0xff]
      %v4930 = vsel %vm3202, %v3179, 0
      %v4933 = vsel %vm3202, %v3180, 0
      %4935 = vmatprep.subr.mxu0 0.0
      %4936 = vmatpush1.msra.mxu0 0.0
      %4937 = vmatprep.subr.mxu0 0.0
      %4938 = vmatpush1.msra.mxu0 0.0
      %4939 = vmatprep.subr.mxu0 0.0
      %4940 = vmatpush1.msra.mxu0 %v4928
      %4941 = vmatprep.subr.mxu0 0.0
      %4942 = vmatpush1.msra.mxu0 %v4927
      %4943 = vmatprep.subr.mxu0 0.0
      %4944 = vmatpush1.msra.mxu0 %v4926
      %4945 = vmatprep.subr.mxu0 0.0
      %4946 = vmatpush1.msra.mxu0 %v4925
      %4947 = vmatprep.subr.mxu0 0.0
      %4948 = vmatpush1.msra.mxu0 %v4924
      %4949 = vmatprep.subr.mxu0 0.0
      %4950 = vmatpush1.msra.mxu0 %v4923
      %4951 = vmatprep.subr.mxu0 0.0
      %4952 = vmatpush1.msra.mxu0 %v4922
      %4953 = vmatprep.subr.mxu0 0.0
      %4954 = vmatpush1.msra.mxu0 %v4921
      %4955 = vmatprep.subr.mxu0 0.0
      %4956 = vmatpush1.msra.mxu0 %v4920
      %4957 = vmatprep.subr.mxu0 0.0
      %4958 = vmatpush1.msra.mxu0 %v4919
      %4959 = vmatprep.subr.mxu0 0.0
      %4960 = vmatpush1.msra.mxu0 %v4918
      %4961 = vmatprep.subr.mxu0 0.0
      %4962 = vmatpush1.msra.mxu0 %v4917
      %4963 = vmatprep.subr.mxu0 0.0
      %4964 = vmatpush1.msra.mxu0 %v4916
      %4965 = vmatprep.subr.mxu0 0.0
      %4966 = vmatpush1.msra.mxu0 %v4915
      %4967 = vmatprep.subr.mxu0 0.0
      %4968 = vmatpush2.msra.mxu0 0.0
      %4969 = vmatprep.subr.mxu0 0.0
      %4970 = vmatpush2.msra.mxu0 0.0
      %4971 = vmatprep.subr.mxu0 0.0
      %4972 = vmatpush2.msra.mxu0 0.0
      %4973 = vmatprep.subr.mxu0 0.0
      %4974 = vmatpush2.msra.mxu0 0.0
      %4975 = vmatprep.subr.mxu0 0.0
      %4976 = vmatpush2.msra.mxu0 0.0
      %4977 = vmatprep.subr.mxu0 0.0
      %4978 = vmatpush2.msra.mxu0 0.0
      %4979 = vmatprep.subr.mxu0 0.0
      %4980 = vmatpush2.msra.mxu0 0.0
      %4981 = vmatprep.subr.mxu0 0.0
      %4982 = vmatpush2.msra.mxu0 0.0
      %4983 = vmatprep.subr.mxu0 0.0
      %4984 = vmatpush2.msra.mxu0 0.0
      %4985 = vmatprep.subr.mxu0 0.0
      %4986 = vmatpush2.msra.mxu0 0.0
      %4987 = vmatprep.subr.mxu0 0.0
      %4988 = vmatpush2.msra.mxu0 0.0
      %4989 = vmatprep.subr.mxu0 0.0
      %4990 = vmatpush2.msra.mxu0 0.0
      %4991 = vmatprep.subr.mxu0 0.0
      %4992 = vmatpush2.msra.mxu0 0.0
      %4993 = vmatprep.subr.mxu0 0.0
      %4994 = vmatpush2.msra.mxu0 0.0
      %4995 = vmatprep.subr.mxu0 0.0
      %4996 = vmatpush2.msra.mxu0 0.0
      %4997 = vmatprep.subr.mxu0 0.0
      %4998 = vmatpush2.msra.mxu0 0.0
      %4999 = vmatprep.mubr.f32.mxu0 0.0
      %5000 = vmatmul.mubr.f32.gmra.mxu0 %v3240
      %v5001 = vpop.f32.mrf.mxu0
      %v5002 = vadd.f32 0.0, %v5001
      %v5003 = vpop.f32.mrf.mxu0
      %5004 = vmatprep.mubr.f32.mxu0 0.0
      %5005 = vmatmul.mubr.f32.gmra.mxu0 %v3243
      %v5006 = vpop.f32.mrf.mxu0
      %v5007 = vadd.f32 0.0, %v5006
      %v5008 = vpop.f32.mrf.mxu0
      %5009 = vmatprep.mubr.f32.mxu0 0.0
      %5010 = vmatmul.mubr.f32.gmra.mxu0 %v3246
      %v5011 = vpop.f32.mrf.mxu0
      %v5012 = vadd.f32 0.0, %v5011
      %v5013 = vpop.f32.mrf.mxu0
      %5014 = vmatprep.mubr.f32.mxu0 0.0
      %5015 = vmatmul.mubr.f32.gmra.mxu0 %v3249
      %v5016 = vpop.f32.mrf.mxu0
      %v5017 = vadd.f32 0.0, %v5016
      %v5018 = vpop.f32.mrf.mxu0
      %5019 = vmatprep.mubr.f32.mxu0 0.0
      %5020 = vmatmul.mubr.f32.gmra.mxu0 %v3252
      %v5021 = vpop.f32.mrf.mxu0
      %v5022 = vadd.f32 0.0, %v5021
      %v5023 = vpop.f32.mrf.mxu0
      %5024 = vmatprep.mubr.f32.mxu0 0.0
      %5025 = vmatmul.mubr.f32.gmra.mxu0 %v3255
      %v5026 = vpop.f32.mrf.mxu0
      %v5027 = vadd.f32 0.0, %v5026
      %v5028 = vpop.f32.mrf.mxu0
      %5029 = vmatprep.mubr.f32.mxu0 0.0
      %5030 = vmatmul.mubr.f32.gmra.mxu0 %v3258
      %v5031 = vpop.f32.mrf.mxu0
      %v5032 = vadd.f32 0.0, %v5031
      %v5033 = vpop.f32.mrf.mxu0
      %5034 = vmatprep.mubr.f32.mxu0 0.0
      %5035 = vmatmul.mubr.f32.gmra.mxu0 %v3261
      %v5036 = vpop.f32.mrf.mxu0
      %v5037 = vadd.f32 0.0, %v5036
      %v5038 = vpop.f32.mrf.mxu0
      %5039 = vmatprep.mubr.f32.mxu0 0.0
      %5040 = vmatmul.mubr.f32.gmra.mxu0 %v3264
      %v5041 = vpop.f32.mrf.mxu0
      %v5042 = vadd.f32 0.0, %v5041
      %v5043 = vpop.f32.mrf.mxu0
      %5044 = vmatprep.mubr.f32.mxu0 0.0
      %5045 = vmatmul.mubr.f32.gmra.mxu0 %v3267
      %v5046 = vpop.f32.mrf.mxu0
      %v5047 = vadd.f32 0.0, %v5046
      %v5048 = vpop.f32.mrf.mxu0
      %5049 = vmatprep.mubr.f32.mxu0 0.0
      %5050 = vmatmul.mubr.f32.gmra.mxu0 %v3270
      %v5051 = vpop.f32.mrf.mxu0
      %v5052 = vadd.f32 0.0, %v5051
      %v5053 = vpop.f32.mrf.mxu0
      %5054 = vmatprep.mubr.f32.mxu0 0.0
      %5055 = vmatmul.mubr.f32.gmra.mxu0 %v3273
      %v5056 = vpop.f32.mrf.mxu0
      %v5057 = vadd.f32 0.0, %v5056
      %v5058 = vpop.f32.mrf.mxu0
      %5059 = vmatprep.mubr.f32.mxu0 0.0
      %5060 = vmatmul.mubr.f32.gmra.mxu0 %v3276
      %v5061 = vpop.f32.mrf.mxu0
      %v5062 = vadd.f32 0.0, %v5061
      %v5063 = vpop.f32.mrf.mxu0
      %5064 = vmatprep.mubr.f32.mxu0 0.0
      %5065 = vmatmul.mubr.f32.gmra.mxu0 %v3279
      %v5066 = vpop.f32.mrf.mxu0
      %v5067 = vadd.f32 0.0, %v5066
      %v5068 = vpop.f32.mrf.mxu0
      %5069 = vmatprep.mubr.f32.mxu0 0.0
      %5070 = vmatmul.mubr.f32.gmra.mxu0 %v3282
      %v5071 = vpop.f32.mrf.mxu0
      %v5072 = vadd.f32 0.0, %v5071
      %v5073 = vpop.f32.mrf.mxu0
      %5074 = vmatprep.mubr.f32.mxu0 0.0
      %5075 = vmatmul.mubr.f32.gmra.mxu0 %v3285
      %v5076 = vpop.f32.mrf.mxu0
      %v5077 = vadd.f32 0.0, %v5076
      %v5078 = vpop.f32.mrf.mxu0
      %5079 = vmatprep.mubr.f32.mxu0 0.0
      %5080 = vmatmul.mubr.f32.gmra.mxu0 %v3288
      %v5081 = vpop.f32.mrf.mxu0
      %v5082 = vadd.f32 0.0, %v5081
      %v5083 = vpop.f32.mrf.mxu0
      %5084 = vmatprep.mubr.f32.mxu0 0.0
      %5085 = vmatmul.mubr.f32.gmra.mxu0 %v3291
      %v5086 = vpop.f32.mrf.mxu0
      %v5087 = vadd.f32 0.0, %v5086
      %v5088 = vpop.f32.mrf.mxu0
      %5089 = vmatprep.mubr.f32.mxu0 0.0
      %5090 = vmatmul.mubr.f32.gmra.mxu0 %v3294
      %v5091 = vpop.f32.mrf.mxu0
      %v5092 = vadd.f32 0.0, %v5091
      %v5093 = vpop.f32.mrf.mxu0
      %5094 = vmatprep.mubr.f32.mxu0 0.0
      %5095 = vmatmul.mubr.f32.gmra.mxu0 %v3297
      %v5096 = vpop.f32.mrf.mxu0
      %v5097 = vadd.f32 0.0, %v5096
      %v5098 = vpop.f32.mrf.mxu0
      %5099 = vmatprep.mubr.f32.mxu0 0.0
      %5100 = vmatmul.mubr.f32.gmra.mxu0 %v3540
      %v5101 = vpop.f32.mrf.mxu0
      %v5102 = vadd.f32 0.0, %v5101
      %v5103 = vpop.f32.mrf.mxu0
      %5104 = vmatprep.mubr.f32.mxu0 0.0
      %5105 = vmatmul.mubr.f32.gmra.mxu0 %v3543
      %v5106 = vpop.f32.mrf.mxu0
      %v5107 = vadd.f32 0.0, %v5106
      %v5108 = vpop.f32.mrf.mxu0
      %5109 = vmatprep.mubr.f32.mxu0 0.0
      %5110 = vmatmul.mubr.f32.gmra.mxu0 %v3818
      %v5111 = vpop.f32.mrf.mxu0
      %v5112 = vadd.f32 0.0, %v5111
      %v5113 = vpop.f32.mrf.mxu0
      %5114 = vmatprep.mubr.f32.mxu0 0.0
      %5115 = vmatmul.mubr.f32.gmra.mxu0 %v3821
      %v5116 = vpop.f32.mrf.mxu0
      %v5117 = vadd.f32 0.0, %v5116
      %v5118 = vpop.f32.mrf.mxu0
      %5119 = vmatprep.mubr.f32.mxu0 0.0
      %5120 = vmatmul.mubr.f32.gmra.mxu0 %v4096
      %v5121 = vpop.f32.mrf.mxu0
      %v5122 = vadd.f32 0.0, %v5121
      %v5123 = vpop.f32.mrf.mxu0
      %5124 = vmatprep.mubr.f32.mxu0 0.0
      %5125 = vmatmul.mubr.f32.gmra.mxu0 %v4099
      %v5126 = vpop.f32.mrf.mxu0
      %v5127 = vadd.f32 0.0, %v5126
      %v5128 = vpop.f32.mrf.mxu0
      %5129 = vmatprep.mubr.f32.mxu0 0.0
      %5130 = vmatmul.mubr.f32.gmra.mxu0 %v4374
      %v5131 = vpop.f32.mrf.mxu0
      %v5132 = vadd.f32 0.0, %v5131
      %v5133 = vpop.f32.mrf.mxu0
      %5134 = vmatprep.mubr.f32.mxu0 0.0
      %5135 = vmatmul.mubr.f32.gmra.mxu0 %v4377
      %v5136 = vpop.f32.mrf.mxu0
      %v5137 = vadd.f32 0.0, %v5136
      %v5138 = vpop.f32.mrf.mxu0
      %5139 = vmatprep.mubr.f32.mxu0 0.0
      %5140 = vmatmul.mubr.f32.gmra.mxu0 %v4652
      %v5141 = vpop.f32.mrf.mxu0
      %v5142 = vadd.f32 0.0, %v5141
      %v5143 = vpop.f32.mrf.mxu0
      %5144 = vmatprep.mubr.f32.mxu0 0.0
      %5145 = vmatmul.mubr.f32.gmra.mxu0 %v4655
      %v5146 = vpop.f32.mrf.mxu0
      %v5147 = vadd.f32 0.0, %v5146
      %v5148 = vpop.f32.mrf.mxu0
      %5149 = vmatprep.mubr.f32.mxu0 0.0
      %5150 = vmatmul.mubr.f32.gmra.mxu0 %v4930
      %v5151 = vpop.f32.mrf.mxu0
      %v5152 = vadd.f32 0.0, %v5151
      %v5153 = vpop.f32.mrf.mxu0
      %5154 = vmatprep.mubr.f32.mxu0 0.0
      %5155 = vmatmul.mubr.f32.gmra.mxu0 %v4933
      %v5156 = vpop.f32.mrf.mxu0
      %v5157 = vadd.f32 0.0, %v5156
      %v5158 = vpop.f32.mrf.mxu0
      %5159 = vdwg.mxu0
      %v5160 = vadd.f32 %v4882, %v5002
      %v5161 = vadd.f32 %v4883, %v5007
      %v5162 = vadd.f32 %v4884, %v5012
      %v5163 = vadd.f32 %v4885, %v5017
      %v5164 = vadd.f32 %v4886, %v5022
      %v5165 = vadd.f32 %v4887, %v5027
      %v5166 = vadd.f32 %v4888, %v5032
      %v5167 = vadd.f32 %v4889, %v5037
      %v5168 = vadd.f32 %v4890, %v5042
      %v5169 = vadd.f32 %v4891, %v5047
      %v5170 = vadd.f32 %v4892, %v5052
      %v5171 = vadd.f32 %v4893, %v5057
      %v5172 = vadd.f32 %v4894, %v5062
      %v5173 = vadd.f32 %v4895, %v5067
      %v5174 = vadd.f32 %v4896, %v5072
      %v5175 = vadd.f32 %v4897, %v5077
      %v5176 = vadd.f32 %v4898, %v5082
      %v5177 = vadd.f32 %v4899, %v5087
      %v5178 = vadd.f32 %v4900, %v5092
      %v5179 = vadd.f32 %v4901, %v5097
      %v5180 = vadd.f32 %v4902, %v5102
      %v5181 = vadd.f32 %v4903, %v5107
      %v5182 = vadd.f32 %v4904, %v5112
      %v5183 = vadd.f32 %v4905, %v5117
      %v5184 = vadd.f32 %v4906, %v5122
      %v5185 = vadd.f32 %v4907, %v5127
      %v5186 = vadd.f32 %v4908, %v5132
      %v5187 = vadd.f32 %v4909, %v5137
      %v5188 = vadd.f32 %v4910, %v5142
      %v5189 = vadd.f32 %v4911, %v5147
      %v5190 = vadd.f32 %v4912, %v5152
      %v5191 = vadd.f32 %v4913, %v5157
      %v5192 = vmax.f32 %v5160, 0.0
      %v5193 = vmax.f32 %v5161, 0.0
      %v5194 = vmax.f32 %v5162, 0.0
      %v5195 = vmax.f32 %v5163, 0.0
      %v5196 = vmax.f32 %v5164, 0.0
      %v5197 = vmax.f32 %v5165, 0.0
      %v5198 = vmax.f32 %v5166, 0.0
      %v5199 = vmax.f32 %v5167, 0.0
      %v5200 = vmax.f32 %v5168, 0.0
      %v5201 = vmax.f32 %v5169, 0.0
      %v5202 = vmax.f32 %v5170, 0.0
      %v5203 = vmax.f32 %v5171, 0.0
      %v5204 = vmax.f32 %v5172, 0.0
      %v5205 = vmax.f32 %v5173, 0.0
      %v5206 = vmax.f32 %v5174, 0.0
      %v5207 = vmax.f32 %v5175, 0.0
      %v5208 = vmax.f32 %v5176, 0.0
      %v5209 = vmax.f32 %v5177, 0.0
      %v5210 = vmax.f32 %v5178, 0.0
      %v5211 = vmax.f32 %v5179, 0.0
      %v5212 = vmax.f32 %v5180, 0.0
      %v5213 = vmax.f32 %v5181, 0.0
      %v5214 = vmax.f32 %v5182, 0.0
      %v5215 = vmax.f32 %v5183, 0.0
      %v5216 = vmax.f32 %v5184, 0.0
      %v5217 = vmax.f32 %v5185, 0.0
      %v5218 = vmax.f32 %v5186, 0.0
      %v5219 = vmax.f32 %v5187, 0.0
      %v5220 = vmax.f32 %v5188, 0.0
      %v5221 = vmax.f32 %v5189, 0.0
      %v5222 = vmax.f32 %v5190, 0.0
      %v5223 = vmax.f32 %v5191, 0.0
      %5224 = vst.msk [vmem:[#allocation3] sm:$0xff] %vm736, 0.0
      %5225 = vst.msk [vmem:[#allocation3 + $0x8] sm:$0xff] %vm736, 0.0
      %vm5226 = vcmask 29696
      %5227 = vst.msk [vmem:[#allocation3 + $0x10] sm:$0x3f] %vm5226, 0.0
      %5228 = vst.msk [vmem:[#allocation3 + $0x18] sm:$0xff] %vm736, 0.0
      %5229 = vst.msk [vmem:[#allocation3 + $0x20] sm:$0xff] %vm736, 0.0
      %5230 = vst.msk [vmem:[#allocation3 + $0x28] sm:$0x3f] %vm5226, 0.0
      %5231 = vst.msk [vmem:[#allocation3 + $0x30] sm:$0xff] %vm736, 0.0
      %5232 = vst.msk [vmem:[#allocation3 + $0x38] sm:$0xff] %vm736, 0.0
      %5233 = vst.msk [vmem:[#allocation3 + $0x40] sm:$0x3f] %vm5226, 0.0
      %s5234 = scalar_lea.vmem [#allocation3], 456
      %5235 = vst.msk [vmem:[%s5234] sm:$0xff] %vm736, 0.0
      %5236 = vst.msk [vmem:[%s5234 + $0x8] sm:$0xff] %vm736, 0.0
      %5237 = vst.msk [vmem:[%s5234 + $0x10] sm:$0x3f] %vm5226, 0.0
      %5238 = vst.msk [vmem:[%s5234 + $0x18] sm:$0xff] %vm736, 0.0
      %5239 = vst.msk [vmem:[%s5234 + $0x20] sm:$0xff] %vm736, 0.0
      %5240 = vst.msk [vmem:[%s5234 + $0x28] sm:$0x3f] %vm5226, 0.0
      %5241 = vst.msk [vmem:[%s5234 + $0x30] sm:$0xff] %vm736, 0.0
      %5242 = vst.msk [vmem:[%s5234 + $0x38] sm:$0xff] %vm736, 0.0
      %5243 = vst.msk [vmem:[%s5234 + $0x40] sm:$0x3f] %vm5226, 0.0
      %v5276 = vrot.slane %v5192, 5
      %v5277 = vrot.slane %v5193, 5
      %v5278 = vsel %vm1146, %v5276, %v5277
      %v5279 = vrot.slane %v5194, 5
      %v5280 = vrot.slane %v5195, 5
      %v5281 = vsel %vm1146, %v5279, %v5280
      %v5282 = vrot.slane %v5196, 5
      %v5283 = vrot.slane %v5197, 5
      %v5284 = vsel %vm1146, %v5282, %v5283
      %v5285 = vrot.slane %v5198, 5
      %v5286 = vrot.slane %v5199, 5
      %v5287 = vsel %vm1146, %v5285, %v5286
      %v5288 = vrot.slane %v5200, 5
      %v5289 = vrot.slane %v5201, 5
      %v5290 = vsel %vm1146, %v5288, %v5289
      %v5291 = vrot.slane %v5202, 5
      %v5292 = vrot.slane %v5203, 5
      %v5293 = vsel %vm1146, %v5291, %v5292
      %v5294 = vrot.slane %v5204, 5
      %v5295 = vrot.slane %v5205, 5
      %v5296 = vsel %vm1146, %v5294, %v5295
      %v5297 = vrot.slane %v5206, 5
      %v5298 = vrot.slane %v5207, 5
      %v5299 = vsel %vm1146, %v5297, %v5298
      %v5300 = vrot.slane %v5208, 5
      %v5301 = vrot.slane %v5209, 5
      %v5302 = vsel %vm1146, %v5300, %v5301
      %v5303 = vrot.slane %v5210, 5
      %v5304 = vrot.slane %v5211, 5
      %v5305 = vsel %vm1146, %v5303, %v5304
      %v5306 = vrot.slane %v5212, 5
      %v5307 = vrot.slane %v5213, 5
      %v5308 = vsel %vm1146, %v5306, %v5307
      %v5309 = vrot.slane %v5214, 5
      %v5310 = vrot.slane %v5215, 5
      %v5311 = vsel %vm1146, %v5309, %v5310
      %v5312 = vrot.slane %v5216, 5
      %v5313 = vrot.slane %v5217, 5
      %v5314 = vsel %vm1146, %v5312, %v5313
      %v5315 = vrot.slane %v5218, 5
      %v5316 = vrot.slane %v5219, 5
      %v5317 = vsel %vm1146, %v5315, %v5316
      %v5318 = vrot.slane %v5220, 5
      %v5319 = vrot.slane %v5221, 5
      %v5320 = vsel %vm1146, %v5318, %v5319
      %v5321 = vrot.slane %v5222, 5
      %v5322 = vrot.slane %v5223, 5
      %v5323 = vsel %vm1146, %v5321, %v5322
      %v5372 = vsel %vm1146, 0.0, %v5276
      %v5373 = vsel %vm1146, 0.0, %v5279
      %v5374 = vsel %vm1146, 0.0, %v5282
      %v5375 = vsel %vm1146, 0.0, %v5285
      %v5376 = vsel %vm1146, 0.0, %v5288
      %v5377 = vsel %vm1146, 0.0, %v5291
      %v5378 = vsel %vm1146, 0.0, %v5294
      %v5379 = vsel %vm1146, 0.0, %v5297
      %v5380 = vsel %vm1146, 0.0, %v5300
      %v5381 = vsel %vm1146, 0.0, %v5303
      %v5382 = vsel %vm1146, 0.0, %v5306
      %v5383 = vsel %vm1146, 0.0, %v5309
      %v5384 = vsel %vm1146, 0.0, %v5312
      %v5385 = vsel %vm1146, 0.0, %v5315
      %v5386 = vsel %vm1146, 0.0, %v5318
      %v5387 = vsel %vm1146, 0.0, %v5321
      %v5388 = vsel %vm1146, %v5277, 0.0
      %v5389 = vsel %vm1146, %v5280, 0.0
      %v5390 = vsel %vm1146, %v5283, 0.0
      %v5391 = vsel %vm1146, %v5286, 0.0
      %v5392 = vsel %vm1146, %v5289, 0.0
      %v5393 = vsel %vm1146, %v5292, 0.0
      %v5394 = vsel %vm1146, %v5295, 0.0
      %v5395 = vsel %vm1146, %v5298, 0.0
      %v5396 = vsel %vm1146, %v5301, 0.0
      %v5397 = vsel %vm1146, %v5304, 0.0
      %v5398 = vsel %vm1146, %v5307, 0.0
      %v5399 = vsel %vm1146, %v5310, 0.0
      %v5400 = vsel %vm1146, %v5313, 0.0
      %v5401 = vsel %vm1146, %v5316, 0.0
      %v5402 = vsel %vm1146, %v5319, 0.0
      %v5403 = vsel %vm1146, %v5322, 0.0
      %s5404 = scalar_lea.vmem [#allocation3], 72
      %5405 = vst.msk [vmem:[%s5404] sm:$0xff] %vm736, %v5372
      %5406 = vst.msk [vmem:[%s5404 + $0x8] sm:$0xff] %vm736, %v5278
      %5407 = vst.msk [vmem:[%s5404 + $0x10] sm:$0x3f] %vm5226, %v5388
      %5408 = vst.msk [vmem:[%s5404 + $0x18] sm:$0xff] %vm736, %v5373
      %5409 = vst.msk [vmem:[%s5404 + $0x20] sm:$0xff] %vm736, %v5281
      %5410 = vst.msk [vmem:[%s5404 + $0x28] sm:$0x3f] %vm5226, %v5389
      %5411 = vst.msk [vmem:[%s5404 + $0x30] sm:$0xff] %vm736, %v5374
      %5412 = vst.msk [vmem:[%s5404 + $0x38] sm:$0xff] %vm736, %v5284
      %5413 = vst.msk [vmem:[%s5404 + $0x40] sm:$0x3f] %vm5226, %v5390
      %5414 = vst.msk [vmem:[%s5404 + $0x48] sm:$0xff] %vm736, %v5375
      %5415 = vst.msk [vmem:[%s5404 + $0x50] sm:$0xff] %vm736, %v5287
      %5416 = vst.msk [vmem:[%s5404 + $0x58] sm:$0x3f] %vm5226, %v5391
      %5417 = vst.msk [vmem:[%s5404 + $0x60] sm:$0xff] %vm736, %v5376
      %5418 = vst.msk [vmem:[%s5404 + $0x68] sm:$0xff] %vm736, %v5290
      %5419 = vst.msk [vmem:[%s5404 + $0x70] sm:$0x3f] %vm5226, %v5392
      %5420 = vst.msk [vmem:[%s5404 + $0x78] sm:$0xff] %vm736, %v5377
      %5421 = vst.msk [vmem:[%s5404 + $0x80] sm:$0xff] %vm736, %v5293
      %5422 = vst.msk [vmem:[%s5404 + $0x88] sm:$0x3f] %vm5226, %v5393
      %5423 = vst.msk [vmem:[%s5404 + $0x90] sm:$0xff] %vm736, %v5378
      %5424 = vst.msk [vmem:[%s5404 + $0x98] sm:$0xff] %vm736, %v5296
      %5425 = vst.msk [vmem:[%s5404 + $0xa0] sm:$0x3f] %vm5226, %v5394
      %5426 = vst.msk [vmem:[%s5404 + $0xa8] sm:$0xff] %vm736, %v5379
      %5427 = vst.msk [vmem:[%s5404 + $0xb0] sm:$0xff] %vm736, %v5299
      %5428 = vst.msk [vmem:[%s5404 + $0xb8] sm:$0x3f] %vm5226, %v5395
      %5429 = vst.msk [vmem:[%s5404 + $0xc0] sm:$0xff] %vm736, %v5380
      %5430 = vst.msk [vmem:[%s5404 + $0xc8] sm:$0xff] %vm736, %v5302
      %5431 = vst.msk [vmem:[%s5404 + $0xd0] sm:$0x3f] %vm5226, %v5396
      %5432 = vst.msk [vmem:[%s5404 + $0xd8] sm:$0xff] %vm736, %v5381
      %5433 = vst.msk [vmem:[%s5404 + $0xe0] sm:$0xff] %vm736, %v5305
      %5434 = vst.msk [vmem:[%s5404 + $0xe8] sm:$0x3f] %vm5226, %v5397
      %5435 = vst.msk [vmem:[%s5404 + $0xf0] sm:$0xff] %vm736, %v5382
      %5436 = vst.msk [vmem:[%s5404 + $0xf8] sm:$0xff] %vm736, %v5308
      %5437 = vst.msk [vmem:[%s5404 + $0x100] sm:$0x3f] %vm5226, %v5398
      %5438 = vst.msk [vmem:[%s5404 + $0x108] sm:$0xff] %vm736, %v5383
      %5439 = vst.msk [vmem:[%s5404 + $0x110] sm:$0xff] %vm736, %v5311
      %5440 = vst.msk [vmem:[%s5404 + $0x118] sm:$0x3f] %vm5226, %v5399
      %5441 = vst.msk [vmem:[%s5404 + $0x120] sm:$0xff] %vm736, %v5384
      %5442 = vst.msk [vmem:[%s5404 + $0x128] sm:$0xff] %vm736, %v5314
      %5443 = vst.msk [vmem:[%s5404 + $0x130] sm:$0x3f] %vm5226, %v5400
      %5444 = vst.msk [vmem:[%s5404 + $0x138] sm:$0xff] %vm736, %v5385
      %5445 = vst.msk [vmem:[%s5404 + $0x140] sm:$0xff] %vm736, %v5317
      %5446 = vst.msk [vmem:[%s5404 + $0x148] sm:$0x3f] %vm5226, %v5401
      %5447 = vst.msk [vmem:[%s5404 + $0x150] sm:$0xff] %vm736, %v5386
      %5448 = vst.msk [vmem:[%s5404 + $0x158] sm:$0xff] %vm736, %v5320
      %5449 = vst.msk [vmem:[%s5404 + $0x160] sm:$0x3f] %vm5226, %v5402
      %5450 = vst.msk [vmem:[%s5404 + $0x168] sm:$0xff] %vm736, %v5387
      %5451 = vst.msk [vmem:[%s5404 + $0x170] sm:$0xff] %vm736, %v5323
      %5452 = vst.msk [vmem:[%s5404 + $0x178] sm:$0x3f] %vm5226, %v5403
      %v5453 = vld [vmem:[#allocation3] sm:$0xff]
      %v5454 = vld [vmem:[#allocation3 + $0x8] sm:$0xff]
      %v5455 = vld [vmem:[#allocation3 + $0x10] sm:$0x3f]
      %v5456 = vld [vmem:[#allocation3 + $0x18] sm:$0xff]
      %v5457 = vld [vmem:[#allocation3 + $0x20] sm:$0xff]
      %v5458 = vld [vmem:[#allocation3 + $0x28] sm:$0x3f]
      %v5459 = vld [vmem:[#allocation3 + $0x30] sm:$0xff]
      %v5460 = vld [vmem:[#allocation3 + $0x38] sm:$0xff]
      %v5461 = vld [vmem:[#allocation3 + $0x40] sm:$0x3f]
      %v5462 = vld [vmem:[#allocation3 + $0x48] sm:$0xff]
      %v5463 = vld [vmem:[#allocation3 + $0x50] sm:$0xff]
      %v5464 = vld [vmem:[#allocation3 + $0x58] sm:$0x3f]
      %v5465 = vld [vmem:[#allocation3 + $0x60] sm:$0xff]
      %v5466 = vld [vmem:[#allocation3 + $0x68] sm:$0xff]
      %v5467 = vld [vmem:[#allocation3 + $0x70] sm:$0x3f]
      %v5468 = vld [vmem:[#allocation3 + $0x78] sm:$0xff]
      %v5469 = vld [vmem:[#allocation3 + $0x80] sm:$0xff]
      %v5470 = vld [vmem:[#allocation3 + $0x88] sm:$0x3f]
      %v5471 = vld [vmem:[#allocation3 + $0x90] sm:$0xff]
      %v5472 = vld [vmem:[#allocation3 + $0x98] sm:$0xff]
      %v5473 = vld [vmem:[#allocation3 + $0xa0] sm:$0x3f]
      %v5474 = vld [vmem:[#allocation3 + $0xa8] sm:$0xff]
      %v5475 = vld [vmem:[#allocation3 + $0xb0] sm:$0xff]
      %v5476 = vld [vmem:[#allocation3 + $0xb8] sm:$0x3f]
      %v5477 = vld [vmem:[#allocation3 + $0xc0] sm:$0xff]
      %v5478 = vld [vmem:[#allocation3 + $0xc8] sm:$0xff]
      %v5479 = vld [vmem:[#allocation3 + $0xd0] sm:$0x3f]
      %v5480 = vld [vmem:[#allocation3 + $0xd8] sm:$0xff]
      %v5481 = vld [vmem:[#allocation3 + $0xe0] sm:$0xff]
      %v5482 = vld [vmem:[#allocation3 + $0xe8] sm:$0x3f]
      %v5483 = vld [vmem:[#allocation3 + $0xf0] sm:$0xff]
      %v5484 = vld [vmem:[#allocation3 + $0xf8] sm:$0xff]
      %v5485 = vld [vmem:[#allocation3 + $0x100] sm:$0x3f]
      %v5486 = vld [vmem:[#allocation3 + $0x108] sm:$0xff]
      %v5487 = vld [vmem:[#allocation3 + $0x110] sm:$0xff]
      %v5488 = vld [vmem:[#allocation3 + $0x118] sm:$0x3f]
      %v5489 = vld [vmem:[#allocation3 + $0x120] sm:$0xff]
      %v5490 = vld [vmem:[#allocation3 + $0x128] sm:$0xff]
      %v5491 = vld [vmem:[#allocation3 + $0x130] sm:$0x3f]
      %v5492 = vld [vmem:[#allocation3 + $0x138] sm:$0xff]
      %v5493 = vld [vmem:[#allocation3 + $0x140] sm:$0xff]
      %v5494 = vld [vmem:[#allocation3 + $0x148] sm:$0x3f]
      %v5495 = vld [vmem:[#allocation3 + $0x150] sm:$0xff]
      %v5496 = vld [vmem:[#allocation3 + $0x158] sm:$0xff]
      %v5497 = vld [vmem:[#allocation3 + $0x160] sm:$0x3f]
      %v5498 = vld [vmem:[#allocation3 + $0x168] sm:$0xff]
      %v5499 = vld [vmem:[#allocation3 + $0x170] sm:$0xff]
      %v5500 = vld [vmem:[#allocation3 + $0x178] sm:$0x3f]
      %v5501 = vld [vmem:[#allocation3 + $0x180] sm:$0xff]
      %v5502 = vld [vmem:[#allocation3 + $0x188] sm:$0xff]
      %v5503 = vld [vmem:[#allocation3 + $0x190] sm:$0x3f]
      %v5504 = vld [vmem:[#allocation3 + $0x198] sm:$0xff]
      %v5505 = vld [vmem:[#allocation3 + $0x1a0] sm:$0xff]
      %v5506 = vld [vmem:[#allocation3 + $0x1a8] sm:$0x3f]
      %v5507 = vld [vmem:[#allocation3 + $0x1b0] sm:$0xff]
      %v5508 = vld [vmem:[#allocation3 + $0x1b8] sm:$0xff]
      %v5509 = vld [vmem:[#allocation3 + $0x1c0] sm:$0x3f]
      %v5510 = vld [vmem:[#allocation3 + $0x1c8] sm:$0xff]
      %v5511 = vld [vmem:[#allocation3 + $0x1d0] sm:$0xff]
      %v5512 = vld [vmem:[#allocation3 + $0x1d8] sm:$0x3f]
      %v5513 = vld [vmem:[#allocation3 + $0x1e0] sm:$0xff]
      %v5514 = vld [vmem:[#allocation3 + $0x1e8] sm:$0xff]
      %v5515 = vld [vmem:[#allocation3 + $0x1f0] sm:$0x3f]
      %v5516 = vld [vmem:[#allocation3 + $0x1f8] sm:$0xff]
      %v5517 = vld [vmem:[#allocation3 + $0x200] sm:$0xff]
      %v5518 = vld [vmem:[#allocation3 + $0x208] sm:$0x3f]
      %v5585 = vrot.slane %v5453, 1
      %v5586 = vrot.slane %v5454, 1
      %v5587 = vsel %vm1456, %v5585, %v5586
      %v5588 = vrot.slane %v5455, 1
      %v5589 = vsel %vm1456, %v5586, %v5588
      %v5590 = vrot.slane %v5456, 1
      %v5591 = vrot.slane %v5457, 1
      %v5592 = vsel %vm1456, %v5590, %v5591
      %v5593 = vrot.slane %v5458, 1
      %v5594 = vsel %vm1456, %v5591, %v5593
      %v5595 = vrot.slane %v5459, 1
      %v5596 = vrot.slane %v5460, 1
      %v5597 = vsel %vm1456, %v5595, %v5596
      %v5598 = vrot.slane %v5461, 1
      %v5599 = vsel %vm1456, %v5596, %v5598
      %v5600 = vrot.slane %v5462, 1
      %v5601 = vrot.slane %v5463, 1
      %v5602 = vsel %vm1456, %v5600, %v5601
      %v5603 = vrot.slane %v5464, 1
      %v5604 = vsel %vm1456, %v5601, %v5603
      %v5605 = vrot.slane %v5465, 1
      %v5606 = vrot.slane %v5466, 1
      %v5607 = vsel %vm1456, %v5605, %v5606
      %v5608 = vrot.slane %v5467, 1
      %v5609 = vsel %vm1456, %v5606, %v5608
      %v5610 = vrot.slane %v5468, 1
      %v5611 = vrot.slane %v5469, 1
      %v5612 = vsel %vm1456, %v5610, %v5611
      %v5613 = vrot.slane %v5470, 1
      %v5614 = vsel %vm1456, %v5611, %v5613
      %v5615 = vrot.slane %v5471, 1
      %v5616 = vrot.slane %v5472, 1
      %v5617 = vsel %vm1456, %v5615, %v5616
      %v5618 = vrot.slane %v5473, 1
      %v5619 = vsel %vm1456, %v5616, %v5618
      %v5620 = vrot.slane %v5474, 1
      %v5621 = vrot.slane %v5475, 1
      %v5622 = vsel %vm1456, %v5620, %v5621
      %v5623 = vrot.slane %v5476, 1
      %v5624 = vsel %vm1456, %v5621, %v5623
      %v5625 = vrot.slane %v5477, 1
      %v5626 = vrot.slane %v5478, 1
      %v5627 = vsel %vm1456, %v5625, %v5626
      %v5628 = vrot.slane %v5479, 1
      %v5629 = vsel %vm1456, %v5626, %v5628
      %v5630 = vrot.slane %v5480, 1
      %v5631 = vrot.slane %v5481, 1
      %v5632 = vsel %vm1456, %v5630, %v5631
      %v5633 = vrot.slane %v5482, 1
      %v5634 = vsel %vm1456, %v5631, %v5633
      %v5635 = vrot.slane %v5483, 1
      %v5636 = vrot.slane %v5484, 1
      %v5637 = vsel %vm1456, %v5635, %v5636
      %v5638 = vrot.slane %v5485, 1
      %v5639 = vsel %vm1456, %v5636, %v5638
      %v5640 = vrot.slane %v5486, 1
      %v5641 = vrot.slane %v5487, 1
      %v5642 = vsel %vm1456, %v5640, %v5641
      %v5643 = vrot.slane %v5488, 1
      %v5644 = vsel %vm1456, %v5641, %v5643
      %v5645 = vrot.slane %v5489, 1
      %v5646 = vrot.slane %v5490, 1
      %v5647 = vsel %vm1456, %v5645, %v5646
      %v5648 = vrot.slane %v5491, 1
      %v5649 = vsel %vm1456, %v5646, %v5648
      %v5650 = vrot.slane %v5492, 1
      %v5651 = vrot.slane %v5493, 1
      %v5652 = vsel %vm1456, %v5650, %v5651
      %v5653 = vrot.slane %v5494, 1
      %v5654 = vsel %vm1456, %v5651, %v5653
      %v5655 = vrot.slane %v5495, 1
      %v5656 = vrot.slane %v5496, 1
      %v5657 = vsel %vm1456, %v5655, %v5656
      %v5658 = vrot.slane %v5497, 1
      %v5659 = vsel %vm1456, %v5656, %v5658
      %v5660 = vrot.slane %v5498, 1
      %v5661 = vrot.slane %v5499, 1
      %v5662 = vsel %vm1456, %v5660, %v5661
      %v5663 = vrot.slane %v5500, 1
      %v5664 = vsel %vm1456, %v5661, %v5663
      %v5665 = vrot.slane %v5501, 1
      %v5666 = vrot.slane %v5502, 1
      %v5667 = vsel %vm1456, %v5665, %v5666
      %v5668 = vrot.slane %v5503, 1
      %v5669 = vsel %vm1456, %v5666, %v5668
      %v5670 = vrot.slane %v5504, 1
      %v5671 = vrot.slane %v5505, 1
      %v5672 = vsel %vm1456, %v5670, %v5671
      %v5673 = vrot.slane %v5506, 1
      %v5674 = vsel %vm1456, %v5671, %v5673
      %v5675 = vrot.slane %v5507, 1
      %v5676 = vrot.slane %v5508, 1
      %v5677 = vsel %vm1456, %v5675, %v5676
      %v5678 = vrot.slane %v5509, 1
      %v5679 = vsel %vm1456, %v5676, %v5678
      %v5680 = vrot.slane %v5510, 1
      %v5681 = vrot.slane %v5511, 1
      %v5682 = vsel %vm1456, %v5680, %v5681
      %v5683 = vrot.slane %v5512, 1
      %v5684 = vsel %vm1456, %v5681, %v5683
      %v5685 = vrot.slane %v5513, 1
      %v5686 = vrot.slane %v5514, 1
      %v5687 = vsel %vm1456, %v5685, %v5686
      %v5688 = vrot.slane %v5515, 1
      %v5689 = vsel %vm1456, %v5686, %v5688
      %v5690 = vrot.slane %v5516, 1
      %v5691 = vrot.slane %v5517, 1
      %v5692 = vsel %vm1456, %v5690, %v5691
      %v5693 = vrot.slane %v5518, 1
      %v5694 = vsel %vm1456, %v5691, %v5693
      %5695 = vrot.lane.b32.xlu0 %v5587, 4
      %v5696 = vpop.permute.xlu0 %5695
      %5697 = vrot.lane.b32.xlu0 %v5589, 4
      %v5698 = vpop.permute.xlu0 %5697
      %5699 = vrot.lane.b32.xlu0 %v5592, 4
      %v5700 = vpop.permute.xlu0 %5699
      %5701 = vrot.lane.b32.xlu0 %v5594, 4
      %v5702 = vpop.permute.xlu0 %5701
      %5703 = vrot.lane.b32.xlu0 %v5597, 4
      %v5704 = vpop.permute.xlu0 %5703
      %5705 = vrot.lane.b32.xlu0 %v5599, 4
      %v5706 = vpop.permute.xlu0 %5705
      %5707 = vrot.lane.b32.xlu0 %v5602, 4
      %v5708 = vpop.permute.xlu0 %5707
      %5709 = vrot.lane.b32.xlu0 %v5604, 4
      %v5710 = vpop.permute.xlu0 %5709
      %5711 = vrot.lane.b32.xlu0 %v5607, 4
      %v5712 = vpop.permute.xlu0 %5711
      %5713 = vrot.lane.b32.xlu0 %v5609, 4
      %v5714 = vpop.permute.xlu0 %5713
      %5715 = vrot.lane.b32.xlu0 %v5612, 4
      %v5716 = vpop.permute.xlu0 %5715
      %5717 = vrot.lane.b32.xlu0 %v5614, 4
      %v5718 = vpop.permute.xlu0 %5717
      %5719 = vrot.lane.b32.xlu0 %v5617, 4
      %v5720 = vpop.permute.xlu0 %5719
      %5721 = vrot.lane.b32.xlu0 %v5619, 4
      %v5722 = vpop.permute.xlu0 %5721
      %5723 = vrot.lane.b32.xlu0 %v5622, 4
      %v5724 = vpop.permute.xlu0 %5723
      %5725 = vrot.lane.b32.xlu0 %v5624, 4
      %v5726 = vpop.permute.xlu0 %5725
      %5727 = vrot.lane.b32.xlu0 %v5627, 4
      %v5728 = vpop.permute.xlu0 %5727
      %5729 = vrot.lane.b32.xlu0 %v5629, 4
      %v5730 = vpop.permute.xlu0 %5729
      %5731 = vrot.lane.b32.xlu0 %v5632, 4
      %v5732 = vpop.permute.xlu0 %5731
      %5733 = vrot.lane.b32.xlu0 %v5634, 4
      %v5734 = vpop.permute.xlu0 %5733
      %5735 = vrot.lane.b32.xlu0 %v5637, 4
      %v5736 = vpop.permute.xlu0 %5735
      %5737 = vrot.lane.b32.xlu0 %v5639, 4
      %v5738 = vpop.permute.xlu0 %5737
      %5739 = vrot.lane.b32.xlu0 %v5642, 4
      %v5740 = vpop.permute.xlu0 %5739
      %5741 = vrot.lane.b32.xlu0 %v5644, 4
      %v5742 = vpop.permute.xlu0 %5741
      %5743 = vrot.lane.b32.xlu0 %v5647, 4
      %v5744 = vpop.permute.xlu0 %5743
      %5745 = vrot.lane.b32.xlu0 %v5649, 4
      %v5746 = vpop.permute.xlu0 %5745
      %5747 = vrot.lane.b32.xlu0 %v5652, 4
      %v5748 = vpop.permute.xlu0 %5747
      %5749 = vrot.lane.b32.xlu0 %v5654, 4
      %v5750 = vpop.permute.xlu0 %5749
      %5751 = vrot.lane.b32.xlu0 %v5657, 4
      %v5752 = vpop.permute.xlu0 %5751
      %5753 = vrot.lane.b32.xlu0 %v5659, 4
      %v5754 = vpop.permute.xlu0 %5753
      %5755 = vrot.lane.b32.xlu0 %v5662, 4
      %v5756 = vpop.permute.xlu0 %5755
      %5757 = vrot.lane.b32.xlu0 %v5664, 4
      %v5758 = vpop.permute.xlu0 %5757
      %5759 = vrot.lane.b32.xlu0 %v5667, 4
      %v5760 = vpop.permute.xlu0 %5759
      %5761 = vrot.lane.b32.xlu0 %v5669, 4
      %v5762 = vpop.permute.xlu0 %5761
      %5763 = vrot.lane.b32.xlu0 %v5672, 4
      %v5764 = vpop.permute.xlu0 %5763
      %5765 = vrot.lane.b32.xlu0 %v5674, 4
      %v5766 = vpop.permute.xlu0 %5765
      %5767 = vrot.lane.b32.xlu0 %v5677, 4
      %v5768 = vpop.permute.xlu0 %5767
      %5769 = vrot.lane.b32.xlu0 %v5679, 4
      %v5770 = vpop.permute.xlu0 %5769
      %5771 = vrot.lane.b32.xlu0 %v5682, 4
      %v5772 = vpop.permute.xlu0 %5771
      %5773 = vrot.lane.b32.xlu0 %v5684, 4
      %v5774 = vpop.permute.xlu0 %5773
      %5775 = vrot.lane.b32.xlu0 %v5687, 4
      %v5776 = vpop.permute.xlu0 %5775
      %5777 = vrot.lane.b32.xlu0 %v5689, 4
      %v5778 = vpop.permute.xlu0 %5777
      %5779 = vrot.lane.b32.xlu0 %v5692, 4
      %v5780 = vpop.permute.xlu0 %5779
      %5781 = vrot.lane.b32.xlu0 %v5694, 4
      %v5782 = vpop.permute.xlu0 %5781
      %v5827 = vrot.slane %v5453, 2
      %v5828 = vrot.slane %v5454, 2
      %v5829 = vsel %vm1699, %v5827, %v5828
      %v5830 = vrot.slane %v5455, 2
      %v5831 = vsel %vm1699, %v5828, %v5830
      %v5832 = vrot.slane %v5456, 2
      %v5833 = vrot.slane %v5457, 2
      %v5834 = vsel %vm1699, %v5832, %v5833
      %v5835 = vrot.slane %v5458, 2
      %v5836 = vsel %vm1699, %v5833, %v5835
      %v5837 = vrot.slane %v5459, 2
      %v5838 = vrot.slane %v5460, 2
      %v5839 = vsel %vm1699, %v5837, %v5838
      %v5840 = vrot.slane %v5461, 2
      %v5841 = vsel %vm1699, %v5838, %v5840
      %v5842 = vrot.slane %v5462, 2
      %v5843 = vrot.slane %v5463, 2
      %v5844 = vsel %vm1699, %v5842, %v5843
      %v5845 = vrot.slane %v5464, 2
      %v5846 = vsel %vm1699, %v5843, %v5845
      %v5847 = vrot.slane %v5465, 2
      %v5848 = vrot.slane %v5466, 2
      %v5849 = vsel %vm1699, %v5847, %v5848
      %v5850 = vrot.slane %v5467, 2
      %v5851 = vsel %vm1699, %v5848, %v5850
      %v5852 = vrot.slane %v5468, 2
      %v5853 = vrot.slane %v5469, 2
      %v5854 = vsel %vm1699, %v5852, %v5853
      %v5855 = vrot.slane %v5470, 2
      %v5856 = vsel %vm1699, %v5853, %v5855
      %v5857 = vrot.slane %v5471, 2
      %v5858 = vrot.slane %v5472, 2
      %v5859 = vsel %vm1699, %v5857, %v5858
      %v5860 = vrot.slane %v5473, 2
      %v5861 = vsel %vm1699, %v5858, %v5860
      %v5862 = vrot.slane %v5474, 2
      %v5863 = vrot.slane %v5475, 2
      %v5864 = vsel %vm1699, %v5862, %v5863
      %v5865 = vrot.slane %v5476, 2
      %v5866 = vsel %vm1699, %v5863, %v5865
      %v5867 = vrot.slane %v5477, 2
      %v5868 = vrot.slane %v5478, 2
      %v5869 = vsel %vm1699, %v5867, %v5868
      %v5870 = vrot.slane %v5479, 2
      %v5871 = vsel %vm1699, %v5868, %v5870
      %v5872 = vrot.slane %v5480, 2
      %v5873 = vrot.slane %v5481, 2
      %v5874 = vsel %vm1699, %v5872, %v5873
      %v5875 = vrot.slane %v5482, 2
      %v5876 = vsel %vm1699, %v5873, %v5875
      %v5877 = vrot.slane %v5483, 2
      %v5878 = vrot.slane %v5484, 2
      %v5879 = vsel %vm1699, %v5877, %v5878
      %v5880 = vrot.slane %v5485, 2
      %v5881 = vsel %vm1699, %v5878, %v5880
      %v5882 = vrot.slane %v5486, 2
      %v5883 = vrot.slane %v5487, 2
      %v5884 = vsel %vm1699, %v5882, %v5883
      %v5885 = vrot.slane %v5488, 2
      %v5886 = vsel %vm1699, %v5883, %v5885
      %v5887 = vrot.slane %v5489, 2
      %v5888 = vrot.slane %v5490, 2
      %v5889 = vsel %vm1699, %v5887, %v5888
      %v5890 = vrot.slane %v5491, 2
      %v5891 = vsel %vm1699, %v5888, %v5890
      %v5892 = vrot.slane %v5492, 2
      %v5893 = vrot.slane %v5493, 2
      %v5894 = vsel %vm1699, %v5892, %v5893
      %v5895 = vrot.slane %v5494, 2
      %v5896 = vsel %vm1699, %v5893, %v5895
      %v5897 = vrot.slane %v5495, 2
      %v5898 = vrot.slane %v5496, 2
      %v5899 = vsel %vm1699, %v5897, %v5898
      %v5900 = vrot.slane %v5497, 2
      %v5901 = vsel %vm1699, %v5898, %v5900
      %v5902 = vrot.slane %v5498, 2
      %v5903 = vrot.slane %v5499, 2
      %v5904 = vsel %vm1699, %v5902, %v5903
      %v5905 = vrot.slane %v5500, 2
      %v5906 = vsel %vm1699, %v5903, %v5905
      %v5907 = vrot.slane %v5501, 2
      %v5908 = vrot.slane %v5502, 2
      %v5909 = vsel %vm1699, %v5907, %v5908
      %v5910 = vrot.slane %v5503, 2
      %v5911 = vsel %vm1699, %v5908, %v5910
      %v5912 = vrot.slane %v5504, 2
      %v5913 = vrot.slane %v5505, 2
      %v5914 = vsel %vm1699, %v5912, %v5913
      %v5915 = vrot.slane %v5506, 2
      %v5916 = vsel %vm1699, %v5913, %v5915
      %v5917 = vrot.slane %v5507, 2
      %v5918 = vrot.slane %v5508, 2
      %v5919 = vsel %vm1699, %v5917, %v5918
      %v5920 = vrot.slane %v5509, 2
      %v5921 = vsel %vm1699, %v5918, %v5920
      %v5922 = vrot.slane %v5510, 2
      %v5923 = vrot.slane %v5511, 2
      %v5924 = vsel %vm1699, %v5922, %v5923
      %v5925 = vrot.slane %v5512, 2
      %v5926 = vsel %vm1699, %v5923, %v5925
      %v5927 = vrot.slane %v5513, 2
      %v5928 = vrot.slane %v5514, 2
      %v5929 = vsel %vm1699, %v5927, %v5928
      %v5930 = vrot.slane %v5515, 2
      %v5931 = vsel %vm1699, %v5928, %v5930
      %v5932 = vrot.slane %v5516, 2
      %v5933 = vrot.slane %v5517, 2
      %v5934 = vsel %vm1699, %v5932, %v5933
      %v5935 = vrot.slane %v5518, 2
      %v5936 = vsel %vm1699, %v5933, %v5935
      %5937 = vrot.lane.b32.xlu0 %v5829, 8
      %v5938 = vpop.permute.xlu0 %5937
      %5939 = vrot.lane.b32.xlu0 %v5831, 8
      %v5940 = vpop.permute.xlu0 %5939
      %5941 = vrot.lane.b32.xlu0 %v5834, 8
      %v5942 = vpop.permute.xlu0 %5941
      %5943 = vrot.lane.b32.xlu0 %v5836, 8
      %v5944 = vpop.permute.xlu0 %5943
      %5945 = vrot.lane.b32.xlu0 %v5839, 8
      %v5946 = vpop.permute.xlu0 %5945
      %5947 = vrot.lane.b32.xlu0 %v5841, 8
      %v5948 = vpop.permute.xlu0 %5947
      %5949 = vrot.lane.b32.xlu0 %v5844, 8
      %v5950 = vpop.permute.xlu0 %5949
      %5951 = vrot.lane.b32.xlu0 %v5846, 8
      %v5952 = vpop.permute.xlu0 %5951
      %5953 = vrot.lane.b32.xlu0 %v5849, 8
      %v5954 = vpop.permute.xlu0 %5953
      %5955 = vrot.lane.b32.xlu0 %v5851, 8
      %v5956 = vpop.permute.xlu0 %5955
      %5957 = vrot.lane.b32.xlu0 %v5854, 8
      %v5958 = vpop.permute.xlu0 %5957
      %5959 = vrot.lane.b32.xlu0 %v5856, 8
      %v5960 = vpop.permute.xlu0 %5959
      %5961 = vrot.lane.b32.xlu0 %v5859, 8
      %v5962 = vpop.permute.xlu0 %5961
      %5963 = vrot.lane.b32.xlu0 %v5861, 8
      %v5964 = vpop.permute.xlu0 %5963
      %5965 = vrot.lane.b32.xlu0 %v5864, 8
      %v5966 = vpop.permute.xlu0 %5965
      %5967 = vrot.lane.b32.xlu0 %v5866, 8
      %v5968 = vpop.permute.xlu0 %5967
      %5969 = vrot.lane.b32.xlu0 %v5869, 8
      %v5970 = vpop.permute.xlu0 %5969
      %5971 = vrot.lane.b32.xlu0 %v5871, 8
      %v5972 = vpop.permute.xlu0 %5971
      %5973 = vrot.lane.b32.xlu0 %v5874, 8
      %v5974 = vpop.permute.xlu0 %5973
      %5975 = vrot.lane.b32.xlu0 %v5876, 8
      %v5976 = vpop.permute.xlu0 %5975
      %5977 = vrot.lane.b32.xlu0 %v5879, 8
      %v5978 = vpop.permute.xlu0 %5977
      %5979 = vrot.lane.b32.xlu0 %v5881, 8
      %v5980 = vpop.permute.xlu0 %5979
      %5981 = vrot.lane.b32.xlu0 %v5884, 8
      %v5982 = vpop.permute.xlu0 %5981
      %5983 = vrot.lane.b32.xlu0 %v5886, 8
      %v5984 = vpop.permute.xlu0 %5983
      %5985 = vrot.lane.b32.xlu0 %v5889, 8
      %v5986 = vpop.permute.xlu0 %5985
      %5987 = vrot.lane.b32.xlu0 %v5891, 8
      %v5988 = vpop.permute.xlu0 %5987
      %5989 = vrot.lane.b32.xlu0 %v5894, 8
      %v5990 = vpop.permute.xlu0 %5989
      %5991 = vrot.lane.b32.xlu0 %v5896, 8
      %v5992 = vpop.permute.xlu0 %5991
      %5993 = vrot.lane.b32.xlu0 %v5899, 8
      %v5994 = vpop.permute.xlu0 %5993
      %5995 = vrot.lane.b32.xlu0 %v5901, 8
      %v5996 = vpop.permute.xlu0 %5995
      %5997 = vrot.lane.b32.xlu0 %v5904, 8
      %v5998 = vpop.permute.xlu0 %5997
      %5999 = vrot.lane.b32.xlu0 %v5906, 8
      %v6000 = vpop.permute.xlu0 %5999
      %6001 = vrot.lane.b32.xlu0 %v5909, 8
      %v6002 = vpop.permute.xlu0 %6001
      %6003 = vrot.lane.b32.xlu0 %v5911, 8
      %v6004 = vpop.permute.xlu0 %6003
      %6005 = vrot.lane.b32.xlu0 %v5914, 8
      %v6006 = vpop.permute.xlu0 %6005
      %6007 = vrot.lane.b32.xlu0 %v5916, 8
      %v6008 = vpop.permute.xlu0 %6007
      %6009 = vrot.lane.b32.xlu0 %v5919, 8
      %v6010 = vpop.permute.xlu0 %6009
      %6011 = vrot.lane.b32.xlu0 %v5921, 8
      %v6012 = vpop.permute.xlu0 %6011
      %6013 = vrot.lane.b32.xlu0 %v5924, 8
      %v6014 = vpop.permute.xlu0 %6013
      %6015 = vrot.lane.b32.xlu0 %v5926, 8
      %v6016 = vpop.permute.xlu0 %6015
      %6017 = vrot.lane.b32.xlu0 %v5929, 8
      %v6018 = vpop.permute.xlu0 %6017
      %6019 = vrot.lane.b32.xlu0 %v5931, 8
      %v6020 = vpop.permute.xlu0 %6019
      %6021 = vrot.lane.b32.xlu0 %v5934, 8
      %v6022 = vpop.permute.xlu0 %6021
      %6023 = vrot.lane.b32.xlu0 %v5936, 8
      %v6024 = vpop.permute.xlu0 %6023
      %v6069 = vrot.slane %v5453, 3
      %v6070 = vrot.slane %v5454, 3
      %v6071 = vsel %vm1942, %v6069, %v6070
      %v6072 = vrot.slane %v5455, 3
      %v6073 = vsel %vm1942, %v6070, %v6072
      %v6074 = vrot.slane %v5456, 3
      %v6075 = vrot.slane %v5457, 3
      %v6076 = vsel %vm1942, %v6074, %v6075
      %v6077 = vrot.slane %v5458, 3
      %v6078 = vsel %vm1942, %v6075, %v6077
      %v6079 = vrot.slane %v5459, 3
      %v6080 = vrot.slane %v5460, 3
      %v6081 = vsel %vm1942, %v6079, %v6080
      %v6082 = vrot.slane %v5461, 3
      %v6083 = vsel %vm1942, %v6080, %v6082
      %v6084 = vrot.slane %v5462, 3
      %v6085 = vrot.slane %v5463, 3
      %v6086 = vsel %vm1942, %v6084, %v6085
      %v6087 = vrot.slane %v5464, 3
      %v6088 = vsel %vm1942, %v6085, %v6087
      %v6089 = vrot.slane %v5465, 3
      %v6090 = vrot.slane %v5466, 3
      %v6091 = vsel %vm1942, %v6089, %v6090
      %v6092 = vrot.slane %v5467, 3
      %v6093 = vsel %vm1942, %v6090, %v6092
      %v6094 = vrot.slane %v5468, 3
      %v6095 = vrot.slane %v5469, 3
      %v6096 = vsel %vm1942, %v6094, %v6095
      %v6097 = vrot.slane %v5470, 3
      %v6098 = vsel %vm1942, %v6095, %v6097
      %v6099 = vrot.slane %v5471, 3
      %v6100 = vrot.slane %v5472, 3
      %v6101 = vsel %vm1942, %v6099, %v6100
      %v6102 = vrot.slane %v5473, 3
      %v6103 = vsel %vm1942, %v6100, %v6102
      %v6104 = vrot.slane %v5474, 3
      %v6105 = vrot.slane %v5475, 3
      %v6106 = vsel %vm1942, %v6104, %v6105
      %v6107 = vrot.slane %v5476, 3
      %v6108 = vsel %vm1942, %v6105, %v6107
      %v6109 = vrot.slane %v5477, 3
      %v6110 = vrot.slane %v5478, 3
      %v6111 = vsel %vm1942, %v6109, %v6110
      %v6112 = vrot.slane %v5479, 3
      %v6113 = vsel %vm1942, %v6110, %v6112
      %v6114 = vrot.slane %v5480, 3
      %v6115 = vrot.slane %v5481, 3
      %v6116 = vsel %vm1942, %v6114, %v6115
      %v6117 = vrot.slane %v5482, 3
      %v6118 = vsel %vm1942, %v6115, %v6117
      %v6119 = vrot.slane %v5483, 3
      %v6120 = vrot.slane %v5484, 3
      %v6121 = vsel %vm1942, %v6119, %v6120
      %v6122 = vrot.slane %v5485, 3
      %v6123 = vsel %vm1942, %v6120, %v6122
      %v6124 = vrot.slane %v5486, 3
      %v6125 = vrot.slane %v5487, 3
      %v6126 = vsel %vm1942, %v6124, %v6125
      %v6127 = vrot.slane %v5488, 3
      %v6128 = vsel %vm1942, %v6125, %v6127
      %v6129 = vrot.slane %v5489, 3
      %v6130 = vrot.slane %v5490, 3
      %v6131 = vsel %vm1942, %v6129, %v6130
      %v6132 = vrot.slane %v5491, 3
      %v6133 = vsel %vm1942, %v6130, %v6132
      %v6134 = vrot.slane %v5492, 3
      %v6135 = vrot.slane %v5493, 3
      %v6136 = vsel %vm1942, %v6134, %v6135
      %v6137 = vrot.slane %v5494, 3
      %v6138 = vsel %vm1942, %v6135, %v6137
      %v6139 = vrot.slane %v5495, 3
      %v6140 = vrot.slane %v5496, 3
      %v6141 = vsel %vm1942, %v6139, %v6140
      %v6142 = vrot.slane %v5497, 3
      %v6143 = vsel %vm1942, %v6140, %v6142
      %v6144 = vrot.slane %v5498, 3
      %v6145 = vrot.slane %v5499, 3
      %v6146 = vsel %vm1942, %v6144, %v6145
      %v6147 = vrot.slane %v5500, 3
      %v6148 = vsel %vm1942, %v6145, %v6147
      %v6149 = vrot.slane %v5501, 3
      %v6150 = vrot.slane %v5502, 3
      %v6151 = vsel %vm1942, %v6149, %v6150
      %v6152 = vrot.slane %v5503, 3
      %v6153 = vsel %vm1942, %v6150, %v6152
      %v6154 = vrot.slane %v5504, 3
      %v6155 = vrot.slane %v5505, 3
      %v6156 = vsel %vm1942, %v6154, %v6155
      %v6157 = vrot.slane %v5506, 3
      %v6158 = vsel %vm1942, %v6155, %v6157
      %v6159 = vrot.slane %v5507, 3
      %v6160 = vrot.slane %v5508, 3
      %v6161 = vsel %vm1942, %v6159, %v6160
      %v6162 = vrot.slane %v5509, 3
      %v6163 = vsel %vm1942, %v6160, %v6162
      %v6164 = vrot.slane %v5510, 3
      %v6165 = vrot.slane %v5511, 3
      %v6166 = vsel %vm1942, %v6164, %v6165
      %v6167 = vrot.slane %v5512, 3
      %v6168 = vsel %vm1942, %v6165, %v6167
      %v6169 = vrot.slane %v5513, 3
      %v6170 = vrot.slane %v5514, 3
      %v6171 = vsel %vm1942, %v6169, %v6170
      %v6172 = vrot.slane %v5515, 3
      %v6173 = vsel %vm1942, %v6170, %v6172
      %v6174 = vrot.slane %v5516, 3
      %v6175 = vrot.slane %v5517, 3
      %v6176 = vsel %vm1942, %v6174, %v6175
      %v6177 = vrot.slane %v5518, 3
      %v6178 = vsel %vm1942, %v6175, %v6177
      %6179 = vrot.lane.b32.xlu0 %v6071, 12
      %v6180 = vpop.permute.xlu0 %6179
      %6181 = vrot.lane.b32.xlu0 %v6073, 12
      %v6182 = vpop.permute.xlu0 %6181
      %6183 = vrot.lane.b32.xlu0 %v6076, 12
      %v6184 = vpop.permute.xlu0 %6183
      %6185 = vrot.lane.b32.xlu0 %v6078, 12
      %v6186 = vpop.permute.xlu0 %6185
      %6187 = vrot.lane.b32.xlu0 %v6081, 12
      %v6188 = vpop.permute.xlu0 %6187
      %6189 = vrot.lane.b32.xlu0 %v6083, 12
      %v6190 = vpop.permute.xlu0 %6189
      %6191 = vrot.lane.b32.xlu0 %v6086, 12
      %v6192 = vpop.permute.xlu0 %6191
      %6193 = vrot.lane.b32.xlu0 %v6088, 12
      %v6194 = vpop.permute.xlu0 %6193
      %6195 = vrot.lane.b32.xlu0 %v6091, 12
      %v6196 = vpop.permute.xlu0 %6195
      %6197 = vrot.lane.b32.xlu0 %v6093, 12
      %v6198 = vpop.permute.xlu0 %6197
      %6199 = vrot.lane.b32.xlu0 %v6096, 12
      %v6200 = vpop.permute.xlu0 %6199
      %6201 = vrot.lane.b32.xlu0 %v6098, 12
      %v6202 = vpop.permute.xlu0 %6201
      %6203 = vrot.lane.b32.xlu0 %v6101, 12
      %v6204 = vpop.permute.xlu0 %6203
      %6205 = vrot.lane.b32.xlu0 %v6103, 12
      %v6206 = vpop.permute.xlu0 %6205
      %6207 = vrot.lane.b32.xlu0 %v6106, 12
      %v6208 = vpop.permute.xlu0 %6207
      %6209 = vrot.lane.b32.xlu0 %v6108, 12
      %v6210 = vpop.permute.xlu0 %6209
      %6211 = vrot.lane.b32.xlu0 %v6111, 12
      %v6212 = vpop.permute.xlu0 %6211
      %6213 = vrot.lane.b32.xlu0 %v6113, 12
      %v6214 = vpop.permute.xlu0 %6213
      %6215 = vrot.lane.b32.xlu0 %v6116, 12
      %v6216 = vpop.permute.xlu0 %6215
      %6217 = vrot.lane.b32.xlu0 %v6118, 12
      %v6218 = vpop.permute.xlu0 %6217
      %6219 = vrot.lane.b32.xlu0 %v6121, 12
      %v6220 = vpop.permute.xlu0 %6219
      %6221 = vrot.lane.b32.xlu0 %v6123, 12
      %v6222 = vpop.permute.xlu0 %6221
      %6223 = vrot.lane.b32.xlu0 %v6126, 12
      %v6224 = vpop.permute.xlu0 %6223
      %6225 = vrot.lane.b32.xlu0 %v6128, 12
      %v6226 = vpop.permute.xlu0 %6225
      %6227 = vrot.lane.b32.xlu0 %v6131, 12
      %v6228 = vpop.permute.xlu0 %6227
      %6229 = vrot.lane.b32.xlu0 %v6133, 12
      %v6230 = vpop.permute.xlu0 %6229
      %6231 = vrot.lane.b32.xlu0 %v6136, 12
      %v6232 = vpop.permute.xlu0 %6231
      %6233 = vrot.lane.b32.xlu0 %v6138, 12
      %v6234 = vpop.permute.xlu0 %6233
      %6235 = vrot.lane.b32.xlu0 %v6141, 12
      %v6236 = vpop.permute.xlu0 %6235
      %6237 = vrot.lane.b32.xlu0 %v6143, 12
      %v6238 = vpop.permute.xlu0 %6237
      %6239 = vrot.lane.b32.xlu0 %v6146, 12
      %v6240 = vpop.permute.xlu0 %6239
      %6241 = vrot.lane.b32.xlu0 %v6148, 12
      %v6242 = vpop.permute.xlu0 %6241
      %6243 = vrot.lane.b32.xlu0 %v6151, 12
      %v6244 = vpop.permute.xlu0 %6243
      %6245 = vrot.lane.b32.xlu0 %v6153, 12
      %v6246 = vpop.permute.xlu0 %6245
      %6247 = vrot.lane.b32.xlu0 %v6156, 12
      %v6248 = vpop.permute.xlu0 %6247
      %6249 = vrot.lane.b32.xlu0 %v6158, 12
      %v6250 = vpop.permute.xlu0 %6249
      %6251 = vrot.lane.b32.xlu0 %v6161, 12
      %v6252 = vpop.permute.xlu0 %6251
      %6253 = vrot.lane.b32.xlu0 %v6163, 12
      %v6254 = vpop.permute.xlu0 %6253
      %6255 = vrot.lane.b32.xlu0 %v6166, 12
      %v6256 = vpop.permute.xlu0 %6255
      %6257 = vrot.lane.b32.xlu0 %v6168, 12
      %v6258 = vpop.permute.xlu0 %6257
      %6259 = vrot.lane.b32.xlu0 %v6171, 12
      %v6260 = vpop.permute.xlu0 %6259
      %6261 = vrot.lane.b32.xlu0 %v6173, 12
      %v6262 = vpop.permute.xlu0 %6261
      %6263 = vrot.lane.b32.xlu0 %v6176, 12
      %v6264 = vpop.permute.xlu0 %6263
      %6265 = vrot.lane.b32.xlu0 %v6178, 12
      %v6266 = vpop.permute.xlu0 %6265
      %v6311 = vrot.slane %v5453, 4
      %v6312 = vrot.slane %v5454, 4
      %v6313 = vsel %vm833, %v6311, %v6312
      %v6314 = vrot.slane %v5455, 4
      %v6315 = vsel %vm833, %v6312, %v6314
      %v6316 = vrot.slane %v5456, 4
      %v6317 = vrot.slane %v5457, 4
      %v6318 = vsel %vm833, %v6316, %v6317
      %v6319 = vrot.slane %v5458, 4
      %v6320 = vsel %vm833, %v6317, %v6319
      %v6321 = vrot.slane %v5459, 4
      %v6322 = vrot.slane %v5460, 4
      %v6323 = vsel %vm833, %v6321, %v6322
      %v6324 = vrot.slane %v5461, 4
      %v6325 = vsel %vm833, %v6322, %v6324
      %v6326 = vrot.slane %v5462, 4
      %v6327 = vrot.slane %v5463, 4
      %v6328 = vsel %vm833, %v6326, %v6327
      %v6329 = vrot.slane %v5464, 4
      %v6330 = vsel %vm833, %v6327, %v6329
      %v6331 = vrot.slane %v5465, 4
      %v6332 = vrot.slane %v5466, 4
      %v6333 = vsel %vm833, %v6331, %v6332
      %v6334 = vrot.slane %v5467, 4
      %v6335 = vsel %vm833, %v6332, %v6334
      %v6336 = vrot.slane %v5468, 4
      %v6337 = vrot.slane %v5469, 4
      %v6338 = vsel %vm833, %v6336, %v6337
      %v6339 = vrot.slane %v5470, 4
      %v6340 = vsel %vm833, %v6337, %v6339
      %v6341 = vrot.slane %v5471, 4
      %v6342 = vrot.slane %v5472, 4
      %v6343 = vsel %vm833, %v6341, %v6342
      %v6344 = vrot.slane %v5473, 4
      %v6345 = vsel %vm833, %v6342, %v6344
      %v6346 = vrot.slane %v5474, 4
      %v6347 = vrot.slane %v5475, 4
      %v6348 = vsel %vm833, %v6346, %v6347
      %v6349 = vrot.slane %v5476, 4
      %v6350 = vsel %vm833, %v6347, %v6349
      %v6351 = vrot.slane %v5477, 4
      %v6352 = vrot.slane %v5478, 4
      %v6353 = vsel %vm833, %v6351, %v6352
      %v6354 = vrot.slane %v5479, 4
      %v6355 = vsel %vm833, %v6352, %v6354
      %v6356 = vrot.slane %v5480, 4
      %v6357 = vrot.slane %v5481, 4
      %v6358 = vsel %vm833, %v6356, %v6357
      %v6359 = vrot.slane %v5482, 4
      %v6360 = vsel %vm833, %v6357, %v6359
      %v6361 = vrot.slane %v5483, 4
      %v6362 = vrot.slane %v5484, 4
      %v6363 = vsel %vm833, %v6361, %v6362
      %v6364 = vrot.slane %v5485, 4
      %v6365 = vsel %vm833, %v6362, %v6364
      %v6366 = vrot.slane %v5486, 4
      %v6367 = vrot.slane %v5487, 4
      %v6368 = vsel %vm833, %v6366, %v6367
      %v6369 = vrot.slane %v5488, 4
      %v6370 = vsel %vm833, %v6367, %v6369
      %v6371 = vrot.slane %v5489, 4
      %v6372 = vrot.slane %v5490, 4
      %v6373 = vsel %vm833, %v6371, %v6372
      %v6374 = vrot.slane %v5491, 4
      %v6375 = vsel %vm833, %v6372, %v6374
      %v6376 = vrot.slane %v5492, 4
      %v6377 = vrot.slane %v5493, 4
      %v6378 = vsel %vm833, %v6376, %v6377
      %v6379 = vrot.slane %v5494, 4
      %v6380 = vsel %vm833, %v6377, %v6379
      %v6381 = vrot.slane %v5495, 4
      %v6382 = vrot.slane %v5496, 4
      %v6383 = vsel %vm833, %v6381, %v6382
      %v6384 = vrot.slane %v5497, 4
      %v6385 = vsel %vm833, %v6382, %v6384
      %v6386 = vrot.slane %v5498, 4
      %v6387 = vrot.slane %v5499, 4
      %v6388 = vsel %vm833, %v6386, %v6387
      %v6389 = vrot.slane %v5500, 4
      %v6390 = vsel %vm833, %v6387, %v6389
      %v6391 = vrot.slane %v5501, 4
      %v6392 = vrot.slane %v5502, 4
      %v6393 = vsel %vm833, %v6391, %v6392
      %v6394 = vrot.slane %v5503, 4
      %v6395 = vsel %vm833, %v6392, %v6394
      %v6396 = vrot.slane %v5504, 4
      %v6397 = vrot.slane %v5505, 4
      %v6398 = vsel %vm833, %v6396, %v6397
      %v6399 = vrot.slane %v5506, 4
      %v6400 = vsel %vm833, %v6397, %v6399
      %v6401 = vrot.slane %v5507, 4
      %v6402 = vrot.slane %v5508, 4
      %v6403 = vsel %vm833, %v6401, %v6402
      %v6404 = vrot.slane %v5509, 4
      %v6405 = vsel %vm833, %v6402, %v6404
      %v6406 = vrot.slane %v5510, 4
      %v6407 = vrot.slane %v5511, 4
      %v6408 = vsel %vm833, %v6406, %v6407
      %v6409 = vrot.slane %v5512, 4
      %v6410 = vsel %vm833, %v6407, %v6409
      %v6411 = vrot.slane %v5513, 4
      %v6412 = vrot.slane %v5514, 4
      %v6413 = vsel %vm833, %v6411, %v6412
      %v6414 = vrot.slane %v5515, 4
      %v6415 = vsel %vm833, %v6412, %v6414
      %v6416 = vrot.slane %v5516, 4
      %v6417 = vrot.slane %v5517, 4
      %v6418 = vsel %vm833, %v6416, %v6417
      %v6419 = vrot.slane %v5518, 4
      %v6420 = vsel %vm833, %v6417, %v6419
      %6421 = vrot.lane.b32.xlu0 %v6313, 16
      %v6422 = vpop.permute.xlu0 %6421
      %6423 = vrot.lane.b32.xlu0 %v6315, 16
      %v6424 = vpop.permute.xlu0 %6423
      %6425 = vrot.lane.b32.xlu0 %v6318, 16
      %v6426 = vpop.permute.xlu0 %6425
      %6427 = vrot.lane.b32.xlu0 %v6320, 16
      %v6428 = vpop.permute.xlu0 %6427
      %6429 = vrot.lane.b32.xlu0 %v6323, 16
      %v6430 = vpop.permute.xlu0 %6429
      %6431 = vrot.lane.b32.xlu0 %v6325, 16
      %v6432 = vpop.permute.xlu0 %6431
      %6433 = vrot.lane.b32.xlu0 %v6328, 16
      %v6434 = vpop.permute.xlu0 %6433
      %6435 = vrot.lane.b32.xlu0 %v6330, 16
      %v6436 = vpop.permute.xlu0 %6435
      %6437 = vrot.lane.b32.xlu0 %v6333, 16
      %v6438 = vpop.permute.xlu0 %6437
      %6439 = vrot.lane.b32.xlu0 %v6335, 16
      %v6440 = vpop.permute.xlu0 %6439
      %6441 = vrot.lane.b32.xlu0 %v6338, 16
      %v6442 = vpop.permute.xlu0 %6441
      %6443 = vrot.lane.b32.xlu0 %v6340, 16
      %v6444 = vpop.permute.xlu0 %6443
      %6445 = vrot.lane.b32.xlu0 %v6343, 16
      %v6446 = vpop.permute.xlu0 %6445
      %6447 = vrot.lane.b32.xlu0 %v6345, 16
      %v6448 = vpop.permute.xlu0 %6447
      %6449 = vrot.lane.b32.xlu0 %v6348, 16
      %v6450 = vpop.permute.xlu0 %6449
      %6451 = vrot.lane.b32.xlu0 %v6350, 16
      %v6452 = vpop.permute.xlu0 %6451
      %6453 = vrot.lane.b32.xlu0 %v6353, 16
      %v6454 = vpop.permute.xlu0 %6453
      %6455 = vrot.lane.b32.xlu0 %v6355, 16
      %v6456 = vpop.permute.xlu0 %6455
      %6457 = vrot.lane.b32.xlu0 %v6358, 16
      %v6458 = vpop.permute.xlu0 %6457
      %6459 = vrot.lane.b32.xlu0 %v6360, 16
      %v6460 = vpop.permute.xlu0 %6459
      %6461 = vrot.lane.b32.xlu0 %v6363, 16
      %v6462 = vpop.permute.xlu0 %6461
      %6463 = vrot.lane.b32.xlu0 %v6365, 16
      %v6464 = vpop.permute.xlu0 %6463
      %6465 = vrot.lane.b32.xlu0 %v6368, 16
      %v6466 = vpop.permute.xlu0 %6465
      %6467 = vrot.lane.b32.xlu0 %v6370, 16
      %v6468 = vpop.permute.xlu0 %6467
      %6469 = vrot.lane.b32.xlu0 %v6373, 16
      %v6470 = vpop.permute.xlu0 %6469
      %6471 = vrot.lane.b32.xlu0 %v6375, 16
      %v6472 = vpop.permute.xlu0 %6471
      %6473 = vrot.lane.b32.xlu0 %v6378, 16
      %v6474 = vpop.permute.xlu0 %6473
      %6475 = vrot.lane.b32.xlu0 %v6380, 16
      %v6476 = vpop.permute.xlu0 %6475
      %6477 = vrot.lane.b32.xlu0 %v6383, 16
      %v6478 = vpop.permute.xlu0 %6477
      %6479 = vrot.lane.b32.xlu0 %v6385, 16
      %v6480 = vpop.permute.xlu0 %6479
      %6481 = vrot.lane.b32.xlu0 %v6388, 16
      %v6482 = vpop.permute.xlu0 %6481
      %6483 = vrot.lane.b32.xlu0 %v6390, 16
      %v6484 = vpop.permute.xlu0 %6483
      %6485 = vrot.lane.b32.xlu0 %v6393, 16
      %v6486 = vpop.permute.xlu0 %6485
      %6487 = vrot.lane.b32.xlu0 %v6395, 16
      %v6488 = vpop.permute.xlu0 %6487
      %6489 = vrot.lane.b32.xlu0 %v6398, 16
      %v6490 = vpop.permute.xlu0 %6489
      %6491 = vrot.lane.b32.xlu0 %v6400, 16
      %v6492 = vpop.permute.xlu0 %6491
      %6493 = vrot.lane.b32.xlu0 %v6403, 16
      %v6494 = vpop.permute.xlu0 %6493
      %6495 = vrot.lane.b32.xlu0 %v6405, 16
      %v6496 = vpop.permute.xlu0 %6495
      %6497 = vrot.lane.b32.xlu0 %v6408, 16
      %v6498 = vpop.permute.xlu0 %6497
      %6499 = vrot.lane.b32.xlu0 %v6410, 16
      %v6500 = vpop.permute.xlu0 %6499
      %6501 = vrot.lane.b32.xlu0 %v6413, 16
      %v6502 = vpop.permute.xlu0 %6501
      %6503 = vrot.lane.b32.xlu0 %v6415, 16
      %v6504 = vpop.permute.xlu0 %6503
      %6505 = vrot.lane.b32.xlu0 %v6418, 16
      %v6506 = vpop.permute.xlu0 %6505
      %6507 = vrot.lane.b32.xlu0 %v6420, 16
      %v6508 = vpop.permute.xlu0 %6507
      %v6553 = vrot.slane %v5453, 5
      %v6554 = vrot.slane %v5454, 5
      %v6555 = vsel %vm1146, %v6553, %v6554
      %v6556 = vrot.slane %v5455, 5
      %v6557 = vsel %vm1146, %v6554, %v6556
      %v6558 = vrot.slane %v5456, 5
      %v6559 = vrot.slane %v5457, 5
      %v6560 = vsel %vm1146, %v6558, %v6559
      %v6561 = vrot.slane %v5458, 5
      %v6562 = vsel %vm1146, %v6559, %v6561
      %v6563 = vrot.slane %v5459, 5
      %v6564 = vrot.slane %v5460, 5
      %v6565 = vsel %vm1146, %v6563, %v6564
      %v6566 = vrot.slane %v5461, 5
      %v6567 = vsel %vm1146, %v6564, %v6566
      %v6568 = vrot.slane %v5462, 5
      %v6569 = vrot.slane %v5463, 5
      %v6570 = vsel %vm1146, %v6568, %v6569
      %v6571 = vrot.slane %v5464, 5
      %v6572 = vsel %vm1146, %v6569, %v6571
      %v6573 = vrot.slane %v5465, 5
      %v6574 = vrot.slane %v5466, 5
      %v6575 = vsel %vm1146, %v6573, %v6574
      %v6576 = vrot.slane %v5467, 5
      %v6577 = vsel %vm1146, %v6574, %v6576
      %v6578 = vrot.slane %v5468, 5
      %v6579 = vrot.slane %v5469, 5
      %v6580 = vsel %vm1146, %v6578, %v6579
      %v6581 = vrot.slane %v5470, 5
      %v6582 = vsel %vm1146, %v6579, %v6581
      %v6583 = vrot.slane %v5471, 5
      %v6584 = vrot.slane %v5472, 5
      %v6585 = vsel %vm1146, %v6583, %v6584
      %v6586 = vrot.slane %v5473, 5
      %v6587 = vsel %vm1146, %v6584, %v6586
      %v6588 = vrot.slane %v5474, 5
      %v6589 = vrot.slane %v5475, 5
      %v6590 = vsel %vm1146, %v6588, %v6589
      %v6591 = vrot.slane %v5476, 5
      %v6592 = vsel %vm1146, %v6589, %v6591
      %v6593 = vrot.slane %v5477, 5
      %v6594 = vrot.slane %v5478, 5
      %v6595 = vsel %vm1146, %v6593, %v6594
      %v6596 = vrot.slane %v5479, 5
      %v6597 = vsel %vm1146, %v6594, %v6596
      %v6598 = vrot.slane %v5480, 5
      %v6599 = vrot.slane %v5481, 5
      %v6600 = vsel %vm1146, %v6598, %v6599
      %v6601 = vrot.slane %v5482, 5
      %v6602 = vsel %vm1146, %v6599, %v6601
      %v6603 = vrot.slane %v5483, 5
      %v6604 = vrot.slane %v5484, 5
      %v6605 = vsel %vm1146, %v6603, %v6604
      %v6606 = vrot.slane %v5485, 5
      %v6607 = vsel %vm1146, %v6604, %v6606
      %v6608 = vrot.slane %v5486, 5
      %v6609 = vrot.slane %v5487, 5
      %v6610 = vsel %vm1146, %v6608, %v6609
      %v6611 = vrot.slane %v5488, 5
      %v6612 = vsel %vm1146, %v6609, %v6611
      %v6613 = vrot.slane %v5489, 5
      %v6614 = vrot.slane %v5490, 5
      %v6615 = vsel %vm1146, %v6613, %v6614
      %v6616 = vrot.slane %v5491, 5
      %v6617 = vsel %vm1146, %v6614, %v6616
      %v6618 = vrot.slane %v5492, 5
      %v6619 = vrot.slane %v5493, 5
      %v6620 = vsel %vm1146, %v6618, %v6619
      %v6621 = vrot.slane %v5494, 5
      %v6622 = vsel %vm1146, %v6619, %v6621
      %v6623 = vrot.slane %v5495, 5
      %v6624 = vrot.slane %v5496, 5
      %v6625 = vsel %vm1146, %v6623, %v6624
      %v6626 = vrot.slane %v5497, 5
      %v6627 = vsel %vm1146, %v6624, %v6626
      %v6628 = vrot.slane %v5498, 5
      %v6629 = vrot.slane %v5499, 5
      %v6630 = vsel %vm1146, %v6628, %v6629
      %v6631 = vrot.slane %v5500, 5
      %v6632 = vsel %vm1146, %v6629, %v6631
      %v6633 = vrot.slane %v5501, 5
      %v6634 = vrot.slane %v5502, 5
      %v6635 = vsel %vm1146, %v6633, %v6634
      %v6636 = vrot.slane %v5503, 5
      %v6637 = vsel %vm1146, %v6634, %v6636
      %v6638 = vrot.slane %v5504, 5
      %v6639 = vrot.slane %v5505, 5
      %v6640 = vsel %vm1146, %v6638, %v6639
      %v6641 = vrot.slane %v5506, 5
      %v6642 = vsel %vm1146, %v6639, %v6641
      %v6643 = vrot.slane %v5507, 5
      %v6644 = vrot.slane %v5508, 5
      %v6645 = vsel %vm1146, %v6643, %v6644
      %v6646 = vrot.slane %v5509, 5
      %v6647 = vsel %vm1146, %v6644, %v6646
      %v6648 = vrot.slane %v5510, 5
      %v6649 = vrot.slane %v5511, 5
      %v6650 = vsel %vm1146, %v6648, %v6649
      %v6651 = vrot.slane %v5512, 5
      %v6652 = vsel %vm1146, %v6649, %v6651
      %v6653 = vrot.slane %v5513, 5
      %v6654 = vrot.slane %v5514, 5
      %v6655 = vsel %vm1146, %v6653, %v6654
      %v6656 = vrot.slane %v5515, 5
      %v6657 = vsel %vm1146, %v6654, %v6656
      %v6658 = vrot.slane %v5516, 5
      %v6659 = vrot.slane %v5517, 5
      %v6660 = vsel %vm1146, %v6658, %v6659
      %v6661 = vrot.slane %v5518, 5
      %v6662 = vsel %vm1146, %v6659, %v6661
      %6663 = vrot.lane.b32.xlu0 %v6555, 20
      %v6664 = vpop.permute.xlu0 %6663
      %6665 = vrot.lane.b32.xlu0 %v6557, 20
      %v6666 = vpop.permute.xlu0 %6665
      %6667 = vrot.lane.b32.xlu0 %v6560, 20
      %v6668 = vpop.permute.xlu0 %6667
      %6669 = vrot.lane.b32.xlu0 %v6562, 20
      %v6670 = vpop.permute.xlu0 %6669
      %6671 = vrot.lane.b32.xlu0 %v6565, 20
      %v6672 = vpop.permute.xlu0 %6671
      %6673 = vrot.lane.b32.xlu0 %v6567, 20
      %v6674 = vpop.permute.xlu0 %6673
      %6675 = vrot.lane.b32.xlu0 %v6570, 20
      %v6676 = vpop.permute.xlu0 %6675
      %6677 = vrot.lane.b32.xlu0 %v6572, 20
      %v6678 = vpop.permute.xlu0 %6677
      %6679 = vrot.lane.b32.xlu0 %v6575, 20
      %v6680 = vpop.permute.xlu0 %6679
      %6681 = vrot.lane.b32.xlu0 %v6577, 20
      %v6682 = vpop.permute.xlu0 %6681
      %6683 = vrot.lane.b32.xlu0 %v6580, 20
      %v6684 = vpop.permute.xlu0 %6683
      %6685 = vrot.lane.b32.xlu0 %v6582, 20
      %v6686 = vpop.permute.xlu0 %6685
      %6687 = vrot.lane.b32.xlu0 %v6585, 20
      %v6688 = vpop.permute.xlu0 %6687
      %6689 = vrot.lane.b32.xlu0 %v6587, 20
      %v6690 = vpop.permute.xlu0 %6689
      %6691 = vrot.lane.b32.xlu0 %v6590, 20
      %v6692 = vpop.permute.xlu0 %6691
      %6693 = vrot.lane.b32.xlu0 %v6592, 20
      %v6694 = vpop.permute.xlu0 %6693
      %6695 = vrot.lane.b32.xlu0 %v6595, 20
      %v6696 = vpop.permute.xlu0 %6695
      %6697 = vrot.lane.b32.xlu0 %v6597, 20
      %v6698 = vpop.permute.xlu0 %6697
      %6699 = vrot.lane.b32.xlu0 %v6600, 20
      %v6700 = vpop.permute.xlu0 %6699
      %6701 = vrot.lane.b32.xlu0 %v6602, 20
      %v6702 = vpop.permute.xlu0 %6701
      %6703 = vrot.lane.b32.xlu0 %v6605, 20
      %v6704 = vpop.permute.xlu0 %6703
      %6705 = vrot.lane.b32.xlu0 %v6607, 20
      %v6706 = vpop.permute.xlu0 %6705
      %6707 = vrot.lane.b32.xlu0 %v6610, 20
      %v6708 = vpop.permute.xlu0 %6707
      %6709 = vrot.lane.b32.xlu0 %v6612, 20
      %v6710 = vpop.permute.xlu0 %6709
      %6711 = vrot.lane.b32.xlu0 %v6615, 20
      %v6712 = vpop.permute.xlu0 %6711
      %6713 = vrot.lane.b32.xlu0 %v6617, 20
      %v6714 = vpop.permute.xlu0 %6713
      %6715 = vrot.lane.b32.xlu0 %v6620, 20
      %v6716 = vpop.permute.xlu0 %6715
      %6717 = vrot.lane.b32.xlu0 %v6622, 20
      %v6718 = vpop.permute.xlu0 %6717
      %6719 = vrot.lane.b32.xlu0 %v6625, 20
      %v6720 = vpop.permute.xlu0 %6719
      %6721 = vrot.lane.b32.xlu0 %v6627, 20
      %v6722 = vpop.permute.xlu0 %6721
      %6723 = vrot.lane.b32.xlu0 %v6630, 20
      %v6724 = vpop.permute.xlu0 %6723
      %6725 = vrot.lane.b32.xlu0 %v6632, 20
      %v6726 = vpop.permute.xlu0 %6725
      %6727 = vrot.lane.b32.xlu0 %v6635, 20
      %v6728 = vpop.permute.xlu0 %6727
      %6729 = vrot.lane.b32.xlu0 %v6637, 20
      %v6730 = vpop.permute.xlu0 %6729
      %6731 = vrot.lane.b32.xlu0 %v6640, 20
      %v6732 = vpop.permute.xlu0 %6731
      %6733 = vrot.lane.b32.xlu0 %v6642, 20
      %v6734 = vpop.permute.xlu0 %6733
      %6735 = vrot.lane.b32.xlu0 %v6645, 20
      %v6736 = vpop.permute.xlu0 %6735
      %6737 = vrot.lane.b32.xlu0 %v6647, 20
      %v6738 = vpop.permute.xlu0 %6737
      %6739 = vrot.lane.b32.xlu0 %v6650, 20
      %v6740 = vpop.permute.xlu0 %6739
      %6741 = vrot.lane.b32.xlu0 %v6652, 20
      %v6742 = vpop.permute.xlu0 %6741
      %6743 = vrot.lane.b32.xlu0 %v6655, 20
      %v6744 = vpop.permute.xlu0 %6743
      %6745 = vrot.lane.b32.xlu0 %v6657, 20
      %v6746 = vpop.permute.xlu0 %6745
      %6747 = vrot.lane.b32.xlu0 %v6660, 20
      %v6748 = vpop.permute.xlu0 %6747
      %6749 = vrot.lane.b32.xlu0 %v6662, 20
      %v6750 = vpop.permute.xlu0 %6749
      %v6795 = vrot.slane %v5453, 6
      %v6796 = vrot.slane %v5454, 6
      %v6797 = vsel %vm2669, %v6795, %v6796
      %v6798 = vrot.slane %v5455, 6
      %v6799 = vsel %vm2669, %v6796, %v6798
      %v6800 = vrot.slane %v5456, 6
      %v6801 = vrot.slane %v5457, 6
      %v6802 = vsel %vm2669, %v6800, %v6801
      %v6803 = vrot.slane %v5458, 6
      %v6804 = vsel %vm2669, %v6801, %v6803
      %v6805 = vrot.slane %v5459, 6
      %v6806 = vrot.slane %v5460, 6
      %v6807 = vsel %vm2669, %v6805, %v6806
      %v6808 = vrot.slane %v5461, 6
      %v6809 = vsel %vm2669, %v6806, %v6808
      %v6810 = vrot.slane %v5462, 6
      %v6811 = vrot.slane %v5463, 6
      %v6812 = vsel %vm2669, %v6810, %v6811
      %v6813 = vrot.slane %v5464, 6
      %v6814 = vsel %vm2669, %v6811, %v6813
      %v6815 = vrot.slane %v5465, 6
      %v6816 = vrot.slane %v5466, 6
      %v6817 = vsel %vm2669, %v6815, %v6816
      %v6818 = vrot.slane %v5467, 6
      %v6819 = vsel %vm2669, %v6816, %v6818
      %v6820 = vrot.slane %v5468, 6
      %v6821 = vrot.slane %v5469, 6
      %v6822 = vsel %vm2669, %v6820, %v6821
      %v6823 = vrot.slane %v5470, 6
      %v6824 = vsel %vm2669, %v6821, %v6823
      %v6825 = vrot.slane %v5471, 6
      %v6826 = vrot.slane %v5472, 6
      %v6827 = vsel %vm2669, %v6825, %v6826
      %v6828 = vrot.slane %v5473, 6
      %v6829 = vsel %vm2669, %v6826, %v6828
      %v6830 = vrot.slane %v5474, 6
      %v6831 = vrot.slane %v5475, 6
      %v6832 = vsel %vm2669, %v6830, %v6831
      %v6833 = vrot.slane %v5476, 6
      %v6834 = vsel %vm2669, %v6831, %v6833
      %v6835 = vrot.slane %v5477, 6
      %v6836 = vrot.slane %v5478, 6
      %v6837 = vsel %vm2669, %v6835, %v6836
      %v6838 = vrot.slane %v5479, 6
      %v6839 = vsel %vm2669, %v6836, %v6838
      %v6840 = vrot.slane %v5480, 6
      %v6841 = vrot.slane %v5481, 6
      %v6842 = vsel %vm2669, %v6840, %v6841
      %v6843 = vrot.slane %v5482, 6
      %v6844 = vsel %vm2669, %v6841, %v6843
      %v6845 = vrot.slane %v5483, 6
      %v6846 = vrot.slane %v5484, 6
      %v6847 = vsel %vm2669, %v6845, %v6846
      %v6848 = vrot.slane %v5485, 6
      %v6849 = vsel %vm2669, %v6846, %v6848
      %v6850 = vrot.slane %v5486, 6
      %v6851 = vrot.slane %v5487, 6
      %v6852 = vsel %vm2669, %v6850, %v6851
      %v6853 = vrot.slane %v5488, 6
      %v6854 = vsel %vm2669, %v6851, %v6853
      %v6855 = vrot.slane %v5489, 6
      %v6856 = vrot.slane %v5490, 6
      %v6857 = vsel %vm2669, %v6855, %v6856
      %v6858 = vrot.slane %v5491, 6
      %v6859 = vsel %vm2669, %v6856, %v6858
      %v6860 = vrot.slane %v5492, 6
      %v6861 = vrot.slane %v5493, 6
      %v6862 = vsel %vm2669, %v6860, %v6861
      %v6863 = vrot.slane %v5494, 6
      %v6864 = vsel %vm2669, %v6861, %v6863
      %v6865 = vrot.slane %v5495, 6
      %v6866 = vrot.slane %v5496, 6
      %v6867 = vsel %vm2669, %v6865, %v6866
      %v6868 = vrot.slane %v5497, 6
      %v6869 = vsel %vm2669, %v6866, %v6868
      %v6870 = vrot.slane %v5498, 6
      %v6871 = vrot.slane %v5499, 6
      %v6872 = vsel %vm2669, %v6870, %v6871
      %v6873 = vrot.slane %v5500, 6
      %v6874 = vsel %vm2669, %v6871, %v6873
      %v6875 = vrot.slane %v5501, 6
      %v6876 = vrot.slane %v5502, 6
      %v6877 = vsel %vm2669, %v6875, %v6876
      %v6878 = vrot.slane %v5503, 6
      %v6879 = vsel %vm2669, %v6876, %v6878
      %v6880 = vrot.slane %v5504, 6
      %v6881 = vrot.slane %v5505, 6
      %v6882 = vsel %vm2669, %v6880, %v6881
      %v6883 = vrot.slane %v5506, 6
      %v6884 = vsel %vm2669, %v6881, %v6883
      %v6885 = vrot.slane %v5507, 6
      %v6886 = vrot.slane %v5508, 6
      %v6887 = vsel %vm2669, %v6885, %v6886
      %v6888 = vrot.slane %v5509, 6
      %v6889 = vsel %vm2669, %v6886, %v6888
      %v6890 = vrot.slane %v5510, 6
      %v6891 = vrot.slane %v5511, 6
      %v6892 = vsel %vm2669, %v6890, %v6891
      %v6893 = vrot.slane %v5512, 6
      %v6894 = vsel %vm2669, %v6891, %v6893
      %v6895 = vrot.slane %v5513, 6
      %v6896 = vrot.slane %v5514, 6
      %v6897 = vsel %vm2669, %v6895, %v6896
      %v6898 = vrot.slane %v5515, 6
      %v6899 = vsel %vm2669, %v6896, %v6898
      %v6900 = vrot.slane %v5516, 6
      %v6901 = vrot.slane %v5517, 6
      %v6902 = vsel %vm2669, %v6900, %v6901
      %v6903 = vrot.slane %v5518, 6
      %v6904 = vsel %vm2669, %v6901, %v6903
      %6905 = vrot.lane.b32.xlu0 %v6797, 24
      %v6906 = vpop.permute.xlu0 %6905
      %6907 = vrot.lane.b32.xlu0 %v6799, 24
      %v6908 = vpop.permute.xlu0 %6907
      %6909 = vrot.lane.b32.xlu0 %v6802, 24
      %v6910 = vpop.permute.xlu0 %6909
      %6911 = vrot.lane.b32.xlu0 %v6804, 24
      %v6912 = vpop.permute.xlu0 %6911
      %6913 = vrot.lane.b32.xlu0 %v6807, 24
      %v6914 = vpop.permute.xlu0 %6913
      %6915 = vrot.lane.b32.xlu0 %v6809, 24
      %v6916 = vpop.permute.xlu0 %6915
      %6917 = vrot.lane.b32.xlu0 %v6812, 24
      %v6918 = vpop.permute.xlu0 %6917
      %6919 = vrot.lane.b32.xlu0 %v6814, 24
      %v6920 = vpop.permute.xlu0 %6919
      %6921 = vrot.lane.b32.xlu0 %v6817, 24
      %v6922 = vpop.permute.xlu0 %6921
      %6923 = vrot.lane.b32.xlu0 %v6819, 24
      %v6924 = vpop.permute.xlu0 %6923
      %6925 = vrot.lane.b32.xlu0 %v6822, 24
      %v6926 = vpop.permute.xlu0 %6925
      %6927 = vrot.lane.b32.xlu0 %v6824, 24
      %v6928 = vpop.permute.xlu0 %6927
      %6929 = vrot.lane.b32.xlu0 %v6827, 24
      %v6930 = vpop.permute.xlu0 %6929
      %6931 = vrot.lane.b32.xlu0 %v6829, 24
      %v6932 = vpop.permute.xlu0 %6931
      %6933 = vrot.lane.b32.xlu0 %v6832, 24
      %v6934 = vpop.permute.xlu0 %6933
      %6935 = vrot.lane.b32.xlu0 %v6834, 24
      %v6936 = vpop.permute.xlu0 %6935
      %6937 = vrot.lane.b32.xlu0 %v6837, 24
      %v6938 = vpop.permute.xlu0 %6937
      %6939 = vrot.lane.b32.xlu0 %v6839, 24
      %v6940 = vpop.permute.xlu0 %6939
      %6941 = vrot.lane.b32.xlu0 %v6842, 24
      %v6942 = vpop.permute.xlu0 %6941
      %6943 = vrot.lane.b32.xlu0 %v6844, 24
      %v6944 = vpop.permute.xlu0 %6943
      %6945 = vrot.lane.b32.xlu0 %v6847, 24
      %v6946 = vpop.permute.xlu0 %6945
      %6947 = vrot.lane.b32.xlu0 %v6849, 24
      %v6948 = vpop.permute.xlu0 %6947
      %6949 = vrot.lane.b32.xlu0 %v6852, 24
      %v6950 = vpop.permute.xlu0 %6949
      %6951 = vrot.lane.b32.xlu0 %v6854, 24
      %v6952 = vpop.permute.xlu0 %6951
      %6953 = vrot.lane.b32.xlu0 %v6857, 24
      %v6954 = vpop.permute.xlu0 %6953
      %6955 = vrot.lane.b32.xlu0 %v6859, 24
      %v6956 = vpop.permute.xlu0 %6955
      %6957 = vrot.lane.b32.xlu0 %v6862, 24
      %v6958 = vpop.permute.xlu0 %6957
      %6959 = vrot.lane.b32.xlu0 %v6864, 24
      %v6960 = vpop.permute.xlu0 %6959
      %6961 = vrot.lane.b32.xlu0 %v6867, 24
      %v6962 = vpop.permute.xlu0 %6961
      %6963 = vrot.lane.b32.xlu0 %v6869, 24
      %v6964 = vpop.permute.xlu0 %6963
      %6965 = vrot.lane.b32.xlu0 %v6872, 24
      %v6966 = vpop.permute.xlu0 %6965
      %6967 = vrot.lane.b32.xlu0 %v6874, 24
      %v6968 = vpop.permute.xlu0 %6967
      %6969 = vrot.lane.b32.xlu0 %v6877, 24
      %v6970 = vpop.permute.xlu0 %6969
      %6971 = vrot.lane.b32.xlu0 %v6879, 24
      %v6972 = vpop.permute.xlu0 %6971
      %6973 = vrot.lane.b32.xlu0 %v6882, 24
      %v6974 = vpop.permute.xlu0 %6973
      %6975 = vrot.lane.b32.xlu0 %v6884, 24
      %v6976 = vpop.permute.xlu0 %6975
      %6977 = vrot.lane.b32.xlu0 %v6887, 24
      %v6978 = vpop.permute.xlu0 %6977
      %6979 = vrot.lane.b32.xlu0 %v6889, 24
      %v6980 = vpop.permute.xlu0 %6979
      %6981 = vrot.lane.b32.xlu0 %v6892, 24
      %v6982 = vpop.permute.xlu0 %6981
      %6983 = vrot.lane.b32.xlu0 %v6894, 24
      %v6984 = vpop.permute.xlu0 %6983
      %6985 = vrot.lane.b32.xlu0 %v6897, 24
      %v6986 = vpop.permute.xlu0 %6985
      %6987 = vrot.lane.b32.xlu0 %v6899, 24
      %v6988 = vpop.permute.xlu0 %6987
      %6989 = vrot.lane.b32.xlu0 %v6902, 24
      %v6990 = vpop.permute.xlu0 %6989
      %6991 = vrot.lane.b32.xlu0 %v6904, 24
      %v6992 = vpop.permute.xlu0 %6991
      %v7037 = vsel %vm736, %v5453, %v5696
      %v7038 = vsel %vm736, %v5454, %v5698
      %v7039 = vsel %vm736, %v5456, %v5700
      %v7040 = vsel %vm736, %v5457, %v5702
      %v7041 = vsel %vm736, %v5459, %v5704
      %v7042 = vsel %vm736, %v5460, %v5706
      %v7043 = vsel %vm736, %v5462, %v5708
      %v7044 = vsel %vm736, %v5463, %v5710
      %v7045 = vsel %vm736, %v5465, %v5712
      %v7046 = vsel %vm736, %v5466, %v5714
      %v7047 = vsel %vm736, %v5468, %v5716
      %v7048 = vsel %vm736, %v5469, %v5718
      %v7049 = vsel %vm736, %v5471, %v5720
      %v7050 = vsel %vm736, %v5472, %v5722
      %v7051 = vsel %vm736, %v5474, %v5724
      %v7052 = vsel %vm736, %v5475, %v5726
      %v7053 = vsel %vm736, %v5477, %v5728
      %v7054 = vsel %vm736, %v5478, %v5730
      %v7055 = vsel %vm736, %v5480, %v5732
      %v7056 = vsel %vm736, %v5481, %v5734
      %v7057 = vsel %vm736, %v5483, %v5736
      %v7058 = vsel %vm736, %v5484, %v5738
      %v7059 = vsel %vm736, %v5486, %v5740
      %v7060 = vsel %vm736, %v5487, %v5742
      %v7061 = vsel %vm736, %v5489, %v5744
      %v7062 = vsel %vm736, %v5490, %v5746
      %v7063 = vsel %vm736, %v5492, %v5748
      %v7064 = vsel %vm736, %v5493, %v5750
      %v7065 = vsel %vm736, %v5495, %v5752
      %v7066 = vsel %vm736, %v5496, %v5754
      %v7067 = vsel %vm736, %v5498, %v5756
      %v7068 = vsel %vm736, %v5499, %v5758
      %v7069 = vsel %vm736, %v5501, %v5760
      %v7070 = vsel %vm736, %v5502, %v5762
      %v7071 = vsel %vm736, %v5504, %v5764
      %v7072 = vsel %vm736, %v5505, %v5766
      %v7073 = vsel %vm736, %v5507, %v5768
      %v7074 = vsel %vm736, %v5508, %v5770
      %v7075 = vsel %vm736, %v5510, %v5772
      %v7076 = vsel %vm736, %v5511, %v5774
      %v7077 = vsel %vm736, %v5513, %v5776
      %v7078 = vsel %vm736, %v5514, %v5778
      %v7079 = vsel %vm736, %v5516, %v5780
      %v7080 = vsel %vm736, %v5517, %v5782
      %vm7081 = vcmask 64512
      %v7082 = vsel %vm7081, %v7037, %v5938
      %v7083 = vsel %vm7081, %v7038, %v5940
      %v7084 = vsel %vm7081, %v7039, %v5942
      %v7085 = vsel %vm7081, %v7040, %v5944
      %v7086 = vsel %vm7081, %v7041, %v5946
      %v7087 = vsel %vm7081, %v7042, %v5948
      %v7088 = vsel %vm7081, %v7043, %v5950
      %v7089 = vsel %vm7081, %v7044, %v5952
      %v7090 = vsel %vm7081, %v7045, %v5954
      %v7091 = vsel %vm7081, %v7046, %v5956
      %v7092 = vsel %vm7081, %v7047, %v5958
      %v7093 = vsel %vm7081, %v7048, %v5960
      %v7094 = vsel %vm7081, %v7049, %v5962
      %v7095 = vsel %vm7081, %v7050, %v5964
      %v7096 = vsel %vm7081, %v7051, %v5966
      %v7097 = vsel %vm7081, %v7052, %v5968
      %v7098 = vsel %vm7081, %v7053, %v5970
      %v7099 = vsel %vm7081, %v7054, %v5972
      %v7100 = vsel %vm7081, %v7055, %v5974
      %v7101 = vsel %vm7081, %v7056, %v5976
      %v7102 = vsel %vm7081, %v7057, %v5978
      %v7103 = vsel %vm7081, %v7058, %v5980
      %v7104 = vsel %vm7081, %v7059, %v5982
      %v7105 = vsel %vm7081, %v7060, %v5984
      %v7106 = vsel %vm7081, %v7061, %v5986
      %v7107 = vsel %vm7081, %v7062, %v5988
      %v7108 = vsel %vm7081, %v7063, %v5990
      %v7109 = vsel %vm7081, %v7064, %v5992
      %v7110 = vsel %vm7081, %v7065, %v5994
      %v7111 = vsel %vm7081, %v7066, %v5996
      %v7112 = vsel %vm7081, %v7067, %v5998
      %v7113 = vsel %vm7081, %v7068, %v6000
      %v7114 = vsel %vm7081, %v7069, %v6002
      %v7115 = vsel %vm7081, %v7070, %v6004
      %v7116 = vsel %vm7081, %v7071, %v6006
      %v7117 = vsel %vm7081, %v7072, %v6008
      %v7118 = vsel %vm7081, %v7073, %v6010
      %v7119 = vsel %vm7081, %v7074, %v6012
      %v7120 = vsel %vm7081, %v7075, %v6014
      %v7121 = vsel %vm7081, %v7076, %v6016
      %v7122 = vsel %vm7081, %v7077, %v6018
      %v7123 = vsel %vm7081, %v7078, %v6020
      %v7124 = vsel %vm7081, %v7079, %v6022
      %v7125 = vsel %vm7081, %v7080, %v6024
      %vm7126 = vcmask 97280
      %v7127 = vsel %vm7126, %v7082, %v6180
      %v7128 = vsel %vm7126, %v7083, %v6182
      %v7129 = vsel %vm7126, %v7084, %v6184
      %v7130 = vsel %vm7126, %v7085, %v6186
      %v7131 = vsel %vm7126, %v7086, %v6188
      %v7132 = vsel %vm7126, %v7087, %v6190
      %v7133 = vsel %vm7126, %v7088, %v6192
      %v7134 = vsel %vm7126, %v7089, %v6194
      %v7135 = vsel %vm7126, %v7090, %v6196
      %v7136 = vsel %vm7126, %v7091, %v6198
      %v7137 = vsel %vm7126, %v7092, %v6200
      %v7138 = vsel %vm7126, %v7093, %v6202
      %v7139 = vsel %vm7126, %v7094, %v6204
      %v7140 = vsel %vm7126, %v7095, %v6206
      %v7141 = vsel %vm7126, %v7096, %v6208
      %v7142 = vsel %vm7126, %v7097, %v6210
      %v7143 = vsel %vm7126, %v7098, %v6212
      %v7144 = vsel %vm7126, %v7099, %v6214
      %v7145 = vsel %vm7126, %v7100, %v6216
      %v7146 = vsel %vm7126, %v7101, %v6218
      %v7147 = vsel %vm7126, %v7102, %v6220
      %v7148 = vsel %vm7126, %v7103, %v6222
      %v7149 = vsel %vm7126, %v7104, %v6224
      %v7150 = vsel %vm7126, %v7105, %v6226
      %v7151 = vsel %vm7126, %v7106, %v6228
      %v7152 = vsel %vm7126, %v7107, %v6230
      %v7153 = vsel %vm7126, %v7108, %v6232
      %v7154 = vsel %vm7126, %v7109, %v6234
      %v7155 = vsel %vm7126, %v7110, %v6236
      %v7156 = vsel %vm7126, %v7111, %v6238
      %v7157 = vsel %vm7126, %v7112, %v6240
      %v7158 = vsel %vm7126, %v7113, %v6242
      %v7159 = vsel %vm7126, %v7114, %v6244
      %v7160 = vsel %vm7126, %v7115, %v6246
      %v7161 = vsel %vm7126, %v7116, %v6248
      %v7162 = vsel %vm7126, %v7117, %v6250
      %v7163 = vsel %vm7126, %v7118, %v6252
      %v7164 = vsel %vm7126, %v7119, %v6254
      %v7165 = vsel %vm7126, %v7120, %v6256
      %v7166 = vsel %vm7126, %v7121, %v6258
      %v7167 = vsel %vm7126, %v7122, %v6260
      %v7168 = vsel %vm7126, %v7123, %v6262
      %v7169 = vsel %vm7126, %v7124, %v6264
      %v7170 = vsel %vm7126, %v7125, %v6266
      %v7171 = vsel %vm374, %v7127, %v6422
      %v7172 = vsel %vm374, %v7128, %v6424
      %v7173 = vsel %vm374, %v7129, %v6426
      %v7174 = vsel %vm374, %v7130, %v6428
      %v7175 = vsel %vm374, %v7131, %v6430
      %v7176 = vsel %vm374, %v7132, %v6432
      %v7177 = vsel %vm374, %v7133, %v6434
      %v7178 = vsel %vm374, %v7134, %v6436
      %v7179 = vsel %vm374, %v7135, %v6438
      %v7180 = vsel %vm374, %v7136, %v6440
      %v7181 = vsel %vm374, %v7137, %v6442
      %v7182 = vsel %vm374, %v7138, %v6444
      %v7183 = vsel %vm374, %v7139, %v6446
      %v7184 = vsel %vm374, %v7140, %v6448
      %v7185 = vsel %vm374, %v7141, %v6450
      %v7186 = vsel %vm374, %v7142, %v6452
      %v7187 = vsel %vm374, %v7143, %v6454
      %v7188 = vsel %vm374, %v7144, %v6456
      %v7189 = vsel %vm374, %v7145, %v6458
      %v7190 = vsel %vm374, %v7146, %v6460
      %v7191 = vsel %vm374, %v7147, %v6462
      %v7192 = vsel %vm374, %v7148, %v6464
      %v7193 = vsel %vm374, %v7149, %v6466
      %v7194 = vsel %vm374, %v7150, %v6468
      %v7195 = vsel %vm374, %v7151, %v6470
      %v7196 = vsel %vm374, %v7152, %v6472
      %v7197 = vsel %vm374, %v7153, %v6474
      %v7198 = vsel %vm374, %v7154, %v6476
      %v7199 = vsel %vm374, %v7155, %v6478
      %v7200 = vsel %vm374, %v7156, %v6480
      %v7201 = vsel %vm374, %v7157, %v6482
      %v7202 = vsel %vm374, %v7158, %v6484
      %v7203 = vsel %vm374, %v7159, %v6486
      %v7204 = vsel %vm374, %v7160, %v6488
      %v7205 = vsel %vm374, %v7161, %v6490
      %v7206 = vsel %vm374, %v7162, %v6492
      %v7207 = vsel %vm374, %v7163, %v6494
      %v7208 = vsel %vm374, %v7164, %v6496
      %v7209 = vsel %vm374, %v7165, %v6498
      %v7210 = vsel %vm374, %v7166, %v6500
      %v7211 = vsel %vm374, %v7167, %v6502
      %v7212 = vsel %vm374, %v7168, %v6504
      %v7213 = vsel %vm374, %v7169, %v6506
      %v7214 = vsel %vm374, %v7170, %v6508
      %vm7215 = vcmask 162816
      %v7216 = vsel %vm7215, %v7171, %v6664
      %v7217 = vsel %vm7215, %v7172, %v6666
      %v7218 = vsel %vm7215, %v7173, %v6668
      %v7219 = vsel %vm7215, %v7174, %v6670
      %v7220 = vsel %vm7215, %v7175, %v6672
      %v7221 = vsel %vm7215, %v7176, %v6674
      %v7222 = vsel %vm7215, %v7177, %v6676
      %v7223 = vsel %vm7215, %v7178, %v6678
      %v7224 = vsel %vm7215, %v7179, %v6680
      %v7225 = vsel %vm7215, %v7180, %v6682
      %v7226 = vsel %vm7215, %v7181, %v6684
      %v7227 = vsel %vm7215, %v7182, %v6686
      %v7228 = vsel %vm7215, %v7183, %v6688
      %v7229 = vsel %vm7215, %v7184, %v6690
      %v7230 = vsel %vm7215, %v7185, %v6692
      %v7231 = vsel %vm7215, %v7186, %v6694
      %v7232 = vsel %vm7215, %v7187, %v6696
      %v7233 = vsel %vm7215, %v7188, %v6698
      %v7234 = vsel %vm7215, %v7189, %v6700
      %v7235 = vsel %vm7215, %v7190, %v6702
      %v7236 = vsel %vm7215, %v7191, %v6704
      %v7237 = vsel %vm7215, %v7192, %v6706
      %v7238 = vsel %vm7215, %v7193, %v6708
      %v7239 = vsel %vm7215, %v7194, %v6710
      %v7240 = vsel %vm7215, %v7195, %v6712
      %v7241 = vsel %vm7215, %v7196, %v6714
      %v7242 = vsel %vm7215, %v7197, %v6716
      %v7243 = vsel %vm7215, %v7198, %v6718
      %v7244 = vsel %vm7215, %v7199, %v6720
      %v7245 = vsel %vm7215, %v7200, %v6722
      %v7246 = vsel %vm7215, %v7201, %v6724
      %v7247 = vsel %vm7215, %v7202, %v6726
      %v7248 = vsel %vm7215, %v7203, %v6728
      %v7249 = vsel %vm7215, %v7204, %v6730
      %v7250 = vsel %vm7215, %v7205, %v6732
      %v7251 = vsel %vm7215, %v7206, %v6734
      %v7252 = vsel %vm7215, %v7207, %v6736
      %v7253 = vsel %vm7215, %v7208, %v6738
      %v7254 = vsel %vm7215, %v7209, %v6740
      %v7255 = vsel %vm7215, %v7210, %v6742
      %v7256 = vsel %vm7215, %v7211, %v6744
      %v7257 = vsel %vm7215, %v7212, %v6746
      %v7258 = vsel %vm7215, %v7213, %v6748
      %v7259 = vsel %vm7215, %v7214, %v6750
      %vm7260 = vcmask 195584
      %v7261 = vsel %vm7260, %v7216, %v6906
      %v7262 = vsel %vm7260, %v7217, %v6908
      %v7263 = vsel %vm7260, %v7218, %v6910
      %v7264 = vsel %vm7260, %v7219, %v6912
      %v7265 = vsel %vm7260, %v7220, %v6914
      %v7266 = vsel %vm7260, %v7221, %v6916
      %v7267 = vsel %vm7260, %v7222, %v6918
      %v7268 = vsel %vm7260, %v7223, %v6920
      %v7269 = vsel %vm7260, %v7224, %v6922
      %v7270 = vsel %vm7260, %v7225, %v6924
      %v7271 = vsel %vm7260, %v7226, %v6926
      %v7272 = vsel %vm7260, %v7227, %v6928
      %v7273 = vsel %vm7260, %v7228, %v6930
      %v7274 = vsel %vm7260, %v7229, %v6932
      %v7275 = vsel %vm7260, %v7230, %v6934
      %v7276 = vsel %vm7260, %v7231, %v6936
      %v7277 = vsel %vm7260, %v7232, %v6938
      %v7278 = vsel %vm7260, %v7233, %v6940
      %v7279 = vsel %vm7260, %v7234, %v6942
      %v7280 = vsel %vm7260, %v7235, %v6944
      %v7281 = vsel %vm7260, %v7236, %v6946
      %v7282 = vsel %vm7260, %v7237, %v6948
      %v7283 = vsel %vm7260, %v7238, %v6950
      %v7284 = vsel %vm7260, %v7239, %v6952
      %v7285 = vsel %vm7260, %v7240, %v6954
      %v7286 = vsel %vm7260, %v7241, %v6956
      %v7287 = vsel %vm7260, %v7242, %v6958
      %v7288 = vsel %vm7260, %v7243, %v6960
      %v7289 = vsel %vm7260, %v7244, %v6962
      %v7290 = vsel %vm7260, %v7245, %v6964
      %v7291 = vsel %vm7260, %v7246, %v6966
      %v7292 = vsel %vm7260, %v7247, %v6968
      %v7293 = vsel %vm7260, %v7248, %v6970
      %v7294 = vsel %vm7260, %v7249, %v6972
      %v7295 = vsel %vm7260, %v7250, %v6974
      %v7296 = vsel %vm7260, %v7251, %v6976
      %v7297 = vsel %vm7260, %v7252, %v6978
      %v7298 = vsel %vm7260, %v7253, %v6980
      %v7299 = vsel %vm7260, %v7254, %v6982
      %v7300 = vsel %vm7260, %v7255, %v6984
      %v7301 = vsel %vm7260, %v7256, %v6986
      %v7302 = vsel %vm7260, %v7257, %v6988
      %v7303 = vsel %vm7260, %v7258, %v6990
      %v7304 = vsel %vm7260, %v7259, %v6992
      %v7305 = vld [vmem:[%s7] sm:$0xff]
      %v7306 = vld [vmem:[%s7 + $0x8] sm:$0xff]
      %v7307 = vld [vmem:[%s7 + $0x10] sm:$0xff]
      %v7308 = vld [vmem:[%s7 + $0x18] sm:$0xf]
      %v7309 = vld [vmem:[%s8] sm:$0x1]
      %v7311 = vlaneseq
      %v7312 = vshrl.u32 %v7311, 7
      %v7313 = vsub.s32 0, %v7312
      %v7314 = vrot.slane %v7309, %v7313
      %vm7316 = vcmask 228352
      %v7318 = vsel %vm7316, %v7261, 0
      %v7321 = vsel %vm7316, %v7262, 0
      %v7324 = vsel %vm7316, %v7263, 0
      %v7327 = vsel %vm7316, %v7264, 0
      %v7330 = vsel %vm7316, %v7265, 0
      %v7333 = vsel %vm7316, %v7266, 0
      %v7336 = vsel %vm7316, %v7267, 0
      %v7339 = vsel %vm7316, %v7268, 0
      %v7342 = vsel %vm7316, %v7269, 0
      %v7345 = vsel %vm7316, %v7270, 0
      %v7348 = vsel %vm7316, %v7271, 0
      %v7351 = vsel %vm7316, %v7272, 0
      %v7354 = vsel %vm7316, %v7273, 0
      %v7357 = vsel %vm7316, %v7274, 0
      %v7360 = vsel %vm7316, %v7275, 0
      %v7363 = vsel %vm7316, %v7276, 0
      %v7366 = vsel %vm7316, %v7277, 0
      %v7369 = vsel %vm7316, %v7278, 0
      %v7372 = vsel %vm7316, %v7279, 0
      %v7375 = vsel %vm7316, %v7280, 0
      %v7378 = vsel %vm7316, %v7281, 0
      %v7381 = vsel %vm7316, %v7282, 0
      %v7384 = vsel %vm7316, %v7283, 0
      %v7387 = vsel %vm7316, %v7284, 0
      %v7390 = vsel %vm7316, %v7285, 0
      %v7393 = vsel %vm7316, %v7286, 0
      %v7396 = vsel %vm7316, %v7287, 0
      %v7399 = vsel %vm7316, %v7288, 0
      %v7402 = vsel %vm7316, %v7289, 0
      %v7405 = vsel %vm7316, %v7290, 0
      %v7408 = vsel %vm7316, %v7291, 0
      %v7411 = vsel %vm7316, %v7292, 0
      %v7414 = vsel %vm833, %v7308, 0
      %7416 = vmatprep.subr.mxu0 0.0
      %7417 = vmatpush1.msra.mxu0 0.0
      %7418 = vmatprep.subr.mxu0 0.0
      %7419 = vmatpush1.msra.mxu0 0.0
      %7420 = vmatprep.subr.mxu0 0.0
      %7421 = vmatpush1.msra.mxu0 0.0
      %7422 = vmatprep.subr.mxu0 0.0
      %7423 = vmatpush1.msra.mxu0 0.0
      %7424 = vmatprep.subr.mxu0 0.0
      %7425 = vmatpush1.msra.mxu0 0.0
      %7426 = vmatprep.subr.mxu0 0.0
      %7427 = vmatpush1.msra.mxu0 0.0
      %7428 = vmatprep.subr.mxu0 0.0
      %7429 = vmatpush1.msra.mxu0 0.0
      %7430 = vmatprep.subr.mxu0 0.0
      %7431 = vmatpush1.msra.mxu0 0.0
      %7432 = vmatprep.subr.mxu0 0.0
      %7433 = vmatpush1.msra.mxu0 0.0
      %7434 = vmatprep.subr.mxu0 0.0
      %7435 = vmatpush1.msra.mxu0 0.0
      %7436 = vmatprep.subr.mxu0 0.0
      %7437 = vmatpush1.msra.mxu0 0.0
      %7438 = vmatprep.subr.mxu0 0.0
      %7439 = vmatpush1.msra.mxu0 0.0
      %7440 = vmatprep.subr.mxu0 0.0
      %7441 = vmatpush1.msra.mxu0 %v7414
      %7442 = vmatprep.subr.mxu0 0.0
      %7443 = vmatpush1.msra.mxu0 %v7307
      %7444 = vmatprep.subr.mxu0 0.0
      %7445 = vmatpush1.msra.mxu0 %v7306
      %7446 = vmatprep.subr.mxu0 0.0
      %7447 = vmatpush1.msra.mxu0 %v7305
      %7448 = vmatprep.subr.mxu0 0.0
      %7449 = vmatpush2.msra.mxu0 0.0
      %7450 = vmatprep.subr.mxu0 0.0
      %7451 = vmatpush2.msra.mxu0 0.0
      %7452 = vmatprep.subr.mxu0 0.0
      %7453 = vmatpush2.msra.mxu0 0.0
      %7454 = vmatprep.subr.mxu0 0.0
      %7455 = vmatpush2.msra.mxu0 0.0
      %7456 = vmatprep.subr.mxu0 0.0
      %7457 = vmatpush2.msra.mxu0 0.0
      %7458 = vmatprep.subr.mxu0 0.0
      %7459 = vmatpush2.msra.mxu0 0.0
      %7460 = vmatprep.subr.mxu0 0.0
      %7461 = vmatpush2.msra.mxu0 0.0
      %7462 = vmatprep.subr.mxu0 0.0
      %7463 = vmatpush2.msra.mxu0 0.0
      %7464 = vmatprep.subr.mxu0 0.0
      %7465 = vmatpush2.msra.mxu0 0.0
      %7466 = vmatprep.subr.mxu0 0.0
      %7467 = vmatpush2.msra.mxu0 0.0
      %7468 = vmatprep.subr.mxu0 0.0
      %7469 = vmatpush2.msra.mxu0 0.0
      %7470 = vmatprep.subr.mxu0 0.0
      %7471 = vmatpush2.msra.mxu0 0.0
      %7472 = vmatprep.subr.mxu0 0.0
      %7473 = vmatpush2.msra.mxu0 0.0
      %7474 = vmatprep.subr.mxu0 0.0
      %7475 = vmatpush2.msra.mxu0 0.0
      %7476 = vmatprep.subr.mxu0 0.0
      %7477 = vmatpush2.msra.mxu0 0.0
      %7478 = vmatprep.subr.mxu0 0.0
      %7479 = vmatpush2.msra.mxu0 0.0
      %7480 = vmatprep.mubr.f32.mxu0 0.0
      %7481 = vmatmul.mubr.f32.gmra.mxu0 %v7318
      %v7482 = vpop.f32.mrf.mxu0
      %v7483 = vadd.f32 %v7314, %v7482
      %v7484 = vpop.f32.mrf.mxu0
      %7485 = vmatprep.mubr.f32.mxu0 0.0
      %7486 = vmatmul.mubr.f32.gmra.mxu0 %v7321
      %v7487 = vpop.f32.mrf.mxu0
      %v7488 = vadd.f32 %v7314, %v7487
      %v7489 = vpop.f32.mrf.mxu0
      %7490 = vmatprep.mubr.f32.mxu0 0.0
      %7491 = vmatmul.mubr.f32.gmra.mxu0 %v7324
      %v7492 = vpop.f32.mrf.mxu0
      %v7493 = vadd.f32 %v7314, %v7492
      %v7494 = vpop.f32.mrf.mxu0
      %7495 = vmatprep.mubr.f32.mxu0 0.0
      %7496 = vmatmul.mubr.f32.gmra.mxu0 %v7327
      %v7497 = vpop.f32.mrf.mxu0
      %v7498 = vadd.f32 %v7314, %v7497
      %v7499 = vpop.f32.mrf.mxu0
      %7500 = vmatprep.mubr.f32.mxu0 0.0
      %7501 = vmatmul.mubr.f32.gmra.mxu0 %v7330
      %v7502 = vpop.f32.mrf.mxu0
      %v7503 = vadd.f32 %v7314, %v7502
      %v7504 = vpop.f32.mrf.mxu0
      %7505 = vmatprep.mubr.f32.mxu0 0.0
      %7506 = vmatmul.mubr.f32.gmra.mxu0 %v7333
      %v7507 = vpop.f32.mrf.mxu0
      %v7508 = vadd.f32 %v7314, %v7507
      %v7509 = vpop.f32.mrf.mxu0
      %7510 = vmatprep.mubr.f32.mxu0 0.0
      %7511 = vmatmul.mubr.f32.gmra.mxu0 %v7336
      %v7512 = vpop.f32.mrf.mxu0
      %v7513 = vadd.f32 %v7314, %v7512
      %v7514 = vpop.f32.mrf.mxu0
      %7515 = vmatprep.mubr.f32.mxu0 0.0
      %7516 = vmatmul.mubr.f32.gmra.mxu0 %v7339
      %v7517 = vpop.f32.mrf.mxu0
      %v7518 = vadd.f32 %v7314, %v7517
      %v7519 = vpop.f32.mrf.mxu0
      %7520 = vmatprep.mubr.f32.mxu0 0.0
      %7521 = vmatmul.mubr.f32.gmra.mxu0 %v7342
      %v7522 = vpop.f32.mrf.mxu0
      %v7523 = vadd.f32 %v7314, %v7522
      %v7524 = vpop.f32.mrf.mxu0
      %7525 = vmatprep.mubr.f32.mxu0 0.0
      %7526 = vmatmul.mubr.f32.gmra.mxu0 %v7345
      %v7527 = vpop.f32.mrf.mxu0
      %v7528 = vadd.f32 %v7314, %v7527
      %v7529 = vpop.f32.mrf.mxu0
      %7530 = vmatprep.mubr.f32.mxu0 0.0
      %7531 = vmatmul.mubr.f32.gmra.mxu0 %v7348
      %v7532 = vpop.f32.mrf.mxu0
      %v7533 = vadd.f32 %v7314, %v7532
      %v7534 = vpop.f32.mrf.mxu0
      %7535 = vmatprep.mubr.f32.mxu0 0.0
      %7536 = vmatmul.mubr.f32.gmra.mxu0 %v7351
      %v7537 = vpop.f32.mrf.mxu0
      %v7538 = vadd.f32 %v7314, %v7537
      %v7539 = vpop.f32.mrf.mxu0
      %7540 = vmatprep.mubr.f32.mxu0 0.0
      %7541 = vmatmul.mubr.f32.gmra.mxu0 %v7354
      %v7542 = vpop.f32.mrf.mxu0
      %v7543 = vadd.f32 %v7314, %v7542
      %v7544 = vpop.f32.mrf.mxu0
      %7545 = vmatprep.mubr.f32.mxu0 0.0
      %7546 = vmatmul.mubr.f32.gmra.mxu0 %v7357
      %v7547 = vpop.f32.mrf.mxu0
      %v7548 = vadd.f32 %v7314, %v7547
      %v7549 = vpop.f32.mrf.mxu0
      %7550 = vmatprep.mubr.f32.mxu0 0.0
      %7551 = vmatmul.mubr.f32.gmra.mxu0 %v7360
      %v7552 = vpop.f32.mrf.mxu0
      %v7553 = vadd.f32 %v7314, %v7552
      %v7554 = vpop.f32.mrf.mxu0
      %7555 = vmatprep.mubr.f32.mxu0 0.0
      %7556 = vmatmul.mubr.f32.gmra.mxu0 %v7363
      %v7557 = vpop.f32.mrf.mxu0
      %v7558 = vadd.f32 %v7314, %v7557
      %v7559 = vpop.f32.mrf.mxu0
      %7560 = vmatprep.mubr.f32.mxu0 0.0
      %7561 = vmatmul.mubr.f32.gmra.mxu0 %v7366
      %v7562 = vpop.f32.mrf.mxu0
      %v7563 = vadd.f32 %v7314, %v7562
      %v7564 = vpop.f32.mrf.mxu0
      %7565 = vmatprep.mubr.f32.mxu0 0.0
      %7566 = vmatmul.mubr.f32.gmra.mxu0 %v7369
      %v7567 = vpop.f32.mrf.mxu0
      %v7568 = vadd.f32 %v7314, %v7567
      %v7569 = vpop.f32.mrf.mxu0
      %7570 = vmatprep.mubr.f32.mxu0 0.0
      %7571 = vmatmul.mubr.f32.gmra.mxu0 %v7372
      %v7572 = vpop.f32.mrf.mxu0
      %v7573 = vadd.f32 %v7314, %v7572
      %v7574 = vpop.f32.mrf.mxu0
      %7575 = vmatprep.mubr.f32.mxu0 0.0
      %7576 = vmatmul.mubr.f32.gmra.mxu0 %v7375
      %v7577 = vpop.f32.mrf.mxu0
      %v7578 = vadd.f32 %v7314, %v7577
      %v7579 = vpop.f32.mrf.mxu0
      %7580 = vmatprep.mubr.f32.mxu0 0.0
      %7581 = vmatmul.mubr.f32.gmra.mxu0 %v7378
      %v7582 = vpop.f32.mrf.mxu0
      %v7583 = vadd.f32 %v7314, %v7582
      %v7584 = vpop.f32.mrf.mxu0
      %7585 = vmatprep.mubr.f32.mxu0 0.0
      %7586 = vmatmul.mubr.f32.gmra.mxu0 %v7381
      %v7587 = vpop.f32.mrf.mxu0
      %v7588 = vadd.f32 %v7314, %v7587
      %v7589 = vpop.f32.mrf.mxu0
      %7590 = vmatprep.mubr.f32.mxu0 0.0
      %7591 = vmatmul.mubr.f32.gmra.mxu0 %v7384
      %v7592 = vpop.f32.mrf.mxu0
      %v7593 = vadd.f32 %v7314, %v7592
      %v7594 = vpop.f32.mrf.mxu0
      %7595 = vmatprep.mubr.f32.mxu0 0.0
      %7596 = vmatmul.mubr.f32.gmra.mxu0 %v7387
      %v7597 = vpop.f32.mrf.mxu0
      %v7598 = vadd.f32 %v7314, %v7597
      %v7599 = vpop.f32.mrf.mxu0
      %7600 = vmatprep.mubr.f32.mxu0 0.0
      %7601 = vmatmul.mubr.f32.gmra.mxu0 %v7390
      %v7602 = vpop.f32.mrf.mxu0
      %v7603 = vadd.f32 %v7314, %v7602
      %v7604 = vpop.f32.mrf.mxu0
      %7605 = vmatprep.mubr.f32.mxu0 0.0
      %7606 = vmatmul.mubr.f32.gmra.mxu0 %v7393
      %v7607 = vpop.f32.mrf.mxu0
      %v7608 = vadd.f32 %v7314, %v7607
      %v7609 = vpop.f32.mrf.mxu0
      %7610 = vmatprep.mubr.f32.mxu0 0.0
      %7611 = vmatmul.mubr.f32.gmra.mxu0 %v7396
      %v7612 = vpop.f32.mrf.mxu0
      %v7613 = vadd.f32 %v7314, %v7612
      %v7614 = vpop.f32.mrf.mxu0
      %7615 = vmatprep.mubr.f32.mxu0 0.0
      %7616 = vmatmul.mubr.f32.gmra.mxu0 %v7399
      %v7617 = vpop.f32.mrf.mxu0
      %v7618 = vadd.f32 %v7314, %v7617
      %v7619 = vpop.f32.mrf.mxu0
      %7620 = vmatprep.mubr.f32.mxu0 0.0
      %7621 = vmatmul.mubr.f32.gmra.mxu0 %v7402
      %v7622 = vpop.f32.mrf.mxu0
      %v7623 = vadd.f32 %v7314, %v7622
      %v7624 = vpop.f32.mrf.mxu0
      %7625 = vmatprep.mubr.f32.mxu0 0.0
      %7626 = vmatmul.mubr.f32.gmra.mxu0 %v7405
      %v7627 = vpop.f32.mrf.mxu0
      %v7628 = vadd.f32 %v7314, %v7627
      %v7629 = vpop.f32.mrf.mxu0
      %7630 = vmatprep.mubr.f32.mxu0 0.0
      %7631 = vmatmul.mubr.f32.gmra.mxu0 %v7408
      %v7632 = vpop.f32.mrf.mxu0
      %v7633 = vadd.f32 %v7314, %v7632
      %v7634 = vpop.f32.mrf.mxu0
      %7635 = vmatprep.mubr.f32.mxu0 0.0
      %7636 = vmatmul.mubr.f32.gmra.mxu0 %v7411
      %v7637 = vpop.f32.mrf.mxu0
      %v7638 = vadd.f32 %v7314, %v7637
      %v7639 = vpop.f32.mrf.mxu0
      %7640 = vdwg.mxu0
      %s7641 = scalar_lea.vmem %s7, 32
      %v7642 = vld [vmem:[%s7641] sm:$0xff]
      %v7643 = vld [vmem:[%s7641 + $0x8] sm:$0xff]
      %v7644 = vld [vmem:[%s7641 + $0x10] sm:$0xff]
      %v7645 = vld [vmem:[%s7641 + $0x18] sm:$0xf]
      %v7647 = vsel %vm7316, %v7293, 0
      %v7650 = vsel %vm7316, %v7294, 0
      %v7653 = vsel %vm833, %v7645, 0
      %7655 = vmatprep.subr.mxu0 0.0
      %7656 = vmatpush1.msra.mxu0 0.0
      %7657 = vmatprep.subr.mxu0 0.0
      %7658 = vmatpush1.msra.mxu0 0.0
      %7659 = vmatprep.subr.mxu0 0.0
      %7660 = vmatpush1.msra.mxu0 0.0
      %7661 = vmatprep.subr.mxu0 0.0
      %7662 = vmatpush1.msra.mxu0 0.0
      %7663 = vmatprep.subr.mxu0 0.0
      %7664 = vmatpush1.msra.mxu0 0.0
      %7665 = vmatprep.subr.mxu0 0.0
      %7666 = vmatpush1.msra.mxu0 0.0
      %7667 = vmatprep.subr.mxu0 0.0
      %7668 = vmatpush1.msra.mxu0 0.0
      %7669 = vmatprep.subr.mxu0 0.0
      %7670 = vmatpush1.msra.mxu0 0.0
      %7671 = vmatprep.subr.mxu0 0.0
      %7672 = vmatpush1.msra.mxu0 0.0
      %7673 = vmatprep.subr.mxu0 0.0
      %7674 = vmatpush1.msra.mxu0 0.0
      %7675 = vmatprep.subr.mxu0 0.0
      %7676 = vmatpush1.msra.mxu0 0.0
      %7677 = vmatprep.subr.mxu0 0.0
      %7678 = vmatpush1.msra.mxu0 0.0
      %7679 = vmatprep.subr.mxu0 0.0
      %7680 = vmatpush1.msra.mxu0 %v7653
      %7681 = vmatprep.subr.mxu0 0.0
      %7682 = vmatpush1.msra.mxu0 %v7644
      %7683 = vmatprep.subr.mxu0 0.0
      %7684 = vmatpush1.msra.mxu0 %v7643
      %7685 = vmatprep.subr.mxu0 0.0
      %7686 = vmatpush1.msra.mxu0 %v7642
      %7687 = vmatprep.subr.mxu0 0.0
      %7688 = vmatpush2.msra.mxu0 0.0
      %7689 = vmatprep.subr.mxu0 0.0
      %7690 = vmatpush2.msra.mxu0 0.0
      %7691 = vmatprep.subr.mxu0 0.0
      %7692 = vmatpush2.msra.mxu0 0.0
      %7693 = vmatprep.subr.mxu0 0.0
      %7694 = vmatpush2.msra.mxu0 0.0
      %7695 = vmatprep.subr.mxu0 0.0
      %7696 = vmatpush2.msra.mxu0 0.0
      %7697 = vmatprep.subr.mxu0 0.0
      %7698 = vmatpush2.msra.mxu0 0.0
      %7699 = vmatprep.subr.mxu0 0.0
      %7700 = vmatpush2.msra.mxu0 0.0
      %7701 = vmatprep.subr.mxu0 0.0
      %7702 = vmatpush2.msra.mxu0 0.0
      %7703 = vmatprep.subr.mxu0 0.0
      %7704 = vmatpush2.msra.mxu0 0.0
      %7705 = vmatprep.subr.mxu0 0.0
      %7706 = vmatpush2.msra.mxu0 0.0
      %7707 = vmatprep.subr.mxu0 0.0
      %7708 = vmatpush2.msra.mxu0 0.0
      %7709 = vmatprep.subr.mxu0 0.0
      %7710 = vmatpush2.msra.mxu0 0.0
      %7711 = vmatprep.subr.mxu0 0.0
      %7712 = vmatpush2.msra.mxu0 0.0
      %7713 = vmatprep.subr.mxu0 0.0
      %7714 = vmatpush2.msra.mxu0 0.0
      %7715 = vmatprep.subr.mxu0 0.0
      %7716 = vmatpush2.msra.mxu0 0.0
      %7717 = vmatprep.subr.mxu0 0.0
      %7718 = vmatpush2.msra.mxu0 0.0
      %7719 = vmatprep.mubr.f32.mxu0 0.0
      %7720 = vmatmul.mubr.f32.gmra.mxu0 %v7324
      %v7721 = vpop.f32.mrf.mxu0
      %v7722 = vadd.f32 0.0, %v7721
      %v7723 = vpop.f32.mrf.mxu0
      %7724 = vmatprep.mubr.f32.mxu0 0.0
      %7725 = vmatmul.mubr.f32.gmra.mxu0 %v7327
      %v7726 = vpop.f32.mrf.mxu0
      %v7727 = vadd.f32 0.0, %v7726
      %v7728 = vpop.f32.mrf.mxu0
      %7729 = vmatprep.mubr.f32.mxu0 0.0
      %7730 = vmatmul.mubr.f32.gmra.mxu0 %v7330
      %v7731 = vpop.f32.mrf.mxu0
      %v7732 = vadd.f32 0.0, %v7731
      %v7733 = vpop.f32.mrf.mxu0
      %7734 = vmatprep.mubr.f32.mxu0 0.0
      %7735 = vmatmul.mubr.f32.gmra.mxu0 %v7333
      %v7736 = vpop.f32.mrf.mxu0
      %v7737 = vadd.f32 0.0, %v7736
      %v7738 = vpop.f32.mrf.mxu0
      %7739 = vmatprep.mubr.f32.mxu0 0.0
      %7740 = vmatmul.mubr.f32.gmra.mxu0 %v7336
      %v7741 = vpop.f32.mrf.mxu0
      %v7742 = vadd.f32 0.0, %v7741
      %v7743 = vpop.f32.mrf.mxu0
      %7744 = vmatprep.mubr.f32.mxu0 0.0
      %7745 = vmatmul.mubr.f32.gmra.mxu0 %v7339
      %v7746 = vpop.f32.mrf.mxu0
      %v7747 = vadd.f32 0.0, %v7746
      %v7748 = vpop.f32.mrf.mxu0
      %7749 = vmatprep.mubr.f32.mxu0 0.0
      %7750 = vmatmul.mubr.f32.gmra.mxu0 %v7342
      %v7751 = vpop.f32.mrf.mxu0
      %v7752 = vadd.f32 0.0, %v7751
      %v7753 = vpop.f32.mrf.mxu0
      %7754 = vmatprep.mubr.f32.mxu0 0.0
      %7755 = vmatmul.mubr.f32.gmra.mxu0 %v7345
      %v7756 = vpop.f32.mrf.mxu0
      %v7757 = vadd.f32 0.0, %v7756
      %v7758 = vpop.f32.mrf.mxu0
      %7759 = vmatprep.mubr.f32.mxu0 0.0
      %7760 = vmatmul.mubr.f32.gmra.mxu0 %v7348
      %v7761 = vpop.f32.mrf.mxu0
      %v7762 = vadd.f32 0.0, %v7761
      %v7763 = vpop.f32.mrf.mxu0
      %7764 = vmatprep.mubr.f32.mxu0 0.0
      %7765 = vmatmul.mubr.f32.gmra.mxu0 %v7351
      %v7766 = vpop.f32.mrf.mxu0
      %v7767 = vadd.f32 0.0, %v7766
      %v7768 = vpop.f32.mrf.mxu0
      %7769 = vmatprep.mubr.f32.mxu0 0.0
      %7770 = vmatmul.mubr.f32.gmra.mxu0 %v7354
      %v7771 = vpop.f32.mrf.mxu0
      %v7772 = vadd.f32 0.0, %v7771
      %v7773 = vpop.f32.mrf.mxu0
      %7774 = vmatprep.mubr.f32.mxu0 0.0
      %7775 = vmatmul.mubr.f32.gmra.mxu0 %v7357
      %v7776 = vpop.f32.mrf.mxu0
      %v7777 = vadd.f32 0.0, %v7776
      %v7778 = vpop.f32.mrf.mxu0
      %7779 = vmatprep.mubr.f32.mxu0 0.0
      %7780 = vmatmul.mubr.f32.gmra.mxu0 %v7360
      %v7781 = vpop.f32.mrf.mxu0
      %v7782 = vadd.f32 0.0, %v7781
      %v7783 = vpop.f32.mrf.mxu0
      %7784 = vmatprep.mubr.f32.mxu0 0.0
      %7785 = vmatmul.mubr.f32.gmra.mxu0 %v7363
      %v7786 = vpop.f32.mrf.mxu0
      %v7787 = vadd.f32 0.0, %v7786
      %v7788 = vpop.f32.mrf.mxu0
      %7789 = vmatprep.mubr.f32.mxu0 0.0
      %7790 = vmatmul.mubr.f32.gmra.mxu0 %v7366
      %v7791 = vpop.f32.mrf.mxu0
      %v7792 = vadd.f32 0.0, %v7791
      %v7793 = vpop.f32.mrf.mxu0
      %7794 = vmatprep.mubr.f32.mxu0 0.0
      %7795 = vmatmul.mubr.f32.gmra.mxu0 %v7369
      %v7796 = vpop.f32.mrf.mxu0
      %v7797 = vadd.f32 0.0, %v7796
      %v7798 = vpop.f32.mrf.mxu0
      %7799 = vmatprep.mubr.f32.mxu0 0.0
      %7800 = vmatmul.mubr.f32.gmra.mxu0 %v7372
      %v7801 = vpop.f32.mrf.mxu0
      %v7802 = vadd.f32 0.0, %v7801
      %v7803 = vpop.f32.mrf.mxu0
      %7804 = vmatprep.mubr.f32.mxu0 0.0
      %7805 = vmatmul.mubr.f32.gmra.mxu0 %v7375
      %v7806 = vpop.f32.mrf.mxu0
      %v7807 = vadd.f32 0.0, %v7806
      %v7808 = vpop.f32.mrf.mxu0
      %7809 = vmatprep.mubr.f32.mxu0 0.0
      %7810 = vmatmul.mubr.f32.gmra.mxu0 %v7378
      %v7811 = vpop.f32.mrf.mxu0
      %v7812 = vadd.f32 0.0, %v7811
      %v7813 = vpop.f32.mrf.mxu0
      %7814 = vmatprep.mubr.f32.mxu0 0.0
      %7815 = vmatmul.mubr.f32.gmra.mxu0 %v7381
      %v7816 = vpop.f32.mrf.mxu0
      %v7817 = vadd.f32 0.0, %v7816
      %v7818 = vpop.f32.mrf.mxu0
      %7819 = vmatprep.mubr.f32.mxu0 0.0
      %7820 = vmatmul.mubr.f32.gmra.mxu0 %v7384
      %v7821 = vpop.f32.mrf.mxu0
      %v7822 = vadd.f32 0.0, %v7821
      %v7823 = vpop.f32.mrf.mxu0
      %7824 = vmatprep.mubr.f32.mxu0 0.0
      %7825 = vmatmul.mubr.f32.gmra.mxu0 %v7387
      %v7826 = vpop.f32.mrf.mxu0
      %v7827 = vadd.f32 0.0, %v7826
      %v7828 = vpop.f32.mrf.mxu0
      %7829 = vmatprep.mubr.f32.mxu0 0.0
      %7830 = vmatmul.mubr.f32.gmra.mxu0 %v7390
      %v7831 = vpop.f32.mrf.mxu0
      %v7832 = vadd.f32 0.0, %v7831
      %v7833 = vpop.f32.mrf.mxu0
      %7834 = vmatprep.mubr.f32.mxu0 0.0
      %7835 = vmatmul.mubr.f32.gmra.mxu0 %v7393
      %v7836 = vpop.f32.mrf.mxu0
      %v7837 = vadd.f32 0.0, %v7836
      %v7838 = vpop.f32.mrf.mxu0
      %7839 = vmatprep.mubr.f32.mxu0 0.0
      %7840 = vmatmul.mubr.f32.gmra.mxu0 %v7396
      %v7841 = vpop.f32.mrf.mxu0
      %v7842 = vadd.f32 0.0, %v7841
      %v7843 = vpop.f32.mrf.mxu0
      %7844 = vmatprep.mubr.f32.mxu0 0.0
      %7845 = vmatmul.mubr.f32.gmra.mxu0 %v7399
      %v7846 = vpop.f32.mrf.mxu0
      %v7847 = vadd.f32 0.0, %v7846
      %v7848 = vpop.f32.mrf.mxu0
      %7849 = vmatprep.mubr.f32.mxu0 0.0
      %7850 = vmatmul.mubr.f32.gmra.mxu0 %v7402
      %v7851 = vpop.f32.mrf.mxu0
      %v7852 = vadd.f32 0.0, %v7851
      %v7853 = vpop.f32.mrf.mxu0
      %7854 = vmatprep.mubr.f32.mxu0 0.0
      %7855 = vmatmul.mubr.f32.gmra.mxu0 %v7405
      %v7856 = vpop.f32.mrf.mxu0
      %v7857 = vadd.f32 0.0, %v7856
      %v7858 = vpop.f32.mrf.mxu0
      %7859 = vmatprep.mubr.f32.mxu0 0.0
      %7860 = vmatmul.mubr.f32.gmra.mxu0 %v7408
      %v7861 = vpop.f32.mrf.mxu0
      %v7862 = vadd.f32 0.0, %v7861
      %v7863 = vpop.f32.mrf.mxu0
      %7864 = vmatprep.mubr.f32.mxu0 0.0
      %7865 = vmatmul.mubr.f32.gmra.mxu0 %v7411
      %v7866 = vpop.f32.mrf.mxu0
      %v7867 = vadd.f32 0.0, %v7866
      %v7868 = vpop.f32.mrf.mxu0
      %7869 = vmatprep.mubr.f32.mxu0 0.0
      %7870 = vmatmul.mubr.f32.gmra.mxu0 %v7647
      %v7871 = vpop.f32.mrf.mxu0
      %v7872 = vadd.f32 0.0, %v7871
      %v7873 = vpop.f32.mrf.mxu0
      %7874 = vmatprep.mubr.f32.mxu0 0.0
      %7875 = vmatmul.mubr.f32.gmra.mxu0 %v7650
      %v7876 = vpop.f32.mrf.mxu0
      %v7877 = vadd.f32 0.0, %v7876
      %v7878 = vpop.f32.mrf.mxu0
      %7879 = vdwg.mxu0
      %v7880 = vadd.f32 %v7483, %v7722
      %v7881 = vadd.f32 %v7488, %v7727
      %v7882 = vadd.f32 %v7493, %v7732
      %v7883 = vadd.f32 %v7498, %v7737
      %v7884 = vadd.f32 %v7503, %v7742
      %v7885 = vadd.f32 %v7508, %v7747
      %v7886 = vadd.f32 %v7513, %v7752
      %v7887 = vadd.f32 %v7518, %v7757
      %v7888 = vadd.f32 %v7523, %v7762
      %v7889 = vadd.f32 %v7528, %v7767
      %v7890 = vadd.f32 %v7533, %v7772
      %v7891 = vadd.f32 %v7538, %v7777
      %v7892 = vadd.f32 %v7543, %v7782
      %v7893 = vadd.f32 %v7548, %v7787
      %v7894 = vadd.f32 %v7553, %v7792
      %v7895 = vadd.f32 %v7558, %v7797
      %v7896 = vadd.f32 %v7563, %v7802
      %v7897 = vadd.f32 %v7568, %v7807
      %v7898 = vadd.f32 %v7573, %v7812
      %v7899 = vadd.f32 %v7578, %v7817
      %v7900 = vadd.f32 %v7583, %v7822
      %v7901 = vadd.f32 %v7588, %v7827
      %v7902 = vadd.f32 %v7593, %v7832
      %v7903 = vadd.f32 %v7598, %v7837
      %v7904 = vadd.f32 %v7603, %v7842
      %v7905 = vadd.f32 %v7608, %v7847
      %v7906 = vadd.f32 %v7613, %v7852
      %v7907 = vadd.f32 %v7618, %v7857
      %v7908 = vadd.f32 %v7623, %v7862
      %v7909 = vadd.f32 %v7628, %v7867
      %v7910 = vadd.f32 %v7633, %v7872
      %v7911 = vadd.f32 %v7638, %v7877
      %s7912 = scalar_lea.vmem %s7, 64
      %v7913 = vld [vmem:[%s7912] sm:$0xff]
      %v7914 = vld [vmem:[%s7912 + $0x8] sm:$0xff]
      %v7915 = vld [vmem:[%s7912 + $0x10] sm:$0xff]
      %v7916 = vld [vmem:[%s7912 + $0x18] sm:$0xf]
      %v7918 = vsel %vm7316, %v7295, 0
      %v7921 = vsel %vm7316, %v7296, 0
      %v7924 = vsel %vm833, %v7916, 0
      %7926 = vmatprep.subr.mxu0 0.0
      %7927 = vmatpush1.msra.mxu0 0.0
      %7928 = vmatprep.subr.mxu0 0.0
      %7929 = vmatpush1.msra.mxu0 0.0
      %7930 = vmatprep.subr.mxu0 0.0
      %7931 = vmatpush1.msra.mxu0 0.0
      %7932 = vmatprep.subr.mxu0 0.0
      %7933 = vmatpush1.msra.mxu0 0.0
      %7934 = vmatprep.subr.mxu0 0.0
      %7935 = vmatpush1.msra.mxu0 0.0
      %7936 = vmatprep.subr.mxu0 0.0
      %7937 = vmatpush1.msra.mxu0 0.0
      %7938 = vmatprep.subr.mxu0 0.0
      %7939 = vmatpush1.msra.mxu0 0.0
      %7940 = vmatprep.subr.mxu0 0.0
      %7941 = vmatpush1.msra.mxu0 0.0
      %7942 = vmatprep.subr.mxu0 0.0
      %7943 = vmatpush1.msra.mxu0 0.0
      %7944 = vmatprep.subr.mxu0 0.0
      %7945 = vmatpush1.msra.mxu0 0.0
      %7946 = vmatprep.subr.mxu0 0.0
      %7947 = vmatpush1.msra.mxu0 0.0
      %7948 = vmatprep.subr.mxu0 0.0
      %7949 = vmatpush1.msra.mxu0 0.0
      %7950 = vmatprep.subr.mxu0 0.0
      %7951 = vmatpush1.msra.mxu0 %v7924
      %7952 = vmatprep.subr.mxu0 0.0
      %7953 = vmatpush1.msra.mxu0 %v7915
      %7954 = vmatprep.subr.mxu0 0.0
      %7955 = vmatpush1.msra.mxu0 %v7914
      %7956 = vmatprep.subr.mxu0 0.0
      %7957 = vmatpush1.msra.mxu0 %v7913
      %7958 = vmatprep.subr.mxu0 0.0
      %7959 = vmatpush2.msra.mxu0 0.0
      %7960 = vmatprep.subr.mxu0 0.0
      %7961 = vmatpush2.msra.mxu0 0.0
      %7962 = vmatprep.subr.mxu0 0.0
      %7963 = vmatpush2.msra.mxu0 0.0
      %7964 = vmatprep.subr.mxu0 0.0
      %7965 = vmatpush2.msra.mxu0 0.0
      %7966 = vmatprep.subr.mxu0 0.0
      %7967 = vmatpush2.msra.mxu0 0.0
      %7968 = vmatprep.subr.mxu0 0.0
      %7969 = vmatpush2.msra.mxu0 0.0
      %7970 = vmatprep.subr.mxu0 0.0
      %7971 = vmatpush2.msra.mxu0 0.0
      %7972 = vmatprep.subr.mxu0 0.0
      %7973 = vmatpush2.msra.mxu0 0.0
      %7974 = vmatprep.subr.mxu0 0.0
      %7975 = vmatpush2.msra.mxu0 0.0
      %7976 = vmatprep.subr.mxu0 0.0
      %7977 = vmatpush2.msra.mxu0 0.0
      %7978 = vmatprep.subr.mxu0 0.0
      %7979 = vmatpush2.msra.mxu0 0.0
      %7980 = vmatprep.subr.mxu0 0.0
      %7981 = vmatpush2.msra.mxu0 0.0
      %7982 = vmatprep.subr.mxu0 0.0
      %7983 = vmatpush2.msra.mxu0 0.0
      %7984 = vmatprep.subr.mxu0 0.0
      %7985 = vmatpush2.msra.mxu0 0.0
      %7986 = vmatprep.subr.mxu0 0.0
      %7987 = vmatpush2.msra.mxu0 0.0
      %7988 = vmatprep.subr.mxu0 0.0
      %7989 = vmatpush2.msra.mxu0 0.0
      %7990 = vmatprep.mubr.f32.mxu0 0.0
      %7991 = vmatmul.mubr.f32.gmra.mxu0 %v7330
      %v7992 = vpop.f32.mrf.mxu0
      %v7993 = vadd.f32 0.0, %v7992
      %v7994 = vpop.f32.mrf.mxu0
      %7995 = vmatprep.mubr.f32.mxu0 0.0
      %7996 = vmatmul.mubr.f32.gmra.mxu0 %v7333
      %v7997 = vpop.f32.mrf.mxu0
      %v7998 = vadd.f32 0.0, %v7997
      %v7999 = vpop.f32.mrf.mxu0
      %8000 = vmatprep.mubr.f32.mxu0 0.0
      %8001 = vmatmul.mubr.f32.gmra.mxu0 %v7336
      %v8002 = vpop.f32.mrf.mxu0
      %v8003 = vadd.f32 0.0, %v8002
      %v8004 = vpop.f32.mrf.mxu0
      %8005 = vmatprep.mubr.f32.mxu0 0.0
      %8006 = vmatmul.mubr.f32.gmra.mxu0 %v7339
      %v8007 = vpop.f32.mrf.mxu0
      %v8008 = vadd.f32 0.0, %v8007
      %v8009 = vpop.f32.mrf.mxu0
      %8010 = vmatprep.mubr.f32.mxu0 0.0
      %8011 = vmatmul.mubr.f32.gmra.mxu0 %v7342
      %v8012 = vpop.f32.mrf.mxu0
      %v8013 = vadd.f32 0.0, %v8012
      %v8014 = vpop.f32.mrf.mxu0
      %8015 = vmatprep.mubr.f32.mxu0 0.0
      %8016 = vmatmul.mubr.f32.gmra.mxu0 %v7345
      %v8017 = vpop.f32.mrf.mxu0
      %v8018 = vadd.f32 0.0, %v8017
      %v8019 = vpop.f32.mrf.mxu0
      %8020 = vmatprep.mubr.f32.mxu0 0.0
      %8021 = vmatmul.mubr.f32.gmra.mxu0 %v7348
      %v8022 = vpop.f32.mrf.mxu0
      %v8023 = vadd.f32 0.0, %v8022
      %v8024 = vpop.f32.mrf.mxu0
      %8025 = vmatprep.mubr.f32.mxu0 0.0
      %8026 = vmatmul.mubr.f32.gmra.mxu0 %v7351
      %v8027 = vpop.f32.mrf.mxu0
      %v8028 = vadd.f32 0.0, %v8027
      %v8029 = vpop.f32.mrf.mxu0
      %8030 = vmatprep.mubr.f32.mxu0 0.0
      %8031 = vmatmul.mubr.f32.gmra.mxu0 %v7354
      %v8032 = vpop.f32.mrf.mxu0
      %v8033 = vadd.f32 0.0, %v8032
      %v8034 = vpop.f32.mrf.mxu0
      %8035 = vmatprep.mubr.f32.mxu0 0.0
      %8036 = vmatmul.mubr.f32.gmra.mxu0 %v7357
      %v8037 = vpop.f32.mrf.mxu0
      %v8038 = vadd.f32 0.0, %v8037
      %v8039 = vpop.f32.mrf.mxu0
      %8040 = vmatprep.mubr.f32.mxu0 0.0
      %8041 = vmatmul.mubr.f32.gmra.mxu0 %v7360
      %v8042 = vpop.f32.mrf.mxu0
      %v8043 = vadd.f32 0.0, %v8042
      %v8044 = vpop.f32.mrf.mxu0
      %8045 = vmatprep.mubr.f32.mxu0 0.0
      %8046 = vmatmul.mubr.f32.gmra.mxu0 %v7363
      %v8047 = vpop.f32.mrf.mxu0
      %v8048 = vadd.f32 0.0, %v8047
      %v8049 = vpop.f32.mrf.mxu0
      %8050 = vmatprep.mubr.f32.mxu0 0.0
      %8051 = vmatmul.mubr.f32.gmra.mxu0 %v7366
      %v8052 = vpop.f32.mrf.mxu0
      %v8053 = vadd.f32 0.0, %v8052
      %v8054 = vpop.f32.mrf.mxu0
      %8055 = vmatprep.mubr.f32.mxu0 0.0
      %8056 = vmatmul.mubr.f32.gmra.mxu0 %v7369
      %v8057 = vpop.f32.mrf.mxu0
      %v8058 = vadd.f32 0.0, %v8057
      %v8059 = vpop.f32.mrf.mxu0
      %8060 = vmatprep.mubr.f32.mxu0 0.0
      %8061 = vmatmul.mubr.f32.gmra.mxu0 %v7372
      %v8062 = vpop.f32.mrf.mxu0
      %v8063 = vadd.f32 0.0, %v8062
      %v8064 = vpop.f32.mrf.mxu0
      %8065 = vmatprep.mubr.f32.mxu0 0.0
      %8066 = vmatmul.mubr.f32.gmra.mxu0 %v7375
      %v8067 = vpop.f32.mrf.mxu0
      %v8068 = vadd.f32 0.0, %v8067
      %v8069 = vpop.f32.mrf.mxu0
      %8070 = vmatprep.mubr.f32.mxu0 0.0
      %8071 = vmatmul.mubr.f32.gmra.mxu0 %v7378
      %v8072 = vpop.f32.mrf.mxu0
      %v8073 = vadd.f32 0.0, %v8072
      %v8074 = vpop.f32.mrf.mxu0
      %8075 = vmatprep.mubr.f32.mxu0 0.0
      %8076 = vmatmul.mubr.f32.gmra.mxu0 %v7381
      %v8077 = vpop.f32.mrf.mxu0
      %v8078 = vadd.f32 0.0, %v8077
      %v8079 = vpop.f32.mrf.mxu0
      %8080 = vmatprep.mubr.f32.mxu0 0.0
      %8081 = vmatmul.mubr.f32.gmra.mxu0 %v7384
      %v8082 = vpop.f32.mrf.mxu0
      %v8083 = vadd.f32 0.0, %v8082
      %v8084 = vpop.f32.mrf.mxu0
      %8085 = vmatprep.mubr.f32.mxu0 0.0
      %8086 = vmatmul.mubr.f32.gmra.mxu0 %v7387
      %v8087 = vpop.f32.mrf.mxu0
      %v8088 = vadd.f32 0.0, %v8087
      %v8089 = vpop.f32.mrf.mxu0
      %8090 = vmatprep.mubr.f32.mxu0 0.0
      %8091 = vmatmul.mubr.f32.gmra.mxu0 %v7390
      %v8092 = vpop.f32.mrf.mxu0
      %v8093 = vadd.f32 0.0, %v8092
      %v8094 = vpop.f32.mrf.mxu0
      %8095 = vmatprep.mubr.f32.mxu0 0.0
      %8096 = vmatmul.mubr.f32.gmra.mxu0 %v7393
      %v8097 = vpop.f32.mrf.mxu0
      %v8098 = vadd.f32 0.0, %v8097
      %v8099 = vpop.f32.mrf.mxu0
      %8100 = vmatprep.mubr.f32.mxu0 0.0
      %8101 = vmatmul.mubr.f32.gmra.mxu0 %v7396
      %v8102 = vpop.f32.mrf.mxu0
      %v8103 = vadd.f32 0.0, %v8102
      %v8104 = vpop.f32.mrf.mxu0
      %8105 = vmatprep.mubr.f32.mxu0 0.0
      %8106 = vmatmul.mubr.f32.gmra.mxu0 %v7399
      %v8107 = vpop.f32.mrf.mxu0
      %v8108 = vadd.f32 0.0, %v8107
      %v8109 = vpop.f32.mrf.mxu0
      %8110 = vmatprep.mubr.f32.mxu0 0.0
      %8111 = vmatmul.mubr.f32.gmra.mxu0 %v7402
      %v8112 = vpop.f32.mrf.mxu0
      %v8113 = vadd.f32 0.0, %v8112
      %v8114 = vpop.f32.mrf.mxu0
      %8115 = vmatprep.mubr.f32.mxu0 0.0
      %8116 = vmatmul.mubr.f32.gmra.mxu0 %v7405
      %v8117 = vpop.f32.mrf.mxu0
      %v8118 = vadd.f32 0.0, %v8117
      %v8119 = vpop.f32.mrf.mxu0
      %8120 = vmatprep.mubr.f32.mxu0 0.0
      %8121 = vmatmul.mubr.f32.gmra.mxu0 %v7408
      %v8122 = vpop.f32.mrf.mxu0
      %v8123 = vadd.f32 0.0, %v8122
      %v8124 = vpop.f32.mrf.mxu0
      %8125 = vmatprep.mubr.f32.mxu0 0.0
      %8126 = vmatmul.mubr.f32.gmra.mxu0 %v7411
      %v8127 = vpop.f32.mrf.mxu0
      %v8128 = vadd.f32 0.0, %v8127
      %v8129 = vpop.f32.mrf.mxu0
      %8130 = vmatprep.mubr.f32.mxu0 0.0
      %8131 = vmatmul.mubr.f32.gmra.mxu0 %v7647
      %v8132 = vpop.f32.mrf.mxu0
      %v8133 = vadd.f32 0.0, %v8132
      %v8134 = vpop.f32.mrf.mxu0
      %8135 = vmatprep.mubr.f32.mxu0 0.0
      %8136 = vmatmul.mubr.f32.gmra.mxu0 %v7650
      %v8137 = vpop.f32.mrf.mxu0
      %v8138 = vadd.f32 0.0, %v8137
      %v8139 = vpop.f32.mrf.mxu0
      %8140 = vmatprep.mubr.f32.mxu0 0.0
      %8141 = vmatmul.mubr.f32.gmra.mxu0 %v7918
      %v8142 = vpop.f32.mrf.mxu0
      %v8143 = vadd.f32 0.0, %v8142
      %v8144 = vpop.f32.mrf.mxu0
      %8145 = vmatprep.mubr.f32.mxu0 0.0
      %8146 = vmatmul.mubr.f32.gmra.mxu0 %v7921
      %v8147 = vpop.f32.mrf.mxu0
      %v8148 = vadd.f32 0.0, %v8147
      %v8149 = vpop.f32.mrf.mxu0
      %8150 = vdwg.mxu0
      %v8151 = vadd.f32 %v7880, %v7993
      %v8152 = vadd.f32 %v7881, %v7998
      %v8153 = vadd.f32 %v7882, %v8003
      %v8154 = vadd.f32 %v7883, %v8008
      %v8155 = vadd.f32 %v7884, %v8013
      %v8156 = vadd.f32 %v7885, %v8018
      %v8157 = vadd.f32 %v7886, %v8023
      %v8158 = vadd.f32 %v7887, %v8028
      %v8159 = vadd.f32 %v7888, %v8033
      %v8160 = vadd.f32 %v7889, %v8038
      %v8161 = vadd.f32 %v7890, %v8043
      %v8162 = vadd.f32 %v7891, %v8048
      %v8163 = vadd.f32 %v7892, %v8053
      %v8164 = vadd.f32 %v7893, %v8058
      %v8165 = vadd.f32 %v7894, %v8063
      %v8166 = vadd.f32 %v7895, %v8068
      %v8167 = vadd.f32 %v7896, %v8073
      %v8168 = vadd.f32 %v7897, %v8078
      %v8169 = vadd.f32 %v7898, %v8083
      %v8170 = vadd.f32 %v7899, %v8088
      %v8171 = vadd.f32 %v7900, %v8093
      %v8172 = vadd.f32 %v7901, %v8098
      %v8173 = vadd.f32 %v7902, %v8103
      %v8174 = vadd.f32 %v7903, %v8108
      %v8175 = vadd.f32 %v7904, %v8113
      %v8176 = vadd.f32 %v7905, %v8118
      %v8177 = vadd.f32 %v7906, %v8123
      %v8178 = vadd.f32 %v7907, %v8128
      %v8179 = vadd.f32 %v7908, %v8133
      %v8180 = vadd.f32 %v7909, %v8138
      %v8181 = vadd.f32 %v7910, %v8143
      %v8182 = vadd.f32 %v7911, %v8148
      %s8183 = scalar_lea.vmem %s7, 96
      %v8184 = vld [vmem:[%s8183] sm:$0xff]
      %v8185 = vld [vmem:[%s8183 + $0x8] sm:$0xff]
      %v8186 = vld [vmem:[%s8183 + $0x10] sm:$0xff]
      %v8187 = vld [vmem:[%s8183 + $0x18] sm:$0xf]
      %v8189 = vsel %vm7316, %v7297, 0
      %v8192 = vsel %vm7316, %v7298, 0
      %v8195 = vsel %vm833, %v8187, 0
      %8197 = vmatprep.subr.mxu0 0.0
      %8198 = vmatpush1.msra.mxu0 0.0
      %8199 = vmatprep.subr.mxu0 0.0
      %8200 = vmatpush1.msra.mxu0 0.0
      %8201 = vmatprep.subr.mxu0 0.0
      %8202 = vmatpush1.msra.mxu0 0.0
      %8203 = vmatprep.subr.mxu0 0.0
      %8204 = vmatpush1.msra.mxu0 0.0
      %8205 = vmatprep.subr.mxu0 0.0
      %8206 = vmatpush1.msra.mxu0 0.0
      %8207 = vmatprep.subr.mxu0 0.0
      %8208 = vmatpush1.msra.mxu0 0.0
      %8209 = vmatprep.subr.mxu0 0.0
      %8210 = vmatpush1.msra.mxu0 0.0
      %8211 = vmatprep.subr.mxu0 0.0
      %8212 = vmatpush1.msra.mxu0 0.0
      %8213 = vmatprep.subr.mxu0 0.0
      %8214 = vmatpush1.msra.mxu0 0.0
      %8215 = vmatprep.subr.mxu0 0.0
      %8216 = vmatpush1.msra.mxu0 0.0
      %8217 = vmatprep.subr.mxu0 0.0
      %8218 = vmatpush1.msra.mxu0 0.0
      %8219 = vmatprep.subr.mxu0 0.0
      %8220 = vmatpush1.msra.mxu0 0.0
      %8221 = vmatprep.subr.mxu0 0.0
      %8222 = vmatpush1.msra.mxu0 %v8195
      %8223 = vmatprep.subr.mxu0 0.0
      %8224 = vmatpush1.msra.mxu0 %v8186
      %8225 = vmatprep.subr.mxu0 0.0
      %8226 = vmatpush1.msra.mxu0 %v8185
      %8227 = vmatprep.subr.mxu0 0.0
      %8228 = vmatpush1.msra.mxu0 %v8184
      %8229 = vmatprep.subr.mxu0 0.0
      %8230 = vmatpush2.msra.mxu0 0.0
      %8231 = vmatprep.subr.mxu0 0.0
      %8232 = vmatpush2.msra.mxu0 0.0
      %8233 = vmatprep.subr.mxu0 0.0
      %8234 = vmatpush2.msra.mxu0 0.0
      %8235 = vmatprep.subr.mxu0 0.0
      %8236 = vmatpush2.msra.mxu0 0.0
      %8237 = vmatprep.subr.mxu0 0.0
      %8238 = vmatpush2.msra.mxu0 0.0
      %8239 = vmatprep.subr.mxu0 0.0
      %8240 = vmatpush2.msra.mxu0 0.0
      %8241 = vmatprep.subr.mxu0 0.0
      %8242 = vmatpush2.msra.mxu0 0.0
      %8243 = vmatprep.subr.mxu0 0.0
      %8244 = vmatpush2.msra.mxu0 0.0
      %8245 = vmatprep.subr.mxu0 0.0
      %8246 = vmatpush2.msra.mxu0 0.0
      %8247 = vmatprep.subr.mxu0 0.0
      %8248 = vmatpush2.msra.mxu0 0.0
      %8249 = vmatprep.subr.mxu0 0.0
      %8250 = vmatpush2.msra.mxu0 0.0
      %8251 = vmatprep.subr.mxu0 0.0
      %8252 = vmatpush2.msra.mxu0 0.0
      %8253 = vmatprep.subr.mxu0 0.0
      %8254 = vmatpush2.msra.mxu0 0.0
      %8255 = vmatprep.subr.mxu0 0.0
      %8256 = vmatpush2.msra.mxu0 0.0
      %8257 = vmatprep.subr.mxu0 0.0
      %8258 = vmatpush2.msra.mxu0 0.0
      %8259 = vmatprep.subr.mxu0 0.0
      %8260 = vmatpush2.msra.mxu0 0.0
      %8261 = vmatprep.mubr.f32.mxu0 0.0
      %8262 = vmatmul.mubr.f32.gmra.mxu0 %v7336
      %v8263 = vpop.f32.mrf.mxu0
      %v8264 = vadd.f32 0.0, %v8263
      %v8265 = vpop.f32.mrf.mxu0
      %8266 = vmatprep.mubr.f32.mxu0 0.0
      %8267 = vmatmul.mubr.f32.gmra.mxu0 %v7339
      %v8268 = vpop.f32.mrf.mxu0
      %v8269 = vadd.f32 0.0, %v8268
      %v8270 = vpop.f32.mrf.mxu0
      %8271 = vmatprep.mubr.f32.mxu0 0.0
      %8272 = vmatmul.mubr.f32.gmra.mxu0 %v7342
      %v8273 = vpop.f32.mrf.mxu0
      %v8274 = vadd.f32 0.0, %v8273
      %v8275 = vpop.f32.mrf.mxu0
      %8276 = vmatprep.mubr.f32.mxu0 0.0
      %8277 = vmatmul.mubr.f32.gmra.mxu0 %v7345
      %v8278 = vpop.f32.mrf.mxu0
      %v8279 = vadd.f32 0.0, %v8278
      %v8280 = vpop.f32.mrf.mxu0
      %8281 = vmatprep.mubr.f32.mxu0 0.0
      %8282 = vmatmul.mubr.f32.gmra.mxu0 %v7348
      %v8283 = vpop.f32.mrf.mxu0
      %v8284 = vadd.f32 0.0, %v8283
      %v8285 = vpop.f32.mrf.mxu0
      %8286 = vmatprep.mubr.f32.mxu0 0.0
      %8287 = vmatmul.mubr.f32.gmra.mxu0 %v7351
      %v8288 = vpop.f32.mrf.mxu0
      %v8289 = vadd.f32 0.0, %v8288
      %v8290 = vpop.f32.mrf.mxu0
      %8291 = vmatprep.mubr.f32.mxu0 0.0
      %8292 = vmatmul.mubr.f32.gmra.mxu0 %v7354
      %v8293 = vpop.f32.mrf.mxu0
      %v8294 = vadd.f32 0.0, %v8293
      %v8295 = vpop.f32.mrf.mxu0
      %8296 = vmatprep.mubr.f32.mxu0 0.0
      %8297 = vmatmul.mubr.f32.gmra.mxu0 %v7357
      %v8298 = vpop.f32.mrf.mxu0
      %v8299 = vadd.f32 0.0, %v8298
      %v8300 = vpop.f32.mrf.mxu0
      %8301 = vmatprep.mubr.f32.mxu0 0.0
      %8302 = vmatmul.mubr.f32.gmra.mxu0 %v7360
      %v8303 = vpop.f32.mrf.mxu0
      %v8304 = vadd.f32 0.0, %v8303
      %v8305 = vpop.f32.mrf.mxu0
      %8306 = vmatprep.mubr.f32.mxu0 0.0
      %8307 = vmatmul.mubr.f32.gmra.mxu0 %v7363
      %v8308 = vpop.f32.mrf.mxu0
      %v8309 = vadd.f32 0.0, %v8308
      %v8310 = vpop.f32.mrf.mxu0
      %8311 = vmatprep.mubr.f32.mxu0 0.0
      %8312 = vmatmul.mubr.f32.gmra.mxu0 %v7366
      %v8313 = vpop.f32.mrf.mxu0
      %v8314 = vadd.f32 0.0, %v8313
      %v8315 = vpop.f32.mrf.mxu0
      %8316 = vmatprep.mubr.f32.mxu0 0.0
      %8317 = vmatmul.mubr.f32.gmra.mxu0 %v7369
      %v8318 = vpop.f32.mrf.mxu0
      %v8319 = vadd.f32 0.0, %v8318
      %v8320 = vpop.f32.mrf.mxu0
      %8321 = vmatprep.mubr.f32.mxu0 0.0
      %8322 = vmatmul.mubr.f32.gmra.mxu0 %v7372
      %v8323 = vpop.f32.mrf.mxu0
      %v8324 = vadd.f32 0.0, %v8323
      %v8325 = vpop.f32.mrf.mxu0
      %8326 = vmatprep.mubr.f32.mxu0 0.0
      %8327 = vmatmul.mubr.f32.gmra.mxu0 %v7375
      %v8328 = vpop.f32.mrf.mxu0
      %v8329 = vadd.f32 0.0, %v8328
      %v8330 = vpop.f32.mrf.mxu0
      %8331 = vmatprep.mubr.f32.mxu0 0.0
      %8332 = vmatmul.mubr.f32.gmra.mxu0 %v7378
      %v8333 = vpop.f32.mrf.mxu0
      %v8334 = vadd.f32 0.0, %v8333
      %v8335 = vpop.f32.mrf.mxu0
      %8336 = vmatprep.mubr.f32.mxu0 0.0
      %8337 = vmatmul.mubr.f32.gmra.mxu0 %v7381
      %v8338 = vpop.f32.mrf.mxu0
      %v8339 = vadd.f32 0.0, %v8338
      %v8340 = vpop.f32.mrf.mxu0
      %8341 = vmatprep.mubr.f32.mxu0 0.0
      %8342 = vmatmul.mubr.f32.gmra.mxu0 %v7384
      %v8343 = vpop.f32.mrf.mxu0
      %v8344 = vadd.f32 0.0, %v8343
      %v8345 = vpop.f32.mrf.mxu0
      %8346 = vmatprep.mubr.f32.mxu0 0.0
      %8347 = vmatmul.mubr.f32.gmra.mxu0 %v7387
      %v8348 = vpop.f32.mrf.mxu0
      %v8349 = vadd.f32 0.0, %v8348
      %v8350 = vpop.f32.mrf.mxu0
      %8351 = vmatprep.mubr.f32.mxu0 0.0
      %8352 = vmatmul.mubr.f32.gmra.mxu0 %v7390
      %v8353 = vpop.f32.mrf.mxu0
      %v8354 = vadd.f32 0.0, %v8353
      %v8355 = vpop.f32.mrf.mxu0
      %8356 = vmatprep.mubr.f32.mxu0 0.0
      %8357 = vmatmul.mubr.f32.gmra.mxu0 %v7393
      %v8358 = vpop.f32.mrf.mxu0
      %v8359 = vadd.f32 0.0, %v8358
      %v8360 = vpop.f32.mrf.mxu0
      %8361 = vmatprep.mubr.f32.mxu0 0.0
      %8362 = vmatmul.mubr.f32.gmra.mxu0 %v7396
      %v8363 = vpop.f32.mrf.mxu0
      %v8364 = vadd.f32 0.0, %v8363
      %v8365 = vpop.f32.mrf.mxu0
      %8366 = vmatprep.mubr.f32.mxu0 0.0
      %8367 = vmatmul.mubr.f32.gmra.mxu0 %v7399
      %v8368 = vpop.f32.mrf.mxu0
      %v8369 = vadd.f32 0.0, %v8368
      %v8370 = vpop.f32.mrf.mxu0
      %8371 = vmatprep.mubr.f32.mxu0 0.0
      %8372 = vmatmul.mubr.f32.gmra.mxu0 %v7402
      %v8373 = vpop.f32.mrf.mxu0
      %v8374 = vadd.f32 0.0, %v8373
      %v8375 = vpop.f32.mrf.mxu0
      %8376 = vmatprep.mubr.f32.mxu0 0.0
      %8377 = vmatmul.mubr.f32.gmra.mxu0 %v7405
      %v8378 = vpop.f32.mrf.mxu0
      %v8379 = vadd.f32 0.0, %v8378
      %v8380 = vpop.f32.mrf.mxu0
      %8381 = vmatprep.mubr.f32.mxu0 0.0
      %8382 = vmatmul.mubr.f32.gmra.mxu0 %v7408
      %v8383 = vpop.f32.mrf.mxu0
      %v8384 = vadd.f32 0.0, %v8383
      %v8385 = vpop.f32.mrf.mxu0
      %8386 = vmatprep.mubr.f32.mxu0 0.0
      %8387 = vmatmul.mubr.f32.gmra.mxu0 %v7411
      %v8388 = vpop.f32.mrf.mxu0
      %v8389 = vadd.f32 0.0, %v8388
      %v8390 = vpop.f32.mrf.mxu0
      %8391 = vmatprep.mubr.f32.mxu0 0.0
      %8392 = vmatmul.mubr.f32.gmra.mxu0 %v7647
      %v8393 = vpop.f32.mrf.mxu0
      %v8394 = vadd.f32 0.0, %v8393
      %v8395 = vpop.f32.mrf.mxu0
      %8396 = vmatprep.mubr.f32.mxu0 0.0
      %8397 = vmatmul.mubr.f32.gmra.mxu0 %v7650
      %v8398 = vpop.f32.mrf.mxu0
      %v8399 = vadd.f32 0.0, %v8398
      %v8400 = vpop.f32.mrf.mxu0
      %8401 = vmatprep.mubr.f32.mxu0 0.0
      %8402 = vmatmul.mubr.f32.gmra.mxu0 %v7918
      %v8403 = vpop.f32.mrf.mxu0
      %v8404 = vadd.f32 0.0, %v8403
      %v8405 = vpop.f32.mrf.mxu0
      %8406 = vmatprep.mubr.f32.mxu0 0.0
      %8407 = vmatmul.mubr.f32.gmra.mxu0 %v7921
      %v8408 = vpop.f32.mrf.mxu0
      %v8409 = vadd.f32 0.0, %v8408
      %v8410 = vpop.f32.mrf.mxu0
      %8411 = vmatprep.mubr.f32.mxu0 0.0
      %8412 = vmatmul.mubr.f32.gmra.mxu0 %v8189
      %v8413 = vpop.f32.mrf.mxu0
      %v8414 = vadd.f32 0.0, %v8413
      %v8415 = vpop.f32.mrf.mxu0
      %8416 = vmatprep.mubr.f32.mxu0 0.0
      %8417 = vmatmul.mubr.f32.gmra.mxu0 %v8192
      %v8418 = vpop.f32.mrf.mxu0
      %v8419 = vadd.f32 0.0, %v8418
      %v8420 = vpop.f32.mrf.mxu0
      %8421 = vdwg.mxu0
      %v8422 = vadd.f32 %v8151, %v8264
      %v8423 = vadd.f32 %v8152, %v8269
      %v8424 = vadd.f32 %v8153, %v8274
      %v8425 = vadd.f32 %v8154, %v8279
      %v8426 = vadd.f32 %v8155, %v8284
      %v8427 = vadd.f32 %v8156, %v8289
      %v8428 = vadd.f32 %v8157, %v8294
      %v8429 = vadd.f32 %v8158, %v8299
      %v8430 = vadd.f32 %v8159, %v8304
      %v8431 = vadd.f32 %v8160, %v8309
      %v8432 = vadd.f32 %v8161, %v8314
      %v8433 = vadd.f32 %v8162, %v8319
      %v8434 = vadd.f32 %v8163, %v8324
      %v8435 = vadd.f32 %v8164, %v8329
      %v8436 = vadd.f32 %v8165, %v8334
      %v8437 = vadd.f32 %v8166, %v8339
      %v8438 = vadd.f32 %v8167, %v8344
      %v8439 = vadd.f32 %v8168, %v8349
      %v8440 = vadd.f32 %v8169, %v8354
      %v8441 = vadd.f32 %v8170, %v8359
      %v8442 = vadd.f32 %v8171, %v8364
      %v8443 = vadd.f32 %v8172, %v8369
      %v8444 = vadd.f32 %v8173, %v8374
      %v8445 = vadd.f32 %v8174, %v8379
      %v8446 = vadd.f32 %v8175, %v8384
      %v8447 = vadd.f32 %v8176, %v8389
      %v8448 = vadd.f32 %v8177, %v8394
      %v8449 = vadd.f32 %v8178, %v8399
      %v8450 = vadd.f32 %v8179, %v8404
      %v8451 = vadd.f32 %v8180, %v8409
      %v8452 = vadd.f32 %v8181, %v8414
      %v8453 = vadd.f32 %v8182, %v8419
      %s8454 = scalar_lea.vmem %s7, 128
      %v8455 = vld [vmem:[%s8454] sm:$0xff]
      %v8456 = vld [vmem:[%s8454 + $0x8] sm:$0xff]
      %v8457 = vld [vmem:[%s8454 + $0x10] sm:$0xff]
      %v8458 = vld [vmem:[%s8454 + $0x18] sm:$0xf]
      %v8460 = vsel %vm7316, %v7299, 0
      %v8463 = vsel %vm7316, %v7300, 0
      %v8466 = vsel %vm833, %v8458, 0
      %8468 = vmatprep.subr.mxu0 0.0
      %8469 = vmatpush1.msra.mxu0 0.0
      %8470 = vmatprep.subr.mxu0 0.0
      %8471 = vmatpush1.msra.mxu0 0.0
      %8472 = vmatprep.subr.mxu0 0.0
      %8473 = vmatpush1.msra.mxu0 0.0
      %8474 = vmatprep.subr.mxu0 0.0
      %8475 = vmatpush1.msra.mxu0 0.0
      %8476 = vmatprep.subr.mxu0 0.0
      %8477 = vmatpush1.msra.mxu0 0.0
      %8478 = vmatprep.subr.mxu0 0.0
      %8479 = vmatpush1.msra.mxu0 0.0
      %8480 = vmatprep.subr.mxu0 0.0
      %8481 = vmatpush1.msra.mxu0 0.0
      %8482 = vmatprep.subr.mxu0 0.0
      %8483 = vmatpush1.msra.mxu0 0.0
      %8484 = vmatprep.subr.mxu0 0.0
      %8485 = vmatpush1.msra.mxu0 0.0
      %8486 = vmatprep.subr.mxu0 0.0
      %8487 = vmatpush1.msra.mxu0 0.0
      %8488 = vmatprep.subr.mxu0 0.0
      %8489 = vmatpush1.msra.mxu0 0.0
      %8490 = vmatprep.subr.mxu0 0.0
      %8491 = vmatpush1.msra.mxu0 0.0
      %8492 = vmatprep.subr.mxu0 0.0
      %8493 = vmatpush1.msra.mxu0 %v8466
      %8494 = vmatprep.subr.mxu0 0.0
      %8495 = vmatpush1.msra.mxu0 %v8457
      %8496 = vmatprep.subr.mxu0 0.0
      %8497 = vmatpush1.msra.mxu0 %v8456
      %8498 = vmatprep.subr.mxu0 0.0
      %8499 = vmatpush1.msra.mxu0 %v8455
      %8500 = vmatprep.subr.mxu0 0.0
      %8501 = vmatpush2.msra.mxu0 0.0
      %8502 = vmatprep.subr.mxu0 0.0
      %8503 = vmatpush2.msra.mxu0 0.0
      %8504 = vmatprep.subr.mxu0 0.0
      %8505 = vmatpush2.msra.mxu0 0.0
      %8506 = vmatprep.subr.mxu0 0.0
      %8507 = vmatpush2.msra.mxu0 0.0
      %8508 = vmatprep.subr.mxu0 0.0
      %8509 = vmatpush2.msra.mxu0 0.0
      %8510 = vmatprep.subr.mxu0 0.0
      %8511 = vmatpush2.msra.mxu0 0.0
      %8512 = vmatprep.subr.mxu0 0.0
      %8513 = vmatpush2.msra.mxu0 0.0
      %8514 = vmatprep.subr.mxu0 0.0
      %8515 = vmatpush2.msra.mxu0 0.0
      %8516 = vmatprep.subr.mxu0 0.0
      %8517 = vmatpush2.msra.mxu0 0.0
      %8518 = vmatprep.subr.mxu0 0.0
      %8519 = vmatpush2.msra.mxu0 0.0
      %8520 = vmatprep.subr.mxu0 0.0
      %8521 = vmatpush2.msra.mxu0 0.0
      %8522 = vmatprep.subr.mxu0 0.0
      %8523 = vmatpush2.msra.mxu0 0.0
      %8524 = vmatprep.subr.mxu0 0.0
      %8525 = vmatpush2.msra.mxu0 0.0
      %8526 = vmatprep.subr.mxu0 0.0
      %8527 = vmatpush2.msra.mxu0 0.0
      %8528 = vmatprep.subr.mxu0 0.0
      %8529 = vmatpush2.msra.mxu0 0.0
      %8530 = vmatprep.subr.mxu0 0.0
      %8531 = vmatpush2.msra.mxu0 0.0
      %8532 = vmatprep.mubr.f32.mxu0 0.0
      %8533 = vmatmul.mubr.f32.gmra.mxu0 %v7342
      %v8534 = vpop.f32.mrf.mxu0
      %v8535 = vadd.f32 0.0, %v8534
      %v8536 = vpop.f32.mrf.mxu0
      %8537 = vmatprep.mubr.f32.mxu0 0.0
      %8538 = vmatmul.mubr.f32.gmra.mxu0 %v7345
      %v8539 = vpop.f32.mrf.mxu0
      %v8540 = vadd.f32 0.0, %v8539
      %v8541 = vpop.f32.mrf.mxu0
      %8542 = vmatprep.mubr.f32.mxu0 0.0
      %8543 = vmatmul.mubr.f32.gmra.mxu0 %v7348
      %v8544 = vpop.f32.mrf.mxu0
      %v8545 = vadd.f32 0.0, %v8544
      %v8546 = vpop.f32.mrf.mxu0
      %8547 = vmatprep.mubr.f32.mxu0 0.0
      %8548 = vmatmul.mubr.f32.gmra.mxu0 %v7351
      %v8549 = vpop.f32.mrf.mxu0
      %v8550 = vadd.f32 0.0, %v8549
      %v8551 = vpop.f32.mrf.mxu0
      %8552 = vmatprep.mubr.f32.mxu0 0.0
      %8553 = vmatmul.mubr.f32.gmra.mxu0 %v7354
      %v8554 = vpop.f32.mrf.mxu0
      %v8555 = vadd.f32 0.0, %v8554
      %v8556 = vpop.f32.mrf.mxu0
      %8557 = vmatprep.mubr.f32.mxu0 0.0
      %8558 = vmatmul.mubr.f32.gmra.mxu0 %v7357
      %v8559 = vpop.f32.mrf.mxu0
      %v8560 = vadd.f32 0.0, %v8559
      %v8561 = vpop.f32.mrf.mxu0
      %8562 = vmatprep.mubr.f32.mxu0 0.0
      %8563 = vmatmul.mubr.f32.gmra.mxu0 %v7360
      %v8564 = vpop.f32.mrf.mxu0
      %v8565 = vadd.f32 0.0, %v8564
      %v8566 = vpop.f32.mrf.mxu0
      %8567 = vmatprep.mubr.f32.mxu0 0.0
      %8568 = vmatmul.mubr.f32.gmra.mxu0 %v7363
      %v8569 = vpop.f32.mrf.mxu0
      %v8570 = vadd.f32 0.0, %v8569
      %v8571 = vpop.f32.mrf.mxu0
      %8572 = vmatprep.mubr.f32.mxu0 0.0
      %8573 = vmatmul.mubr.f32.gmra.mxu0 %v7366
      %v8574 = vpop.f32.mrf.mxu0
      %v8575 = vadd.f32 0.0, %v8574
      %v8576 = vpop.f32.mrf.mxu0
      %8577 = vmatprep.mubr.f32.mxu0 0.0
      %8578 = vmatmul.mubr.f32.gmra.mxu0 %v7369
      %v8579 = vpop.f32.mrf.mxu0
      %v8580 = vadd.f32 0.0, %v8579
      %v8581 = vpop.f32.mrf.mxu0
      %8582 = vmatprep.mubr.f32.mxu0 0.0
      %8583 = vmatmul.mubr.f32.gmra.mxu0 %v7372
      %v8584 = vpop.f32.mrf.mxu0
      %v8585 = vadd.f32 0.0, %v8584
      %v8586 = vpop.f32.mrf.mxu0
      %8587 = vmatprep.mubr.f32.mxu0 0.0
      %8588 = vmatmul.mubr.f32.gmra.mxu0 %v7375
      %v8589 = vpop.f32.mrf.mxu0
      %v8590 = vadd.f32 0.0, %v8589
      %v8591 = vpop.f32.mrf.mxu0
      %8592 = vmatprep.mubr.f32.mxu0 0.0
      %8593 = vmatmul.mubr.f32.gmra.mxu0 %v7378
      %v8594 = vpop.f32.mrf.mxu0
      %v8595 = vadd.f32 0.0, %v8594
      %v8596 = vpop.f32.mrf.mxu0
      %8597 = vmatprep.mubr.f32.mxu0 0.0
      %8598 = vmatmul.mubr.f32.gmra.mxu0 %v7381
      %v8599 = vpop.f32.mrf.mxu0
      %v8600 = vadd.f32 0.0, %v8599
      %v8601 = vpop.f32.mrf.mxu0
      %8602 = vmatprep.mubr.f32.mxu0 0.0
      %8603 = vmatmul.mubr.f32.gmra.mxu0 %v7384
      %v8604 = vpop.f32.mrf.mxu0
      %v8605 = vadd.f32 0.0, %v8604
      %v8606 = vpop.f32.mrf.mxu0
      %8607 = vmatprep.mubr.f32.mxu0 0.0
      %8608 = vmatmul.mubr.f32.gmra.mxu0 %v7387
      %v8609 = vpop.f32.mrf.mxu0
      %v8610 = vadd.f32 0.0, %v8609
      %v8611 = vpop.f32.mrf.mxu0
      %8612 = vmatprep.mubr.f32.mxu0 0.0
      %8613 = vmatmul.mubr.f32.gmra.mxu0 %v7390
      %v8614 = vpop.f32.mrf.mxu0
      %v8615 = vadd.f32 0.0, %v8614
      %v8616 = vpop.f32.mrf.mxu0
      %8617 = vmatprep.mubr.f32.mxu0 0.0
      %8618 = vmatmul.mubr.f32.gmra.mxu0 %v7393
      %v8619 = vpop.f32.mrf.mxu0
      %v8620 = vadd.f32 0.0, %v8619
      %v8621 = vpop.f32.mrf.mxu0
      %8622 = vmatprep.mubr.f32.mxu0 0.0
      %8623 = vmatmul.mubr.f32.gmra.mxu0 %v7396
      %v8624 = vpop.f32.mrf.mxu0
      %v8625 = vadd.f32 0.0, %v8624
      %v8626 = vpop.f32.mrf.mxu0
      %8627 = vmatprep.mubr.f32.mxu0 0.0
      %8628 = vmatmul.mubr.f32.gmra.mxu0 %v7399
      %v8629 = vpop.f32.mrf.mxu0
      %v8630 = vadd.f32 0.0, %v8629
      %v8631 = vpop.f32.mrf.mxu0
      %8632 = vmatprep.mubr.f32.mxu0 0.0
      %8633 = vmatmul.mubr.f32.gmra.mxu0 %v7402
      %v8634 = vpop.f32.mrf.mxu0
      %v8635 = vadd.f32 0.0, %v8634
      %v8636 = vpop.f32.mrf.mxu0
      %8637 = vmatprep.mubr.f32.mxu0 0.0
      %8638 = vmatmul.mubr.f32.gmra.mxu0 %v7405
      %v8639 = vpop.f32.mrf.mxu0
      %v8640 = vadd.f32 0.0, %v8639
      %v8641 = vpop.f32.mrf.mxu0
      %8642 = vmatprep.mubr.f32.mxu0 0.0
      %8643 = vmatmul.mubr.f32.gmra.mxu0 %v7408
      %v8644 = vpop.f32.mrf.mxu0
      %v8645 = vadd.f32 0.0, %v8644
      %v8646 = vpop.f32.mrf.mxu0
      %8647 = vmatprep.mubr.f32.mxu0 0.0
      %8648 = vmatmul.mubr.f32.gmra.mxu0 %v7411
      %v8649 = vpop.f32.mrf.mxu0
      %v8650 = vadd.f32 0.0, %v8649
      %v8651 = vpop.f32.mrf.mxu0
      %8652 = vmatprep.mubr.f32.mxu0 0.0
      %8653 = vmatmul.mubr.f32.gmra.mxu0 %v7647
      %v8654 = vpop.f32.mrf.mxu0
      %v8655 = vadd.f32 0.0, %v8654
      %v8656 = vpop.f32.mrf.mxu0
      %8657 = vmatprep.mubr.f32.mxu0 0.0
      %8658 = vmatmul.mubr.f32.gmra.mxu0 %v7650
      %v8659 = vpop.f32.mrf.mxu0
      %v8660 = vadd.f32 0.0, %v8659
      %v8661 = vpop.f32.mrf.mxu0
      %8662 = vmatprep.mubr.f32.mxu0 0.0
      %8663 = vmatmul.mubr.f32.gmra.mxu0 %v7918
      %v8664 = vpop.f32.mrf.mxu0
      %v8665 = vadd.f32 0.0, %v8664
      %v8666 = vpop.f32.mrf.mxu0
      %8667 = vmatprep.mubr.f32.mxu0 0.0
      %8668 = vmatmul.mubr.f32.gmra.mxu0 %v7921
      %v8669 = vpop.f32.mrf.mxu0
      %v8670 = vadd.f32 0.0, %v8669
      %v8671 = vpop.f32.mrf.mxu0
      %8672 = vmatprep.mubr.f32.mxu0 0.0
      %8673 = vmatmul.mubr.f32.gmra.mxu0 %v8189
      %v8674 = vpop.f32.mrf.mxu0
      %v8675 = vadd.f32 0.0, %v8674
      %v8676 = vpop.f32.mrf.mxu0
      %8677 = vmatprep.mubr.f32.mxu0 0.0
      %8678 = vmatmul.mubr.f32.gmra.mxu0 %v8192
      %v8679 = vpop.f32.mrf.mxu0
      %v8680 = vadd.f32 0.0, %v8679
      %v8681 = vpop.f32.mrf.mxu0
      %8682 = vmatprep.mubr.f32.mxu0 0.0
      %8683 = vmatmul.mubr.f32.gmra.mxu0 %v8460
      %v8684 = vpop.f32.mrf.mxu0
      %v8685 = vadd.f32 0.0, %v8684
      %v8686 = vpop.f32.mrf.mxu0
      %8687 = vmatprep.mubr.f32.mxu0 0.0
      %8688 = vmatmul.mubr.f32.gmra.mxu0 %v8463
      %v8689 = vpop.f32.mrf.mxu0
      %v8690 = vadd.f32 0.0, %v8689
      %v8691 = vpop.f32.mrf.mxu0
      %8692 = vdwg.mxu0
      %v8693 = vadd.f32 %v8422, %v8535
      %v8694 = vadd.f32 %v8423, %v8540
      %v8695 = vadd.f32 %v8424, %v8545
      %v8696 = vadd.f32 %v8425, %v8550
      %v8697 = vadd.f32 %v8426, %v8555
      %v8698 = vadd.f32 %v8427, %v8560
      %v8699 = vadd.f32 %v8428, %v8565
      %v8700 = vadd.f32 %v8429, %v8570
      %v8701 = vadd.f32 %v8430, %v8575
      %v8702 = vadd.f32 %v8431, %v8580
      %v8703 = vadd.f32 %v8432, %v8585
      %v8704 = vadd.f32 %v8433, %v8590
      %v8705 = vadd.f32 %v8434, %v8595
      %v8706 = vadd.f32 %v8435, %v8600
      %v8707 = vadd.f32 %v8436, %v8605
      %v8708 = vadd.f32 %v8437, %v8610
      %v8709 = vadd.f32 %v8438, %v8615
      %v8710 = vadd.f32 %v8439, %v8620
      %v8711 = vadd.f32 %v8440, %v8625
      %v8712 = vadd.f32 %v8441, %v8630
      %v8713 = vadd.f32 %v8442, %v8635
      %v8714 = vadd.f32 %v8443, %v8640
      %v8715 = vadd.f32 %v8444, %v8645
      %v8716 = vadd.f32 %v8445, %v8650
      %v8717 = vadd.f32 %v8446, %v8655
      %v8718 = vadd.f32 %v8447, %v8660
      %v8719 = vadd.f32 %v8448, %v8665
      %v8720 = vadd.f32 %v8449, %v8670
      %v8721 = vadd.f32 %v8450, %v8675
      %v8722 = vadd.f32 %v8451, %v8680
      %v8723 = vadd.f32 %v8452, %v8685
      %v8724 = vadd.f32 %v8453, %v8690
      %s8725 = scalar_lea.vmem %s7, 160
      %v8726 = vld [vmem:[%s8725] sm:$0xff]
      %v8727 = vld [vmem:[%s8725 + $0x8] sm:$0xff]
      %v8728 = vld [vmem:[%s8725 + $0x10] sm:$0xff]
      %v8729 = vld [vmem:[%s8725 + $0x18] sm:$0xf]
      %v8731 = vsel %vm7316, %v7301, 0
      %v8734 = vsel %vm7316, %v7302, 0
      %v8737 = vsel %vm833, %v8729, 0
      %8739 = vmatprep.subr.mxu0 0.0
      %8740 = vmatpush1.msra.mxu0 0.0
      %8741 = vmatprep.subr.mxu0 0.0
      %8742 = vmatpush1.msra.mxu0 0.0
      %8743 = vmatprep.subr.mxu0 0.0
      %8744 = vmatpush1.msra.mxu0 0.0
      %8745 = vmatprep.subr.mxu0 0.0
      %8746 = vmatpush1.msra.mxu0 0.0
      %8747 = vmatprep.subr.mxu0 0.0
      %8748 = vmatpush1.msra.mxu0 0.0
      %8749 = vmatprep.subr.mxu0 0.0
      %8750 = vmatpush1.msra.mxu0 0.0
      %8751 = vmatprep.subr.mxu0 0.0
      %8752 = vmatpush1.msra.mxu0 0.0
      %8753 = vmatprep.subr.mxu0 0.0
      %8754 = vmatpush1.msra.mxu0 0.0
      %8755 = vmatprep.subr.mxu0 0.0
      %8756 = vmatpush1.msra.mxu0 0.0
      %8757 = vmatprep.subr.mxu0 0.0
      %8758 = vmatpush1.msra.mxu0 0.0
      %8759 = vmatprep.subr.mxu0 0.0
      %8760 = vmatpush1.msra.mxu0 0.0
      %8761 = vmatprep.subr.mxu0 0.0
      %8762 = vmatpush1.msra.mxu0 0.0
      %8763 = vmatprep.subr.mxu0 0.0
      %8764 = vmatpush1.msra.mxu0 %v8737
      %8765 = vmatprep.subr.mxu0 0.0
      %8766 = vmatpush1.msra.mxu0 %v8728
      %8767 = vmatprep.subr.mxu0 0.0
      %8768 = vmatpush1.msra.mxu0 %v8727
      %8769 = vmatprep.subr.mxu0 0.0
      %8770 = vmatpush1.msra.mxu0 %v8726
      %8771 = vmatprep.subr.mxu0 0.0
      %8772 = vmatpush2.msra.mxu0 0.0
      %8773 = vmatprep.subr.mxu0 0.0
      %8774 = vmatpush2.msra.mxu0 0.0
      %8775 = vmatprep.subr.mxu0 0.0
      %8776 = vmatpush2.msra.mxu0 0.0
      %8777 = vmatprep.subr.mxu0 0.0
      %8778 = vmatpush2.msra.mxu0 0.0
      %8779 = vmatprep.subr.mxu0 0.0
      %8780 = vmatpush2.msra.mxu0 0.0
      %8781 = vmatprep.subr.mxu0 0.0
      %8782 = vmatpush2.msra.mxu0 0.0
      %8783 = vmatprep.subr.mxu0 0.0
      %8784 = vmatpush2.msra.mxu0 0.0
      %8785 = vmatprep.subr.mxu0 0.0
      %8786 = vmatpush2.msra.mxu0 0.0
      %8787 = vmatprep.subr.mxu0 0.0
      %8788 = vmatpush2.msra.mxu0 0.0
      %8789 = vmatprep.subr.mxu0 0.0
      %8790 = vmatpush2.msra.mxu0 0.0
      %8791 = vmatprep.subr.mxu0 0.0
      %8792 = vmatpush2.msra.mxu0 0.0
      %8793 = vmatprep.subr.mxu0 0.0
      %8794 = vmatpush2.msra.mxu0 0.0
      %8795 = vmatprep.subr.mxu0 0.0
      %8796 = vmatpush2.msra.mxu0 0.0
      %8797 = vmatprep.subr.mxu0 0.0
      %8798 = vmatpush2.msra.mxu0 0.0
      %8799 = vmatprep.subr.mxu0 0.0
      %8800 = vmatpush2.msra.mxu0 0.0
      %8801 = vmatprep.subr.mxu0 0.0
      %8802 = vmatpush2.msra.mxu0 0.0
      %8803 = vmatprep.mubr.f32.mxu0 0.0
      %8804 = vmatmul.mubr.f32.gmra.mxu0 %v7348
      %v8805 = vpop.f32.mrf.mxu0
      %v8806 = vadd.f32 0.0, %v8805
      %v8807 = vpop.f32.mrf.mxu0
      %8808 = vmatprep.mubr.f32.mxu0 0.0
      %8809 = vmatmul.mubr.f32.gmra.mxu0 %v7351
      %v8810 = vpop.f32.mrf.mxu0
      %v8811 = vadd.f32 0.0, %v8810
      %v8812 = vpop.f32.mrf.mxu0
      %8813 = vmatprep.mubr.f32.mxu0 0.0
      %8814 = vmatmul.mubr.f32.gmra.mxu0 %v7354
      %v8815 = vpop.f32.mrf.mxu0
      %v8816 = vadd.f32 0.0, %v8815
      %v8817 = vpop.f32.mrf.mxu0
      %8818 = vmatprep.mubr.f32.mxu0 0.0
      %8819 = vmatmul.mubr.f32.gmra.mxu0 %v7357
      %v8820 = vpop.f32.mrf.mxu0
      %v8821 = vadd.f32 0.0, %v8820
      %v8822 = vpop.f32.mrf.mxu0
      %8823 = vmatprep.mubr.f32.mxu0 0.0
      %8824 = vmatmul.mubr.f32.gmra.mxu0 %v7360
      %v8825 = vpop.f32.mrf.mxu0
      %v8826 = vadd.f32 0.0, %v8825
      %v8827 = vpop.f32.mrf.mxu0
      %8828 = vmatprep.mubr.f32.mxu0 0.0
      %8829 = vmatmul.mubr.f32.gmra.mxu0 %v7363
      %v8830 = vpop.f32.mrf.mxu0
      %v8831 = vadd.f32 0.0, %v8830
      %v8832 = vpop.f32.mrf.mxu0
      %8833 = vmatprep.mubr.f32.mxu0 0.0
      %8834 = vmatmul.mubr.f32.gmra.mxu0 %v7366
      %v8835 = vpop.f32.mrf.mxu0
      %v8836 = vadd.f32 0.0, %v8835
      %v8837 = vpop.f32.mrf.mxu0
      %8838 = vmatprep.mubr.f32.mxu0 0.0
      %8839 = vmatmul.mubr.f32.gmra.mxu0 %v7369
      %v8840 = vpop.f32.mrf.mxu0
      %v8841 = vadd.f32 0.0, %v8840
      %v8842 = vpop.f32.mrf.mxu0
      %8843 = vmatprep.mubr.f32.mxu0 0.0
      %8844 = vmatmul.mubr.f32.gmra.mxu0 %v7372
      %v8845 = vpop.f32.mrf.mxu0
      %v8846 = vadd.f32 0.0, %v8845
      %v8847 = vpop.f32.mrf.mxu0
      %8848 = vmatprep.mubr.f32.mxu0 0.0
      %8849 = vmatmul.mubr.f32.gmra.mxu0 %v7375
      %v8850 = vpop.f32.mrf.mxu0
      %v8851 = vadd.f32 0.0, %v8850
      %v8852 = vpop.f32.mrf.mxu0
      %8853 = vmatprep.mubr.f32.mxu0 0.0
      %8854 = vmatmul.mubr.f32.gmra.mxu0 %v7378
      %v8855 = vpop.f32.mrf.mxu0
      %v8856 = vadd.f32 0.0, %v8855
      %v8857 = vpop.f32.mrf.mxu0
      %8858 = vmatprep.mubr.f32.mxu0 0.0
      %8859 = vmatmul.mubr.f32.gmra.mxu0 %v7381
      %v8860 = vpop.f32.mrf.mxu0
      %v8861 = vadd.f32 0.0, %v8860
      %v8862 = vpop.f32.mrf.mxu0
      %8863 = vmatprep.mubr.f32.mxu0 0.0
      %8864 = vmatmul.mubr.f32.gmra.mxu0 %v7384
      %v8865 = vpop.f32.mrf.mxu0
      %v8866 = vadd.f32 0.0, %v8865
      %v8867 = vpop.f32.mrf.mxu0
      %8868 = vmatprep.mubr.f32.mxu0 0.0
      %8869 = vmatmul.mubr.f32.gmra.mxu0 %v7387
      %v8870 = vpop.f32.mrf.mxu0
      %v8871 = vadd.f32 0.0, %v8870
      %v8872 = vpop.f32.mrf.mxu0
      %8873 = vmatprep.mubr.f32.mxu0 0.0
      %8874 = vmatmul.mubr.f32.gmra.mxu0 %v7390
      %v8875 = vpop.f32.mrf.mxu0
      %v8876 = vadd.f32 0.0, %v8875
      %v8877 = vpop.f32.mrf.mxu0
      %8878 = vmatprep.mubr.f32.mxu0 0.0
      %8879 = vmatmul.mubr.f32.gmra.mxu0 %v7393
      %v8880 = vpop.f32.mrf.mxu0
      %v8881 = vadd.f32 0.0, %v8880
      %v8882 = vpop.f32.mrf.mxu0
      %8883 = vmatprep.mubr.f32.mxu0 0.0
      %8884 = vmatmul.mubr.f32.gmra.mxu0 %v7396
      %v8885 = vpop.f32.mrf.mxu0
      %v8886 = vadd.f32 0.0, %v8885
      %v8887 = vpop.f32.mrf.mxu0
      %8888 = vmatprep.mubr.f32.mxu0 0.0
      %8889 = vmatmul.mubr.f32.gmra.mxu0 %v7399
      %v8890 = vpop.f32.mrf.mxu0
      %v8891 = vadd.f32 0.0, %v8890
      %v8892 = vpop.f32.mrf.mxu0
      %8893 = vmatprep.mubr.f32.mxu0 0.0
      %8894 = vmatmul.mubr.f32.gmra.mxu0 %v7402
      %v8895 = vpop.f32.mrf.mxu0
      %v8896 = vadd.f32 0.0, %v8895
      %v8897 = vpop.f32.mrf.mxu0
      %8898 = vmatprep.mubr.f32.mxu0 0.0
      %8899 = vmatmul.mubr.f32.gmra.mxu0 %v7405
      %v8900 = vpop.f32.mrf.mxu0
      %v8901 = vadd.f32 0.0, %v8900
      %v8902 = vpop.f32.mrf.mxu0
      %8903 = vmatprep.mubr.f32.mxu0 0.0
      %8904 = vmatmul.mubr.f32.gmra.mxu0 %v7408
      %v8905 = vpop.f32.mrf.mxu0
      %v8906 = vadd.f32 0.0, %v8905
      %v8907 = vpop.f32.mrf.mxu0
      %8908 = vmatprep.mubr.f32.mxu0 0.0
      %8909 = vmatmul.mubr.f32.gmra.mxu0 %v7411
      %v8910 = vpop.f32.mrf.mxu0
      %v8911 = vadd.f32 0.0, %v8910
      %v8912 = vpop.f32.mrf.mxu0
      %8913 = vmatprep.mubr.f32.mxu0 0.0
      %8914 = vmatmul.mubr.f32.gmra.mxu0 %v7647
      %v8915 = vpop.f32.mrf.mxu0
      %v8916 = vadd.f32 0.0, %v8915
      %v8917 = vpop.f32.mrf.mxu0
      %8918 = vmatprep.mubr.f32.mxu0 0.0
      %8919 = vmatmul.mubr.f32.gmra.mxu0 %v7650
      %v8920 = vpop.f32.mrf.mxu0
      %v8921 = vadd.f32 0.0, %v8920
      %v8922 = vpop.f32.mrf.mxu0
      %8923 = vmatprep.mubr.f32.mxu0 0.0
      %8924 = vmatmul.mubr.f32.gmra.mxu0 %v7918
      %v8925 = vpop.f32.mrf.mxu0
      %v8926 = vadd.f32 0.0, %v8925
      %v8927 = vpop.f32.mrf.mxu0
      %8928 = vmatprep.mubr.f32.mxu0 0.0
      %8929 = vmatmul.mubr.f32.gmra.mxu0 %v7921
      %v8930 = vpop.f32.mrf.mxu0
      %v8931 = vadd.f32 0.0, %v8930
      %v8932 = vpop.f32.mrf.mxu0
      %8933 = vmatprep.mubr.f32.mxu0 0.0
      %8934 = vmatmul.mubr.f32.gmra.mxu0 %v8189
      %v8935 = vpop.f32.mrf.mxu0
      %v8936 = vadd.f32 0.0, %v8935
      %v8937 = vpop.f32.mrf.mxu0
      %8938 = vmatprep.mubr.f32.mxu0 0.0
      %8939 = vmatmul.mubr.f32.gmra.mxu0 %v8192
      %v8940 = vpop.f32.mrf.mxu0
      %v8941 = vadd.f32 0.0, %v8940
      %v8942 = vpop.f32.mrf.mxu0
      %8943 = vmatprep.mubr.f32.mxu0 0.0
      %8944 = vmatmul.mubr.f32.gmra.mxu0 %v8460
      %v8945 = vpop.f32.mrf.mxu0
      %v8946 = vadd.f32 0.0, %v8945
      %v8947 = vpop.f32.mrf.mxu0
      %8948 = vmatprep.mubr.f32.mxu0 0.0
      %8949 = vmatmul.mubr.f32.gmra.mxu0 %v8463
      %v8950 = vpop.f32.mrf.mxu0
      %v8951 = vadd.f32 0.0, %v8950
      %v8952 = vpop.f32.mrf.mxu0
      %8953 = vmatprep.mubr.f32.mxu0 0.0
      %8954 = vmatmul.mubr.f32.gmra.mxu0 %v8731
      %v8955 = vpop.f32.mrf.mxu0
      %v8956 = vadd.f32 0.0, %v8955
      %v8957 = vpop.f32.mrf.mxu0
      %8958 = vmatprep.mubr.f32.mxu0 0.0
      %8959 = vmatmul.mubr.f32.gmra.mxu0 %v8734
      %v8960 = vpop.f32.mrf.mxu0
      %v8961 = vadd.f32 0.0, %v8960
      %v8962 = vpop.f32.mrf.mxu0
      %8963 = vdwg.mxu0
      %v8964 = vadd.f32 %v8693, %v8806
      %v8965 = vadd.f32 %v8694, %v8811
      %v8966 = vadd.f32 %v8695, %v8816
      %v8967 = vadd.f32 %v8696, %v8821
      %v8968 = vadd.f32 %v8697, %v8826
      %v8969 = vadd.f32 %v8698, %v8831
      %v8970 = vadd.f32 %v8699, %v8836
      %v8971 = vadd.f32 %v8700, %v8841
      %v8972 = vadd.f32 %v8701, %v8846
      %v8973 = vadd.f32 %v8702, %v8851
      %v8974 = vadd.f32 %v8703, %v8856
      %v8975 = vadd.f32 %v8704, %v8861
      %v8976 = vadd.f32 %v8705, %v8866
      %v8977 = vadd.f32 %v8706, %v8871
      %v8978 = vadd.f32 %v8707, %v8876
      %v8979 = vadd.f32 %v8708, %v8881
      %v8980 = vadd.f32 %v8709, %v8886
      %v8981 = vadd.f32 %v8710, %v8891
      %v8982 = vadd.f32 %v8711, %v8896
      %v8983 = vadd.f32 %v8712, %v8901
      %v8984 = vadd.f32 %v8713, %v8906
      %v8985 = vadd.f32 %v8714, %v8911
      %v8986 = vadd.f32 %v8715, %v8916
      %v8987 = vadd.f32 %v8716, %v8921
      %v8988 = vadd.f32 %v8717, %v8926
      %v8989 = vadd.f32 %v8718, %v8931
      %v8990 = vadd.f32 %v8719, %v8936
      %v8991 = vadd.f32 %v8720, %v8941
      %v8992 = vadd.f32 %v8721, %v8946
      %v8993 = vadd.f32 %v8722, %v8951
      %v8994 = vadd.f32 %v8723, %v8956
      %v8995 = vadd.f32 %v8724, %v8961
      %s8996 = scalar_lea.vmem %s7, 192
      %v8997 = vld [vmem:[%s8996] sm:$0xff]
      %v8998 = vld [vmem:[%s8996 + $0x8] sm:$0xff]
      %v8999 = vld [vmem:[%s8996 + $0x10] sm:$0xff]
      %v9000 = vld [vmem:[%s8996 + $0x18] sm:$0xf]
      %v9002 = vsel %vm7316, %v7303, 0
      %v9005 = vsel %vm7316, %v7304, 0
      %v9008 = vsel %vm833, %v9000, 0
      %9010 = vmatprep.subr.mxu0 0.0
      %9011 = vmatpush1.msra.mxu0 0.0
      %9012 = vmatprep.subr.mxu0 0.0
      %9013 = vmatpush1.msra.mxu0 0.0
      %9014 = vmatprep.subr.mxu0 0.0
      %9015 = vmatpush1.msra.mxu0 0.0
      %9016 = vmatprep.subr.mxu0 0.0
      %9017 = vmatpush1.msra.mxu0 0.0
      %9018 = vmatprep.subr.mxu0 0.0
      %9019 = vmatpush1.msra.mxu0 0.0
      %9020 = vmatprep.subr.mxu0 0.0
      %9021 = vmatpush1.msra.mxu0 0.0
      %9022 = vmatprep.subr.mxu0 0.0
      %9023 = vmatpush1.msra.mxu0 0.0
      %9024 = vmatprep.subr.mxu0 0.0
      %9025 = vmatpush1.msra.mxu0 0.0
      %9026 = vmatprep.subr.mxu0 0.0
      %9027 = vmatpush1.msra.mxu0 0.0
      %9028 = vmatprep.subr.mxu0 0.0
      %9029 = vmatpush1.msra.mxu0 0.0
      %9030 = vmatprep.subr.mxu0 0.0
      %9031 = vmatpush1.msra.mxu0 0.0
      %9032 = vmatprep.subr.mxu0 0.0
      %9033 = vmatpush1.msra.mxu0 0.0
      %9034 = vmatprep.subr.mxu0 0.0
      %9035 = vmatpush1.msra.mxu0 %v9008
      %9036 = vmatprep.subr.mxu0 0.0
      %9037 = vmatpush1.msra.mxu0 %v8999
      %9038 = vmatprep.subr.mxu0 0.0
      %9039 = vmatpush1.msra.mxu0 %v8998
      %9040 = vmatprep.subr.mxu0 0.0
      %9041 = vmatpush1.msra.mxu0 %v8997
      %9042 = vmatprep.subr.mxu0 0.0
      %9043 = vmatpush2.msra.mxu0 0.0
      %9044 = vmatprep.subr.mxu0 0.0
      %9045 = vmatpush2.msra.mxu0 0.0
      %9046 = vmatprep.subr.mxu0 0.0
      %9047 = vmatpush2.msra.mxu0 0.0
      %9048 = vmatprep.subr.mxu0 0.0
      %9049 = vmatpush2.msra.mxu0 0.0
      %9050 = vmatprep.subr.mxu0 0.0
      %9051 = vmatpush2.msra.mxu0 0.0
      %9052 = vmatprep.subr.mxu0 0.0
      %9053 = vmatpush2.msra.mxu0 0.0
      %9054 = vmatprep.subr.mxu0 0.0
      %9055 = vmatpush2.msra.mxu0 0.0
      %9056 = vmatprep.subr.mxu0 0.0
      %9057 = vmatpush2.msra.mxu0 0.0
      %9058 = vmatprep.subr.mxu0 0.0
      %9059 = vmatpush2.msra.mxu0 0.0
      %9060 = vmatprep.subr.mxu0 0.0
      %9061 = vmatpush2.msra.mxu0 0.0
      %9062 = vmatprep.subr.mxu0 0.0
      %9063 = vmatpush2.msra.mxu0 0.0
      %9064 = vmatprep.subr.mxu0 0.0
      %9065 = vmatpush2.msra.mxu0 0.0
      %9066 = vmatprep.subr.mxu0 0.0
      %9067 = vmatpush2.msra.mxu0 0.0
      %9068 = vmatprep.subr.mxu0 0.0
      %9069 = vmatpush2.msra.mxu0 0.0
      %9070 = vmatprep.subr.mxu0 0.0
      %9071 = vmatpush2.msra.mxu0 0.0
      %9072 = vmatprep.subr.mxu0 0.0
      %9073 = vmatpush2.msra.mxu0 0.0
      %9074 = vmatprep.mubr.f32.mxu0 0.0
      %9075 = vmatmul.mubr.f32.gmra.mxu0 %v7354
      %v9076 = vpop.f32.mrf.mxu0
      %v9077 = vadd.f32 0.0, %v9076
      %v9078 = vpop.f32.mrf.mxu0
      %9079 = vmatprep.mubr.f32.mxu0 0.0
      %9080 = vmatmul.mubr.f32.gmra.mxu0 %v7357
      %v9081 = vpop.f32.mrf.mxu0
      %v9082 = vadd.f32 0.0, %v9081
      %v9083 = vpop.f32.mrf.mxu0
      %9084 = vmatprep.mubr.f32.mxu0 0.0
      %9085 = vmatmul.mubr.f32.gmra.mxu0 %v7360
      %v9086 = vpop.f32.mrf.mxu0
      %v9087 = vadd.f32 0.0, %v9086
      %v9088 = vpop.f32.mrf.mxu0
      %9089 = vmatprep.mubr.f32.mxu0 0.0
      %9090 = vmatmul.mubr.f32.gmra.mxu0 %v7363
      %v9091 = vpop.f32.mrf.mxu0
      %v9092 = vadd.f32 0.0, %v9091
      %v9093 = vpop.f32.mrf.mxu0
      %9094 = vmatprep.mubr.f32.mxu0 0.0
      %9095 = vmatmul.mubr.f32.gmra.mxu0 %v7366
      %v9096 = vpop.f32.mrf.mxu0
      %v9097 = vadd.f32 0.0, %v9096
      %v9098 = vpop.f32.mrf.mxu0
      %9099 = vmatprep.mubr.f32.mxu0 0.0
      %9100 = vmatmul.mubr.f32.gmra.mxu0 %v7369
      %v9101 = vpop.f32.mrf.mxu0
      %v9102 = vadd.f32 0.0, %v9101
      %v9103 = vpop.f32.mrf.mxu0
      %9104 = vmatprep.mubr.f32.mxu0 0.0
      %9105 = vmatmul.mubr.f32.gmra.mxu0 %v7372
      %v9106 = vpop.f32.mrf.mxu0
      %v9107 = vadd.f32 0.0, %v9106
      %v9108 = vpop.f32.mrf.mxu0
      %9109 = vmatprep.mubr.f32.mxu0 0.0
      %9110 = vmatmul.mubr.f32.gmra.mxu0 %v7375
      %v9111 = vpop.f32.mrf.mxu0
      %v9112 = vadd.f32 0.0, %v9111
      %v9113 = vpop.f32.mrf.mxu0
      %9114 = vmatprep.mubr.f32.mxu0 0.0
      %9115 = vmatmul.mubr.f32.gmra.mxu0 %v7378
      %v9116 = vpop.f32.mrf.mxu0
      %v9117 = vadd.f32 0.0, %v9116
      %v9118 = vpop.f32.mrf.mxu0
      %9119 = vmatprep.mubr.f32.mxu0 0.0
      %9120 = vmatmul.mubr.f32.gmra.mxu0 %v7381
      %v9121 = vpop.f32.mrf.mxu0
      %v9122 = vadd.f32 0.0, %v9121
      %v9123 = vpop.f32.mrf.mxu0
      %9124 = vmatprep.mubr.f32.mxu0 0.0
      %9125 = vmatmul.mubr.f32.gmra.mxu0 %v7384
      %v9126 = vpop.f32.mrf.mxu0
      %v9127 = vadd.f32 0.0, %v9126
      %v9128 = vpop.f32.mrf.mxu0
      %9129 = vmatprep.mubr.f32.mxu0 0.0
      %9130 = vmatmul.mubr.f32.gmra.mxu0 %v7387
      %v9131 = vpop.f32.mrf.mxu0
      %v9132 = vadd.f32 0.0, %v9131
      %v9133 = vpop.f32.mrf.mxu0
      %9134 = vmatprep.mubr.f32.mxu0 0.0
      %9135 = vmatmul.mubr.f32.gmra.mxu0 %v7390
      %v9136 = vpop.f32.mrf.mxu0
      %v9137 = vadd.f32 0.0, %v9136
      %v9138 = vpop.f32.mrf.mxu0
      %9139 = vmatprep.mubr.f32.mxu0 0.0
      %9140 = vmatmul.mubr.f32.gmra.mxu0 %v7393
      %v9141 = vpop.f32.mrf.mxu0
      %v9142 = vadd.f32 0.0, %v9141
      %v9143 = vpop.f32.mrf.mxu0
      %9144 = vmatprep.mubr.f32.mxu0 0.0
      %9145 = vmatmul.mubr.f32.gmra.mxu0 %v7396
      %v9146 = vpop.f32.mrf.mxu0
      %v9147 = vadd.f32 0.0, %v9146
      %v9148 = vpop.f32.mrf.mxu0
      %9149 = vmatprep.mubr.f32.mxu0 0.0
      %9150 = vmatmul.mubr.f32.gmra.mxu0 %v7399
      %v9151 = vpop.f32.mrf.mxu0
      %v9152 = vadd.f32 0.0, %v9151
      %v9153 = vpop.f32.mrf.mxu0
      %9154 = vmatprep.mubr.f32.mxu0 0.0
      %9155 = vmatmul.mubr.f32.gmra.mxu0 %v7402
      %v9156 = vpop.f32.mrf.mxu0
      %v9157 = vadd.f32 0.0, %v9156
      %v9158 = vpop.f32.mrf.mxu0
      %9159 = vmatprep.mubr.f32.mxu0 0.0
      %9160 = vmatmul.mubr.f32.gmra.mxu0 %v7405
      %v9161 = vpop.f32.mrf.mxu0
      %v9162 = vadd.f32 0.0, %v9161
      %v9163 = vpop.f32.mrf.mxu0
      %9164 = vmatprep.mubr.f32.mxu0 0.0
      %9165 = vmatmul.mubr.f32.gmra.mxu0 %v7408
      %v9166 = vpop.f32.mrf.mxu0
      %v9167 = vadd.f32 0.0, %v9166
      %v9168 = vpop.f32.mrf.mxu0
      %9169 = vmatprep.mubr.f32.mxu0 0.0
      %9170 = vmatmul.mubr.f32.gmra.mxu0 %v7411
      %v9171 = vpop.f32.mrf.mxu0
      %v9172 = vadd.f32 0.0, %v9171
      %v9173 = vpop.f32.mrf.mxu0
      %9174 = vmatprep.mubr.f32.mxu0 0.0
      %9175 = vmatmul.mubr.f32.gmra.mxu0 %v7647
      %v9176 = vpop.f32.mrf.mxu0
      %v9177 = vadd.f32 0.0, %v9176
      %v9178 = vpop.f32.mrf.mxu0
      %9179 = vmatprep.mubr.f32.mxu0 0.0
      %9180 = vmatmul.mubr.f32.gmra.mxu0 %v7650
      %v9181 = vpop.f32.mrf.mxu0
      %v9182 = vadd.f32 0.0, %v9181
      %v9183 = vpop.f32.mrf.mxu0
      %9184 = vmatprep.mubr.f32.mxu0 0.0
      %9185 = vmatmul.mubr.f32.gmra.mxu0 %v7918
      %v9186 = vpop.f32.mrf.mxu0
      %v9187 = vadd.f32 0.0, %v9186
      %v9188 = vpop.f32.mrf.mxu0
      %9189 = vmatprep.mubr.f32.mxu0 0.0
      %9190 = vmatmul.mubr.f32.gmra.mxu0 %v7921
      %v9191 = vpop.f32.mrf.mxu0
      %v9192 = vadd.f32 0.0, %v9191
      %v9193 = vpop.f32.mrf.mxu0
      %9194 = vmatprep.mubr.f32.mxu0 0.0
      %9195 = vmatmul.mubr.f32.gmra.mxu0 %v8189
      %v9196 = vpop.f32.mrf.mxu0
      %v9197 = vadd.f32 0.0, %v9196
      %v9198 = vpop.f32.mrf.mxu0
      %9199 = vmatprep.mubr.f32.mxu0 0.0
      %9200 = vmatmul.mubr.f32.gmra.mxu0 %v8192
      %v9201 = vpop.f32.mrf.mxu0
      %v9202 = vadd.f32 0.0, %v9201
      %v9203 = vpop.f32.mrf.mxu0
      %9204 = vmatprep.mubr.f32.mxu0 0.0
      %9205 = vmatmul.mubr.f32.gmra.mxu0 %v8460
      %v9206 = vpop.f32.mrf.mxu0
      %v9207 = vadd.f32 0.0, %v9206
      %v9208 = vpop.f32.mrf.mxu0
      %9209 = vmatprep.mubr.f32.mxu0 0.0
      %9210 = vmatmul.mubr.f32.gmra.mxu0 %v8463
      %v9211 = vpop.f32.mrf.mxu0
      %v9212 = vadd.f32 0.0, %v9211
      %v9213 = vpop.f32.mrf.mxu0
      %9214 = vmatprep.mubr.f32.mxu0 0.0
      %9215 = vmatmul.mubr.f32.gmra.mxu0 %v8731
      %v9216 = vpop.f32.mrf.mxu0
      %v9217 = vadd.f32 0.0, %v9216
      %v9218 = vpop.f32.mrf.mxu0
      %9219 = vmatprep.mubr.f32.mxu0 0.0
      %9220 = vmatmul.mubr.f32.gmra.mxu0 %v8734
      %v9221 = vpop.f32.mrf.mxu0
      %v9222 = vadd.f32 0.0, %v9221
      %v9223 = vpop.f32.mrf.mxu0
      %9224 = vmatprep.mubr.f32.mxu0 0.0
      %9225 = vmatmul.mubr.f32.gmra.mxu0 %v9002
      %v9226 = vpop.f32.mrf.mxu0
      %v9227 = vadd.f32 0.0, %v9226
      %v9228 = vpop.f32.mrf.mxu0
      %9229 = vmatprep.mubr.f32.mxu0 0.0
      %9230 = vmatmul.mubr.f32.gmra.mxu0 %v9005
      %v9231 = vpop.f32.mrf.mxu0
      %v9232 = vadd.f32 0.0, %v9231
      %v9233 = vpop.f32.mrf.mxu0
      %9234 = vdwg.mxu0
      %v9235 = vadd.f32 %v8964, %v9077
      %v9236 = vadd.f32 %v8965, %v9082
      %v9237 = vadd.f32 %v8966, %v9087
      %v9238 = vadd.f32 %v8967, %v9092
      %v9239 = vadd.f32 %v8968, %v9097
      %v9240 = vadd.f32 %v8969, %v9102
      %v9241 = vadd.f32 %v8970, %v9107
      %v9242 = vadd.f32 %v8971, %v9112
      %v9243 = vadd.f32 %v8972, %v9117
      %v9244 = vadd.f32 %v8973, %v9122
      %v9245 = vadd.f32 %v8974, %v9127
      %v9246 = vadd.f32 %v8975, %v9132
      %v9247 = vadd.f32 %v8976, %v9137
      %v9248 = vadd.f32 %v8977, %v9142
      %v9249 = vadd.f32 %v8978, %v9147
      %v9250 = vadd.f32 %v8979, %v9152
      %v9251 = vadd.f32 %v8980, %v9157
      %v9252 = vadd.f32 %v8981, %v9162
      %v9253 = vadd.f32 %v8982, %v9167
      %v9254 = vadd.f32 %v8983, %v9172
      %v9255 = vadd.f32 %v8984, %v9177
      %v9256 = vadd.f32 %v8985, %v9182
      %v9257 = vadd.f32 %v8986, %v9187
      %v9258 = vadd.f32 %v8987, %v9192
      %v9259 = vadd.f32 %v8988, %v9197
      %v9260 = vadd.f32 %v8989, %v9202
      %v9261 = vadd.f32 %v8990, %v9207
      %v9262 = vadd.f32 %v8991, %v9212
      %v9263 = vadd.f32 %v8992, %v9217
      %v9264 = vadd.f32 %v8993, %v9222
      %v9265 = vadd.f32 %v8994, %v9227
      %v9266 = vadd.f32 %v8995, %v9232
      %v9267 = vxor.u32 %v9235, 2147483648
      %v9268 = vxor.u32 %v9236, 2147483648
      %v9269 = vxor.u32 %v9237, 2147483648
      %v9270 = vxor.u32 %v9238, 2147483648
      %v9271 = vxor.u32 %v9239, 2147483648
      %v9272 = vxor.u32 %v9240, 2147483648
      %v9273 = vxor.u32 %v9241, 2147483648
      %v9274 = vxor.u32 %v9242, 2147483648
      %v9275 = vxor.u32 %v9243, 2147483648
      %v9276 = vxor.u32 %v9244, 2147483648
      %v9277 = vxor.u32 %v9245, 2147483648
      %v9278 = vxor.u32 %v9246, 2147483648
      %v9279 = vxor.u32 %v9247, 2147483648
      %v9280 = vxor.u32 %v9248, 2147483648
      %v9281 = vxor.u32 %v9249, 2147483648
      %v9282 = vxor.u32 %v9250, 2147483648
      %v9283 = vxor.u32 %v9251, 2147483648
      %v9284 = vxor.u32 %v9252, 2147483648
      %v9285 = vxor.u32 %v9253, 2147483648
      %v9286 = vxor.u32 %v9254, 2147483648
      %v9287 = vxor.u32 %v9255, 2147483648
      %v9288 = vxor.u32 %v9256, 2147483648
      %v9289 = vxor.u32 %v9257, 2147483648
      %v9290 = vxor.u32 %v9258, 2147483648
      %v9291 = vxor.u32 %v9259, 2147483648
      %v9292 = vxor.u32 %v9260, 2147483648
      %v9293 = vxor.u32 %v9261, 2147483648
      %v9294 = vxor.u32 %v9262, 2147483648
      %v9295 = vxor.u32 %v9263, 2147483648
      %v9296 = vxor.u32 %v9264, 2147483648
      %v9297 = vxor.u32 %v9265, 2147483648
      %v9298 = vxor.u32 %v9266, 2147483648
      %v9299 = vmul.f32 %v9267, 1.442695
      %v9300 = vpow.pop %v9299
      %v9301 = vmul.f32 %v9268, 1.442695
      %v9302 = vpow.pop %v9301
      %v9303 = vmul.f32 %v9269, 1.442695
      %v9304 = vpow.pop %v9303
      %v9305 = vmul.f32 %v9270, 1.442695
      %v9306 = vpow.pop %v9305
      %v9307 = vmul.f32 %v9271, 1.442695
      %v9308 = vpow.pop %v9307
      %v9309 = vmul.f32 %v9272, 1.442695
      %v9310 = vpow.pop %v9309
      %v9311 = vmul.f32 %v9273, 1.442695
      %v9312 = vpow.pop %v9311
      %v9313 = vmul.f32 %v9274, 1.442695
      %v9314 = vpow.pop %v9313
      %v9315 = vmul.f32 %v9275, 1.442695
      %v9316 = vpow.pop %v9315
      %v9317 = vmul.f32 %v9276, 1.442695
      %v9318 = vpow.pop %v9317
      %v9319 = vmul.f32 %v9277, 1.442695
      %v9320 = vpow.pop %v9319
      %v9321 = vmul.f32 %v9278, 1.442695
      %v9322 = vpow.pop %v9321
      %v9323 = vmul.f32 %v9279, 1.442695
      %v9324 = vpow.pop %v9323
      %v9325 = vmul.f32 %v9280, 1.442695
      %v9326 = vpow.pop %v9325
      %v9327 = vmul.f32 %v9281, 1.442695
      %v9328 = vpow.pop %v9327
      %v9329 = vmul.f32 %v9282, 1.442695
      %v9330 = vpow.pop %v9329
      %v9331 = vmul.f32 %v9283, 1.442695
      %v9332 = vpow.pop %v9331
      %v9333 = vmul.f32 %v9284, 1.442695
      %v9334 = vpow.pop %v9333
      %v9335 = vmul.f32 %v9285, 1.442695
      %v9336 = vpow.pop %v9335
      %v9337 = vmul.f32 %v9286, 1.442695
      %v9338 = vpow.pop %v9337
      %v9339 = vmul.f32 %v9287, 1.442695
      %v9340 = vpow.pop %v9339
      %v9341 = vmul.f32 %v9288, 1.442695
      %v9342 = vpow.pop %v9341
      %v9343 = vmul.f32 %v9289, 1.442695
      %v9344 = vpow.pop %v9343
      %v9345 = vmul.f32 %v9290, 1.442695
      %v9346 = vpow.pop %v9345
      %v9347 = vmul.f32 %v9291, 1.442695
      %v9348 = vpow.pop %v9347
      %v9349 = vmul.f32 %v9292, 1.442695
      %v9350 = vpow.pop %v9349
      %v9351 = vmul.f32 %v9293, 1.442695
      %v9352 = vpow.pop %v9351
      %v9353 = vmul.f32 %v9294, 1.442695
      %v9354 = vpow.pop %v9353
      %v9355 = vmul.f32 %v9295, 1.442695
      %v9356 = vpow.pop %v9355
      %v9357 = vmul.f32 %v9296, 1.442695
      %v9358 = vpow.pop %v9357
      %v9359 = vmul.f32 %v9297, 1.442695
      %v9360 = vpow.pop %v9359
      %v9361 = vmul.f32 %v9298, 1.442695
      %v9362 = vpow.pop %v9361
      %v9363 = vadd.f32 %v9300, 1.0
      %v9364 = vadd.f32 %v9302, 1.0
      %v9365 = vadd.f32 %v9304, 1.0
      %v9366 = vadd.f32 %v9306, 1.0
      %v9367 = vadd.f32 %v9308, 1.0
      %v9368 = vadd.f32 %v9310, 1.0
      %v9369 = vadd.f32 %v9312, 1.0
      %v9370 = vadd.f32 %v9314, 1.0
      %v9371 = vadd.f32 %v9316, 1.0
      %v9372 = vadd.f32 %v9318, 1.0
      %v9373 = vadd.f32 %v9320, 1.0
      %v9374 = vadd.f32 %v9322, 1.0
      %v9375 = vadd.f32 %v9324, 1.0
      %v9376 = vadd.f32 %v9326, 1.0
      %v9377 = vadd.f32 %v9328, 1.0
      %v9378 = vadd.f32 %v9330, 1.0
      %v9379 = vadd.f32 %v9332, 1.0
      %v9380 = vadd.f32 %v9334, 1.0
      %v9381 = vadd.f32 %v9336, 1.0
      %v9382 = vadd.f32 %v9338, 1.0
      %v9383 = vadd.f32 %v9340, 1.0
      %v9384 = vadd.f32 %v9342, 1.0
      %v9385 = vadd.f32 %v9344, 1.0
      %v9386 = vadd.f32 %v9346, 1.0
      %v9387 = vadd.f32 %v9348, 1.0
      %v9388 = vadd.f32 %v9350, 1.0
      %v9389 = vadd.f32 %v9352, 1.0
      %v9390 = vadd.f32 %v9354, 1.0
      %v9391 = vadd.f32 %v9356, 1.0
      %v9392 = vadd.f32 %v9358, 1.0
      %v9393 = vadd.f32 %v9360, 1.0
      %v9394 = vadd.f32 %v9362, 1.0
      %v9395 = vrcp.pop %v9363
      %v9396 = vmul.f32 1.0, %v9395
      %v9397 = vrcp.pop %v9364
      %v9398 = vmul.f32 1.0, %v9397
      %v9399 = vrcp.pop %v9365
      %v9400 = vmul.f32 1.0, %v9399
      %v9401 = vrcp.pop %v9366
      %v9402 = vmul.f32 1.0, %v9401
      %v9403 = vrcp.pop %v9367
      %v9404 = vmul.f32 1.0, %v9403
      %v9405 = vrcp.pop %v9368
      %v9406 = vmul.f32 1.0, %v9405
      %v9407 = vrcp.pop %v9369
      %v9408 = vmul.f32 1.0, %v9407
      %v9409 = vrcp.pop %v9370
      %v9410 = vmul.f32 1.0, %v9409
      %v9411 = vrcp.pop %v9371
      %v9412 = vmul.f32 1.0, %v9411
      %v9413 = vrcp.pop %v9372
      %v9414 = vmul.f32 1.0, %v9413
      %v9415 = vrcp.pop %v9373
      %v9416 = vmul.f32 1.0, %v9415
      %v9417 = vrcp.pop %v9374
      %v9418 = vmul.f32 1.0, %v9417
      %v9419 = vrcp.pop %v9375
      %v9420 = vmul.f32 1.0, %v9419
      %v9421 = vrcp.pop %v9376
      %v9422 = vmul.f32 1.0, %v9421
      %v9423 = vrcp.pop %v9377
      %v9424 = vmul.f32 1.0, %v9423
      %v9425 = vrcp.pop %v9378
      %v9426 = vmul.f32 1.0, %v9425
      %v9427 = vrcp.pop %v9379
      %v9428 = vmul.f32 1.0, %v9427
      %v9429 = vrcp.pop %v9380
      %v9430 = vmul.f32 1.0, %v9429
      %v9431 = vrcp.pop %v9381
      %v9432 = vmul.f32 1.0, %v9431
      %v9433 = vrcp.pop %v9382
      %v9434 = vmul.f32 1.0, %v9433
      %v9435 = vrcp.pop %v9383
      %v9436 = vmul.f32 1.0, %v9435
      %v9437 = vrcp.pop %v9384
      %v9438 = vmul.f32 1.0, %v9437
      %v9439 = vrcp.pop %v9385
      %v9440 = vmul.f32 1.0, %v9439
      %v9441 = vrcp.pop %v9386
      %v9442 = vmul.f32 1.0, %v9441
      %v9443 = vrcp.pop %v9387
      %v9444 = vmul.f32 1.0, %v9443
      %v9445 = vrcp.pop %v9388
      %v9446 = vmul.f32 1.0, %v9445
      %v9447 = vrcp.pop %v9389
      %v9448 = vmul.f32 1.0, %v9447
      %v9449 = vrcp.pop %v9390
      %v9450 = vmul.f32 1.0, %v9449
      %v9451 = vrcp.pop %v9391
      %v9452 = vmul.f32 1.0, %v9451
      %v9453 = vrcp.pop %v9392
      %v9454 = vmul.f32 1.0, %v9453
      %v9455 = vrcp.pop %v9393
      %v9456 = vmul.f32 1.0, %v9455
      %v9457 = vrcp.pop %v9394
      %v9458 = vmul.f32 1.0, %v9457
      %v9459 = vmul.f32 %v1062, %v9396
      %v9460 = vmul.f32 %v1063, %v9398
      %v9461 = vmul.f32 %v1064, %v9400
      %v9462 = vmul.f32 %v1065, %v9402
      %v9463 = vmul.f32 %v1066, %v9404
      %v9464 = vmul.f32 %v1067, %v9406
      %v9465 = vmul.f32 %v1068, %v9408
      %v9466 = vmul.f32 %v1069, %v9410
      %v9467 = vmul.f32 %v1070, %v9412
      %v9468 = vmul.f32 %v1071, %v9414
      %v9469 = vmul.f32 %v1072, %v9416
      %v9470 = vmul.f32 %v1073, %v9418
      %v9471 = vmul.f32 %v1074, %v9420
      %v9472 = vmul.f32 %v1075, %v9422
      %v9473 = vmul.f32 %v1076, %v9424
      %v9474 = vmul.f32 %v1077, %v9426
      %v9475 = vmul.f32 %v1078, %v9428
      %v9476 = vmul.f32 %v1079, %v9430
      %v9477 = vmul.f32 %v1080, %v9432
      %v9478 = vmul.f32 %v1081, %v9434
      %v9479 = vmul.f32 %v1082, %v9436
      %v9480 = vmul.f32 %v1083, %v9438
      %v9481 = vmul.f32 %v1084, %v9440
      %v9482 = vmul.f32 %v1085, %v9442
      %v9483 = vmul.f32 %v1086, %v9444
      %v9484 = vmul.f32 %v1087, %v9446
      %v9485 = vmul.f32 %v1088, %v9448
      %v9486 = vmul.f32 %v1089, %v9450
      %v9487 = vmul.f32 %v1090, %v9452
      %v9488 = vmul.f32 %v1091, %v9454
      %v9489 = vmul.f32 %v1092, %v9456
      %v9490 = vmul.f32 %v1093, %v9458
      %9491 = vst.msk [vmem:[%s332] sm:$0xff] %vm374, %v9459
      %9492 = vst.msk [vmem:[%s332 + $0x8] sm:$0xff] %vm374, %v9460
      %9493 = vst.msk [vmem:[%s332 + $0x10] sm:$0xff] %vm374, %v9461
      %9494 = vst.msk [vmem:[%s332 + $0x18] sm:$0xff] %vm374, %v9462
      %9495 = vst.msk [vmem:[%s332 + $0x20] sm:$0xff] %vm374, %v9463
      %9496 = vst.msk [vmem:[%s332 + $0x28] sm:$0xff] %vm374, %v9464
      %9497 = vst.msk [vmem:[%s332 + $0x30] sm:$0xff] %vm374, %v9465
      %9498 = vst.msk [vmem:[%s332 + $0x38] sm:$0xff] %vm374, %v9466
      %9499 = vst.msk [vmem:[%s332 + $0x40] sm:$0xff] %vm374, %v9467
      %9500 = vst.msk [vmem:[%s332 + $0x48] sm:$0xff] %vm374, %v9468
      %9501 = vst.msk [vmem:[%s332 + $0x50] sm:$0xff] %vm374, %v9469
      %9502 = vst.msk [vmem:[%s332 + $0x58] sm:$0xff] %vm374, %v9470
      %9503 = vst.msk [vmem:[%s332 + $0x60] sm:$0xff] %vm374, %v9471
      %9504 = vst.msk [vmem:[%s332 + $0x68] sm:$0xff] %vm374, %v9472
      %9505 = vst.msk [vmem:[%s332 + $0x70] sm:$0xff] %vm374, %v9473
      %9506 = vst.msk [vmem:[%s332 + $0x78] sm:$0xff] %vm374, %v9474
      %9507 = vst.msk [vmem:[%s332 + $0x80] sm:$0xff] %vm374, %v9475
      %9508 = vst.msk [vmem:[%s332 + $0x88] sm:$0xff] %vm374, %v9476
      %9509 = vst.msk [vmem:[%s332 + $0x90] sm:$0xff] %vm374, %v9477
      %9510 = vst.msk [vmem:[%s332 + $0x98] sm:$0xff] %vm374, %v9478
      %9511 = vst.msk [vmem:[%s332 + $0xa0] sm:$0xff] %vm374, %v9479
      %9512 = vst.msk [vmem:[%s332 + $0xa8] sm:$0xff] %vm374, %v9480
      %9513 = vst.msk [vmem:[%s332 + $0xb0] sm:$0xff] %vm374, %v9481
      %9514 = vst.msk [vmem:[%s332 + $0xb8] sm:$0xff] %vm374, %v9482
      %9515 = vst.msk [vmem:[%s332 + $0xc0] sm:$0xff] %vm374, %v9483
      %9516 = vst.msk [vmem:[%s332 + $0xc8] sm:$0xff] %vm374, %v9484
      %9517 = vst.msk [vmem:[%s332 + $0xd0] sm:$0xff] %vm374, %v9485
      %9518 = vst.msk [vmem:[%s332 + $0xd8] sm:$0xff] %vm374, %v9486
      %9519 = vst.msk [vmem:[%s332 + $0xe0] sm:$0xff] %vm374, %v9487
      %9520 = vst.msk [vmem:[%s332 + $0xe8] sm:$0xff] %vm374, %v9488
      %9521 = vst.msk [vmem:[%s332 + $0xf0] sm:$0xff] %vm374, %v9489
      %9522 = vst.msk [vmem:[%s332 + $0xf8] sm:$0xff] %vm374, %v9490
      %p9523 = scmp.lt.s32.totalorder %s20, 1
      %s9524 = scalar_select %p9523, %s20, 1
      %s9525 = smul.addr %s9524, 32
      %s9526 = smul.addr %s9525, 8
      %s9527 = scalar_lea.vmem %s9, %s9526
      // Predicated region
      $region57: #{tpu_custom_call.1} parent=55 // pred_check
        %p9528 = pneg %p232
      $region58: #{tpu_custom_call.1} parent=55 // pred_check_branch
        %9530 = sbr.rel (%p9528) target = $region60
      $region59: #{tpu_custom_call.1} parent=55 // pred_region
        _
      $region60: #{tpu_custom_call.1} parent=55 // pred_fallthru
        _
    $region56: #{tpu_custom_call.1} parent=5 // pred_fallthru
      _
    %p9531 = scmp.le.s32.totalorder 2, %s15
    // Predicated region
    $region61: #{tpu_custom_call.1} parent=5 // pred_check
      %p9532 = pneg %p9531
    $region62: #{tpu_custom_call.1} parent=5 // pred_check_branch
      %9534 = sbr.rel (%p9532) target = $region64
    $region63: #{tpu_custom_call.1} parent=5 // pred_region
      %s9535 = ssub.s32 %s15, 2
      // Predicated region
      $region65: #{tpu_custom_call.1} parent=63 // pred_check
        %p9536 = pneg %p238
      $region66: #{tpu_custom_call.1} parent=63 // pred_check_branch
        %9538 = sbr.rel (%p9536) target = $region68
      $region67: #{tpu_custom_call.1} parent=63 // pred_region
        %p9539 = scmp.lt.s32.totalorder %s21, 1
        %s9540 = scalar_select %p9539, %s21, 1
        %s9541 = smul.addr %s9540, 32
        %s9542 = smul.addr %s9541, 8
        %s9543 = scalar_lea.vmem %s9, %s9542
      $region68: #{tpu_custom_call.1} parent=63 // pred_fallthru
        _
    $region64: #{tpu_custom_call.1} parent=5 // pred_fallthru
      _
  $region6: #{tpu_custom_call.1} parent=0 // loop_footer
    %s19 = sadd.s32 1, %s15
  $region7: #{tpu_custom_call.1} parent=0 // loop_footer_branch
    %14 = sbr.rel target = $region3
  $region8: #{tpu_custom_call.1} parent=0 // loop_exit
    _

</llo_original>
